<compile_context>
chip_gen: v5e
topology: v5e:2x2
jax: 0.10.0
libtpu: 0.0.40
codegen_flags: <defaults>
</compile_context>

<pallas_src>
import math

import jax
import jax.numpy as jnp
import numpy as np
from jax import lax
from jax.experimental import pallas as pl
from jax.experimental.pallas import tpu as pltpu

# ----------------------------------------------------------------------------
# Static geometry (derived from the module defaults with a 32x32 input)
#   conv1 k4 s2 p2 : 32 -> 17
#   pool1 k3 s2    : 17 -> 8
#   conv2 k5 s1 p2 : 8  -> 8
#   pool2 k3 s2    : 8  -> 3
#   conv3/4/5 k3 p1: 3  -> 3
#   pool3 k3 s2    : 3  -> 1
# ----------------------------------------------------------------------------
N = 2
C_IN = 3
H_IN = W_IN = 32
CH = 12
NUM_CLASSES = 10

H1 = 17            # conv1 output spatial
H1P = 8            # pool1 output spatial (== conv2 output spatial)
H2P = 3            # pool2 output spatial (== conv3/4/5 output spatial)
SIZE = CH * 1 * 1                                            # 12
WIDTH = SIZE * int(1 + math.log(SIZE) / math.log(2.0))       # 48

LANE = 128                         # every channel-ish dim zero-padded to 128
M1 = N * H1 * H1                   # 578   conv1 GEMM rows
M1_PAD = ((M1 + 7) // 8) * 8       # 584   8-aligned
K1 = 4 * 4 * C_IN                  # 48    conv1 im2col depth (padded to 128)

F32 = jnp.float32


# ----------------------------------------------------------------------------
# The single fused Pallas kernel
# ----------------------------------------------------------------------------
def _fused_alexnet_kernel(
    p1_ref,                       # (M1_PAD, 128)  conv1 im2col patches (zero padded)
    w1_ref,                       # (128, 128)     conv1 weight (48x12, zero padded)
    w2_ref,                       # (25, 128, 128) conv2 per-tap weights
    w3_ref, w4_ref, w5_ref,       # (9, 128, 128)  conv3/4/5 per-tap weights
    l1_ref, l2_ref, l3_ref,       # (128, 128)     linear weights (in,out), zero padded
    b_ref,                        # (8, 128)       biases: c1..c5, l1..l3
    out_ref,                      # (N, 128)       padded logits
    # --- VMEM scratch ---
    rows1_ref,                    # (N, 8, 17, 128)  pool1 H-reduced rows
    rows2_ref,                    # (N, 3, 8, 128)   pool2 H-reduced rows
    pad2_ref,                     # (N, 12, 12, 128) conv2 spatially padded input
    pad3_ref, pad4_ref, pad5_ref, # (N, 5, 5, 128)   conv3/4/5 padded inputs
):
    relu = lambda v: jnp.maximum(v, 0.0)

    def conv_from_padded(src_ref, w_taps_ref, b_row, k, h, w):
        """Stride-1 'same' conv as per-tap shifted-slice GEMMs, f32 accumulate."""
        m = N * h * w
        acc = None
        for dh in range(k):
            for dw in range(k):
                xs = src_ref[:, dh:dh + h, dw:dw + w, :].reshape(m, LANE)
                part = jnp.dot(xs, w_taps_ref[dh * k + dw],
                               preferred_element_type=jnp.float32)
                acc = part if acc is None else acc + part
        return relu(acc + b_row)                              # (m, 128)

    def maxpool3x3s2_into_pad(x, ho, wo, rows_ref, dst_ref, pad):
        """3x3 / stride-2 max pool of x:(N,h,w,128); result written into the
        interior of dst_ref (which provides the zero padding for the next conv)."""
        dst_ref[...] = jnp.zeros_like(dst_ref)
        for i in range(ho):                                   # reduce along H
            r = jnp.maximum(jnp.maximum(x[:, 2 * i], x[:, 2 * i + 1]),
                            x[:, 2 * i + 2])                  # (N, w, 128)
            rows_ref[:, i:i + 1, :, :] = r[:, None, :, :]
        for j in range(wo):                                   # reduce along W (stride 2)
            c = jnp.maximum(jnp.maximum(rows_ref[:, :, 2 * j, :],
                                        rows_ref[:, :, 2 * j + 1, :]),
                            rows_ref[:, :, 2 * j + 2, :])     # (N, ho, 128)
            dst_ref[:, pad:pad + ho, pad + j:pad + j + 1, :] = c[:, :, None, :]

    # ---- conv1 (im2col GEMM) + ReLU ------------------------------------------
    a1 = relu(jnp.dot(p1_ref[...], w1_ref[...],
                      preferred_element_type=jnp.float32) + b_ref[0:1, :])
    x1 = a1[:M1].reshape(N, H1, H1, LANE)

    # ---- pool1 -> zero-padded conv2 input ------------------------------------
    maxpool3x3s2_into_pad(x1, H1P, H1P, rows1_ref, pad2_ref, pad=2)

    # ---- conv2 (k=5) + ReLU, pool2 -> padded conv3 input ---------------------
    x2 = conv_from_padded(pad2_ref, w2_ref, b_ref[1:2, :], 5, H1P, H1P)   # (128,128)
    maxpool3x3s2_into_pad(x2.reshape(N, H1P, H1P, LANE), H2P, H2P,
                          rows2_ref, pad3_ref, pad=1)

    # ---- conv3/4/5 (k=3) + ReLU ----------------------------------------------
    x3 = conv_from_padded(pad3_ref, w3_ref, b_ref[2:3, :], 3, H2P, H2P)   # (18,128)
    pad4_ref[...] = jnp.zeros_like(pad4_ref)
    pad4_ref[:, 1:1 + H2P, 1:1 + H2P, :] = x3.reshape(N, H2P, H2P, LANE)

    x4 = conv_from_padded(pad4_ref, w4_ref, b_ref[3:4, :], 3, H2P, H2P)
    pad5_ref[...] = jnp.zeros_like(pad5_ref)
    pad5_ref[:, 1:1 + H2P, 1:1 + H2P, :] = x4.reshape(N, H2P, H2P, LANE)

    x5 = conv_from_padded(pad5_ref, w5_ref, b_ref[4:5, :], 3, H2P, H2P)   # (18,128)

    # ---- pool3: 3x3/s2 on a 3x3 map == max over all 9 positions --------------
    feat = jnp.max(x5.reshape(N, H2P * H2P, LANE), axis=1)                # (N,128)
    # (H=W=1 here, so PyTorch's NCHW flatten order == channel order == lanes)

    # ---- classifier: three fused GEMMs, intermediates stay in vregs ----------
    f1 = relu(jnp.dot(feat, l1_ref[...], preferred_element_type=jnp.float32)
              + b_ref[5:6, :])
    f2 = relu(jnp.dot(f1, l2_ref[...], preferred_element_type=jnp.float32)
              + b_ref[6:7, :])
    out_ref[...] = (jnp.dot(f2, l3_ref[...], preferred_element_type=jnp.float32)
                    + b_ref[7:8, :])


def _fused_forward_call(patches, pp):
    def full(shape):
        return pl.BlockSpec(shape, lambda i, _s=shape: (0,) * len(_s))

    return pl.pallas_call(
        _fused_alexnet_kernel,
        out_shape=jax.ShapeDtypeStruct((N, LANE), F32),
        grid=(1,),
        in_specs=[
            full((M1_PAD, LANE)),        # conv1 patches
            full((LANE, LANE)),          # w1
            full((25, LANE, LANE)),      # w2 taps
            full((9, LANE, LANE)),       # w3 taps
            full((9, LANE, LANE)),       # w4 taps
            full((9, LANE, LANE)),       # w5 taps
            full((LANE, LANE)),          # l1
            full((LANE, LANE)),          # l2
            full((LANE, LANE)),          # l3
            full((8, LANE)),             # biases
        ],
        out_specs=full((N, LANE)),
        scratch_shapes=[
            pltpu.VMEM((N, H1P, H1, LANE), F32),            # rows1
            pltpu.VMEM((N, H2P, H1P, LANE), F32),           # rows2
            pltpu.VMEM((N, H1P + 4, H1P + 4, LANE), F32),   # pad2 (12x12)
            pltpu.VMEM((N, H2P + 2, H2P + 2, LANE), F32),   # pad3 (5x5)
            pltpu.VMEM((N, H2P + 2, H2P + 2, LANE), F32),   # pad4
            pltpu.VMEM((N, H2P + 2, H2P + 2, LANE), F32),   # pad5
        ],
        compiler_params=pltpu.CompilerParams(
            dimension_semantics=("arbitrary",),
            vmem_limit_bytes=32 * 1024 * 1024,
        ),
    )(patches, pp["w1"], pp["w2"], pp["w3"], pp["w4"], pp["w5"],
      pp["l1"], pp["l2"], pp["l3"], pp["b"])


# ----------------------------------------------------------------------------
# Host-side glue: conv1 im2col (stride-2 patch gather) + one-time weight padding
# ----------------------------------------------------------------------------
def _conv1_patches(x_nchw):
    """im2col for the stride-2 conv1 only: (N,3,32,32) -> (584, 128) f32.
    Columns ordered (kh, kw, cin); K padded 48->128, M padded 578->584."""
    x = jnp.transpose(x_nchw, (0, 2, 3, 1))                       # NHWC
    xp = jnp.pad(x, ((0, 0), (2, 2), (2, 2), (0, 0)))
    cols = []
    for dh in range(4):
        for dw in range(4):
            cols.append(xp[:, dh:dh + 2 * H1:2, dw:dw + 2 * H1:2, :])
    patches = jnp.stack(cols, axis=3).reshape(M1, K1)
    patches = jnp.pad(patches, ((0, M1_PAD - M1), (0, LANE - K1)))
    return patches.astype(F32)


def _pad2d(w, rows, cols):
    return jnp.pad(w, ((0, rows - w.shape[0]), (0, cols - w.shape[1])))


def _pad_taps(w_kkio):
    k = w_kkio.shape[0]
    w = w_kkio.reshape(k * k, w_kkio.shape[2], w_kkio.shape[3])
    return jnp.pad(w, ((0, 0), (0, LANE - w.shape[1]), (0, LANE - w.shape[2])))


def prepare_params(params):
    """One-time zero-padding of all weights / biases to lane-dense 128 tiles."""
    b = jnp.stack([
        jnp.pad(params[k], (0, LANE - params[k].shape[0]))
        for k in ("c1_b", "c2_b", "c3_b", "c4_b", "c5_b", "l1_b", "l2_b", "l3_b")
    ])                                                            # (8, 128)
    return {
        "w1": _pad2d(params["c1_w"].reshape(K1, CH), LANE, LANE),
        "w2": _pad_taps(params["c2_w"]),
        "w3": _pad_taps(params["c3_w"]),
        "w4": _pad_taps(params["c4_w"]),
        "w5": _pad_taps(params["c5_w"]),
        "l1": _pad2d(params["l1_w"], LANE, LANE),
        "l2": _pad2d(params["l2_w"], LANE, LANE),
        "l3": _pad2d(params["l3_w"], LANE, LANE),
        "b": b,
    }


@jax.jit
def alexnet_forward(x_nchw, prepared_params):
    patches = _conv1_patches(x_nchw)
    logits_padded = _fused_forward_call(patches, prepared_params)
    return logits_padded[:, :NUM_CLASSES]


# ----------------------------------------------------------------------------
# Pure-JAX/XLA reference (high precision) for validation
# ----------------------------------------------------------------------------
def alexnet_reference(x_nchw, params):
    hp = lax.Precision.HIGHEST
    x = jnp.transpose(x_nchw, (0, 2, 3, 1))

    def conv(x, w, b, stride, pad):
        y = lax.conv_general_dilated(
            x, w, window_strides=(stride, stride),
            padding=((pad, pad), (pad, pad)),
            dimension_numbers=("NHWC", "HWIO", "NHWC"), precision=hp)
        return jnp.maximum(y + b, 0.0)

    def pool(x):
        return lax.reduce_window(x, -jnp.inf, lax.max,
                                 (1, 3, 3, 1), (1, 2, 2, 1), "VALID")

    x = conv(x, params["c1_w"], params["c1_b"], 2, 2); x = pool(x)
    x = conv(x, params["c2_w"], params["c2_b"], 1, 2); x = pool(x)
    x = conv(x, params["c3_w"], params["c3_b"], 1, 1)
    x = conv(x, params["c4_w"], params["c4_b"], 1, 1)
    x = conv(x, params["c5_w"], params["c5_b"], 1, 1); x = pool(x)
    x = jnp.transpose(x, (0, 3, 1, 2)).reshape(x.shape[0], -1)    # PyTorch flatten
    x = jnp.maximum(jnp.dot(x, params["l1_w"], precision=hp) + params["l1_b"], 0.0)
    x = jnp.maximum(jnp.dot(x, params["l2_w"], precision=hp) + params["l2_b"], 0.0)
    return jnp.dot(x, params["l3_w"], precision=hp) + params["l3_b"]


# ----------------------------------------------------------------------------
# Params (conv weights stored as (kh,kw,cin,cout); PyTorch weights would need a
# transpose from (cout,cin,kh,kw) to load here)
# ----------------------------------------------------------------------------
def init_params(key):
    ks = jax.random.split(key, 16)
    s = 0.1

    def cw(k, kh, cin, cout):
        return jax.random.normal(k, (kh, kh, cin, cout), F32) * s

    def lw(k, fin, fout):
        return jax.random.normal(k, (fin, fout), F32) * s

    def bias(k, n):
        return jax.random.normal(k, (n,), F32) * s

    return {
        "c1_w": cw(ks[0], 4, C_IN, CH), "c1_b": bias(ks[8], CH),
        "c2_w": cw(ks[1], 5, CH, CH),   "c2_b": bias(ks[9], CH),
        "c3_w": cw(ks[2], 3, CH, CH),   "c3_b": bias(ks[10], CH),
        "c4_w": cw(ks[3], 3, CH, CH),   "c4_b": bias(ks[11], CH),
        "c5_w": cw(ks[4], 3, CH, CH),   "c5_b": bias(ks[12], CH),
        "l1_w": lw(ks[5], SIZE, WIDTH),         "l1_b": bias(ks[13], WIDTH),
        "l2_w": lw(ks[6], WIDTH, WIDTH),        "l2_b": bias(ks[14], WIDTH),
        "l3_w": lw(ks[7], WIDTH, NUM_CLASSES),  "l3_b": bias(ks[15], NUM_CLASSES),
    }


if __name__ == "__main__":
    key = jax.random.PRNGKey(0)
    kx, kp = jax.random.split(key)
    x = jax.random.normal(kx, (N, C_IN, H_IN, W_IN), F32)
    params = init_params(kp)
    pp = prepare_params(params)         # pad weights to lane-dense tiles ONCE

    out = alexnet_forward(x, pp)
    out = jax.block_until_ready(out)
    assert out.shape == (N, NUM_CLASSES), out.shape
    assert out.dtype == F32

    ref = jax.block_until_ready(alexnet_reference(x, params))
    np.testing.assert_allclose(np.asarray(out), np.asarray(ref),
                               rtol=2e-2, atol=5e-3)

    print("KERNEL_OK")
</pallas_src>

<mosaic_0001>
module attributes {stable_mosaic.version = 11 : i64} {
  func.func @_fused_alexnet_kernel(%arg0: i32, %arg1: memref<584x128xf32, #tpu.memory_space<vmem>>, %arg2: memref<128x128xf32, #tpu.memory_space<vmem>>, %arg3: memref<25x128x128xf32, #tpu.memory_space<vmem>>, %arg4: memref<9x128x128xf32, #tpu.memory_space<vmem>>, %arg5: memref<9x128x128xf32, #tpu.memory_space<vmem>>, %arg6: memref<9x128x128xf32, #tpu.memory_space<vmem>>, %arg7: memref<128x128xf32, #tpu.memory_space<vmem>>, %arg8: memref<128x128xf32, #tpu.memory_space<vmem>>, %arg9: memref<128x128xf32, #tpu.memory_space<vmem>>, %arg10: memref<8x128xf32, #tpu.memory_space<vmem>>, %arg11: memref<2x128xf32, #tpu.memory_space<vmem>>, %arg12: memref<2x8x17x128xf32, #tpu.memory_space<vmem>>, %arg13: memref<2x3x8x128xf32, #tpu.memory_space<vmem>>, %arg14: memref<2x12x12x128xf32, #tpu.memory_space<vmem>>, %arg15: memref<2x5x5x128xf32, #tpu.memory_space<vmem>>, %arg16: memref<2x5x5x128xf32, #tpu.memory_space<vmem>>, %arg17: memref<2x5x5x128xf32, #tpu.memory_space<vmem>>) attributes {dimension_semantics = [#tpu.dimension_semantics<arbitrary>], iteration_bounds = array<i64: 1>, scalar_prefetch = 0 : i64, scratch_operands = 6 : i64, tpu.core_type = #tpu.core_type<tc>, window_params = [{pipeline_mode = #tpu.pipeline_mode<synchronous>, transform_indices = @transform_0, window_bounds = array<i64: 584, 128>}, {pipeline_mode = #tpu.pipeline_mode<synchronous>, transform_indices = @transform_1, window_bounds = array<i64: 128, 128>}, {pipeline_mode = #tpu.pipeline_mode<synchronous>, transform_indices = @transform_2, window_bounds = array<i64: 25, 128, 128>}, {pipeline_mode = #tpu.pipeline_mode<synchronous>, transform_indices = @transform_3, window_bounds = array<i64: 9, 128, 128>}, {pipeline_mode = #tpu.pipeline_mode<synchronous>, transform_indices = @transform_4, window_bounds = array<i64: 9, 128, 128>}, {pipeline_mode = #tpu.pipeline_mode<synchronous>, transform_indices = @transform_5, window_bounds = array<i64: 9, 128, 128>}, {pipeline_mode = #tpu.pipeline_mode<synchronous>, transform_indices = @transform_6, window_bounds = array<i64: 128, 128>}, {pipeline_mode = #tpu.pipeline_mode<synchronous>, transform_indices = @transform_7, window_bounds = array<i64: 128, 128>}, {pipeline_mode = #tpu.pipeline_mode<synchronous>, transform_indices = @transform_8, window_bounds = array<i64: 128, 128>}, {pipeline_mode = #tpu.pipeline_mode<synchronous>, transform_indices = @transform_9, window_bounds = array<i64: 8, 128>}, {pipeline_mode = #tpu.pipeline_mode<synchronous>, transform_indices = @transform_10, window_bounds = array<i64: 2, 128>}]} {
    %c0 = arith.constant 0 : index
    %c0_0 = arith.constant 0 : index
    %0 = vector.load %arg1[%c0, %c0_0] : memref<584x128xf32, #tpu.memory_space<vmem>>, vector<584x128xf32>
    %c0_1 = arith.constant 0 : index
    %c0_2 = arith.constant 0 : index
    %1 = vector.load %arg2[%c0_1, %c0_2] : memref<128x128xf32, #tpu.memory_space<vmem>>, vector<128x128xf32>
    %cst = arith.constant dense<0.000000e+00> : vector<584x128xf32>
    %2 = tpu.matmul %0, %1, %cst {dimension_numbers = #tpu.dot_dimension_numbers<[1], [0], [0], [1], [0, 0, 1, 1], [], []>} : vector<584x128xf32>, vector<128x128xf32>, vector<584x128xf32> -> vector<584x128xf32>
    %c0_3 = arith.constant 0 : index
    %c0_4 = arith.constant 0 : index
    %3 = vector.load %arg10[%c0_3, %c0_4] : memref<8x128xf32, #tpu.memory_space<vmem>>, vector<1x128xf32>
    %4 = vector.broadcast %3 : vector<1x128xf32> to vector<584x128xf32>
    %5 = arith.addf %2, %4 : vector<584x128xf32>
    %cst_5 = arith.constant 0.000000e+00 : f32
    %6 = vector.broadcast %cst_5 : f32 to vector<584x128xf32>
    %7 = arith.maximumf %5, %6 : vector<584x128xf32>
    %8 = vector.extract_strided_slice %7 {offsets = [0, 0], sizes = [578, 128], strides = [1, 1]} : vector<584x128xf32> to vector<578x128xf32>
    %9 = vector.shape_cast %8 : vector<578x128xf32> to vector<2x17x17x128xf32>
    %cst_6 = arith.constant 0.000000e+00 : f32
    %10 = vector.broadcast %cst_6 : f32 to vector<2x12x12x128xf32>
    %c0_7 = arith.constant 0 : index
    %c0_8 = arith.constant 0 : index
    %c0_9 = arith.constant 0 : index
    %c0_10 = arith.constant 0 : index
    %11 = vector.load %arg14[%c0_7, %c0_8, %c0_9, %c0_10] : memref<2x12x12x128xf32, #tpu.memory_space<vmem>>, vector<2x12x12x128xf32>
    tpu.vector_store %arg14[%c0_7, %c0_8, %c0_9, %c0_10], %10 {strides = array<i32>} : memref<2x12x12x128xf32, #tpu.memory_space<vmem>>, vector<2x12x12x128xf32>,
    %12 = vector.extract_strided_slice %9 {offsets = [0, 0, 0, 0], sizes = [2, 1, 17, 128], strides = [1, 1, 1, 1]} : vector<2x17x17x128xf32> to vector<2x1x17x128xf32>
    %13 = vector.shape_cast %12 : vector<2x1x17x128xf32> to vector<2x17x128xf32>
    %14 = vector.extract_strided_slice %9 {offsets = [0, 1, 0, 0], sizes = [2, 1, 17, 128], strides = [1, 1, 1, 1]} : vector<2x17x17x128xf32> to vector<2x1x17x128xf32>
    %15 = vector.shape_cast %14 : vector<2x1x17x128xf32> to vector<2x17x128xf32>
    %16 = arith.maximumf %13, %15 : vector<2x17x128xf32>
    %17 = vector.extract_strided_slice %9 {offsets = [0, 2, 0, 0], sizes = [2, 1, 17, 128], strides = [1, 1, 1, 1]} : vector<2x17x17x128xf32> to vector<2x1x17x128xf32>
    %18 = vector.shape_cast %17 : vector<2x1x17x128xf32> to vector<2x17x128xf32>
    %19 = arith.maximumf %16, %18 : vector<2x17x128xf32>
    %20 = vector.shape_cast %19 : vector<2x17x128xf32> to vector<2x1x17x128xf32>
    %c0_11 = arith.constant 0 : index
    %c0_12 = arith.constant 0 : index
    %c0_13 = arith.constant 0 : index
    %c0_14 = arith.constant 0 : index
    %21 = vector.load %arg12[%c0_11, %c0_12, %c0_13, %c0_14] : memref<2x8x17x128xf32, #tpu.memory_space<vmem>>, vector<2x1x17x128xf32>
    tpu.vector_store %arg12[%c0_11, %c0_12, %c0_13, %c0_14], %20 {strides = array<i32>} : memref<2x8x17x128xf32, #tpu.memory_space<vmem>>, vector<2x1x17x128xf32>,
    %22 = vector.extract_strided_slice %9 {offsets = [0, 2, 0, 0], sizes = [2, 1, 17, 128], strides = [1, 1, 1, 1]} : vector<2x17x17x128xf32> to vector<2x1x17x128xf32>
    %23 = vector.shape_cast %22 : vector<2x1x17x128xf32> to vector<2x17x128xf32>
    %24 = vector.extract_strided_slice %9 {offsets = [0, 3, 0, 0], sizes = [2, 1, 17, 128], strides = [1, 1, 1, 1]} : vector<2x17x17x128xf32> to vector<2x1x17x128xf32>
    %25 = vector.shape_cast %24 : vector<2x1x17x128xf32> to vector<2x17x128xf32>
    %26 = arith.maximumf %23, %25 : vector<2x17x128xf32>
    %27 = vector.extract_strided_slice %9 {offsets = [0, 4, 0, 0], sizes = [2, 1, 17, 128], strides = [1, 1, 1, 1]} : vector<2x17x17x128xf32> to vector<2x1x17x128xf32>
    %28 = vector.shape_cast %27 : vector<2x1x17x128xf32> to vector<2x17x128xf32>
    %29 = arith.maximumf %26, %28 : vector<2x17x128xf32>
    %30 = vector.shape_cast %29 : vector<2x17x128xf32> to vector<2x1x17x128xf32>
    %c0_15 = arith.constant 0 : index
    %c1 = arith.constant 1 : index
    %c0_16 = arith.constant 0 : index
    %c0_17 = arith.constant 0 : index
    %31 = vector.load %arg12[%c0_15, %c1, %c0_16, %c0_17] : memref<2x8x17x128xf32, #tpu.memory_space<vmem>>, vector<2x1x17x128xf32>
    tpu.vector_store %arg12[%c0_15, %c1, %c0_16, %c0_17], %30 {strides = array<i32>} : memref<2x8x17x128xf32, #tpu.memory_space<vmem>>, vector<2x1x17x128xf32>,
    %32 = vector.extract_strided_slice %9 {offsets = [0, 4, 0, 0], sizes = [2, 1, 17, 128], strides = [1, 1, 1, 1]} : vector<2x17x17x128xf32> to vector<2x1x17x128xf32>
    %33 = vector.shape_cast %32 : vector<2x1x17x128xf32> to vector<2x17x128xf32>
    %34 = vector.extract_strided_slice %9 {offsets = [0, 5, 0, 0], sizes = [2, 1, 17, 128], strides = [1, 1, 1, 1]} : vector<2x17x17x128xf32> to vector<2x1x17x128xf32>
    %35 = vector.shape_cast %34 : vector<2x1x17x128xf32> to vector<2x17x128xf32>
    %36 = arith.maximumf %33, %35 : vector<2x17x128xf32>
    %37 = vector.extract_strided_slice %9 {offsets = [0, 6, 0, 0], sizes = [2, 1, 17, 128], strides = [1, 1, 1, 1]} : vector<2x17x17x128xf32> to vector<2x1x17x128xf32>
    %38 = vector.shape_cast %37 : vector<2x1x17x128xf32> to vector<2x17x128xf32>
    %39 = arith.maximumf %36, %38 : vector<2x17x128xf32>
    %40 = vector.shape_cast %39 : vector<2x17x128xf32> to vector<2x1x17x128xf32>
    %c0_18 = arith.constant 0 : index
    %c2 = arith.constant 2 : index
    %c0_19 = arith.constant 0 : index
    %c0_20 = arith.constant 0 : index
    %41 = vector.load %arg12[%c0_18, %c2, %c0_19, %c0_20] : memref<2x8x17x128xf32, #tpu.memory_space<vmem>>, vector<2x1x17x128xf32>
    tpu.vector_store %arg12[%c0_18, %c2, %c0_19, %c0_20], %40 {strides = array<i32>} : memref<2x8x17x128xf32, #tpu.memory_space<vmem>>, vector<2x1x17x128xf32>,
    %42 = vector.extract_strided_slice %9 {offsets = [0, 6, 0, 0], sizes = [2, 1, 17, 128], strides = [1, 1, 1, 1]} : vector<2x17x17x128xf32> to vector<2x1x17x128xf32>
    %43 = vector.shape_cast %42 : vector<2x1x17x128xf32> to vector<2x17x128xf32>
    %44 = vector.extract_strided_slice %9 {offsets = [0, 7, 0, 0], sizes = [2, 1, 17, 128], strides = [1, 1, 1, 1]} : vector<2x17x17x128xf32> to vector<2x1x17x128xf32>
    %45 = vector.shape_cast %44 : vector<2x1x17x128xf32> to vector<2x17x128xf32>
    %46 = arith.maximumf %43, %45 : vector<2x17x128xf32>
    %47 = vector.extract_strided_slice %9 {offsets = [0, 8, 0, 0], sizes = [2, 1, 17, 128], strides = [1, 1, 1, 1]} : vector<2x17x17x128xf32> to vector<2x1x17x128xf32>
    %48 = vector.shape_cast %47 : vector<2x1x17x128xf32> to vector<2x17x128xf32>
    %49 = arith.maximumf %46, %48 : vector<2x17x128xf32>
    %50 = vector.shape_cast %49 : vector<2x17x128xf32> to vector<2x1x17x128xf32>
    %c0_21 = arith.constant 0 : index
    %c3 = arith.constant 3 : index
    %c0_22 = arith.constant 0 : index
    %c0_23 = arith.constant 0 : index
    %51 = vector.load %arg12[%c0_21, %c3, %c0_22, %c0_23] : memref<2x8x17x128xf32, #tpu.memory_space<vmem>>, vector<2x1x17x128xf32>
    tpu.vector_store %arg12[%c0_21, %c3, %c0_22, %c0_23], %50 {strides = array<i32>} : memref<2x8x17x128xf32, #tpu.memory_space<vmem>>, vector<2x1x17x128xf32>,
    %52 = vector.extract_strided_slice %9 {offsets = [0, 8, 0, 0], sizes = [2, 1, 17, 128], strides = [1, 1, 1, 1]} : vector<2x17x17x128xf32> to vector<2x1x17x128xf32>
    %53 = vector.shape_cast %52 : vector<2x1x17x128xf32> to vector<2x17x128xf32>
    %54 = vector.extract_strided_slice %9 {offsets = [0, 9, 0, 0], sizes = [2, 1, 17, 128], strides = [1, 1, 1, 1]} : vector<2x17x17x128xf32> to vector<2x1x17x128xf32>
    %55 = vector.shape_cast %54 : vector<2x1x17x128xf32> to vector<2x17x128xf32>
    %56 = arith.maximumf %53, %55 : vector<2x17x128xf32>
    %57 = vector.extract_strided_slice %9 {offsets = [0, 10, 0, 0], sizes = [2, 1, 17, 128], strides = [1, 1, 1, 1]} : vector<2x17x17x128xf32> to vector<2x1x17x128xf32>
    %58 = vector.shape_cast %57 : vector<2x1x17x128xf32> to vector<2x17x128xf32>
    %59 = arith.maximumf %56, %58 : vector<2x17x128xf32>
    %60 = vector.shape_cast %59 : vector<2x17x128xf32> to vector<2x1x17x128xf32>
    %c0_24 = arith.constant 0 : index
    %c4 = arith.constant 4 : index
    %c0_25 = arith.constant 0 : index
    %c0_26 = arith.constant 0 : index
    %61 = vector.load %arg12[%c0_24, %c4, %c0_25, %c0_26] : memref<2x8x17x128xf32, #tpu.memory_space<vmem>>, vector<2x1x17x128xf32>
    tpu.vector_store %arg12[%c0_24, %c4, %c0_25, %c0_26], %60 {strides = array<i32>} : memref<2x8x17x128xf32, #tpu.memory_space<vmem>>, vector<2x1x17x128xf32>,
    %62 = vector.extract_strided_slice %9 {offsets = [0, 10, 0, 0], sizes = [2, 1, 17, 128], strides = [1, 1, 1, 1]} : vector<2x17x17x128xf32> to vector<2x1x17x128xf32>
    %63 = vector.shape_cast %62 : vector<2x1x17x128xf32> to vector<2x17x128xf32>
    %64 = vector.extract_strided_slice %9 {offsets = [0, 11, 0, 0], sizes = [2, 1, 17, 128], strides = [1, 1, 1, 1]} : vector<2x17x17x128xf32> to vector<2x1x17x128xf32>
    %65 = vector.shape_cast %64 : vector<2x1x17x128xf32> to vector<2x17x128xf32>
    %66 = arith.maximumf %63, %65 : vector<2x17x128xf32>
    %67 = vector.extract_strided_slice %9 {offsets = [0, 12, 0, 0], sizes = [2, 1, 17, 128], strides = [1, 1, 1, 1]} : vector<2x17x17x128xf32> to vector<2x1x17x128xf32>
    %68 = vector.shape_cast %67 : vector<2x1x17x128xf32> to vector<2x17x128xf32>
    %69 = arith.maximumf %66, %68 : vector<2x17x128xf32>
    %70 = vector.shape_cast %69 : vector<2x17x128xf32> to vector<2x1x17x128xf32>
    %c0_27 = arith.constant 0 : index
    %c5 = arith.constant 5 : index
    %c0_28 = arith.constant 0 : index
    %c0_29 = arith.constant 0 : index
    %71 = vector.load %arg12[%c0_27, %c5, %c0_28, %c0_29] : memref<2x8x17x128xf32, #tpu.memory_space<vmem>>, vector<2x1x17x128xf32>
    tpu.vector_store %arg12[%c0_27, %c5, %c0_28, %c0_29], %70 {strides = array<i32>} : memref<2x8x17x128xf32, #tpu.memory_space<vmem>>, vector<2x1x17x128xf32>,
    %72 = vector.extract_strided_slice %9 {offsets = [0, 12, 0, 0], sizes = [2, 1, 17, 128], strides = [1, 1, 1, 1]} : vector<2x17x17x128xf32> to vector<2x1x17x128xf32>
    %73 = vector.shape_cast %72 : vector<2x1x17x128xf32> to vector<2x17x128xf32>
    %74 = vector.extract_strided_slice %9 {offsets = [0, 13, 0, 0], sizes = [2, 1, 17, 128], strides = [1, 1, 1, 1]} : vector<2x17x17x128xf32> to vector<2x1x17x128xf32>
    %75 = vector.shape_cast %74 : vector<2x1x17x128xf32> to vector<2x17x128xf32>
    %76 = arith.maximumf %73, %75 : vector<2x17x128xf32>
    %77 = vector.extract_strided_slice %9 {offsets = [0, 14, 0, 0], sizes = [2, 1, 17, 128], strides = [1, 1, 1, 1]} : vector<2x17x17x128xf32> to vector<2x1x17x128xf32>
    %78 = vector.shape_cast %77 : vector<2x1x17x128xf32> to vector<2x17x128xf32>
    %79 = arith.maximumf %76, %78 : vector<2x17x128xf32>
    %80 = vector.shape_cast %79 : vector<2x17x128xf32> to vector<2x1x17x128xf32>
    %c0_30 = arith.constant 0 : index
    %c6 = arith.constant 6 : index
    %c0_31 = arith.constant 0 : index
    %c0_32 = arith.constant 0 : index
    %81 = vector.load %arg12[%c0_30, %c6, %c0_31, %c0_32] : memref<2x8x17x128xf32, #tpu.memory_space<vmem>>, vector<2x1x17x128xf32>
    tpu.vector_store %arg12[%c0_30, %c6, %c0_31, %c0_32], %80 {strides = array<i32>} : memref<2x8x17x128xf32, #tpu.memory_space<vmem>>, vector<2x1x17x128xf32>,
    %82 = vector.extract_strided_slice %9 {offsets = [0, 14, 0, 0], sizes = [2, 1, 17, 128], strides = [1, 1, 1, 1]} : vector<2x17x17x128xf32> to vector<2x1x17x128xf32>
    %83 = vector.shape_cast %82 : vector<2x1x17x128xf32> to vector<2x17x128xf32>
    %84 = vector.extract_strided_slice %9 {offsets = [0, 15, 0, 0], sizes = [2, 1, 17, 128], strides = [1, 1, 1, 1]} : vector<2x17x17x128xf32> to vector<2x1x17x128xf32>
    %85 = vector.shape_cast %84 : vector<2x1x17x128xf32> to vector<2x17x128xf32>
    %86 = arith.maximumf %83, %85 : vector<2x17x128xf32>
    %87 = vector.extract_strided_slice %9 {offsets = [0, 16, 0, 0], sizes = [2, 1, 17, 128], strides = [1, 1, 1, 1]} : vector<2x17x17x128xf32> to vector<2x1x17x128xf32>
    %88 = vector.shape_cast %87 : vector<2x1x17x128xf32> to vector<2x17x128xf32>
    %89 = arith.maximumf %86, %88 : vector<2x17x128xf32>
    %90 = vector.shape_cast %89 : vector<2x17x128xf32> to vector<2x1x17x128xf32>
    %c0_33 = arith.constant 0 : index
    %c7 = arith.constant 7 : index
    %c0_34 = arith.constant 0 : index
    %c0_35 = arith.constant 0 : index
    %91 = vector.load %arg12[%c0_33, %c7, %c0_34, %c0_35] : memref<2x8x17x128xf32, #tpu.memory_space<vmem>>, vector<2x1x17x128xf32>
    tpu.vector_store %arg12[%c0_33, %c7, %c0_34, %c0_35], %90 {strides = array<i32>} : memref<2x8x17x128xf32, #tpu.memory_space<vmem>>, vector<2x1x17x128xf32>,
    %c0_36 = arith.constant 0 : index
    %c0_37 = arith.constant 0 : index
    %c0_38 = arith.constant 0 : index
    %c0_39 = arith.constant 0 : index
    %92 = vector.load %arg12[%c0_36, %c0_37, %c0_38, %c0_39] : memref<2x8x17x128xf32, #tpu.memory_space<vmem>>, vector<2x8x1x128xf32>
    %93 = vector.shape_cast %92 : vector<2x8x1x128xf32> to vector<2x8x128xf32>
    %c0_40 = arith.constant 0 : index
    %c0_41 = arith.constant 0 : index
    %c1_42 = arith.constant 1 : index
    %c0_43 = arith.constant 0 : index
    %94 = vector.load %arg12[%c0_40, %c0_41, %c1_42, %c0_43] : memref<2x8x17x128xf32, #tpu.memory_space<vmem>>, vector<2x8x1x128xf32>
    %95 = vector.shape_cast %94 : vector<2x8x1x128xf32> to vector<2x8x128xf32>
    %96 = arith.maximumf %93, %95 : vector<2x8x128xf32>
    %c0_44 = arith.constant 0 : index
    %c0_45 = arith.constant 0 : index
    %c2_46 = arith.constant 2 : index
    %c0_47 = arith.constant 0 : index
    %97 = vector.load %arg12[%c0_44, %c0_45, %c2_46, %c0_47] : memref<2x8x17x128xf32, #tpu.memory_space<vmem>>, vector<2x8x1x128xf32>
    %98 = vector.shape_cast %97 : vector<2x8x1x128xf32> to vector<2x8x128xf32>
    %99 = arith.maximumf %96, %98 : vector<2x8x128xf32>
    %100 = vector.shape_cast %99 : vector<2x8x128xf32> to vector<2x8x1x128xf32>
    %c0_48 = arith.constant 0 : index
    %c2_49 = arith.constant 2 : index
    %c2_50 = arith.constant 2 : index
    %c0_51 = arith.constant 0 : index
    %101 = vector.load %arg14[%c0_48, %c2_49, %c2_50, %c0_51] : memref<2x12x12x128xf32, #tpu.memory_space<vmem>>, vector<2x8x1x128xf32>
    tpu.vector_store %arg14[%c0_48, %c2_49, %c2_50, %c0_51], %100 {strides = array<i32>} : memref<2x12x12x128xf32, #tpu.memory_space<vmem>>, vector<2x8x1x128xf32>,
    %c0_52 = arith.constant 0 : index
    %c0_53 = arith.constant 0 : index
    %c2_54 = arith.constant 2 : index
    %c0_55 = arith.constant 0 : index
    %102 = vector.load %arg12[%c0_52, %c0_53, %c2_54, %c0_55] : memref<2x8x17x128xf32, #tpu.memory_space<vmem>>, vector<2x8x1x128xf32>
    %103 = vector.shape_cast %102 : vector<2x8x1x128xf32> to vector<2x8x128xf32>
    %c0_56 = arith.constant 0 : index
    %c0_57 = arith.constant 0 : index
    %c3_58 = arith.constant 3 : index
    %c0_59 = arith.constant 0 : index
    %104 = vector.load %arg12[%c0_56, %c0_57, %c3_58, %c0_59] : memref<2x8x17x128xf32, #tpu.memory_space<vmem>>, vector<2x8x1x128xf32>
    %105 = vector.shape_cast %104 : vector<2x8x1x128xf32> to vector<2x8x128xf32>
    %106 = arith.maximumf %103, %105 : vector<2x8x128xf32>
    %c0_60 = arith.constant 0 : index
    %c0_61 = arith.constant 0 : index
    %c4_62 = arith.constant 4 : index
    %c0_63 = arith.constant 0 : index
    %107 = vector.load %arg12[%c0_60, %c0_61, %c4_62, %c0_63] : memref<2x8x17x128xf32, #tpu.memory_space<vmem>>, vector<2x8x1x128xf32>
    %108 = vector.shape_cast %107 : vector<2x8x1x128xf32> to vector<2x8x128xf32>
    %109 = arith.maximumf %106, %108 : vector<2x8x128xf32>
    %110 = vector.shape_cast %109 : vector<2x8x128xf32> to vector<2x8x1x128xf32>
    %c0_64 = arith.constant 0 : index
    %c2_65 = arith.constant 2 : index
    %c3_66 = arith.constant 3 : index
    %c0_67 = arith.constant 0 : index
    %111 = vector.load %arg14[%c0_64, %c2_65, %c3_66, %c0_67] : memref<2x12x12x128xf32, #tpu.memory_space<vmem>>, vector<2x8x1x128xf32>
    tpu.vector_store %arg14[%c0_64, %c2_65, %c3_66, %c0_67], %110 {strides = array<i32>} : memref<2x12x12x128xf32, #tpu.memory_space<vmem>>, vector<2x8x1x128xf32>,
    %c0_68 = arith.constant 0 : index
    %c0_69 = arith.constant 0 : index
    %c4_70 = arith.constant 4 : index
    %c0_71 = arith.constant 0 : index
    %112 = vector.load %arg12[%c0_68, %c0_69, %c4_70, %c0_71] : memref<2x8x17x128xf32, #tpu.memory_space<vmem>>, vector<2x8x1x128xf32>
    %113 = vector.shape_cast %112 : vector<2x8x1x128xf32> to vector<2x8x128xf32>
    %c0_72 = arith.constant 0 : index
    %c0_73 = arith.constant 0 : index
    %c5_74 = arith.constant 5 : index
    %c0_75 = arith.constant 0 : index
    %114 = vector.load %arg12[%c0_72, %c0_73, %c5_74, %c0_75] : memref<2x8x17x128xf32, #tpu.memory_space<vmem>>, vector<2x8x1x128xf32>
    %115 = vector.shape_cast %114 : vector<2x8x1x128xf32> to vector<2x8x128xf32>
    %116 = arith.maximumf %113, %115 : vector<2x8x128xf32>
    %c0_76 = arith.constant 0 : index
    %c0_77 = arith.constant 0 : index
    %c6_78 = arith.constant 6 : index
    %c0_79 = arith.constant 0 : index
    %117 = vector.load %arg12[%c0_76, %c0_77, %c6_78, %c0_79] : memref<2x8x17x128xf32, #tpu.memory_space<vmem>>, vector<2x8x1x128xf32>
    %118 = vector.shape_cast %117 : vector<2x8x1x128xf32> to vector<2x8x128xf32>
    %119 = arith.maximumf %116, %118 : vector<2x8x128xf32>
    %120 = vector.shape_cast %119 : vector<2x8x128xf32> to vector<2x8x1x128xf32>
    %c0_80 = arith.constant 0 : index
    %c2_81 = arith.constant 2 : index
    %c4_82 = arith.constant 4 : index
    %c0_83 = arith.constant 0 : index
    %121 = vector.load %arg14[%c0_80, %c2_81, %c4_82, %c0_83] : memref<2x12x12x128xf32, #tpu.memory_space<vmem>>, vector<2x8x1x128xf32>
    tpu.vector_store %arg14[%c0_80, %c2_81, %c4_82, %c0_83], %120 {strides = array<i32>} : memref<2x12x12x128xf32, #tpu.memory_space<vmem>>, vector<2x8x1x128xf32>,
    %c0_84 = arith.constant 0 : index
    %c0_85 = arith.constant 0 : index
    %c6_86 = arith.constant 6 : index
    %c0_87 = arith.constant 0 : index
    %122 = vector.load %arg12[%c0_84, %c0_85, %c6_86, %c0_87] : memref<2x8x17x128xf32, #tpu.memory_space<vmem>>, vector<2x8x1x128xf32>
    %123 = vector.shape_cast %122 : vector<2x8x1x128xf32> to vector<2x8x128xf32>
    %c0_88 = arith.constant 0 : index
    %c0_89 = arith.constant 0 : index
    %c7_90 = arith.constant 7 : index
    %c0_91 = arith.constant 0 : index
    %124 = vector.load %arg12[%c0_88, %c0_89, %c7_90, %c0_91] : memref<2x8x17x128xf32, #tpu.memory_space<vmem>>, vector<2x8x1x128xf32>
    %125 = vector.shape_cast %124 : vector<2x8x1x128xf32> to vector<2x8x128xf32>
    %126 = arith.maximumf %123, %125 : vector<2x8x128xf32>
    %c0_92 = arith.constant 0 : index
    %c0_93 = arith.constant 0 : index
    %c8 = arith.constant 8 : index
    %c0_94 = arith.constant 0 : index
    %127 = vector.load %arg12[%c0_92, %c0_93, %c8, %c0_94] : memref<2x8x17x128xf32, #tpu.memory_space<vmem>>, vector<2x8x1x128xf32>
    %128 = vector.shape_cast %127 : vector<2x8x1x128xf32> to vector<2x8x128xf32>
    %129 = arith.maximumf %126, %128 : vector<2x8x128xf32>
    %130 = vector.shape_cast %129 : vector<2x8x128xf32> to vector<2x8x1x128xf32>
    %c0_95 = arith.constant 0 : index
    %c2_96 = arith.constant 2 : index
    %c5_97 = arith.constant 5 : index
    %c0_98 = arith.constant 0 : index
    %131 = vector.load %arg14[%c0_95, %c2_96, %c5_97, %c0_98] : memref<2x12x12x128xf32, #tpu.memory_space<vmem>>, vector<2x8x1x128xf32>
    tpu.vector_store %arg14[%c0_95, %c2_96, %c5_97, %c0_98], %130 {strides = array<i32>} : memref<2x12x12x128xf32, #tpu.memory_space<vmem>>, vector<2x8x1x128xf32>,
    %c0_99 = arith.constant 0 : index
    %c0_100 = arith.constant 0 : index
    %c8_101 = arith.constant 8 : index
    %c0_102 = arith.constant 0 : index
    %132 = vector.load %arg12[%c0_99, %c0_100, %c8_101, %c0_102] : memref<2x8x17x128xf32, #tpu.memory_space<vmem>>, vector<2x8x1x128xf32>
    %133 = vector.shape_cast %132 : vector<2x8x1x128xf32> to vector<2x8x128xf32>
    %c0_103 = arith.constant 0 : index
    %c0_104 = arith.constant 0 : index
    %c9 = arith.constant 9 : index
    %c0_105 = arith.constant 0 : index
    %134 = vector.load %arg12[%c0_103, %c0_104, %c9, %c0_105] : memref<2x8x17x128xf32, #tpu.memory_space<vmem>>, vector<2x8x1x128xf32>
    %135 = vector.shape_cast %134 : vector<2x8x1x128xf32> to vector<2x8x128xf32>
    %136 = arith.maximumf %133, %135 : vector<2x8x128xf32>
    %c0_106 = arith.constant 0 : index
    %c0_107 = arith.constant 0 : index
    %c10 = arith.constant 10 : index
    %c0_108 = arith.constant 0 : index
    %137 = vector.load %arg12[%c0_106, %c0_107, %c10, %c0_108] : memref<2x8x17x128xf32, #tpu.memory_space<vmem>>, vector<2x8x1x128xf32>
    %138 = vector.shape_cast %137 : vector<2x8x1x128xf32> to vector<2x8x128xf32>
    %139 = arith.maximumf %136, %138 : vector<2x8x128xf32>
    %140 = vector.shape_cast %139 : vector<2x8x128xf32> to vector<2x8x1x128xf32>
    %c0_109 = arith.constant 0 : index
    %c2_110 = arith.constant 2 : index
    %c6_111 = arith.constant 6 : index
    %c0_112 = arith.constant 0 : index
    %141 = vector.load %arg14[%c0_109, %c2_110, %c6_111, %c0_112] : memref<2x12x12x128xf32, #tpu.memory_space<vmem>>, vector<2x8x1x128xf32>
    tpu.vector_store %arg14[%c0_109, %c2_110, %c6_111, %c0_112], %140 {strides = array<i32>} : memref<2x12x12x128xf32, #tpu.memory_space<vmem>>, vector<2x8x1x128xf32>,
    %c0_113 = arith.constant 0 : index
    %c0_114 = arith.constant 0 : index
    %c10_115 = arith.constant 10 : index
    %c0_116 = arith.constant 0 : index
    %142 = vector.load %arg12[%c0_113, %c0_114, %c10_115, %c0_116] : memref<2x8x17x128xf32, #tpu.memory_space<vmem>>, vector<2x8x1x128xf32>
    %143 = vector.shape_cast %142 : vector<2x8x1x128xf32> to vector<2x8x128xf32>
    %c0_117 = arith.constant 0 : index
    %c0_118 = arith.constant 0 : index
    %c11 = arith.constant 11 : index
    %c0_119 = arith.constant 0 : index
    %144 = vector.load %arg12[%c0_117, %c0_118, %c11, %c0_119] : memref<2x8x17x128xf32, #tpu.memory_space<vmem>>, vector<2x8x1x128xf32>
    %145 = vector.shape_cast %144 : vector<2x8x1x128xf32> to vector<2x8x128xf32>
    %146 = arith.maximumf %143, %145 : vector<2x8x128xf32>
    %c0_120 = arith.constant 0 : index
    %c0_121 = arith.constant 0 : index
    %c12 = arith.constant 12 : index
    %c0_122 = arith.constant 0 : index
    %147 = vector.load %arg12[%c0_120, %c0_121, %c12, %c0_122] : memref<2x8x17x128xf32, #tpu.memory_space<vmem>>, vector<2x8x1x128xf32>
    %148 = vector.shape_cast %147 : vector<2x8x1x128xf32> to vector<2x8x128xf32>
    %149 = arith.maximumf %146, %148 : vector<2x8x128xf32>
    %150 = vector.shape_cast %149 : vector<2x8x128xf32> to vector<2x8x1x128xf32>
    %c0_123 = arith.constant 0 : index
    %c2_124 = arith.constant 2 : index
    %c7_125 = arith.constant 7 : index
    %c0_126 = arith.constant 0 : index
    %151 = vector.load %arg14[%c0_123, %c2_124, %c7_125, %c0_126] : memref<2x12x12x128xf32, #tpu.memory_space<vmem>>, vector<2x8x1x128xf32>
    tpu.vector_store %arg14[%c0_123, %c2_124, %c7_125, %c0_126], %150 {strides = array<i32>} : memref<2x12x12x128xf32, #tpu.memory_space<vmem>>, vector<2x8x1x128xf32>,
    %c0_127 = arith.constant 0 : index
    %c0_128 = arith.constant 0 : index
    %c12_129 = arith.constant 12 : index
    %c0_130 = arith.constant 0 : index
    %152 = vector.load %arg12[%c0_127, %c0_128, %c12_129, %c0_130] : memref<2x8x17x128xf32, #tpu.memory_space<vmem>>, vector<2x8x1x128xf32>
    %153 = vector.shape_cast %152 : vector<2x8x1x128xf32> to vector<2x8x128xf32>
    %c0_131 = arith.constant 0 : index
    %c0_132 = arith.constant 0 : index
    %c13 = arith.constant 13 : index
    %c0_133 = arith.constant 0 : index
    %154 = vector.load %arg12[%c0_131, %c0_132, %c13, %c0_133] : memref<2x8x17x128xf32, #tpu.memory_space<vmem>>, vector<2x8x1x128xf32>
    %155 = vector.shape_cast %154 : vector<2x8x1x128xf32> to vector<2x8x128xf32>
    %156 = arith.maximumf %153, %155 : vector<2x8x128xf32>
    %c0_134 = arith.constant 0 : index
    %c0_135 = arith.constant 0 : index
    %c14 = arith.constant 14 : index
    %c0_136 = arith.constant 0 : index
    %157 = vector.load %arg12[%c0_134, %c0_135, %c14, %c0_136] : memref<2x8x17x128xf32, #tpu.memory_space<vmem>>, vector<2x8x1x128xf32>
    %158 = vector.shape_cast %157 : vector<2x8x1x128xf32> to vector<2x8x128xf32>
    %159 = arith.maximumf %156, %158 : vector<2x8x128xf32>
    %160 = vector.shape_cast %159 : vector<2x8x128xf32> to vector<2x8x1x128xf32>
    %c0_137 = arith.constant 0 : index
    %c2_138 = arith.constant 2 : index
    %c8_139 = arith.constant 8 : index
    %c0_140 = arith.constant 0 : index
    %161 = vector.load %arg14[%c0_137, %c2_138, %c8_139, %c0_140] : memref<2x12x12x128xf32, #tpu.memory_space<vmem>>, vector<2x8x1x128xf32>
    tpu.vector_store %arg14[%c0_137, %c2_138, %c8_139, %c0_140], %160 {strides = array<i32>} : memref<2x12x12x128xf32, #tpu.memory_space<vmem>>, vector<2x8x1x128xf32>,
    %c0_141 = arith.constant 0 : index
    %c0_142 = arith.constant 0 : index
    %c14_143 = arith.constant 14 : index
    %c0_144 = arith.constant 0 : index
    %162 = vector.load %arg12[%c0_141, %c0_142, %c14_143, %c0_144] : memref<2x8x17x128xf32, #tpu.memory_space<vmem>>, vector<2x8x1x128xf32>
    %163 = vector.shape_cast %162 : vector<2x8x1x128xf32> to vector<2x8x128xf32>
    %c0_145 = arith.constant 0 : index
    %c0_146 = arith.constant 0 : index
    %c15 = arith.constant 15 : index
    %c0_147 = arith.constant 0 : index
    %164 = vector.load %arg12[%c0_145, %c0_146, %c15, %c0_147] : memref<2x8x17x128xf32, #tpu.memory_space<vmem>>, vector<2x8x1x128xf32>
    %165 = vector.shape_cast %164 : vector<2x8x1x128xf32> to vector<2x8x128xf32>
    %166 = arith.maximumf %163, %165 : vector<2x8x128xf32>
    %c0_148 = arith.constant 0 : index
    %c0_149 = arith.constant 0 : index
    %c16 = arith.constant 16 : index
    %c0_150 = arith.constant 0 : index
    %167 = vector.load %arg12[%c0_148, %c0_149, %c16, %c0_150] : memref<2x8x17x128xf32, #tpu.memory_space<vmem>>, vector<2x8x1x128xf32>
    %168 = vector.shape_cast %167 : vector<2x8x1x128xf32> to vector<2x8x128xf32>
    %169 = arith.maximumf %166, %168 : vector<2x8x128xf32>
    %170 = vector.shape_cast %169 : vector<2x8x128xf32> to vector<2x8x1x128xf32>
    %c0_151 = arith.constant 0 : index
    %c2_152 = arith.constant 2 : index
    %c9_153 = arith.constant 9 : index
    %c0_154 = arith.constant 0 : index
    %171 = vector.load %arg14[%c0_151, %c2_152, %c9_153, %c0_154] : memref<2x12x12x128xf32, #tpu.memory_space<vmem>>, vector<2x8x1x128xf32>
    tpu.vector_store %arg14[%c0_151, %c2_152, %c9_153, %c0_154], %170 {strides = array<i32>} : memref<2x12x12x128xf32, #tpu.memory_space<vmem>>, vector<2x8x1x128xf32>,
    %c1_155 = arith.constant 1 : index
    %c0_156 = arith.constant 0 : index
    %172 = vector.load %arg10[%c1_155, %c0_156] : memref<8x128xf32, #tpu.memory_space<vmem>>, vector<1x128xf32>
    %c0_157 = arith.constant 0 : index
    %c0_158 = arith.constant 0 : index
    %c0_159 = arith.constant 0 : index
    %c0_160 = arith.constant 0 : index
    %173 = vector.load %arg14[%c0_157, %c0_158, %c0_159, %c0_160] : memref<2x12x12x128xf32, #tpu.memory_space<vmem>>, vector<2x8x8x128xf32>
    %174 = vector.shape_cast %173 : vector<2x8x8x128xf32> to vector<128x128xf32>
    %c0_161 = arith.constant 0 : index
    %c0_162 = arith.constant 0 : index
    %c0_163 = arith.constant 0 : index
    %175 = vector.load %arg3[%c0_161, %c0_162, %c0_163] : memref<25x128x128xf32, #tpu.memory_space<vmem>>, vector<1x128x128xf32>
    %176 = vector.shape_cast %175 : vector<1x128x128xf32> to vector<128x128xf32>
    %cst_164 = arith.constant dense<0.000000e+00> : vector<128x128xf32>
    %177 = tpu.matmul %174, %176, %cst_164 {dimension_numbers = #tpu.dot_dimension_numbers<[1], [0], [0], [1], [0, 0, 1, 1], [], []>} : vector<128x128xf32>, vector<128x128xf32>, vector<128x128xf32> -> vector<128x128xf32>
    %c0_165 = arith.constant 0 : index
    %c0_166 = arith.constant 0 : index
    %c1_167 = arith.constant 1 : index
    %c0_168 = arith.constant 0 : index
    %178 = vector.load %arg14[%c0_165, %c0_166, %c1_167, %c0_168] : memref<2x12x12x128xf32, #tpu.memory_space<vmem>>, vector<2x8x8x128xf32>
    %179 = vector.shape_cast %178 : vector<2x8x8x128xf32> to vector<128x128xf32>
    %c1_169 = arith.constant 1 : index
    %c0_170 = arith.constant 0 : index
    %c0_171 = arith.constant 0 : index
    %180 = vector.load %arg3[%c1_169, %c0_170, %c0_171] : memref<25x128x128xf32, #tpu.memory_space<vmem>>, vector<1x128x128xf32>
    %181 = vector.shape_cast %180 : vector<1x128x128xf32> to vector<128x128xf32>
    %cst_172 = arith.constant dense<0.000000e+00> : vector<128x128xf32>
    %182 = tpu.matmul %179, %181, %cst_172 {dimension_numbers = #tpu.dot_dimension_numbers<[1], [0], [0], [1], [0, 0, 1, 1], [], []>} : vector<128x128xf32>, vector<128x128xf32>, vector<128x128xf32> -> vector<128x128xf32>
    %183 = arith.addf %177, %182 : vector<128x128xf32>
    %c0_173 = arith.constant 0 : index
    %c0_174 = arith.constant 0 : index
    %c2_175 = arith.constant 2 : index
    %c0_176 = arith.constant 0 : index
    %184 = vector.load %arg14[%c0_173, %c0_174, %c2_175, %c0_176] : memref<2x12x12x128xf32, #tpu.memory_space<vmem>>, vector<2x8x8x128xf32>
    %185 = vector.shape_cast %184 : vector<2x8x8x128xf32> to vector<128x128xf32>
    %c2_177 = arith.constant 2 : index
    %c0_178 = arith.constant 0 : index
    %c0_179 = arith.constant 0 : index
    %186 = vector.load %arg3[%c2_177, %c0_178, %c0_179] : memref<25x128x128xf32, #tpu.memory_space<vmem>>, vector<1x128x128xf32>
    %187 = vector.shape_cast %186 : vector<1x128x128xf32> to vector<128x128xf32>
    %cst_180 = arith.constant dense<0.000000e+00> : vector<128x128xf32>
    %188 = tpu.matmul %185, %187, %cst_180 {dimension_numbers = #tpu.dot_dimension_numbers<[1], [0], [0], [1], [0, 0, 1, 1], [], []>} : vector<128x128xf32>, vector<128x128xf32>, vector<128x128xf32> -> vector<128x128xf32>
    %189 = arith.addf %183, %188 : vector<128x128xf32>
    %c0_181 = arith.constant 0 : index
    %c0_182 = arith.constant 0 : index
    %c3_183 = arith.constant 3 : index
    %c0_184 = arith.constant 0 : index
    %190 = vector.load %arg14[%c0_181, %c0_182, %c3_183, %c0_184] : memref<2x12x12x128xf32, #tpu.memory_space<vmem>>, vector<2x8x8x128xf32>
    %191 = vector.shape_cast %190 : vector<2x8x8x128xf32> to vector<128x128xf32>
    %c3_185 = arith.constant 3 : index
    %c0_186 = arith.constant 0 : index
    %c0_187 = arith.constant 0 : index
    %192 = vector.load %arg3[%c3_185, %c0_186, %c0_187] : memref<25x128x128xf32, #tpu.memory_space<vmem>>, vector<1x128x128xf32>
    %193 = vector.shape_cast %192 : vector<1x128x128xf32> to vector<128x128xf32>
    %cst_188 = arith.constant dense<0.000000e+00> : vector<128x128xf32>
    %194 = tpu.matmul %191, %193, %cst_188 {dimension_numbers = #tpu.dot_dimension_numbers<[1], [0], [0], [1], [0, 0, 1, 1], [], []>} : vector<128x128xf32>, vector<128x128xf32>, vector<128x128xf32> -> vector<128x128xf32>
    %195 = arith.addf %189, %194 : vector<128x128xf32>
    %c0_189 = arith.constant 0 : index
    %c0_190 = arith.constant 0 : index
    %c4_191 = arith.constant 4 : index
    %c0_192 = arith.constant 0 : index
    %196 = vector.load %arg14[%c0_189, %c0_190, %c4_191, %c0_192] : memref<2x12x12x128xf32, #tpu.memory_space<vmem>>, vector<2x8x8x128xf32>
    %197 = vector.shape_cast %196 : vector<2x8x8x128xf32> to vector<128x128xf32>
    %c4_193 = arith.constant 4 : index
    %c0_194 = arith.constant 0 : index
    %c0_195 = arith.constant 0 : index
    %198 = vector.load %arg3[%c4_193, %c0_194, %c0_195] : memref<25x128x128xf32, #tpu.memory_space<vmem>>, vector<1x128x128xf32>
    %199 = vector.shape_cast %198 : vector<1x128x128xf32> to vector<128x128xf32>
    %cst_196 = arith.constant dense<0.000000e+00> : vector<128x128xf32>
    %200 = tpu.matmul %197, %199, %cst_196 {dimension_numbers = #tpu.dot_dimension_numbers<[1], [0], [0], [1], [0, 0, 1, 1], [], []>} : vector<128x128xf32>, vector<128x128xf32>, vector<128x128xf32> -> vector<128x128xf32>
    %201 = arith.addf %195, %200 : vector<128x128xf32>
    %c0_197 = arith.constant 0 : index
    %c1_198 = arith.constant 1 : index
    %c0_199 = arith.constant 0 : index
    %c0_200 = arith.constant 0 : index
    %202 = vector.load %arg14[%c0_197, %c1_198, %c0_199, %c0_200] : memref<2x12x12x128xf32, #tpu.memory_space<vmem>>, vector<2x8x8x128xf32>
    %203 = vector.shape_cast %202 : vector<2x8x8x128xf32> to vector<128x128xf32>
    %c5_201 = arith.constant 5 : index
    %c0_202 = arith.constant 0 : index
    %c0_203 = arith.constant 0 : index
    %204 = vector.load %arg3[%c5_201, %c0_202, %c0_203] : memref<25x128x128xf32, #tpu.memory_space<vmem>>, vector<1x128x128xf32>
    %205 = vector.shape_cast %204 : vector<1x128x128xf32> to vector<128x128xf32>
    %cst_204 = arith.constant dense<0.000000e+00> : vector<128x128xf32>
    %206 = tpu.matmul %203, %205, %cst_204 {dimension_numbers = #tpu.dot_dimension_numbers<[1], [0], [0], [1], [0, 0, 1, 1], [], []>} : vector<128x128xf32>, vector<128x128xf32>, vector<128x128xf32> -> vector<128x128xf32>
    %207 = arith.addf %201, %206 : vector<128x128xf32>
    %c0_205 = arith.constant 0 : index
    %c1_206 = arith.constant 1 : index
    %c1_207 = arith.constant 1 : index
    %c0_208 = arith.constant 0 : index
    %208 = vector.load %arg14[%c0_205, %c1_206, %c1_207, %c0_208] : memref<2x12x12x128xf32, #tpu.memory_space<vmem>>, vector<2x8x8x128xf32>
    %209 = vector.shape_cast %208 : vector<2x8x8x128xf32> to vector<128x128xf32>
    %c6_209 = arith.constant 6 : index
    %c0_210 = arith.constant 0 : index
    %c0_211 = arith.constant 0 : index
    %210 = vector.load %arg3[%c6_209, %c0_210, %c0_211] : memref<25x128x128xf32, #tpu.memory_space<vmem>>, vector<1x128x128xf32>
    %211 = vector.shape_cast %210 : vector<1x128x128xf32> to vector<128x128xf32>
    %cst_212 = arith.constant dense<0.000000e+00> : vector<128x128xf32>
    %212 = tpu.matmul %209, %211, %cst_212 {dimension_numbers = #tpu.dot_dimension_numbers<[1], [0], [0], [1], [0, 0, 1, 1], [], []>} : vector<128x128xf32>, vector<128x128xf32>, vector<128x128xf32> -> vector<128x128xf32>
    %213 = arith.addf %207, %212 : vector<128x128xf32>
    %c0_213 = arith.constant 0 : index
    %c1_214 = arith.constant 1 : index
    %c2_215 = arith.constant 2 : index
    %c0_216 = arith.constant 0 : index
    %214 = vector.load %arg14[%c0_213, %c1_214, %c2_215, %c0_216] : memref<2x12x12x128xf32, #tpu.memory_space<vmem>>, vector<2x8x8x128xf32>
    %215 = vector.shape_cast %214 : vector<2x8x8x128xf32> to vector<128x128xf32>
    %c7_217 = arith.constant 7 : index
    %c0_218 = arith.constant 0 : index
    %c0_219 = arith.constant 0 : index
    %216 = vector.load %arg3[%c7_217, %c0_218, %c0_219] : memref<25x128x128xf32, #tpu.memory_space<vmem>>, vector<1x128x128xf32>
    %217 = vector.shape_cast %216 : vector<1x128x128xf32> to vector<128x128xf32>
    %cst_220 = arith.constant dense<0.000000e+00> : vector<128x128xf32>
    %218 = tpu.matmul %215, %217, %cst_220 {dimension_numbers = #tpu.dot_dimension_numbers<[1], [0], [0], [1], [0, 0, 1, 1], [], []>} : vector<128x128xf32>, vector<128x128xf32>, vector<128x128xf32> -> vector<128x128xf32>
    %219 = arith.addf %213, %218 : vector<128x128xf32>
    %c0_221 = arith.constant 0 : index
    %c1_222 = arith.constant 1 : index
    %c3_223 = arith.constant 3 : index
    %c0_224 = arith.constant 0 : index
    %220 = vector.load %arg14[%c0_221, %c1_222, %c3_223, %c0_224] : memref<2x12x12x128xf32, #tpu.memory_space<vmem>>, vector<2x8x8x128xf32>
    %221 = vector.shape_cast %220 : vector<2x8x8x128xf32> to vector<128x128xf32>
    %c8_225 = arith.constant 8 : index
    %c0_226 = arith.constant 0 : index
    %c0_227 = arith.constant 0 : index
    %222 = vector.load %arg3[%c8_225, %c0_226, %c0_227] : memref<25x128x128xf32, #tpu.memory_space<vmem>>, vector<1x128x128xf32>
    %223 = vector.shape_cast %222 : vector<1x128x128xf32> to vector<128x128xf32>
    %cst_228 = arith.constant dense<0.000000e+00> : vector<128x128xf32>
    %224 = tpu.matmul %221, %223, %cst_228 {dimension_numbers = #tpu.dot_dimension_numbers<[1], [0], [0], [1], [0, 0, 1, 1], [], []>} : vector<128x128xf32>, vector<128x128xf32>, vector<128x128xf32> -> vector<128x128xf32>
    %225 = arith.addf %219, %224 : vector<128x128xf32>
    %c0_229 = arith.constant 0 : index
    %c1_230 = arith.constant 1 : index
    %c4_231 = arith.constant 4 : index
    %c0_232 = arith.constant 0 : index
    %226 = vector.load %arg14[%c0_229, %c1_230, %c4_231, %c0_232] : memref<2x12x12x128xf32, #tpu.memory_space<vmem>>, vector<2x8x8x128xf32>
    %227 = vector.shape_cast %226 : vector<2x8x8x128xf32> to vector<128x128xf32>
    %c9_233 = arith.constant 9 : index
    %c0_234 = arith.constant 0 : index
    %c0_235 = arith.constant 0 : index
    %228 = vector.load %arg3[%c9_233, %c0_234, %c0_235] : memref<25x128x128xf32, #tpu.memory_space<vmem>>, vector<1x128x128xf32>
    %229 = vector.shape_cast %228 : vector<1x128x128xf32> to vector<128x128xf32>
    %cst_236 = arith.constant dense<0.000000e+00> : vector<128x128xf32>
    %230 = tpu.matmul %227, %229, %cst_236 {dimension_numbers = #tpu.dot_dimension_numbers<[1], [0], [0], [1], [0, 0, 1, 1], [], []>} : vector<128x128xf32>, vector<128x128xf32>, vector<128x128xf32> -> vector<128x128xf32>
    %231 = arith.addf %225, %230 : vector<128x128xf32>
    %c0_237 = arith.constant 0 : index
    %c2_238 = arith.constant 2 : index
    %c0_239 = arith.constant 0 : index
    %c0_240 = arith.constant 0 : index
    %232 = vector.load %arg14[%c0_237, %c2_238, %c0_239, %c0_240] : memref<2x12x12x128xf32, #tpu.memory_space<vmem>>, vector<2x8x8x128xf32>
    %233 = vector.shape_cast %232 : vector<2x8x8x128xf32> to vector<128x128xf32>
    %c10_241 = arith.constant 10 : index
    %c0_242 = arith.constant 0 : index
    %c0_243 = arith.constant 0 : index
    %234 = vector.load %arg3[%c10_241, %c0_242, %c0_243] : memref<25x128x128xf32, #tpu.memory_space<vmem>>, vector<1x128x128xf32>
    %235 = vector.shape_cast %234 : vector<1x128x128xf32> to vector<128x128xf32>
    %cst_244 = arith.constant dense<0.000000e+00> : vector<128x128xf32>
    %236 = tpu.matmul %233, %235, %cst_244 {dimension_numbers = #tpu.dot_dimension_numbers<[1], [0], [0], [1], [0, 0, 1, 1], [], []>} : vector<128x128xf32>, vector<128x128xf32>, vector<128x128xf32> -> vector<128x128xf32>
    %237 = arith.addf %231, %236 : vector<128x128xf32>
    %c0_245 = arith.constant 0 : index
    %c2_246 = arith.constant 2 : index
    %c1_247 = arith.constant 1 : index
    %c0_248 = arith.constant 0 : index
    %238 = vector.load %arg14[%c0_245, %c2_246, %c1_247, %c0_248] : memref<2x12x12x128xf32, #tpu.memory_space<vmem>>, vector<2x8x8x128xf32>
    %239 = vector.shape_cast %238 : vector<2x8x8x128xf32> to vector<128x128xf32>
    %c11_249 = arith.constant 11 : index
    %c0_250 = arith.constant 0 : index
    %c0_251 = arith.constant 0 : index
    %240 = vector.load %arg3[%c11_249, %c0_250, %c0_251] : memref<25x128x128xf32, #tpu.memory_space<vmem>>, vector<1x128x128xf32>
    %241 = vector.shape_cast %240 : vector<1x128x128xf32> to vector<128x128xf32>
    %cst_252 = arith.constant dense<0.000000e+00> : vector<128x128xf32>
    %242 = tpu.matmul %239, %241, %cst_252 {dimension_numbers = #tpu.dot_dimension_numbers<[1], [0], [0], [1], [0, 0, 1, 1], [], []>} : vector<128x128xf32>, vector<128x128xf32>, vector<128x128xf32> -> vector<128x128xf32>
    %243 = arith.addf %237, %242 : vector<128x128xf32>
    %c0_253 = arith.constant 0 : index
    %c2_254 = arith.constant 2 : index
    %c2_255 = arith.constant 2 : index
    %c0_256 = arith.constant 0 : index
    %244 = vector.load %arg14[%c0_253, %c2_254, %c2_255, %c0_256] : memref<2x12x12x128xf32, #tpu.memory_space<vmem>>, vector<2x8x8x128xf32>
    %245 = vector.shape_cast %244 : vector<2x8x8x128xf32> to vector<128x128xf32>
    %c12_257 = arith.constant 12 : index
    %c0_258 = arith.constant 0 : index
    %c0_259 = arith.constant 0 : index
    %246 = vector.load %arg3[%c12_257, %c0_258, %c0_259] : memref<25x128x128xf32, #tpu.memory_space<vmem>>, vector<1x128x128xf32>
    %247 = vector.shape_cast %246 : vector<1x128x128xf32> to vector<128x128xf32>
    %cst_260 = arith.constant dense<0.000000e+00> : vector<128x128xf32>
    %248 = tpu.matmul %245, %247, %cst_260 {dimension_numbers = #tpu.dot_dimension_numbers<[1], [0], [0], [1], [0, 0, 1, 1], [], []>} : vector<128x128xf32>, vector<128x128xf32>, vector<128x128xf32> -> vector<128x128xf32>
    %249 = arith.addf %243, %248 : vector<128x128xf32>
    %c0_261 = arith.constant 0 : index
    %c2_262 = arith.constant 2 : index
    %c3_263 = arith.constant 3 : index
    %c0_264 = arith.constant 0 : index
    %250 = vector.load %arg14[%c0_261, %c2_262, %c3_263, %c0_264] : memref<2x12x12x128xf32, #tpu.memory_space<vmem>>, vector<2x8x8x128xf32>
    %251 = vector.shape_cast %250 : vector<2x8x8x128xf32> to vector<128x128xf32>
    %c13_265 = arith.constant 13 : index
    %c0_266 = arith.constant 0 : index
    %c0_267 = arith.constant 0 : index
    %252 = vector.load %arg3[%c13_265, %c0_266, %c0_267] : memref<25x128x128xf32, #tpu.memory_space<vmem>>, vector<1x128x128xf32>
    %253 = vector.shape_cast %252 : vector<1x128x128xf32> to vector<128x128xf32>
    %cst_268 = arith.constant dense<0.000000e+00> : vector<128x128xf32>
    %254 = tpu.matmul %251, %253, %cst_268 {dimension_numbers = #tpu.dot_dimension_numbers<[1], [0], [0], [1], [0, 0, 1, 1], [], []>} : vector<128x128xf32>, vector<128x128xf32>, vector<128x128xf32> -> vector<128x128xf32>
    %255 = arith.addf %249, %254 : vector<128x128xf32>
    %c0_269 = arith.constant 0 : index
    %c2_270 = arith.constant 2 : index
    %c4_271 = arith.constant 4 : index
    %c0_272 = arith.constant 0 : index
    %256 = vector.load %arg14[%c0_269, %c2_270, %c4_271, %c0_272] : memref<2x12x12x128xf32, #tpu.memory_space<vmem>>, vector<2x8x8x128xf32>
    %257 = vector.shape_cast %256 : vector<2x8x8x128xf32> to vector<128x128xf32>
    %c14_273 = arith.constant 14 : index
    %c0_274 = arith.constant 0 : index
    %c0_275 = arith.constant 0 : index
    %258 = vector.load %arg3[%c14_273, %c0_274, %c0_275] : memref<25x128x128xf32, #tpu.memory_space<vmem>>, vector<1x128x128xf32>
    %259 = vector.shape_cast %258 : vector<1x128x128xf32> to vector<128x128xf32>
    %cst_276 = arith.constant dense<0.000000e+00> : vector<128x128xf32>
    %260 = tpu.matmul %257, %259, %cst_276 {dimension_numbers = #tpu.dot_dimension_numbers<[1], [0], [0], [1], [0, 0, 1, 1], [], []>} : vector<128x128xf32>, vector<128x128xf32>, vector<128x128xf32> -> vector<128x128xf32>
    %261 = arith.addf %255, %260 : vector<128x128xf32>
    %c0_277 = arith.constant 0 : index
    %c3_278 = arith.constant 3 : index
    %c0_279 = arith.constant 0 : index
    %c0_280 = arith.constant 0 : index
    %262 = vector.load %arg14[%c0_277, %c3_278, %c0_279, %c0_280] : memref<2x12x12x128xf32, #tpu.memory_space<vmem>>, vector<2x8x8x128xf32>
    %263 = vector.shape_cast %262 : vector<2x8x8x128xf32> to vector<128x128xf32>
    %c15_281 = arith.constant 15 : index
    %c0_282 = arith.constant 0 : index
    %c0_283 = arith.constant 0 : index
    %264 = vector.load %arg3[%c15_281, %c0_282, %c0_283] : memref<25x128x128xf32, #tpu.memory_space<vmem>>, vector<1x128x128xf32>
    %265 = vector.shape_cast %264 : vector<1x128x128xf32> to vector<128x128xf32>
    %cst_284 = arith.constant dense<0.000000e+00> : vector<128x128xf32>
    %266 = tpu.matmul %263, %265, %cst_284 {dimension_numbers = #tpu.dot_dimension_numbers<[1], [0], [0], [1], [0, 0, 1, 1], [], []>} : vector<128x128xf32>, vector<128x128xf32>, vector<128x128xf32> -> vector<128x128xf32>
    %267 = arith.addf %261, %266 : vector<128x128xf32>
    %c0_285 = arith.constant 0 : index
    %c3_286 = arith.constant 3 : index
    %c1_287 = arith.constant 1 : index
    %c0_288 = arith.constant 0 : index
    %268 = vector.load %arg14[%c0_285, %c3_286, %c1_287, %c0_288] : memref<2x12x12x128xf32, #tpu.memory_space<vmem>>, vector<2x8x8x128xf32>
    %269 = vector.shape_cast %268 : vector<2x8x8x128xf32> to vector<128x128xf32>
    %c16_289 = arith.constant 16 : index
    %c0_290 = arith.constant 0 : index
    %c0_291 = arith.constant 0 : index
    %270 = vector.load %arg3[%c16_289, %c0_290, %c0_291] : memref<25x128x128xf32, #tpu.memory_space<vmem>>, vector<1x128x128xf32>
    %271 = vector.shape_cast %270 : vector<1x128x128xf32> to vector<128x128xf32>
    %cst_292 = arith.constant dense<0.000000e+00> : vector<128x128xf32>
    %272 = tpu.matmul %269, %271, %cst_292 {dimension_numbers = #tpu.dot_dimension_numbers<[1], [0], [0], [1], [0, 0, 1, 1], [], []>} : vector<128x128xf32>, vector<128x128xf32>, vector<128x128xf32> -> vector<128x128xf32>
    %273 = arith.addf %267, %272 : vector<128x128xf32>
    %c0_293 = arith.constant 0 : index
    %c3_294 = arith.constant 3 : index
    %c2_295 = arith.constant 2 : index
    %c0_296 = arith.constant 0 : index
    %274 = vector.load %arg14[%c0_293, %c3_294, %c2_295, %c0_296] : memref<2x12x12x128xf32, #tpu.memory_space<vmem>>, vector<2x8x8x128xf32>
    %275 = vector.shape_cast %274 : vector<2x8x8x128xf32> to vector<128x128xf32>
    %c17 = arith.constant 17 : index
    %c0_297 = arith.constant 0 : index
    %c0_298 = arith.constant 0 : index
    %276 = vector.load %arg3[%c17, %c0_297, %c0_298] : memref<25x128x128xf32, #tpu.memory_space<vmem>>, vector<1x128x128xf32>
    %277 = vector.shape_cast %276 : vector<1x128x128xf32> to vector<128x128xf32>
    %cst_299 = arith.constant dense<0.000000e+00> : vector<128x128xf32>
    %278 = tpu.matmul %275, %277, %cst_299 {dimension_numbers = #tpu.dot_dimension_numbers<[1], [0], [0], [1], [0, 0, 1, 1], [], []>} : vector<128x128xf32>, vector<128x128xf32>, vector<128x128xf32> -> vector<128x128xf32>
    %279 = arith.addf %273, %278 : vector<128x128xf32>
    %c0_300 = arith.constant 0 : index
    %c3_301 = arith.constant 3 : index
    %c3_302 = arith.constant 3 : index
    %c0_303 = arith.constant 0 : index
    %280 = vector.load %arg14[%c0_300, %c3_301, %c3_302, %c0_303] : memref<2x12x12x128xf32, #tpu.memory_space<vmem>>, vector<2x8x8x128xf32>
    %281 = vector.shape_cast %280 : vector<2x8x8x128xf32> to vector<128x128xf32>
    %c18 = arith.constant 18 : index
    %c0_304 = arith.constant 0 : index
    %c0_305 = arith.constant 0 : index
    %282 = vector.load %arg3[%c18, %c0_304, %c0_305] : memref<25x128x128xf32, #tpu.memory_space<vmem>>, vector<1x128x128xf32>
    %283 = vector.shape_cast %282 : vector<1x128x128xf32> to vector<128x128xf32>
    %cst_306 = arith.constant dense<0.000000e+00> : vector<128x128xf32>
    %284 = tpu.matmul %281, %283, %cst_306 {dimension_numbers = #tpu.dot_dimension_numbers<[1], [0], [0], [1], [0, 0, 1, 1], [], []>} : vector<128x128xf32>, vector<128x128xf32>, vector<128x128xf32> -> vector<128x128xf32>
    %285 = arith.addf %279, %284 : vector<128x128xf32>
    %c0_307 = arith.constant 0 : index
    %c3_308 = arith.constant 3 : index
    %c4_309 = arith.constant 4 : index
    %c0_310 = arith.constant 0 : index
    %286 = vector.load %arg14[%c0_307, %c3_308, %c4_309, %c0_310] : memref<2x12x12x128xf32, #tpu.memory_space<vmem>>, vector<2x8x8x128xf32>
    %287 = vector.shape_cast %286 : vector<2x8x8x128xf32> to vector<128x128xf32>
    %c19 = arith.constant 19 : index
    %c0_311 = arith.constant 0 : index
    %c0_312 = arith.constant 0 : index
    %288 = vector.load %arg3[%c19, %c0_311, %c0_312] : memref<25x128x128xf32, #tpu.memory_space<vmem>>, vector<1x128x128xf32>
    %289 = vector.shape_cast %288 : vector<1x128x128xf32> to vector<128x128xf32>
    %cst_313 = arith.constant dense<0.000000e+00> : vector<128x128xf32>
    %290 = tpu.matmul %287, %289, %cst_313 {dimension_numbers = #tpu.dot_dimension_numbers<[1], [0], [0], [1], [0, 0, 1, 1], [], []>} : vector<128x128xf32>, vector<128x128xf32>, vector<128x128xf32> -> vector<128x128xf32>
    %291 = arith.addf %285, %290 : vector<128x128xf32>
    %c0_314 = arith.constant 0 : index
    %c4_315 = arith.constant 4 : index
    %c0_316 = arith.constant 0 : index
    %c0_317 = arith.constant 0 : index
    %292 = vector.load %arg14[%c0_314, %c4_315, %c0_316, %c0_317] : memref<2x12x12x128xf32, #tpu.memory_space<vmem>>, vector<2x8x8x128xf32>
    %293 = vector.shape_cast %292 : vector<2x8x8x128xf32> to vector<128x128xf32>
    %c20 = arith.constant 20 : index
    %c0_318 = arith.constant 0 : index
    %c0_319 = arith.constant 0 : index
    %294 = vector.load %arg3[%c20, %c0_318, %c0_319] : memref<25x128x128xf32, #tpu.memory_space<vmem>>, vector<1x128x128xf32>
    %295 = vector.shape_cast %294 : vector<1x128x128xf32> to vector<128x128xf32>
    %cst_320 = arith.constant dense<0.000000e+00> : vector<128x128xf32>
    %296 = tpu.matmul %293, %295, %cst_320 {dimension_numbers = #tpu.dot_dimension_numbers<[1], [0], [0], [1], [0, 0, 1, 1], [], []>} : vector<128x128xf32>, vector<128x128xf32>, vector<128x128xf32> -> vector<128x128xf32>
    %297 = arith.addf %291, %296 : vector<128x128xf32>
    %c0_321 = arith.constant 0 : index
    %c4_322 = arith.constant 4 : index
    %c1_323 = arith.constant 1 : index
    %c0_324 = arith.constant 0 : index
    %298 = vector.load %arg14[%c0_321, %c4_322, %c1_323, %c0_324] : memref<2x12x12x128xf32, #tpu.memory_space<vmem>>, vector<2x8x8x128xf32>
    %299 = vector.shape_cast %298 : vector<2x8x8x128xf32> to vector<128x128xf32>
    %c21 = arith.constant 21 : index
    %c0_325 = arith.constant 0 : index
    %c0_326 = arith.constant 0 : index
    %300 = vector.load %arg3[%c21, %c0_325, %c0_326] : memref<25x128x128xf32, #tpu.memory_space<vmem>>, vector<1x128x128xf32>
    %301 = vector.shape_cast %300 : vector<1x128x128xf32> to vector<128x128xf32>
    %cst_327 = arith.constant dense<0.000000e+00> : vector<128x128xf32>
    %302 = tpu.matmul %299, %301, %cst_327 {dimension_numbers = #tpu.dot_dimension_numbers<[1], [0], [0], [1], [0, 0, 1, 1], [], []>} : vector<128x128xf32>, vector<128x128xf32>, vector<128x128xf32> -> vector<128x128xf32>
    %303 = arith.addf %297, %302 : vector<128x128xf32>
    %c0_328 = arith.constant 0 : index
    %c4_329 = arith.constant 4 : index
    %c2_330 = arith.constant 2 : index
    %c0_331 = arith.constant 0 : index
    %304 = vector.load %arg14[%c0_328, %c4_329, %c2_330, %c0_331] : memref<2x12x12x128xf32, #tpu.memory_space<vmem>>, vector<2x8x8x128xf32>
    %305 = vector.shape_cast %304 : vector<2x8x8x128xf32> to vector<128x128xf32>
    %c22 = arith.constant 22 : index
    %c0_332 = arith.constant 0 : index
    %c0_333 = arith.constant 0 : index
    %306 = vector.load %arg3[%c22, %c0_332, %c0_333] : memref<25x128x128xf32, #tpu.memory_space<vmem>>, vector<1x128x128xf32>
    %307 = vector.shape_cast %306 : vector<1x128x128xf32> to vector<128x128xf32>
    %cst_334 = arith.constant dense<0.000000e+00> : vector<128x128xf32>
    %308 = tpu.matmul %305, %307, %cst_334 {dimension_numbers = #tpu.dot_dimension_numbers<[1], [0], [0], [1], [0, 0, 1, 1], [], []>} : vector<128x128xf32>, vector<128x128xf32>, vector<128x128xf32> -> vector<128x128xf32>
    %309 = arith.addf %303, %308 : vector<128x128xf32>
    %c0_335 = arith.constant 0 : index
    %c4_336 = arith.constant 4 : index
    %c3_337 = arith.constant 3 : index
    %c0_338 = arith.constant 0 : index
    %310 = vector.load %arg14[%c0_335, %c4_336, %c3_337, %c0_338] : memref<2x12x12x128xf32, #tpu.memory_space<vmem>>, vector<2x8x8x128xf32>
    %311 = vector.shape_cast %310 : vector<2x8x8x128xf32> to vector<128x128xf32>
    %c23 = arith.constant 23 : index
    %c0_339 = arith.constant 0 : index
    %c0_340 = arith.constant 0 : index
    %312 = vector.load %arg3[%c23, %c0_339, %c0_340] : memref<25x128x128xf32, #tpu.memory_space<vmem>>, vector<1x128x128xf32>
    %313 = vector.shape_cast %312 : vector<1x128x128xf32> to vector<128x128xf32>
    %cst_341 = arith.constant dense<0.000000e+00> : vector<128x128xf32>
    %314 = tpu.matmul %311, %313, %cst_341 {dimension_numbers = #tpu.dot_dimension_numbers<[1], [0], [0], [1], [0, 0, 1, 1], [], []>} : vector<128x128xf32>, vector<128x128xf32>, vector<128x128xf32> -> vector<128x128xf32>
    %315 = arith.addf %309, %314 : vector<128x128xf32>
    %c0_342 = arith.constant 0 : index
    %c4_343 = arith.constant 4 : index
    %c4_344 = arith.constant 4 : index
    %c0_345 = arith.constant 0 : index
    %316 = vector.load %arg14[%c0_342, %c4_343, %c4_344, %c0_345] : memref<2x12x12x128xf32, #tpu.memory_space<vmem>>, vector<2x8x8x128xf32>
    %317 = vector.shape_cast %316 : vector<2x8x8x128xf32> to vector<128x128xf32>
    %c24 = arith.constant 24 : index
    %c0_346 = arith.constant 0 : index
    %c0_347 = arith.constant 0 : index
    %318 = vector.load %arg3[%c24, %c0_346, %c0_347] : memref<25x128x128xf32, #tpu.memory_space<vmem>>, vector<1x128x128xf32>
    %319 = vector.shape_cast %318 : vector<1x128x128xf32> to vector<128x128xf32>
    %cst_348 = arith.constant dense<0.000000e+00> : vector<128x128xf32>
    %320 = tpu.matmul %317, %319, %cst_348 {dimension_numbers = #tpu.dot_dimension_numbers<[1], [0], [0], [1], [0, 0, 1, 1], [], []>} : vector<128x128xf32>, vector<128x128xf32>, vector<128x128xf32> -> vector<128x128xf32>
    %321 = arith.addf %315, %320 : vector<128x128xf32>
    %322 = vector.broadcast %172 : vector<1x128xf32> to vector<128x128xf32>
    %323 = arith.addf %321, %322 : vector<128x128xf32>
    %cst_349 = arith.constant 0.000000e+00 : f32
    %324 = vector.broadcast %cst_349 : f32 to vector<128x128xf32>
    %325 = arith.maximumf %323, %324 : vector<128x128xf32>
    %326 = vector.shape_cast %325 : vector<128x128xf32> to vector<2x8x8x128xf32>
    %cst_350 = arith.constant 0.000000e+00 : f32
    %327 = vector.broadcast %cst_350 : f32 to vector<2x5x5x128xf32>
    %c0_351 = arith.constant 0 : index
    %c0_352 = arith.constant 0 : index
    %c0_353 = arith.constant 0 : index
    %c0_354 = arith.constant 0 : index
    %328 = vector.load %arg15[%c0_351, %c0_352, %c0_353, %c0_354] : memref<2x5x5x128xf32, #tpu.memory_space<vmem>>, vector<2x5x5x128xf32>
    tpu.vector_store %arg15[%c0_351, %c0_352, %c0_353, %c0_354], %327 {strides = array<i32>} : memref<2x5x5x128xf32, #tpu.memory_space<vmem>>, vector<2x5x5x128xf32>,
    %329 = vector.extract_strided_slice %326 {offsets = [0, 0, 0, 0], sizes = [2, 1, 8, 128], strides = [1, 1, 1, 1]} : vector<2x8x8x128xf32> to vector<2x1x8x128xf32>
    %330 = vector.shape_cast %329 : vector<2x1x8x128xf32> to vector<2x8x128xf32>
    %331 = vector.extract_strided_slice %326 {offsets = [0, 1, 0, 0], sizes = [2, 1, 8, 128], strides = [1, 1, 1, 1]} : vector<2x8x8x128xf32> to vector<2x1x8x128xf32>
    %332 = vector.shape_cast %331 : vector<2x1x8x128xf32> to vector<2x8x128xf32>
    %333 = arith.maximumf %330, %332 : vector<2x8x128xf32>
    %334 = vector.extract_strided_slice %326 {offsets = [0, 2, 0, 0], sizes = [2, 1, 8, 128], strides = [1, 1, 1, 1]} : vector<2x8x8x128xf32> to vector<2x1x8x128xf32>
    %335 = vector.shape_cast %334 : vector<2x1x8x128xf32> to vector<2x8x128xf32>
    %336 = arith.maximumf %333, %335 : vector<2x8x128xf32>
    %337 = vector.shape_cast %336 : vector<2x8x128xf32> to vector<2x1x8x128xf32>
    %c0_355 = arith.constant 0 : index
    %c0_356 = arith.constant 0 : index
    %c0_357 = arith.constant 0 : index
    %c0_358 = arith.constant 0 : index
    %338 = vector.load %arg13[%c0_355, %c0_356, %c0_357, %c0_358] : memref<2x3x8x128xf32, #tpu.memory_space<vmem>>, vector<2x1x8x128xf32>
    tpu.vector_store %arg13[%c0_355, %c0_356, %c0_357, %c0_358], %337 {strides = array<i32>} : memref<2x3x8x128xf32, #tpu.memory_space<vmem>>, vector<2x1x8x128xf32>,
    %339 = vector.extract_strided_slice %326 {offsets = [0, 2, 0, 0], sizes = [2, 1, 8, 128], strides = [1, 1, 1, 1]} : vector<2x8x8x128xf32> to vector<2x1x8x128xf32>
    %340 = vector.shape_cast %339 : vector<2x1x8x128xf32> to vector<2x8x128xf32>
    %341 = vector.extract_strided_slice %326 {offsets = [0, 3, 0, 0], sizes = [2, 1, 8, 128], strides = [1, 1, 1, 1]} : vector<2x8x8x128xf32> to vector<2x1x8x128xf32>
    %342 = vector.shape_cast %341 : vector<2x1x8x128xf32> to vector<2x8x128xf32>
    %343 = arith.maximumf %340, %342 : vector<2x8x128xf32>
    %344 = vector.extract_strided_slice %326 {offsets = [0, 4, 0, 0], sizes = [2, 1, 8, 128], strides = [1, 1, 1, 1]} : vector<2x8x8x128xf32> to vector<2x1x8x128xf32>
    %345 = vector.shape_cast %344 : vector<2x1x8x128xf32> to vector<2x8x128xf32>
    %346 = arith.maximumf %343, %345 : vector<2x8x128xf32>
    %347 = vector.shape_cast %346 : vector<2x8x128xf32> to vector<2x1x8x128xf32>
    %c0_359 = arith.constant 0 : index
    %c1_360 = arith.constant 1 : index
    %c0_361 = arith.constant 0 : index
    %c0_362 = arith.constant 0 : index
    %348 = vector.load %arg13[%c0_359, %c1_360, %c0_361, %c0_362] : memref<2x3x8x128xf32, #tpu.memory_space<vmem>>, vector<2x1x8x128xf32>
    tpu.vector_store %arg13[%c0_359, %c1_360, %c0_361, %c0_362], %347 {strides = array<i32>} : memref<2x3x8x128xf32, #tpu.memory_space<vmem>>, vector<2x1x8x128xf32>,
    %349 = vector.extract_strided_slice %326 {offsets = [0, 4, 0, 0], sizes = [2, 1, 8, 128], strides = [1, 1, 1, 1]} : vector<2x8x8x128xf32> to vector<2x1x8x128xf32>
    %350 = vector.shape_cast %349 : vector<2x1x8x128xf32> to vector<2x8x128xf32>
    %351 = vector.extract_strided_slice %326 {offsets = [0, 5, 0, 0], sizes = [2, 1, 8, 128], strides = [1, 1, 1, 1]} : vector<2x8x8x128xf32> to vector<2x1x8x128xf32>
    %352 = vector.shape_cast %351 : vector<2x1x8x128xf32> to vector<2x8x128xf32>
    %353 = arith.maximumf %350, %352 : vector<2x8x128xf32>
    %354 = vector.extract_strided_slice %326 {offsets = [0, 6, 0, 0], sizes = [2, 1, 8, 128], strides = [1, 1, 1, 1]} : vector<2x8x8x128xf32> to vector<2x1x8x128xf32>
    %355 = vector.shape_cast %354 : vector<2x1x8x128xf32> to vector<2x8x128xf32>
    %356 = arith.maximumf %353, %355 : vector<2x8x128xf32>
    %357 = vector.shape_cast %356 : vector<2x8x128xf32> to vector<2x1x8x128xf32>
    %c0_363 = arith.constant 0 : index
    %c2_364 = arith.constant 2 : index
    %c0_365 = arith.constant 0 : index
    %c0_366 = arith.constant 0 : index
    %358 = vector.load %arg13[%c0_363, %c2_364, %c0_365, %c0_366] : memref<2x3x8x128xf32, #tpu.memory_space<vmem>>, vector<2x1x8x128xf32>
    tpu.vector_store %arg13[%c0_363, %c2_364, %c0_365, %c0_366], %357 {strides = array<i32>} : memref<2x3x8x128xf32, #tpu.memory_space<vmem>>, vector<2x1x8x128xf32>,
    %c0_367 = arith.constant 0 : index
    %c0_368 = arith.constant 0 : index
    %c0_369 = arith.constant 0 : index
    %c0_370 = arith.constant 0 : index
    %359 = vector.load %arg13[%c0_367, %c0_368, %c0_369, %c0_370] : memref<2x3x8x128xf32, #tpu.memory_space<vmem>>, vector<2x3x1x128xf32>
    %360 = vector.shape_cast %359 : vector<2x3x1x128xf32> to vector<2x3x128xf32>
    %c0_371 = arith.constant 0 : index
    %c0_372 = arith.constant 0 : index
    %c1_373 = arith.constant 1 : index
    %c0_374 = arith.constant 0 : index
    %361 = vector.load %arg13[%c0_371, %c0_372, %c1_373, %c0_374] : memref<2x3x8x128xf32, #tpu.memory_space<vmem>>, vector<2x3x1x128xf32>
    %362 = vector.shape_cast %361 : vector<2x3x1x128xf32> to vector<2x3x128xf32>
    %363 = arith.maximumf %360, %362 : vector<2x3x128xf32>
    %c0_375 = arith.constant 0 : index
    %c0_376 = arith.constant 0 : index
    %c2_377 = arith.constant 2 : index
    %c0_378 = arith.constant 0 : index
    %364 = vector.load %arg13[%c0_375, %c0_376, %c2_377, %c0_378] : memref<2x3x8x128xf32, #tpu.memory_space<vmem>>, vector<2x3x1x128xf32>
    %365 = vector.shape_cast %364 : vector<2x3x1x128xf32> to vector<2x3x128xf32>
    %366 = arith.maximumf %363, %365 : vector<2x3x128xf32>
    %367 = vector.shape_cast %366 : vector<2x3x128xf32> to vector<2x3x1x128xf32>
    %c0_379 = arith.constant 0 : index
    %c1_380 = arith.constant 1 : index
    %c1_381 = arith.constant 1 : index
    %c0_382 = arith.constant 0 : index
    %368 = vector.load %arg15[%c0_379, %c1_380, %c1_381, %c0_382] : memref<2x5x5x128xf32, #tpu.memory_space<vmem>>, vector<2x3x1x128xf32>
    tpu.vector_store %arg15[%c0_379, %c1_380, %c1_381, %c0_382], %367 {strides = array<i32>} : memref<2x5x5x128xf32, #tpu.memory_space<vmem>>, vector<2x3x1x128xf32>,
    %c0_383 = arith.constant 0 : index
    %c0_384 = arith.constant 0 : index
    %c2_385 = arith.constant 2 : index
    %c0_386 = arith.constant 0 : index
    %369 = vector.load %arg13[%c0_383, %c0_384, %c2_385, %c0_386] : memref<2x3x8x128xf32, #tpu.memory_space<vmem>>, vector<2x3x1x128xf32>
    %370 = vector.shape_cast %369 : vector<2x3x1x128xf32> to vector<2x3x128xf32>
    %c0_387 = arith.constant 0 : index
    %c0_388 = arith.constant 0 : index
    %c3_389 = arith.constant 3 : index
    %c0_390 = arith.constant 0 : index
    %371 = vector.load %arg13[%c0_387, %c0_388, %c3_389, %c0_390] : memref<2x3x8x128xf32, #tpu.memory_space<vmem>>, vector<2x3x1x128xf32>
    %372 = vector.shape_cast %371 : vector<2x3x1x128xf32> to vector<2x3x128xf32>
    %373 = arith.maximumf %370, %372 : vector<2x3x128xf32>
    %c0_391 = arith.constant 0 : index
    %c0_392 = arith.constant 0 : index
    %c4_393 = arith.constant 4 : index
    %c0_394 = arith.constant 0 : index
    %374 = vector.load %arg13[%c0_391, %c0_392, %c4_393, %c0_394] : memref<2x3x8x128xf32, #tpu.memory_space<vmem>>, vector<2x3x1x128xf32>
    %375 = vector.shape_cast %374 : vector<2x3x1x128xf32> to vector<2x3x128xf32>
    %376 = arith.maximumf %373, %375 : vector<2x3x128xf32>
    %377 = vector.shape_cast %376 : vector<2x3x128xf32> to vector<2x3x1x128xf32>
    %c0_395 = arith.constant 0 : index
    %c1_396 = arith.constant 1 : index
    %c2_397 = arith.constant 2 : index
    %c0_398 = arith.constant 0 : index
    %378 = vector.load %arg15[%c0_395, %c1_396, %c2_397, %c0_398] : memref<2x5x5x128xf32, #tpu.memory_space<vmem>>, vector<2x3x1x128xf32>
    tpu.vector_store %arg15[%c0_395, %c1_396, %c2_397, %c0_398], %377 {strides = array<i32>} : memref<2x5x5x128xf32, #tpu.memory_space<vmem>>, vector<2x3x1x128xf32>,
    %c0_399 = arith.constant 0 : index
    %c0_400 = arith.constant 0 : index
    %c4_401 = arith.constant 4 : index
    %c0_402 = arith.constant 0 : index
    %379 = vector.load %arg13[%c0_399, %c0_400, %c4_401, %c0_402] : memref<2x3x8x128xf32, #tpu.memory_space<vmem>>, vector<2x3x1x128xf32>
    %380 = vector.shape_cast %379 : vector<2x3x1x128xf32> to vector<2x3x128xf32>
    %c0_403 = arith.constant 0 : index
    %c0_404 = arith.constant 0 : index
    %c5_405 = arith.constant 5 : index
    %c0_406 = arith.constant 0 : index
    %381 = vector.load %arg13[%c0_403, %c0_404, %c5_405, %c0_406] : memref<2x3x8x128xf32, #tpu.memory_space<vmem>>, vector<2x3x1x128xf32>
    %382 = vector.shape_cast %381 : vector<2x3x1x128xf32> to vector<2x3x128xf32>
    %383 = arith.maximumf %380, %382 : vector<2x3x128xf32>
    %c0_407 = arith.constant 0 : index
    %c0_408 = arith.constant 0 : index
    %c6_409 = arith.constant 6 : index
    %c0_410 = arith.constant 0 : index
    %384 = vector.load %arg13[%c0_407, %c0_408, %c6_409, %c0_410] : memref<2x3x8x128xf32, #tpu.memory_space<vmem>>, vector<2x3x1x128xf32>
    %385 = vector.shape_cast %384 : vector<2x3x1x128xf32> to vector<2x3x128xf32>
    %386 = arith.maximumf %383, %385 : vector<2x3x128xf32>
    %387 = vector.shape_cast %386 : vector<2x3x128xf32> to vector<2x3x1x128xf32>
    %c0_411 = arith.constant 0 : index
    %c1_412 = arith.constant 1 : index
    %c3_413 = arith.constant 3 : index
    %c0_414 = arith.constant 0 : index
    %388 = vector.load %arg15[%c0_411, %c1_412, %c3_413, %c0_414] : memref<2x5x5x128xf32, #tpu.memory_space<vmem>>, vector<2x3x1x128xf32>
    tpu.vector_store %arg15[%c0_411, %c1_412, %c3_413, %c0_414], %387 {strides = array<i32>} : memref<2x5x5x128xf32, #tpu.memory_space<vmem>>, vector<2x3x1x128xf32>,
    %c2_415 = arith.constant 2 : index
    %c0_416 = arith.constant 0 : index
    %389 = vector.load %arg10[%c2_415, %c0_416] : memref<8x128xf32, #tpu.memory_space<vmem>>, vector<1x128xf32>
    %c0_417 = arith.constant 0 : index
    %c0_418 = arith.constant 0 : index
    %c0_419 = arith.constant 0 : index
    %c0_420 = arith.constant 0 : index
    %390 = vector.load %arg15[%c0_417, %c0_418, %c0_419, %c0_420] : memref<2x5x5x128xf32, #tpu.memory_space<vmem>>, vector<2x3x3x128xf32>
    %391 = vector.shape_cast %390 : vector<2x3x3x128xf32> to vector<18x128xf32>
    %c0_421 = arith.constant 0 : index
    %c0_422 = arith.constant 0 : index
    %c0_423 = arith.constant 0 : index
    %392 = vector.load %arg4[%c0_421, %c0_422, %c0_423] : memref<9x128x128xf32, #tpu.memory_space<vmem>>, vector<1x128x128xf32>
    %393 = vector.shape_cast %392 : vector<1x128x128xf32> to vector<128x128xf32>
    %cst_424 = arith.constant dense<0.000000e+00> : vector<18x128xf32>
    %394 = tpu.matmul %391, %393, %cst_424 {dimension_numbers = #tpu.dot_dimension_numbers<[1], [0], [0], [1], [0, 0, 1, 1], [], []>} : vector<18x128xf32>, vector<128x128xf32>, vector<18x128xf32> -> vector<18x128xf32>
    %c0_425 = arith.constant 0 : index
    %c0_426 = arith.constant 0 : index
    %c1_427 = arith.constant 1 : index
    %c0_428 = arith.constant 0 : index
    %395 = vector.load %arg15[%c0_425, %c0_426, %c1_427, %c0_428] : memref<2x5x5x128xf32, #tpu.memory_space<vmem>>, vector<2x3x3x128xf32>
    %396 = vector.shape_cast %395 : vector<2x3x3x128xf32> to vector<18x128xf32>
    %c1_429 = arith.constant 1 : index
    %c0_430 = arith.constant 0 : index
    %c0_431 = arith.constant 0 : index
    %397 = vector.load %arg4[%c1_429, %c0_430, %c0_431] : memref<9x128x128xf32, #tpu.memory_space<vmem>>, vector<1x128x128xf32>
    %398 = vector.shape_cast %397 : vector<1x128x128xf32> to vector<128x128xf32>
    %cst_432 = arith.constant dense<0.000000e+00> : vector<18x128xf32>
    %399 = tpu.matmul %396, %398, %cst_432 {dimension_numbers = #tpu.dot_dimension_numbers<[1], [0], [0], [1], [0, 0, 1, 1], [], []>} : vector<18x128xf32>, vector<128x128xf32>, vector<18x128xf32> -> vector<18x128xf32>
    %400 = arith.addf %394, %399 : vector<18x128xf32>
    %c0_433 = arith.constant 0 : index
    %c0_434 = arith.constant 0 : index
    %c2_435 = arith.constant 2 : index
    %c0_436 = arith.constant 0 : index
    %401 = vector.load %arg15[%c0_433, %c0_434, %c2_435, %c0_436] : memref<2x5x5x128xf32, #tpu.memory_space<vmem>>, vector<2x3x3x128xf32>
    %402 = vector.shape_cast %401 : vector<2x3x3x128xf32> to vector<18x128xf32>
    %c2_437 = arith.constant 2 : index
    %c0_438 = arith.constant 0 : index
    %c0_439 = arith.constant 0 : index
    %403 = vector.load %arg4[%c2_437, %c0_438, %c0_439] : memref<9x128x128xf32, #tpu.memory_space<vmem>>, vector<1x128x128xf32>
    %404 = vector.shape_cast %403 : vector<1x128x128xf32> to vector<128x128xf32>
    %cst_440 = arith.constant dense<0.000000e+00> : vector<18x128xf32>
    %405 = tpu.matmul %402, %404, %cst_440 {dimension_numbers = #tpu.dot_dimension_numbers<[1], [0], [0], [1], [0, 0, 1, 1], [], []>} : vector<18x128xf32>, vector<128x128xf32>, vector<18x128xf32> -> vector<18x128xf32>
    %406 = arith.addf %400, %405 : vector<18x128xf32>
    %c0_441 = arith.constant 0 : index
    %c1_442 = arith.constant 1 : index
    %c0_443 = arith.constant 0 : index
    %c0_444 = arith.constant 0 : index
    %407 = vector.load %arg15[%c0_441, %c1_442, %c0_443, %c0_444] : memref<2x5x5x128xf32, #tpu.memory_space<vmem>>, vector<2x3x3x128xf32>
    %408 = vector.shape_cast %407 : vector<2x3x3x128xf32> to vector<18x128xf32>
    %c3_445 = arith.constant 3 : index
    %c0_446 = arith.constant 0 : index
    %c0_447 = arith.constant 0 : index
    %409 = vector.load %arg4[%c3_445, %c0_446, %c0_447] : memref<9x128x128xf32, #tpu.memory_space<vmem>>, vector<1x128x128xf32>
    %410 = vector.shape_cast %409 : vector<1x128x128xf32> to vector<128x128xf32>
    %cst_448 = arith.constant dense<0.000000e+00> : vector<18x128xf32>
    %411 = tpu.matmul %408, %410, %cst_448 {dimension_numbers = #tpu.dot_dimension_numbers<[1], [0], [0], [1], [0, 0, 1, 1], [], []>} : vector<18x128xf32>, vector<128x128xf32>, vector<18x128xf32> -> vector<18x128xf32>
    %412 = arith.addf %406, %411 : vector<18x128xf32>
    %c0_449 = arith.constant 0 : index
    %c1_450 = arith.constant 1 : index
    %c1_451 = arith.constant 1 : index
    %c0_452 = arith.constant 0 : index
    %413 = vector.load %arg15[%c0_449, %c1_450, %c1_451, %c0_452] : memref<2x5x5x128xf32, #tpu.memory_space<vmem>>, vector<2x3x3x128xf32>
    %414 = vector.shape_cast %413 : vector<2x3x3x128xf32> to vector<18x128xf32>
    %c4_453 = arith.constant 4 : index
    %c0_454 = arith.constant 0 : index
    %c0_455 = arith.constant 0 : index
    %415 = vector.load %arg4[%c4_453, %c0_454, %c0_455] : memref<9x128x128xf32, #tpu.memory_space<vmem>>, vector<1x128x128xf32>
    %416 = vector.shape_cast %415 : vector<1x128x128xf32> to vector<128x128xf32>
    %cst_456 = arith.constant dense<0.000000e+00> : vector<18x128xf32>
    %417 = tpu.matmul %414, %416, %cst_456 {dimension_numbers = #tpu.dot_dimension_numbers<[1], [0], [0], [1], [0, 0, 1, 1], [], []>} : vector<18x128xf32>, vector<128x128xf32>, vector<18x128xf32> -> vector<18x128xf32>
    %418 = arith.addf %412, %417 : vector<18x128xf32>
    %c0_457 = arith.constant 0 : index
    %c1_458 = arith.constant 1 : index
    %c2_459 = arith.constant 2 : index
    %c0_460 = arith.constant 0 : index
    %419 = vector.load %arg15[%c0_457, %c1_458, %c2_459, %c0_460] : memref<2x5x5x128xf32, #tpu.memory_space<vmem>>, vector<2x3x3x128xf32>
    %420 = vector.shape_cast %419 : vector<2x3x3x128xf32> to vector<18x128xf32>
    %c5_461 = arith.constant 5 : index
    %c0_462 = arith.constant 0 : index
    %c0_463 = arith.constant 0 : index
    %421 = vector.load %arg4[%c5_461, %c0_462, %c0_463] : memref<9x128x128xf32, #tpu.memory_space<vmem>>, vector<1x128x128xf32>
    %422 = vector.shape_cast %421 : vector<1x128x128xf32> to vector<128x128xf32>
    %cst_464 = arith.constant dense<0.000000e+00> : vector<18x128xf32>
    %423 = tpu.matmul %420, %422, %cst_464 {dimension_numbers = #tpu.dot_dimension_numbers<[1], [0], [0], [1], [0, 0, 1, 1], [], []>} : vector<18x128xf32>, vector<128x128xf32>, vector<18x128xf32> -> vector<18x128xf32>
    %424 = arith.addf %418, %423 : vector<18x128xf32>
    %c0_465 = arith.constant 0 : index
    %c2_466 = arith.constant 2 : index
    %c0_467 = arith.constant 0 : index
    %c0_468 = arith.constant 0 : index
    %425 = vector.load %arg15[%c0_465, %c2_466, %c0_467, %c0_468] : memref<2x5x5x128xf32, #tpu.memory_space<vmem>>, vector<2x3x3x128xf32>
    %426 = vector.shape_cast %425 : vector<2x3x3x128xf32> to vector<18x128xf32>
    %c6_469 = arith.constant 6 : index
    %c0_470 = arith.constant 0 : index
    %c0_471 = arith.constant 0 : index
    %427 = vector.load %arg4[%c6_469, %c0_470, %c0_471] : memref<9x128x128xf32, #tpu.memory_space<vmem>>, vector<1x128x128xf32>
    %428 = vector.shape_cast %427 : vector<1x128x128xf32> to vector<128x128xf32>
    %cst_472 = arith.constant dense<0.000000e+00> : vector<18x128xf32>
    %429 = tpu.matmul %426, %428, %cst_472 {dimension_numbers = #tpu.dot_dimension_numbers<[1], [0], [0], [1], [0, 0, 1, 1], [], []>} : vector<18x128xf32>, vector<128x128xf32>, vector<18x128xf32> -> vector<18x128xf32>
    %430 = arith.addf %424, %429 : vector<18x128xf32>
    %c0_473 = arith.constant 0 : index
    %c2_474 = arith.constant 2 : index
    %c1_475 = arith.constant 1 : index
    %c0_476 = arith.constant 0 : index
    %431 = vector.load %arg15[%c0_473, %c2_474, %c1_475, %c0_476] : memref<2x5x5x128xf32, #tpu.memory_space<vmem>>, vector<2x3x3x128xf32>
    %432 = vector.shape_cast %431 : vector<2x3x3x128xf32> to vector<18x128xf32>
    %c7_477 = arith.constant 7 : index
    %c0_478 = arith.constant 0 : index
    %c0_479 = arith.constant 0 : index
    %433 = vector.load %arg4[%c7_477, %c0_478, %c0_479] : memref<9x128x128xf32, #tpu.memory_space<vmem>>, vector<1x128x128xf32>
    %434 = vector.shape_cast %433 : vector<1x128x128xf32> to vector<128x128xf32>
    %cst_480 = arith.constant dense<0.000000e+00> : vector<18x128xf32>
    %435 = tpu.matmul %432, %434, %cst_480 {dimension_numbers = #tpu.dot_dimension_numbers<[1], [0], [0], [1], [0, 0, 1, 1], [], []>} : vector<18x128xf32>, vector<128x128xf32>, vector<18x128xf32> -> vector<18x128xf32>
    %436 = arith.addf %430, %435 : vector<18x128xf32>
    %c0_481 = arith.constant 0 : index
    %c2_482 = arith.constant 2 : index
    %c2_483 = arith.constant 2 : index
    %c0_484 = arith.constant 0 : index
    %437 = vector.load %arg15[%c0_481, %c2_482, %c2_483, %c0_484] : memref<2x5x5x128xf32, #tpu.memory_space<vmem>>, vector<2x3x3x128xf32>
    %438 = vector.shape_cast %437 : vector<2x3x3x128xf32> to vector<18x128xf32>
    %c8_485 = arith.constant 8 : index
    %c0_486 = arith.constant 0 : index
    %c0_487 = arith.constant 0 : index
    %439 = vector.load %arg4[%c8_485, %c0_486, %c0_487] : memref<9x128x128xf32, #tpu.memory_space<vmem>>, vector<1x128x128xf32>
    %440 = vector.shape_cast %439 : vector<1x128x128xf32> to vector<128x128xf32>
    %cst_488 = arith.constant dense<0.000000e+00> : vector<18x128xf32>
    %441 = tpu.matmul %438, %440, %cst_488 {dimension_numbers = #tpu.dot_dimension_numbers<[1], [0], [0], [1], [0, 0, 1, 1], [], []>} : vector<18x128xf32>, vector<128x128xf32>, vector<18x128xf32> -> vector<18x128xf32>
    %442 = arith.addf %436, %441 : vector<18x128xf32>
    %443 = vector.broadcast %389 : vector<1x128xf32> to vector<18x128xf32>
    %444 = arith.addf %442, %443 : vector<18x128xf32>
    %cst_489 = arith.constant 0.000000e+00 : f32
    %445 = vector.broadcast %cst_489 : f32 to vector<18x128xf32>
    %446 = arith.maximumf %444, %445 : vector<18x128xf32>
    %cst_490 = arith.constant 0.000000e+00 : f32
    %447 = vector.broadcast %cst_490 : f32 to vector<2x5x5x128xf32>
    %c0_491 = arith.constant 0 : index
    %c0_492 = arith.constant 0 : index
    %c0_493 = arith.constant 0 : index
    %c0_494 = arith.constant 0 : index
    %448 = vector.load %arg16[%c0_491, %c0_492, %c0_493, %c0_494] : memref<2x5x5x128xf32, #tpu.memory_space<vmem>>, vector<2x5x5x128xf32>
    tpu.vector_store %arg16[%c0_491, %c0_492, %c0_493, %c0_494], %447 {strides = array<i32>} : memref<2x5x5x128xf32, #tpu.memory_space<vmem>>, vector<2x5x5x128xf32>,
    %449 = vector.shape_cast %446 : vector<18x128xf32> to vector<2x3x3x128xf32>
    %c0_495 = arith.constant 0 : index
    %c1_496 = arith.constant 1 : index
    %c1_497 = arith.constant 1 : index
    %c0_498 = arith.constant 0 : index
    %450 = vector.load %arg16[%c0_495, %c1_496, %c1_497, %c0_498] : memref<2x5x5x128xf32, #tpu.memory_space<vmem>>, vector<2x3x3x128xf32>
    tpu.vector_store %arg16[%c0_495, %c1_496, %c1_497, %c0_498], %449 {strides = array<i32>} : memref<2x5x5x128xf32, #tpu.memory_space<vmem>>, vector<2x3x3x128xf32>,
    %c3_499 = arith.constant 3 : index
    %c0_500 = arith.constant 0 : index
    %451 = vector.load %arg10[%c3_499, %c0_500] : memref<8x128xf32, #tpu.memory_space<vmem>>, vector<1x128xf32>
    %c0_501 = arith.constant 0 : index
    %c0_502 = arith.constant 0 : index
    %c0_503 = arith.constant 0 : index
    %c0_504 = arith.constant 0 : index
    %452 = vector.load %arg16[%c0_501, %c0_502, %c0_503, %c0_504] : memref<2x5x5x128xf32, #tpu.memory_space<vmem>>, vector<2x3x3x128xf32>
    %453 = vector.shape_cast %452 : vector<2x3x3x128xf32> to vector<18x128xf32>
    %c0_505 = arith.constant 0 : index
    %c0_506 = arith.constant 0 : index
    %c0_507 = arith.constant 0 : index
    %454 = vector.load %arg5[%c0_505, %c0_506, %c0_507] : memref<9x128x128xf32, #tpu.memory_space<vmem>>, vector<1x128x128xf32>
    %455 = vector.shape_cast %454 : vector<1x128x128xf32> to vector<128x128xf32>
    %cst_508 = arith.constant dense<0.000000e+00> : vector<18x128xf32>
    %456 = tpu.matmul %453, %455, %cst_508 {dimension_numbers = #tpu.dot_dimension_numbers<[1], [0], [0], [1], [0, 0, 1, 1], [], []>} : vector<18x128xf32>, vector<128x128xf32>, vector<18x128xf32> -> vector<18x128xf32>
    %c0_509 = arith.constant 0 : index
    %c0_510 = arith.constant 0 : index
    %c1_511 = arith.constant 1 : index
    %c0_512 = arith.constant 0 : index
    %457 = vector.load %arg16[%c0_509, %c0_510, %c1_511, %c0_512] : memref<2x5x5x128xf32, #tpu.memory_space<vmem>>, vector<2x3x3x128xf32>
    %458 = vector.shape_cast %457 : vector<2x3x3x128xf32> to vector<18x128xf32>
    %c1_513 = arith.constant 1 : index
    %c0_514 = arith.constant 0 : index
    %c0_515 = arith.constant 0 : index
    %459 = vector.load %arg5[%c1_513, %c0_514, %c0_515] : memref<9x128x128xf32, #tpu.memory_space<vmem>>, vector<1x128x128xf32>
    %460 = vector.shape_cast %459 : vector<1x128x128xf32> to vector<128x128xf32>
    %cst_516 = arith.constant dense<0.000000e+00> : vector<18x128xf32>
    %461 = tpu.matmul %458, %460, %cst_516 {dimension_numbers = #tpu.dot_dimension_numbers<[1], [0], [0], [1], [0, 0, 1, 1], [], []>} : vector<18x128xf32>, vector<128x128xf32>, vector<18x128xf32> -> vector<18x128xf32>
    %462 = arith.addf %456, %461 : vector<18x128xf32>
    %c0_517 = arith.constant 0 : index
    %c0_518 = arith.constant 0 : index
    %c2_519 = arith.constant 2 : index
    %c0_520 = arith.constant 0 : index
    %463 = vector.load %arg16[%c0_517, %c0_518, %c2_519, %c0_520] : memref<2x5x5x128xf32, #tpu.memory_space<vmem>>, vector<2x3x3x128xf32>
    %464 = vector.shape_cast %463 : vector<2x3x3x128xf32> to vector<18x128xf32>
    %c2_521 = arith.constant 2 : index
    %c0_522 = arith.constant 0 : index
    %c0_523 = arith.constant 0 : index
    %465 = vector.load %arg5[%c2_521, %c0_522, %c0_523] : memref<9x128x128xf32, #tpu.memory_space<vmem>>, vector<1x128x128xf32>
    %466 = vector.shape_cast %465 : vector<1x128x128xf32> to vector<128x128xf32>
    %cst_524 = arith.constant dense<0.000000e+00> : vector<18x128xf32>
    %467 = tpu.matmul %464, %466, %cst_524 {dimension_numbers = #tpu.dot_dimension_numbers<[1], [0], [0], [1], [0, 0, 1, 1], [], []>} : vector<18x128xf32>, vector<128x128xf32>, vector<18x128xf32> -> vector<18x128xf32>
    %468 = arith.addf %462, %467 : vector<18x128xf32>
    %c0_525 = arith.constant 0 : index
    %c1_526 = arith.constant 1 : index
    %c0_527 = arith.constant 0 : index
    %c0_528 = arith.constant 0 : index
    %469 = vector.load %arg16[%c0_525, %c1_526, %c0_527, %c0_528] : memref<2x5x5x128xf32, #tpu.memory_space<vmem>>, vector<2x3x3x128xf32>
    %470 = vector.shape_cast %469 : vector<2x3x3x128xf32> to vector<18x128xf32>
    %c3_529 = arith.constant 3 : index
    %c0_530 = arith.constant 0 : index
    %c0_531 = arith.constant 0 : index
    %471 = vector.load %arg5[%c3_529, %c0_530, %c0_531] : memref<9x128x128xf32, #tpu.memory_space<vmem>>, vector<1x128x128xf32>
    %472 = vector.shape_cast %471 : vector<1x128x128xf32> to vector<128x128xf32>
    %cst_532 = arith.constant dense<0.000000e+00> : vector<18x128xf32>
    %473 = tpu.matmul %470, %472, %cst_532 {dimension_numbers = #tpu.dot_dimension_numbers<[1], [0], [0], [1], [0, 0, 1, 1], [], []>} : vector<18x128xf32>, vector<128x128xf32>, vector<18x128xf32> -> vector<18x128xf32>
    %474 = arith.addf %468, %473 : vector<18x128xf32>
    %c0_533 = arith.constant 0 : index
    %c1_534 = arith.constant 1 : index
    %c1_535 = arith.constant 1 : index
    %c0_536 = arith.constant 0 : index
    %475 = vector.load %arg16[%c0_533, %c1_534, %c1_535, %c0_536] : memref<2x5x5x128xf32, #tpu.memory_space<vmem>>, vector<2x3x3x128xf32>
    %476 = vector.shape_cast %475 : vector<2x3x3x128xf32> to vector<18x128xf32>
    %c4_537 = arith.constant 4 : index
    %c0_538 = arith.constant 0 : index
    %c0_539 = arith.constant 0 : index
    %477 = vector.load %arg5[%c4_537, %c0_538, %c0_539] : memref<9x128x128xf32, #tpu.memory_space<vmem>>, vector<1x128x128xf32>
    %478 = vector.shape_cast %477 : vector<1x128x128xf32> to vector<128x128xf32>
    %cst_540 = arith.constant dense<0.000000e+00> : vector<18x128xf32>
    %479 = tpu.matmul %476, %478, %cst_540 {dimension_numbers = #tpu.dot_dimension_numbers<[1], [0], [0], [1], [0, 0, 1, 1], [], []>} : vector<18x128xf32>, vector<128x128xf32>, vector<18x128xf32> -> vector<18x128xf32>
    %480 = arith.addf %474, %479 : vector<18x128xf32>
    %c0_541 = arith.constant 0 : index
    %c1_542 = arith.constant 1 : index
    %c2_543 = arith.constant 2 : index
    %c0_544 = arith.constant 0 : index
    %481 = vector.load %arg16[%c0_541, %c1_542, %c2_543, %c0_544] : memref<2x5x5x128xf32, #tpu.memory_space<vmem>>, vector<2x3x3x128xf32>
    %482 = vector.shape_cast %481 : vector<2x3x3x128xf32> to vector<18x128xf32>
    %c5_545 = arith.constant 5 : index
    %c0_546 = arith.constant 0 : index
    %c0_547 = arith.constant 0 : index
    %483 = vector.load %arg5[%c5_545, %c0_546, %c0_547] : memref<9x128x128xf32, #tpu.memory_space<vmem>>, vector<1x128x128xf32>
    %484 = vector.shape_cast %483 : vector<1x128x128xf32> to vector<128x128xf32>
    %cst_548 = arith.constant dense<0.000000e+00> : vector<18x128xf32>
    %485 = tpu.matmul %482, %484, %cst_548 {dimension_numbers = #tpu.dot_dimension_numbers<[1], [0], [0], [1], [0, 0, 1, 1], [], []>} : vector<18x128xf32>, vector<128x128xf32>, vector<18x128xf32> -> vector<18x128xf32>
    %486 = arith.addf %480, %485 : vector<18x128xf32>
    %c0_549 = arith.constant 0 : index
    %c2_550 = arith.constant 2 : index
    %c0_551 = arith.constant 0 : index
    %c0_552 = arith.constant 0 : index
    %487 = vector.load %arg16[%c0_549, %c2_550, %c0_551, %c0_552] : memref<2x5x5x128xf32, #tpu.memory_space<vmem>>, vector<2x3x3x128xf32>
    %488 = vector.shape_cast %487 : vector<2x3x3x128xf32> to vector<18x128xf32>
    %c6_553 = arith.constant 6 : index
    %c0_554 = arith.constant 0 : index
    %c0_555 = arith.constant 0 : index
    %489 = vector.load %arg5[%c6_553, %c0_554, %c0_555] : memref<9x128x128xf32, #tpu.memory_space<vmem>>, vector<1x128x128xf32>
    %490 = vector.shape_cast %489 : vector<1x128x128xf32> to vector<128x128xf32>
    %cst_556 = arith.constant dense<0.000000e+00> : vector<18x128xf32>
    %491 = tpu.matmul %488, %490, %cst_556 {dimension_numbers = #tpu.dot_dimension_numbers<[1], [0], [0], [1], [0, 0, 1, 1], [], []>} : vector<18x128xf32>, vector<128x128xf32>, vector<18x128xf32> -> vector<18x128xf32>
    %492 = arith.addf %486, %491 : vector<18x128xf32>
    %c0_557 = arith.constant 0 : index
    %c2_558 = arith.constant 2 : index
    %c1_559 = arith.constant 1 : index
    %c0_560 = arith.constant 0 : index
    %493 = vector.load %arg16[%c0_557, %c2_558, %c1_559, %c0_560] : memref<2x5x5x128xf32, #tpu.memory_space<vmem>>, vector<2x3x3x128xf32>
    %494 = vector.shape_cast %493 : vector<2x3x3x128xf32> to vector<18x128xf32>
    %c7_561 = arith.constant 7 : index
    %c0_562 = arith.constant 0 : index
    %c0_563 = arith.constant 0 : index
    %495 = vector.load %arg5[%c7_561, %c0_562, %c0_563] : memref<9x128x128xf32, #tpu.memory_space<vmem>>, vector<1x128x128xf32>
    %496 = vector.shape_cast %495 : vector<1x128x128xf32> to vector<128x128xf32>
    %cst_564 = arith.constant dense<0.000000e+00> : vector<18x128xf32>
    %497 = tpu.matmul %494, %496, %cst_564 {dimension_numbers = #tpu.dot_dimension_numbers<[1], [0], [0], [1], [0, 0, 1, 1], [], []>} : vector<18x128xf32>, vector<128x128xf32>, vector<18x128xf32> -> vector<18x128xf32>
    %498 = arith.addf %492, %497 : vector<18x128xf32>
    %c0_565 = arith.constant 0 : index
    %c2_566 = arith.constant 2 : index
    %c2_567 = arith.constant 2 : index
    %c0_568 = arith.constant 0 : index
    %499 = vector.load %arg16[%c0_565, %c2_566, %c2_567, %c0_568] : memref<2x5x5x128xf32, #tpu.memory_space<vmem>>, vector<2x3x3x128xf32>
    %500 = vector.shape_cast %499 : vector<2x3x3x128xf32> to vector<18x128xf32>
    %c8_569 = arith.constant 8 : index
    %c0_570 = arith.constant 0 : index
    %c0_571 = arith.constant 0 : index
    %501 = vector.load %arg5[%c8_569, %c0_570, %c0_571] : memref<9x128x128xf32, #tpu.memory_space<vmem>>, vector<1x128x128xf32>
    %502 = vector.shape_cast %501 : vector<1x128x128xf32> to vector<128x128xf32>
    %cst_572 = arith.constant dense<0.000000e+00> : vector<18x128xf32>
    %503 = tpu.matmul %500, %502, %cst_572 {dimension_numbers = #tpu.dot_dimension_numbers<[1], [0], [0], [1], [0, 0, 1, 1], [], []>} : vector<18x128xf32>, vector<128x128xf32>, vector<18x128xf32> -> vector<18x128xf32>
    %504 = arith.addf %498, %503 : vector<18x128xf32>
    %505 = vector.broadcast %451 : vector<1x128xf32> to vector<18x128xf32>
    %506 = arith.addf %504, %505 : vector<18x128xf32>
    %cst_573 = arith.constant 0.000000e+00 : f32
    %507 = vector.broadcast %cst_573 : f32 to vector<18x128xf32>
    %508 = arith.maximumf %506, %507 : vector<18x128xf32>
    %cst_574 = arith.constant 0.000000e+00 : f32
    %509 = vector.broadcast %cst_574 : f32 to vector<2x5x5x128xf32>
    %c0_575 = arith.constant 0 : index
    %c0_576 = arith.constant 0 : index
    %c0_577 = arith.constant 0 : index
    %c0_578 = arith.constant 0 : index
    %510 = vector.load %arg17[%c0_575, %c0_576, %c0_577, %c0_578] : memref<2x5x5x128xf32, #tpu.memory_space<vmem>>, vector<2x5x5x128xf32>
    tpu.vector_store %arg17[%c0_575, %c0_576, %c0_577, %c0_578], %509 {strides = array<i32>} : memref<2x5x5x128xf32, #tpu.memory_space<vmem>>, vector<2x5x5x128xf32>,
    %511 = vector.shape_cast %508 : vector<18x128xf32> to vector<2x3x3x128xf32>
    %c0_579 = arith.constant 0 : index
    %c1_580 = arith.constant 1 : index
    %c1_581 = arith.constant 1 : index
    %c0_582 = arith.constant 0 : index
    %512 = vector.load %arg17[%c0_579, %c1_580, %c1_581, %c0_582] : memref<2x5x5x128xf32, #tpu.memory_space<vmem>>, vector<2x3x3x128xf32>
    tpu.vector_store %arg17[%c0_579, %c1_580, %c1_581, %c0_582], %511 {strides = array<i32>} : memref<2x5x5x128xf32, #tpu.memory_space<vmem>>, vector<2x3x3x128xf32>,
    %c4_583 = arith.constant 4 : index
    %c0_584 = arith.constant 0 : index
    %513 = vector.load %arg10[%c4_583, %c0_584] : memref<8x128xf32, #tpu.memory_space<vmem>>, vector<1x128xf32>
    %c0_585 = arith.constant 0 : index
    %c0_586 = arith.constant 0 : index
    %c0_587 = arith.constant 0 : index
    %c0_588 = arith.constant 0 : index
    %514 = vector.load %arg17[%c0_585, %c0_586, %c0_587, %c0_588] : memref<2x5x5x128xf32, #tpu.memory_space<vmem>>, vector<2x3x3x128xf32>
    %515 = vector.shape_cast %514 : vector<2x3x3x128xf32> to vector<18x128xf32>
    %c0_589 = arith.constant 0 : index
    %c0_590 = arith.constant 0 : index
    %c0_591 = arith.constant 0 : index
    %516 = vector.load %arg6[%c0_589, %c0_590, %c0_591] : memref<9x128x128xf32, #tpu.memory_space<vmem>>, vector<1x128x128xf32>
    %517 = vector.shape_cast %516 : vector<1x128x128xf32> to vector<128x128xf32>
    %cst_592 = arith.constant dense<0.000000e+00> : vector<18x128xf32>
    %518 = tpu.matmul %515, %517, %cst_592 {dimension_numbers = #tpu.dot_dimension_numbers<[1], [0], [0], [1], [0, 0, 1, 1], [], []>} : vector<18x128xf32>, vector<128x128xf32>, vector<18x128xf32> -> vector<18x128xf32>
    %c0_593 = arith.constant 0 : index
    %c0_594 = arith.constant 0 : index
    %c1_595 = arith.constant 1 : index
    %c0_596 = arith.constant 0 : index
    %519 = vector.load %arg17[%c0_593, %c0_594, %c1_595, %c0_596] : memref<2x5x5x128xf32, #tpu.memory_space<vmem>>, vector<2x3x3x128xf32>
    %520 = vector.shape_cast %519 : vector<2x3x3x128xf32> to vector<18x128xf32>
    %c1_597 = arith.constant 1 : index
    %c0_598 = arith.constant 0 : index
    %c0_599 = arith.constant 0 : index
    %521 = vector.load %arg6[%c1_597, %c0_598, %c0_599] : memref<9x128x128xf32, #tpu.memory_space<vmem>>, vector<1x128x128xf32>
    %522 = vector.shape_cast %521 : vector<1x128x128xf32> to vector<128x128xf32>
    %cst_600 = arith.constant dense<0.000000e+00> : vector<18x128xf32>
    %523 = tpu.matmul %520, %522, %cst_600 {dimension_numbers = #tpu.dot_dimension_numbers<[1], [0], [0], [1], [0, 0, 1, 1], [], []>} : vector<18x128xf32>, vector<128x128xf32>, vector<18x128xf32> -> vector<18x128xf32>
    %524 = arith.addf %518, %523 : vector<18x128xf32>
    %c0_601 = arith.constant 0 : index
    %c0_602 = arith.constant 0 : index
    %c2_603 = arith.constant 2 : index
    %c0_604 = arith.constant 0 : index
    %525 = vector.load %arg17[%c0_601, %c0_602, %c2_603, %c0_604] : memref<2x5x5x128xf32, #tpu.memory_space<vmem>>, vector<2x3x3x128xf32>
    %526 = vector.shape_cast %525 : vector<2x3x3x128xf32> to vector<18x128xf32>
    %c2_605 = arith.constant 2 : index
    %c0_606 = arith.constant 0 : index
    %c0_607 = arith.constant 0 : index
    %527 = vector.load %arg6[%c2_605, %c0_606, %c0_607] : memref<9x128x128xf32, #tpu.memory_space<vmem>>, vector<1x128x128xf32>
    %528 = vector.shape_cast %527 : vector<1x128x128xf32> to vector<128x128xf32>
    %cst_608 = arith.constant dense<0.000000e+00> : vector<18x128xf32>
    %529 = tpu.matmul %526, %528, %cst_608 {dimension_numbers = #tpu.dot_dimension_numbers<[1], [0], [0], [1], [0, 0, 1, 1], [], []>} : vector<18x128xf32>, vector<128x128xf32>, vector<18x128xf32> -> vector<18x128xf32>
    %530 = arith.addf %524, %529 : vector<18x128xf32>
    %c0_609 = arith.constant 0 : index
    %c1_610 = arith.constant 1 : index
    %c0_611 = arith.constant 0 : index
    %c0_612 = arith.constant 0 : index
    %531 = vector.load %arg17[%c0_609, %c1_610, %c0_611, %c0_612] : memref<2x5x5x128xf32, #tpu.memory_space<vmem>>, vector<2x3x3x128xf32>
    %532 = vector.shape_cast %531 : vector<2x3x3x128xf32> to vector<18x128xf32>
    %c3_613 = arith.constant 3 : index
    %c0_614 = arith.constant 0 : index
    %c0_615 = arith.constant 0 : index
    %533 = vector.load %arg6[%c3_613, %c0_614, %c0_615] : memref<9x128x128xf32, #tpu.memory_space<vmem>>, vector<1x128x128xf32>
    %534 = vector.shape_cast %533 : vector<1x128x128xf32> to vector<128x128xf32>
    %cst_616 = arith.constant dense<0.000000e+00> : vector<18x128xf32>
    %535 = tpu.matmul %532, %534, %cst_616 {dimension_numbers = #tpu.dot_dimension_numbers<[1], [0], [0], [1], [0, 0, 1, 1], [], []>} : vector<18x128xf32>, vector<128x128xf32>, vector<18x128xf32> -> vector<18x128xf32>
    %536 = arith.addf %530, %535 : vector<18x128xf32>
    %c0_617 = arith.constant 0 : index
    %c1_618 = arith.constant 1 : index
    %c1_619 = arith.constant 1 : index
    %c0_620 = arith.constant 0 : index
    %537 = vector.load %arg17[%c0_617, %c1_618, %c1_619, %c0_620] : memref<2x5x5x128xf32, #tpu.memory_space<vmem>>, vector<2x3x3x128xf32>
    %538 = vector.shape_cast %537 : vector<2x3x3x128xf32> to vector<18x128xf32>
    %c4_621 = arith.constant 4 : index
    %c0_622 = arith.constant 0 : index
    %c0_623 = arith.constant 0 : index
    %539 = vector.load %arg6[%c4_621, %c0_622, %c0_623] : memref<9x128x128xf32, #tpu.memory_space<vmem>>, vector<1x128x128xf32>
    %540 = vector.shape_cast %539 : vector<1x128x128xf32> to vector<128x128xf32>
    %cst_624 = arith.constant dense<0.000000e+00> : vector<18x128xf32>
    %541 = tpu.matmul %538, %540, %cst_624 {dimension_numbers = #tpu.dot_dimension_numbers<[1], [0], [0], [1], [0, 0, 1, 1], [], []>} : vector<18x128xf32>, vector<128x128xf32>, vector<18x128xf32> -> vector<18x128xf32>
    %542 = arith.addf %536, %541 : vector<18x128xf32>
    %c0_625 = arith.constant 0 : index
    %c1_626 = arith.constant 1 : index
    %c2_627 = arith.constant 2 : index
    %c0_628 = arith.constant 0 : index
    %543 = vector.load %arg17[%c0_625, %c1_626, %c2_627, %c0_628] : memref<2x5x5x128xf32, #tpu.memory_space<vmem>>, vector<2x3x3x128xf32>
    %544 = vector.shape_cast %543 : vector<2x3x3x128xf32> to vector<18x128xf32>
    %c5_629 = arith.constant 5 : index
    %c0_630 = arith.constant 0 : index
    %c0_631 = arith.constant 0 : index
    %545 = vector.load %arg6[%c5_629, %c0_630, %c0_631] : memref<9x128x128xf32, #tpu.memory_space<vmem>>, vector<1x128x128xf32>
    %546 = vector.shape_cast %545 : vector<1x128x128xf32> to vector<128x128xf32>
    %cst_632 = arith.constant dense<0.000000e+00> : vector<18x128xf32>
    %547 = tpu.matmul %544, %546, %cst_632 {dimension_numbers = #tpu.dot_dimension_numbers<[1], [0], [0], [1], [0, 0, 1, 1], [], []>} : vector<18x128xf32>, vector<128x128xf32>, vector<18x128xf32> -> vector<18x128xf32>
    %548 = arith.addf %542, %547 : vector<18x128xf32>
    %c0_633 = arith.constant 0 : index
    %c2_634 = arith.constant 2 : index
    %c0_635 = arith.constant 0 : index
    %c0_636 = arith.constant 0 : index
    %549 = vector.load %arg17[%c0_633, %c2_634, %c0_635, %c0_636] : memref<2x5x5x128xf32, #tpu.memory_space<vmem>>, vector<2x3x3x128xf32>
    %550 = vector.shape_cast %549 : vector<2x3x3x128xf32> to vector<18x128xf32>
    %c6_637 = arith.constant 6 : index
    %c0_638 = arith.constant 0 : index
    %c0_639 = arith.constant 0 : index
    %551 = vector.load %arg6[%c6_637, %c0_638, %c0_639] : memref<9x128x128xf32, #tpu.memory_space<vmem>>, vector<1x128x128xf32>
    %552 = vector.shape_cast %551 : vector<1x128x128xf32> to vector<128x128xf32>
    %cst_640 = arith.constant dense<0.000000e+00> : vector<18x128xf32>
    %553 = tpu.matmul %550, %552, %cst_640 {dimension_numbers = #tpu.dot_dimension_numbers<[1], [0], [0], [1], [0, 0, 1, 1], [], []>} : vector<18x128xf32>, vector<128x128xf32>, vector<18x128xf32> -> vector<18x128xf32>
    %554 = arith.addf %548, %553 : vector<18x128xf32>
    %c0_641 = arith.constant 0 : index
    %c2_642 = arith.constant 2 : index
    %c1_643 = arith.constant 1 : index
    %c0_644 = arith.constant 0 : index
    %555 = vector.load %arg17[%c0_641, %c2_642, %c1_643, %c0_644] : memref<2x5x5x128xf32, #tpu.memory_space<vmem>>, vector<2x3x3x128xf32>
    %556 = vector.shape_cast %555 : vector<2x3x3x128xf32> to vector<18x128xf32>
    %c7_645 = arith.constant 7 : index
    %c0_646 = arith.constant 0 : index
    %c0_647 = arith.constant 0 : index
    %557 = vector.load %arg6[%c7_645, %c0_646, %c0_647] : memref<9x128x128xf32, #tpu.memory_space<vmem>>, vector<1x128x128xf32>
    %558 = vector.shape_cast %557 : vector<1x128x128xf32> to vector<128x128xf32>
    %cst_648 = arith.constant dense<0.000000e+00> : vector<18x128xf32>
    %559 = tpu.matmul %556, %558, %cst_648 {dimension_numbers = #tpu.dot_dimension_numbers<[1], [0], [0], [1], [0, 0, 1, 1], [], []>} : vector<18x128xf32>, vector<128x128xf32>, vector<18x128xf32> -> vector<18x128xf32>
    %560 = arith.addf %554, %559 : vector<18x128xf32>
    %c0_649 = arith.constant 0 : index
    %c2_650 = arith.constant 2 : index
    %c2_651 = arith.constant 2 : index
    %c0_652 = arith.constant 0 : index
    %561 = vector.load %arg17[%c0_649, %c2_650, %c2_651, %c0_652] : memref<2x5x5x128xf32, #tpu.memory_space<vmem>>, vector<2x3x3x128xf32>
    %562 = vector.shape_cast %561 : vector<2x3x3x128xf32> to vector<18x128xf32>
    %c8_653 = arith.constant 8 : index
    %c0_654 = arith.constant 0 : index
    %c0_655 = arith.constant 0 : index
    %563 = vector.load %arg6[%c8_653, %c0_654, %c0_655] : memref<9x128x128xf32, #tpu.memory_space<vmem>>, vector<1x128x128xf32>
    %564 = vector.shape_cast %563 : vector<1x128x128xf32> to vector<128x128xf32>
    %cst_656 = arith.constant dense<0.000000e+00> : vector<18x128xf32>
    %565 = tpu.matmul %562, %564, %cst_656 {dimension_numbers = #tpu.dot_dimension_numbers<[1], [0], [0], [1], [0, 0, 1, 1], [], []>} : vector<18x128xf32>, vector<128x128xf32>, vector<18x128xf32> -> vector<18x128xf32>
    %566 = arith.addf %560, %565 : vector<18x128xf32>
    %567 = vector.broadcast %513 : vector<1x128xf32> to vector<18x128xf32>
    %568 = arith.addf %566, %567 : vector<18x128xf32>
    %cst_657 = arith.constant 0.000000e+00 : f32
    %569 = vector.broadcast %cst_657 : f32 to vector<18x128xf32>
    %570 = arith.maximumf %568, %569 : vector<18x128xf32>
    %571 = vector.shape_cast %570 : vector<18x128xf32> to vector<2x9x128xf32>
    %cst_658 = arith.constant dense<0xFF800000> : vector<2x128xf32>
    %572 = vector.multi_reduction <maximumf>, %571, %cst_658 [1] : vector<2x9x128xf32> to vector<2x128xf32>
    %c0_659 = arith.constant 0 : index
    %c0_660 = arith.constant 0 : index
    %573 = vector.load %arg7[%c0_659, %c0_660] : memref<128x128xf32, #tpu.memory_space<vmem>>, vector<128x128xf32>
    %cst_661 = arith.constant dense<0.000000e+00> : vector<2x128xf32>
    %574 = tpu.matmul %572, %573, %cst_661 {dimension_numbers = #tpu.dot_dimension_numbers<[1], [0], [0], [1], [0, 0, 1, 1], [], []>} : vector<2x128xf32>, vector<128x128xf32>, vector<2x128xf32> -> vector<2x128xf32>
    %c5_662 = arith.constant 5 : index
    %c0_663 = arith.constant 0 : index
    %575 = vector.load %arg10[%c5_662, %c0_663] : memref<8x128xf32, #tpu.memory_space<vmem>>, vector<1x128xf32>
    %576 = vector.broadcast %575 : vector<1x128xf32> to vector<2x128xf32>
    %577 = arith.addf %574, %576 : vector<2x128xf32>
    %cst_664 = arith.constant 0.000000e+00 : f32
    %578 = vector.broadcast %cst_664 : f32 to vector<2x128xf32>
    %579 = arith.maximumf %577, %578 : vector<2x128xf32>
    %c0_665 = arith.constant 0 : index
    %c0_666 = arith.constant 0 : index
    %580 = vector.load %arg8[%c0_665, %c0_666] : memref<128x128xf32, #tpu.memory_space<vmem>>, vector<128x128xf32>
    %cst_667 = arith.constant dense<0.000000e+00> : vector<2x128xf32>
    %581 = tpu.matmul %579, %580, %cst_667 {dimension_numbers = #tpu.dot_dimension_numbers<[1], [0], [0], [1], [0, 0, 1, 1], [], []>} : vector<2x128xf32>, vector<128x128xf32>, vector<2x128xf32> -> vector<2x128xf32>
    %c6_668 = arith.constant 6 : index
    %c0_669 = arith.constant 0 : index
    %582 = vector.load %arg10[%c6_668, %c0_669] : memref<8x128xf32, #tpu.memory_space<vmem>>, vector<1x128xf32>
    %583 = vector.broadcast %582 : vector<1x128xf32> to vector<2x128xf32>
    %584 = arith.addf %581, %583 : vector<2x128xf32>
    %cst_670 = arith.constant 0.000000e+00 : f32
    %585 = vector.broadcast %cst_670 : f32 to vector<2x128xf32>
    %586 = arith.maximumf %584, %585 : vector<2x128xf32>
    %c0_671 = arith.constant 0 : index
    %c0_672 = arith.constant 0 : index
    %587 = vector.load %arg9[%c0_671, %c0_672] : memref<128x128xf32, #tpu.memory_space<vmem>>, vector<128x128xf32>
    %cst_673 = arith.constant dense<0.000000e+00> : vector<2x128xf32>
    %588 = tpu.matmul %586, %587, %cst_673 {dimension_numbers = #tpu.dot_dimension_numbers<[1], [0], [0], [1], [0, 0, 1, 1], [], []>} : vector<2x128xf32>, vector<128x128xf32>, vector<2x128xf32> -> vector<2x128xf32>
    %c7_674 = arith.constant 7 : index
    %c0_675 = arith.constant 0 : index
    %589 = vector.load %arg10[%c7_674, %c0_675] : memref<8x128xf32, #tpu.memory_space<vmem>>, vector<1x128xf32>
    %590 = vector.broadcast %589 : vector<1x128xf32> to vector<2x128xf32>
    %591 = arith.addf %588, %590 : vector<2x128xf32>
    %c0_676 = arith.constant 0 : index
    %c0_677 = arith.constant 0 : index
    %592 = vector.load %arg11[%c0_676, %c0_677] : memref<2x128xf32, #tpu.memory_space<vmem>>, vector<2x128xf32>
    tpu.vector_store %arg11[%c0_676, %c0_677], %591 {strides = array<i32>} : memref<2x128xf32, #tpu.memory_space<vmem>>, vector<2x128xf32>,
    return
  }
  func.func @transform_0(%arg0: i32) -> (i32, i32) {
    %c0_i32 = arith.constant 0 : i32
    %c0_i32_0 = arith.constant 0 : i32
    %c0_i32_1 = arith.constant 0 : i32
    return %c0_i32, %c0_i32_0 : i32, i32
  }
  func.func @transform_1(%arg0: i32) -> (i32, i32) {
    %c0_i32 = arith.constant 0 : i32
    %c0_i32_0 = arith.constant 0 : i32
    %c0_i32_1 = arith.constant 0 : i32
    return %c0_i32, %c0_i32_0 : i32, i32
  }
  func.func @transform_2(%arg0: i32) -> (i32, i32, i32) {
    %c0_i32 = arith.constant 0 : i32
    %c0_i32_0 = arith.constant 0 : i32
    %c0_i32_1 = arith.constant 0 : i32
    %c0_i32_2 = arith.constant 0 : i32
    return %c0_i32, %c0_i32_0, %c0_i32_1 : i32, i32, i32
  }
  func.func @transform_3(%arg0: i32) -> (i32, i32, i32) {
    %c0_i32 = arith.constant 0 : i32
    %c0_i32_0 = arith.constant 0 : i32
    %c0_i32_1 = arith.constant 0 : i32
    %c0_i32_2 = arith.constant 0 : i32
    return %c0_i32, %c0_i32_0, %c0_i32_1 : i32, i32, i32
  }
  func.func @transform_4(%arg0: i32) -> (i32, i32, i32) {
    %c0_i32 = arith.constant 0 : i32
    %c0_i32_0 = arith.constant 0 : i32
    %c0_i32_1 = arith.constant 0 : i32
    %c0_i32_2 = arith.constant 0 : i32
    return %c0_i32, %c0_i32_0, %c0_i32_1 : i32, i32, i32
  }
  func.func @transform_5(%arg0: i32) -> (i32, i32, i32) {
    %c0_i32 = arith.constant 0 : i32
    %c0_i32_0 = arith.constant 0 : i32
    %c0_i32_1 = arith.constant 0 : i32
    %c0_i32_2 = arith.constant 0 : i32
    return %c0_i32, %c0_i32_0, %c0_i32_1 : i32, i32, i32
  }
  func.func @transform_6(%arg0: i32) -> (i32, i32) {
    %c0_i32 = arith.constant 0 : i32
    %c0_i32_0 = arith.constant 0 : i32
    %c0_i32_1 = arith.constant 0 : i32
    return %c0_i32, %c0_i32_0 : i32, i32
  }
  func.func @transform_7(%arg0: i32) -> (i32, i32) {
    %c0_i32 = arith.constant 0 : i32
    %c0_i32_0 = arith.constant 0 : i32
    %c0_i32_1 = arith.constant 0 : i32
    return %c0_i32, %c0_i32_0 : i32, i32
  }
  func.func @transform_8(%arg0: i32) -> (i32, i32) {
    %c0_i32 = arith.constant 0 : i32
    %c0_i32_0 = arith.constant 0 : i32
    %c0_i32_1 = arith.constant 0 : i32
    return %c0_i32, %c0_i32_0 : i32, i32
  }
  func.func @transform_9(%arg0: i32) -> (i32, i32) {
    %c0_i32 = arith.constant 0 : i32
    %c0_i32_0 = arith.constant 0 : i32
    %c0_i32_1 = arith.constant 0 : i32
    return %c0_i32, %c0_i32_0 : i32, i32
  }
  func.func @transform_10(%arg0: i32) -> (i32, i32) {
    %c0_i32 = arith.constant 0 : i32
    %c0_i32_0 = arith.constant 0 : i32
    %c0_i32_1 = arith.constant 0 : i32
    return %c0_i32, %c0_i32_0 : i32, i32
  }
}

</mosaic_0001>

<llo_original>
// kernel: alexnet_forward.1
$region0: #{alexnet_forward.1}
  #allocation0 [shape = 'u32[]', space=smem, size = 0x4, offset = 0x4, fixed_abs, tag = 'smem constant byte address 0x4 - core index']
  #allocation1 [shape = 'u32[72,128]{1,0:T(1,128)}', space=vmem, size = 0x9000, scoped, tag = 'internal scratch']
  #allocation2 [shape = 'f32[2,8,17,128]{3,2,1,0:T(8,128)}', space=vmem, size = 0x30000, scoped, tag = 'scratch operand']
  #allocation3 [shape = 'f32[2,3,8,128]{3,2,1,0:T(8,128)}', space=vmem, size = 0x6000, scoped, tag = 'scratch operand']
  #allocation4 [shape = 'f32[2,12,12,128]{3,2,1,0:T(8,128)}', space=vmem, size = 0x30000, scoped, tag = 'scratch operand']
  #allocation5 [shape = 'f32[2,5,5,128]{3,2,1,0:T(8,128)}', space=vmem, size = 0xa000, scoped, tag = 'scratch operand']
  #allocation6 [shape = 'f32[2,5,5,128]{3,2,1,0:T(8,128)}', space=vmem, size = 0xa000, scoped, tag = 'scratch operand']
  #allocation7 [shape = 'f32[2,5,5,128]{3,2,1,0:T(8,128)}', space=vmem, size = 0xa000, scoped, tag = 'scratch operand']
  %s0 = inlined_call_operand.vmem [shape: f32[584,128], index: 0, kind: input, shape index: {}]
  %s1 = inlined_call_operand.vmem [shape: f32[128,128], index: 1, kind: input, shape index: {}]
  %s2 = inlined_call_operand.vmem [shape: f32[25,128,128], index: 2, kind: input, shape index: {}]
  %s3 = inlined_call_operand.vmem [shape: f32[9,128,128], index: 3, kind: input, shape index: {}]
  %s4 = inlined_call_operand.vmem [shape: f32[9,128,128], index: 4, kind: input, shape index: {}]
  %s5 = inlined_call_operand.vmem [shape: f32[9,128,128], index: 5, kind: input, shape index: {}]
  %s6 = inlined_call_operand.vmem [shape: f32[128,128], index: 6, kind: input, shape index: {}]
  %s7 = inlined_call_operand.vmem [shape: f32[128,128], index: 7, kind: input, shape index: {}]
  %s8 = inlined_call_operand.vmem [shape: f32[128,128], index: 8, kind: input, shape index: {}]
  %s9 = inlined_call_operand.vmem [shape: f32[8,128], index: 9, kind: input, shape index: {}]
  %s10 = inlined_call_operand.hbm [shape: f32[2,128], index: 10, kind: output, shape index: {}]
  %s11 = sld [smem:[#allocation0]]
  $region50: #{alexnet_forward.1} parent=0
    _
  %s13 = ssub.s32 1, %s11
  %s14 = scalar_select 0, %s13, %s11
  $region1: #{alexnet_forward.1} parent=0
    #allocation8 [shape = 'u8[1024]{0}', space=vmem, size = 0x400, scoped, tag = 'output window, operand 0, single buffered']
    #allocation9 [shape = 's32[1]{0}', space=sflag, size = 0x4, scoped, tag = 'scoped memory for alexnet_forward.1']
    %15 = vsyncpa [#allocation9], 0
    // Predicated region
    $region2: #{alexnet_forward.1} parent=1 // pred_check
      _
    $region3: #{alexnet_forward.1} parent=1 // pred_check_branch
      %17 = sbr.rel (0) target = $region5
    $region4: #{alexnet_forward.1} parent=1 // pred_region
      _
    $region5: #{alexnet_forward.1} parent=1 // pred_fallthru
      _
    // Predicated region
    $region6: #{alexnet_forward.1} parent=1 // pred_check
      _
    $region7: #{alexnet_forward.1} parent=1 // pred_check_branch
      %19 = sbr.rel (0) target = $region9
    $region8: #{alexnet_forward.1} parent=1 // pred_region
      _
    $region9: #{alexnet_forward.1} parent=1 // pred_fallthru
      _
    // Predicated region
    $region10: #{alexnet_forward.1} parent=1 // pred_check
      _
    $region11: #{alexnet_forward.1} parent=1 // pred_check_branch
      %21 = sbr.rel (0) target = $region13
    $region12: #{alexnet_forward.1} parent=1 // pred_region
      _
    $region13: #{alexnet_forward.1} parent=1 // pred_fallthru
      _
    // Predicated region
    $region14: #{alexnet_forward.1} parent=1 // pred_check
      _
    $region15: #{alexnet_forward.1} parent=1 // pred_check_branch
      %23 = sbr.rel (0) target = $region17
    $region16: #{alexnet_forward.1} parent=1 // pred_region
      _
    $region17: #{alexnet_forward.1} parent=1 // pred_fallthru
      _
    // Predicated region
    $region18: #{alexnet_forward.1} parent=1 // pred_check
      _
    $region19: #{alexnet_forward.1} parent=1 // pred_check_branch
      %25 = sbr.rel (0) target = $region21
    $region20: #{alexnet_forward.1} parent=1 // pred_region
      _
    $region21: #{alexnet_forward.1} parent=1 // pred_fallthru
      _
    // Predicated region
    $region22: #{alexnet_forward.1} parent=1 // pred_check
      _
    $region23: #{alexnet_forward.1} parent=1 // pred_check_branch
      %27 = sbr.rel (0) target = $region25
    $region24: #{alexnet_forward.1} parent=1 // pred_region
      _
    $region25: #{alexnet_forward.1} parent=1 // pred_fallthru
      _
    // Predicated region
    $region26: #{alexnet_forward.1} parent=1 // pred_check
      _
    $region27: #{alexnet_forward.1} parent=1 // pred_check_branch
      %29 = sbr.rel (0) target = $region29
    $region28: #{alexnet_forward.1} parent=1 // pred_region
      _
    $region29: #{alexnet_forward.1} parent=1 // pred_fallthru
      _
    // Predicated region
    $region30: #{alexnet_forward.1} parent=1 // pred_check
      _
    $region31: #{alexnet_forward.1} parent=1 // pred_check_branch
      %31 = sbr.rel (0) target = $region33
    $region32: #{alexnet_forward.1} parent=1 // pred_region
      _
    $region33: #{alexnet_forward.1} parent=1 // pred_fallthru
      _
    // Predicated region
    $region34: #{alexnet_forward.1} parent=1 // pred_check
      _
    $region35: #{alexnet_forward.1} parent=1 // pred_check_branch
      %33 = sbr.rel (0) target = $region37
    $region36: #{alexnet_forward.1} parent=1 // pred_region
      _
    $region37: #{alexnet_forward.1} parent=1 // pred_fallthru
      _
    // Predicated region
    $region38: #{alexnet_forward.1} parent=1 // pred_check
      _
    $region39: #{alexnet_forward.1} parent=1 // pred_check_branch
      %35 = sbr.rel (0) target = $region41
    $region40: #{alexnet_forward.1} parent=1 // pred_region
      _
    $region41: #{alexnet_forward.1} parent=1 // pred_fallthru
      _
    %v36 = vld [vmem:[%s0] sm:$0xff]
    %v37 = vld [vmem:[%s0 + $0x8] sm:$0xff]
    %v38 = vld [vmem:[%s0 + $0x10] sm:$0xff]
    %v39 = vld [vmem:[%s0 + $0x18] sm:$0xff]
    %v40 = vld [vmem:[%s0 + $0x20] sm:$0xff]
    %v41 = vld [vmem:[%s0 + $0x28] sm:$0xff]
    %v42 = vld [vmem:[%s0 + $0x30] sm:$0xff]
    %v43 = vld [vmem:[%s0 + $0x38] sm:$0xff]
    %v44 = vld [vmem:[%s0 + $0x40] sm:$0xff]
    %v45 = vld [vmem:[%s0 + $0x48] sm:$0xff]
    %v46 = vld [vmem:[%s0 + $0x50] sm:$0xff]
    %v47 = vld [vmem:[%s0 + $0x58] sm:$0xff]
    %v48 = vld [vmem:[%s0 + $0x60] sm:$0xff]
    %v49 = vld [vmem:[%s0 + $0x68] sm:$0xff]
    %v50 = vld [vmem:[%s0 + $0x70] sm:$0xff]
    %v51 = vld [vmem:[%s0 + $0x78] sm:$0xff]
    %v52 = vld [vmem:[%s0 + $0x80] sm:$0xff]
    %v53 = vld [vmem:[%s0 + $0x88] sm:$0xff]
    %v54 = vld [vmem:[%s0 + $0x90] sm:$0xff]
    %v55 = vld [vmem:[%s0 + $0x98] sm:$0xff]
    %v56 = vld [vmem:[%s0 + $0xa0] sm:$0xff]
    %v57 = vld [vmem:[%s0 + $0xa8] sm:$0xff]
    %v58 = vld [vmem:[%s0 + $0xb0] sm:$0xff]
    %v59 = vld [vmem:[%s0 + $0xb8] sm:$0xff]
    %v60 = vld [vmem:[%s0 + $0xc0] sm:$0xff]
    %v61 = vld [vmem:[%s0 + $0xc8] sm:$0xff]
    %v62 = vld [vmem:[%s0 + $0xd0] sm:$0xff]
    %v63 = vld [vmem:[%s0 + $0xd8] sm:$0xff]
    %v64 = vld [vmem:[%s0 + $0xe0] sm:$0xff]
    %v65 = vld [vmem:[%s0 + $0xe8] sm:$0xff]
    %v66 = vld [vmem:[%s0 + $0xf0] sm:$0xff]
    %v67 = vld [vmem:[%s0 + $0xf8] sm:$0xff]
    %v68 = vld [vmem:[%s0 + $0x100] sm:$0xff]
    %v69 = vld [vmem:[%s0 + $0x108] sm:$0xff]
    %v70 = vld [vmem:[%s0 + $0x110] sm:$0xff]
    %v71 = vld [vmem:[%s0 + $0x118] sm:$0xff]
    %v72 = vld [vmem:[%s0 + $0x120] sm:$0xff]
    %v73 = vld [vmem:[%s0 + $0x128] sm:$0xff]
    %v74 = vld [vmem:[%s0 + $0x130] sm:$0xff]
    %v75 = vld [vmem:[%s0 + $0x138] sm:$0xff]
    %v76 = vld [vmem:[%s0 + $0x140] sm:$0xff]
    %v77 = vld [vmem:[%s0 + $0x148] sm:$0xff]
    %v78 = vld [vmem:[%s0 + $0x150] sm:$0xff]
    %v79 = vld [vmem:[%s0 + $0x158] sm:$0xff]
    %v80 = vld [vmem:[%s0 + $0x160] sm:$0xff]
    %v81 = vld [vmem:[%s0 + $0x168] sm:$0xff]
    %v82 = vld [vmem:[%s0 + $0x170] sm:$0xff]
    %v83 = vld [vmem:[%s0 + $0x178] sm:$0xff]
    %v84 = vld [vmem:[%s0 + $0x180] sm:$0xff]
    %v85 = vld [vmem:[%s0 + $0x188] sm:$0xff]
    %v86 = vld [vmem:[%s0 + $0x190] sm:$0xff]
    %v87 = vld [vmem:[%s0 + $0x198] sm:$0xff]
    %v88 = vld [vmem:[%s0 + $0x1a0] sm:$0xff]
    %v89 = vld [vmem:[%s0 + $0x1a8] sm:$0xff]
    %v90 = vld [vmem:[%s0 + $0x1b0] sm:$0xff]
    %v91 = vld [vmem:[%s0 + $0x1b8] sm:$0xff]
    %v92 = vld [vmem:[%s0 + $0x1c0] sm:$0xff]
    %v93 = vld [vmem:[%s0 + $0x1c8] sm:$0xff]
    %v94 = vld [vmem:[%s0 + $0x1d0] sm:$0xff]
    %v95 = vld [vmem:[%s0 + $0x1d8] sm:$0xff]
    %v96 = vld [vmem:[%s0 + $0x1e0] sm:$0xff]
    %v97 = vld [vmem:[%s0 + $0x1e8] sm:$0xff]
    %v98 = vld [vmem:[%s0 + $0x1f0] sm:$0xff]
    %v99 = vld [vmem:[%s0 + $0x1f8] sm:$0xff]
    %v100 = vld [vmem:[%s0 + $0x200] sm:$0xff]
    %v101 = vld [vmem:[%s0 + $0x208] sm:$0xff]
    %v102 = vld [vmem:[%s0 + $0x210] sm:$0xff]
    %v103 = vld [vmem:[%s0 + $0x218] sm:$0xff]
    %v104 = vld [vmem:[%s0 + $0x220] sm:$0xff]
    %v105 = vld [vmem:[%s0 + $0x228] sm:$0xff]
    %v106 = vld [vmem:[%s0 + $0x230] sm:$0xff]
    %v107 = vld [vmem:[%s0 + $0x238] sm:$0xff]
    %v108 = vld [vmem:[%s0 + $0x240] sm:$0xff]
    %v109 = vld [vmem:[%s1] sm:$0xff]
    %v110 = vld [vmem:[%s1 + $0x8] sm:$0xff]
    %v111 = vld [vmem:[%s1 + $0x10] sm:$0xff]
    %v112 = vld [vmem:[%s1 + $0x18] sm:$0xff]
    %v113 = vld [vmem:[%s1 + $0x20] sm:$0xff]
    %v114 = vld [vmem:[%s1 + $0x28] sm:$0xff]
    %v115 = vld [vmem:[%s1 + $0x30] sm:$0xff]
    %v116 = vld [vmem:[%s1 + $0x38] sm:$0xff]
    %v117 = vld [vmem:[%s1 + $0x40] sm:$0xff]
    %v118 = vld [vmem:[%s1 + $0x48] sm:$0xff]
    %v119 = vld [vmem:[%s1 + $0x50] sm:$0xff]
    %v120 = vld [vmem:[%s1 + $0x58] sm:$0xff]
    %v121 = vld [vmem:[%s1 + $0x60] sm:$0xff]
    %v122 = vld [vmem:[%s1 + $0x68] sm:$0xff]
    %v123 = vld [vmem:[%s1 + $0x70] sm:$0xff]
    %v124 = vld [vmem:[%s1 + $0x78] sm:$0xff]
    %v125 = vld [vmem:[%s9] sm:$0x1]
    %v126 = vperm.slane %v125, 0
    %127 = vmatpush.msra.mxu0 %v124
    %128 = vmatpush.msra.mxu0 %v123
    %129 = vmatpush.msra.mxu0 %v122
    %130 = vmatpush.msra.mxu0 %v121
    %131 = vmatpush.msra.mxu0 %v120
    %132 = vmatpush.msra.mxu0 %v119
    %133 = vmatpush.msra.mxu0 %v118
    %134 = vmatpush.msra.mxu0 %v117
    %135 = vmatpush.msra.mxu0 %v116
    %136 = vmatpush.msra.mxu0 %v115
    %137 = vmatpush.msra.mxu0 %v114
    %138 = vmatpush.msra.mxu0 %v113
    %139 = vmatpush.msra.mxu0 %v112
    %140 = vmatpush.msra.mxu0 %v111
    %141 = vmatpush.msra.mxu0 %v110
    %142 = vmatpush.msra.mxu0 %v109
    %143 = vmatmul.f32.gmra.mxu0 %v36
    %v144 = vpop.f32.mrf.mxu0
    %v145 = vadd.f32 %v126, %v144
    %146 = vmatmul.f32.gmra.mxu0 %v37
    %v147 = vpop.f32.mrf.mxu0
    %v148 = vadd.f32 %v126, %v147
    %149 = vmatmul.f32.gmra.mxu0 %v38
    %v150 = vpop.f32.mrf.mxu0
    %v151 = vadd.f32 %v126, %v150
    %152 = vmatmul.f32.gmra.mxu0 %v39
    %v153 = vpop.f32.mrf.mxu0
    %v154 = vadd.f32 %v126, %v153
    %155 = vmatmul.f32.gmra.mxu0 %v40
    %v156 = vpop.f32.mrf.mxu0
    %v157 = vadd.f32 %v126, %v156
    %158 = vmatmul.f32.gmra.mxu0 %v41
    %v159 = vpop.f32.mrf.mxu0
    %v160 = vadd.f32 %v126, %v159
    %161 = vmatmul.f32.gmra.mxu0 %v42
    %v162 = vpop.f32.mrf.mxu0
    %v163 = vadd.f32 %v126, %v162
    %164 = vmatmul.f32.gmra.mxu0 %v43
    %v165 = vpop.f32.mrf.mxu0
    %v166 = vadd.f32 %v126, %v165
    %167 = vmatmul.f32.gmra.mxu0 %v44
    %v168 = vpop.f32.mrf.mxu0
    %v169 = vadd.f32 %v126, %v168
    %170 = vmatmul.f32.gmra.mxu0 %v45
    %v171 = vpop.f32.mrf.mxu0
    %v172 = vadd.f32 %v126, %v171
    %173 = vmatmul.f32.gmra.mxu0 %v46
    %v174 = vpop.f32.mrf.mxu0
    %v175 = vadd.f32 %v126, %v174
    %176 = vmatmul.f32.gmra.mxu0 %v47
    %v177 = vpop.f32.mrf.mxu0
    %v178 = vadd.f32 %v126, %v177
    %179 = vmatmul.f32.gmra.mxu0 %v48
    %v180 = vpop.f32.mrf.mxu0
    %v181 = vadd.f32 %v126, %v180
    %182 = vmatmul.f32.gmra.mxu0 %v49
    %v183 = vpop.f32.mrf.mxu0
    %v184 = vadd.f32 %v126, %v183
    %185 = vmatmul.f32.gmra.mxu0 %v50
    %v186 = vpop.f32.mrf.mxu0
    %v187 = vadd.f32 %v126, %v186
    %188 = vmatmul.f32.gmra.mxu0 %v51
    %v189 = vpop.f32.mrf.mxu0
    %v190 = vadd.f32 %v126, %v189
    %191 = vmatmul.f32.gmra.mxu0 %v52
    %v192 = vpop.f32.mrf.mxu0
    %v193 = vadd.f32 %v126, %v192
    %194 = vmatmul.f32.gmra.mxu0 %v53
    %v195 = vpop.f32.mrf.mxu0
    %v196 = vadd.f32 %v126, %v195
    %197 = vmatmul.f32.gmra.mxu0 %v54
    %v198 = vpop.f32.mrf.mxu0
    %v199 = vadd.f32 %v126, %v198
    %200 = vmatmul.f32.gmra.mxu0 %v55
    %v201 = vpop.f32.mrf.mxu0
    %v202 = vadd.f32 %v126, %v201
    %203 = vmatmul.f32.gmra.mxu0 %v56
    %v204 = vpop.f32.mrf.mxu0
    %v205 = vadd.f32 %v126, %v204
    %206 = vmatmul.f32.gmra.mxu0 %v57
    %v207 = vpop.f32.mrf.mxu0
    %v208 = vadd.f32 %v126, %v207
    %209 = vmatmul.f32.gmra.mxu0 %v58
    %v210 = vpop.f32.mrf.mxu0
    %v211 = vadd.f32 %v126, %v210
    %212 = vmatmul.f32.gmra.mxu0 %v59
    %v213 = vpop.f32.mrf.mxu0
    %v214 = vadd.f32 %v126, %v213
    %215 = vmatmul.f32.gmra.mxu0 %v60
    %v216 = vpop.f32.mrf.mxu0
    %v217 = vadd.f32 %v126, %v216
    %218 = vmatmul.f32.gmra.mxu0 %v61
    %v219 = vpop.f32.mrf.mxu0
    %v220 = vadd.f32 %v126, %v219
    %221 = vmatmul.f32.gmra.mxu0 %v62
    %v222 = vpop.f32.mrf.mxu0
    %v223 = vadd.f32 %v126, %v222
    %224 = vmatmul.f32.gmra.mxu0 %v63
    %v225 = vpop.f32.mrf.mxu0
    %v226 = vadd.f32 %v126, %v225
    %227 = vmatmul.f32.gmra.mxu0 %v64
    %v228 = vpop.f32.mrf.mxu0
    %v229 = vadd.f32 %v126, %v228
    %230 = vmatmul.f32.gmra.mxu0 %v65
    %v231 = vpop.f32.mrf.mxu0
    %v232 = vadd.f32 %v126, %v231
    %233 = vmatmul.f32.gmra.mxu0 %v66
    %v234 = vpop.f32.mrf.mxu0
    %v235 = vadd.f32 %v126, %v234
    %236 = vmatmul.f32.gmra.mxu0 %v67
    %v237 = vpop.f32.mrf.mxu0
    %v238 = vadd.f32 %v126, %v237
    %239 = vmatmul.f32.gmra.mxu0 %v68
    %v240 = vpop.f32.mrf.mxu0
    %v241 = vadd.f32 %v126, %v240
    %242 = vmatmul.f32.gmra.mxu0 %v69
    %v243 = vpop.f32.mrf.mxu0
    %v244 = vadd.f32 %v126, %v243
    %245 = vmatmul.f32.gmra.mxu0 %v70
    %v246 = vpop.f32.mrf.mxu0
    %v247 = vadd.f32 %v126, %v246
    %248 = vmatmul.f32.gmra.mxu0 %v71
    %v249 = vpop.f32.mrf.mxu0
    %v250 = vadd.f32 %v126, %v249
    %251 = vmatmul.f32.gmra.mxu0 %v72
    %v252 = vpop.f32.mrf.mxu0
    %v253 = vadd.f32 %v126, %v252
    %254 = vmatmul.f32.gmra.mxu0 %v73
    %v255 = vpop.f32.mrf.mxu0
    %v256 = vadd.f32 %v126, %v255
    %257 = vmatmul.f32.gmra.mxu0 %v74
    %v258 = vpop.f32.mrf.mxu0
    %v259 = vadd.f32 %v126, %v258
    %260 = vmatmul.f32.gmra.mxu0 %v75
    %v261 = vpop.f32.mrf.mxu0
    %v262 = vadd.f32 %v126, %v261
    %263 = vmatmul.f32.gmra.mxu0 %v76
    %v264 = vpop.f32.mrf.mxu0
    %v265 = vadd.f32 %v126, %v264
    %266 = vmatmul.f32.gmra.mxu0 %v77
    %v267 = vpop.f32.mrf.mxu0
    %v268 = vadd.f32 %v126, %v267
    %269 = vmatmul.f32.gmra.mxu0 %v78
    %v270 = vpop.f32.mrf.mxu0
    %v271 = vadd.f32 %v126, %v270
    %272 = vmatmul.f32.gmra.mxu0 %v79
    %v273 = vpop.f32.mrf.mxu0
    %v274 = vadd.f32 %v126, %v273
    %275 = vmatmul.f32.gmra.mxu0 %v80
    %v276 = vpop.f32.mrf.mxu0
    %v277 = vadd.f32 %v126, %v276
    %278 = vmatmul.f32.gmra.mxu0 %v81
    %v279 = vpop.f32.mrf.mxu0
    %v280 = vadd.f32 %v126, %v279
    %281 = vmatmul.f32.gmra.mxu0 %v82
    %v282 = vpop.f32.mrf.mxu0
    %v283 = vadd.f32 %v126, %v282
    %284 = vmatmul.f32.gmra.mxu0 %v83
    %v285 = vpop.f32.mrf.mxu0
    %v286 = vadd.f32 %v126, %v285
    %287 = vmatmul.f32.gmra.mxu0 %v84
    %v288 = vpop.f32.mrf.mxu0
    %v289 = vadd.f32 %v126, %v288
    %290 = vmatmul.f32.gmra.mxu0 %v85
    %v291 = vpop.f32.mrf.mxu0
    %v292 = vadd.f32 %v126, %v291
    %293 = vmatmul.f32.gmra.mxu0 %v86
    %v294 = vpop.f32.mrf.mxu0
    %v295 = vadd.f32 %v126, %v294
    %296 = vmatmul.f32.gmra.mxu0 %v87
    %v297 = vpop.f32.mrf.mxu0
    %v298 = vadd.f32 %v126, %v297
    %299 = vmatmul.f32.gmra.mxu0 %v88
    %v300 = vpop.f32.mrf.mxu0
    %v301 = vadd.f32 %v126, %v300
    %302 = vmatmul.f32.gmra.mxu0 %v89
    %v303 = vpop.f32.mrf.mxu0
    %v304 = vadd.f32 %v126, %v303
    %305 = vmatmul.f32.gmra.mxu0 %v90
    %v306 = vpop.f32.mrf.mxu0
    %v307 = vadd.f32 %v126, %v306
    %308 = vmatmul.f32.gmra.mxu0 %v91
    %v309 = vpop.f32.mrf.mxu0
    %v310 = vadd.f32 %v126, %v309
    %311 = vmatmul.f32.gmra.mxu0 %v92
    %v312 = vpop.f32.mrf.mxu0
    %v313 = vadd.f32 %v126, %v312
    %314 = vmatmul.f32.gmra.mxu0 %v93
    %v315 = vpop.f32.mrf.mxu0
    %v316 = vadd.f32 %v126, %v315
    %317 = vmatmul.f32.gmra.mxu0 %v94
    %v318 = vpop.f32.mrf.mxu0
    %v319 = vadd.f32 %v126, %v318
    %320 = vmatmul.f32.gmra.mxu0 %v95
    %v321 = vpop.f32.mrf.mxu0
    %v322 = vadd.f32 %v126, %v321
    %323 = vmatmul.f32.gmra.mxu0 %v96
    %v324 = vpop.f32.mrf.mxu0
    %v325 = vadd.f32 %v126, %v324
    %326 = vmatmul.f32.gmra.mxu0 %v97
    %v327 = vpop.f32.mrf.mxu0
    %v328 = vadd.f32 %v126, %v327
    %329 = vmatmul.f32.gmra.mxu0 %v98
    %v330 = vpop.f32.mrf.mxu0
    %v331 = vadd.f32 %v126, %v330
    %332 = vmatmul.f32.gmra.mxu0 %v99
    %v333 = vpop.f32.mrf.mxu0
    %v334 = vadd.f32 %v126, %v333
    %335 = vmatmul.f32.gmra.mxu0 %v100
    %v336 = vpop.f32.mrf.mxu0
    %v337 = vadd.f32 %v126, %v336
    %338 = vmatmul.f32.gmra.mxu0 %v101
    %v339 = vpop.f32.mrf.mxu0
    %v340 = vadd.f32 %v126, %v339
    %341 = vmatmul.f32.gmra.mxu0 %v102
    %v342 = vpop.f32.mrf.mxu0
    %v343 = vadd.f32 %v126, %v342
    %344 = vmatmul.f32.gmra.mxu0 %v103
    %v345 = vpop.f32.mrf.mxu0
    %v346 = vadd.f32 %v126, %v345
    %347 = vmatmul.f32.gmra.mxu0 %v104
    %v348 = vpop.f32.mrf.mxu0
    %v349 = vadd.f32 %v126, %v348
    %350 = vmatmul.f32.gmra.mxu0 %v105
    %v351 = vpop.f32.mrf.mxu0
    %v352 = vadd.f32 %v126, %v351
    %353 = vmatmul.f32.gmra.mxu0 %v106
    %v354 = vpop.f32.mrf.mxu0
    %v355 = vadd.f32 %v126, %v354
    %356 = vmatmul.f32.gmra.mxu0 %v107
    %v357 = vpop.f32.mrf.mxu0
    %v358 = vadd.f32 %v126, %v357
    %359 = vmatmul.f32.gmra.mxu0 %v108
    %v360 = vpop.f32.mrf.mxu0
    %v361 = vadd.f32 %v126, %v360
    %362 = vdwg.mxu0
    %v363 = vmax.f32 %v145, 0.0
    %v364 = vmax.f32 %v148, 0.0
    %v365 = vmax.f32 %v151, 0.0
    %v366 = vmax.f32 %v154, 0.0
    %v367 = vmax.f32 %v157, 0.0
    %v368 = vmax.f32 %v160, 0.0
    %v369 = vmax.f32 %v163, 0.0
    %v370 = vmax.f32 %v166, 0.0
    %v371 = vmax.f32 %v169, 0.0
    %v372 = vmax.f32 %v172, 0.0
    %v373 = vmax.f32 %v175, 0.0
    %v374 = vmax.f32 %v178, 0.0
    %v375 = vmax.f32 %v181, 0.0
    %v376 = vmax.f32 %v184, 0.0
    %v377 = vmax.f32 %v187, 0.0
    %v378 = vmax.f32 %v190, 0.0
    %v379 = vmax.f32 %v193, 0.0
    %v380 = vmax.f32 %v196, 0.0
    %v381 = vmax.f32 %v199, 0.0
    %v382 = vmax.f32 %v202, 0.0
    %v383 = vmax.f32 %v205, 0.0
    %v384 = vmax.f32 %v208, 0.0
    %v385 = vmax.f32 %v211, 0.0
    %v386 = vmax.f32 %v214, 0.0
    %v387 = vmax.f32 %v217, 0.0
    %v388 = vmax.f32 %v220, 0.0
    %v389 = vmax.f32 %v223, 0.0
    %v390 = vmax.f32 %v226, 0.0
    %v391 = vmax.f32 %v229, 0.0
    %v392 = vmax.f32 %v232, 0.0
    %v393 = vmax.f32 %v235, 0.0
    %v394 = vmax.f32 %v238, 0.0
    %v395 = vmax.f32 %v241, 0.0
    %v396 = vmax.f32 %v244, 0.0
    %v397 = vmax.f32 %v247, 0.0
    %v398 = vmax.f32 %v250, 0.0
    %v399 = vmax.f32 %v253, 0.0
    %v400 = vmax.f32 %v256, 0.0
    %v401 = vmax.f32 %v259, 0.0
    %v402 = vmax.f32 %v262, 0.0
    %v403 = vmax.f32 %v265, 0.0
    %v404 = vmax.f32 %v268, 0.0
    %v405 = vmax.f32 %v271, 0.0
    %v406 = vmax.f32 %v274, 0.0
    %v407 = vmax.f32 %v277, 0.0
    %v408 = vmax.f32 %v280, 0.0
    %v409 = vmax.f32 %v283, 0.0
    %v410 = vmax.f32 %v286, 0.0
    %v411 = vmax.f32 %v289, 0.0
    %v412 = vmax.f32 %v292, 0.0
    %v413 = vmax.f32 %v295, 0.0
    %v414 = vmax.f32 %v298, 0.0
    %v415 = vmax.f32 %v301, 0.0
    %v416 = vmax.f32 %v304, 0.0
    %v417 = vmax.f32 %v307, 0.0
    %v418 = vmax.f32 %v310, 0.0
    %v419 = vmax.f32 %v313, 0.0
    %v420 = vmax.f32 %v316, 0.0
    %v421 = vmax.f32 %v319, 0.0
    %v422 = vmax.f32 %v322, 0.0
    %v423 = vmax.f32 %v325, 0.0
    %v424 = vmax.f32 %v328, 0.0
    %v425 = vmax.f32 %v331, 0.0
    %v426 = vmax.f32 %v334, 0.0
    %v427 = vmax.f32 %v337, 0.0
    %v428 = vmax.f32 %v340, 0.0
    %v429 = vmax.f32 %v343, 0.0
    %v430 = vmax.f32 %v346, 0.0
    %v431 = vmax.f32 %v349, 0.0
    %v432 = vmax.f32 %v352, 0.0
    %v433 = vmax.f32 %v355, 0.0
    %v434 = vmax.f32 %v358, 0.0
    %v435 = vmax.f32 %v361, 0.0
    %v509 = vrot.slane %v363, 1
    %v510 = vrot.slane %v363, 2
    %v511 = vrot.slane %v363, 3
    %v512 = vrot.slane %v363, 4
    %v513 = vrot.slane %v363, 5
    %v514 = vrot.slane %v363, 6
    %v515 = vrot.slane %v363, 7
    %v516 = vrot.slane %v364, 1
    %v517 = vrot.slane %v364, 2
    %v518 = vrot.slane %v364, 3
    %v519 = vrot.slane %v364, 4
    %v520 = vrot.slane %v364, 5
    %v521 = vrot.slane %v364, 6
    %v522 = vrot.slane %v364, 7
    %v523 = vrot.slane %v365, 1
    %v524 = vrot.slane %v365, 2
    %v525 = vrot.slane %v365, 3
    %v526 = vrot.slane %v365, 4
    %v527 = vrot.slane %v365, 5
    %v528 = vrot.slane %v365, 6
    %v529 = vrot.slane %v365, 7
    %v530 = vrot.slane %v366, 1
    %v531 = vrot.slane %v366, 2
    %v532 = vrot.slane %v366, 3
    %v533 = vrot.slane %v366, 4
    %v534 = vrot.slane %v366, 5
    %v535 = vrot.slane %v366, 6
    %v536 = vrot.slane %v366, 7
    %v537 = vrot.slane %v367, 1
    %v538 = vrot.slane %v367, 2
    %v539 = vrot.slane %v367, 3
    %v540 = vrot.slane %v367, 4
    %v541 = vrot.slane %v367, 5
    %v542 = vrot.slane %v367, 6
    %v543 = vrot.slane %v367, 7
    %v544 = vrot.slane %v368, 1
    %v545 = vrot.slane %v368, 2
    %v546 = vrot.slane %v368, 3
    %v547 = vrot.slane %v368, 4
    %v548 = vrot.slane %v368, 5
    %v549 = vrot.slane %v368, 6
    %v550 = vrot.slane %v368, 7
    %v551 = vrot.slane %v369, 1
    %v552 = vrot.slane %v369, 2
    %v553 = vrot.slane %v369, 3
    %v554 = vrot.slane %v369, 4
    %v555 = vrot.slane %v369, 5
    %v556 = vrot.slane %v369, 6
    %v557 = vrot.slane %v369, 7
    %v558 = vrot.slane %v370, 1
    %v559 = vrot.slane %v370, 2
    %v560 = vrot.slane %v370, 3
    %v561 = vrot.slane %v370, 4
    %v562 = vrot.slane %v370, 5
    %v563 = vrot.slane %v370, 6
    %v564 = vrot.slane %v370, 7
    %v565 = vrot.slane %v371, 1
    %v566 = vrot.slane %v371, 2
    %v567 = vrot.slane %v371, 3
    %v568 = vrot.slane %v371, 4
    %v569 = vrot.slane %v371, 5
    %v570 = vrot.slane %v371, 6
    %v571 = vrot.slane %v371, 7
    %v572 = vrot.slane %v372, 1
    %v573 = vrot.slane %v372, 2
    %v574 = vrot.slane %v372, 3
    %v575 = vrot.slane %v372, 4
    %v576 = vrot.slane %v372, 5
    %v577 = vrot.slane %v372, 6
    %v578 = vrot.slane %v372, 7
    %v579 = vrot.slane %v373, 1
    %v580 = vrot.slane %v373, 2
    %v581 = vrot.slane %v373, 3
    %v582 = vrot.slane %v373, 4
    %v583 = vrot.slane %v373, 5
    %v584 = vrot.slane %v373, 6
    %v585 = vrot.slane %v373, 7
    %v586 = vrot.slane %v374, 1
    %v587 = vrot.slane %v374, 2
    %v588 = vrot.slane %v374, 3
    %v589 = vrot.slane %v374, 4
    %v590 = vrot.slane %v374, 5
    %v591 = vrot.slane %v374, 6
    %v592 = vrot.slane %v374, 7
    %v593 = vrot.slane %v375, 1
    %v594 = vrot.slane %v375, 2
    %v595 = vrot.slane %v375, 3
    %v596 = vrot.slane %v375, 4
    %v597 = vrot.slane %v375, 5
    %v598 = vrot.slane %v375, 6
    %v599 = vrot.slane %v375, 7
    %v600 = vrot.slane %v376, 1
    %v601 = vrot.slane %v376, 2
    %v602 = vrot.slane %v376, 3
    %v603 = vrot.slane %v376, 4
    %v604 = vrot.slane %v376, 5
    %v605 = vrot.slane %v376, 6
    %v606 = vrot.slane %v376, 7
    %v607 = vrot.slane %v377, 1
    %v608 = vrot.slane %v377, 2
    %v609 = vrot.slane %v377, 3
    %v610 = vrot.slane %v377, 4
    %v611 = vrot.slane %v377, 5
    %v612 = vrot.slane %v377, 6
    %v613 = vrot.slane %v377, 7
    %v614 = vrot.slane %v378, 1
    %v615 = vrot.slane %v378, 2
    %v616 = vrot.slane %v378, 3
    %v617 = vrot.slane %v378, 4
    %v618 = vrot.slane %v378, 5
    %v619 = vrot.slane %v378, 6
    %v620 = vrot.slane %v378, 7
    %v621 = vrot.slane %v379, 1
    %v622 = vrot.slane %v379, 2
    %v623 = vrot.slane %v379, 3
    %v624 = vrot.slane %v379, 4
    %v625 = vrot.slane %v379, 5
    %v626 = vrot.slane %v379, 6
    %v627 = vrot.slane %v379, 7
    %v628 = vrot.slane %v380, 1
    %v629 = vrot.slane %v380, 2
    %v630 = vrot.slane %v380, 3
    %v631 = vrot.slane %v380, 4
    %v632 = vrot.slane %v380, 5
    %v633 = vrot.slane %v380, 6
    %v634 = vrot.slane %v380, 7
    %v635 = vrot.slane %v381, 1
    %v636 = vrot.slane %v381, 2
    %v637 = vrot.slane %v381, 3
    %v638 = vrot.slane %v381, 4
    %v639 = vrot.slane %v381, 5
    %v640 = vrot.slane %v381, 6
    %v641 = vrot.slane %v381, 7
    %v642 = vrot.slane %v382, 1
    %v643 = vrot.slane %v382, 2
    %v644 = vrot.slane %v382, 3
    %v645 = vrot.slane %v382, 4
    %v646 = vrot.slane %v382, 5
    %v647 = vrot.slane %v382, 6
    %v648 = vrot.slane %v382, 7
    %v649 = vrot.slane %v383, 1
    %v650 = vrot.slane %v383, 2
    %v651 = vrot.slane %v383, 3
    %v652 = vrot.slane %v383, 4
    %v653 = vrot.slane %v383, 5
    %v654 = vrot.slane %v383, 6
    %v655 = vrot.slane %v383, 7
    %v656 = vrot.slane %v384, 1
    %v657 = vrot.slane %v384, 2
    %v658 = vrot.slane %v384, 3
    %v659 = vrot.slane %v384, 4
    %v660 = vrot.slane %v384, 5
    %v661 = vrot.slane %v384, 6
    %v662 = vrot.slane %v384, 7
    %v663 = vrot.slane %v385, 1
    %v664 = vrot.slane %v385, 2
    %v665 = vrot.slane %v385, 3
    %v666 = vrot.slane %v385, 4
    %v667 = vrot.slane %v385, 5
    %v668 = vrot.slane %v385, 6
    %v669 = vrot.slane %v385, 7
    %v670 = vrot.slane %v386, 1
    %v671 = vrot.slane %v386, 2
    %v672 = vrot.slane %v386, 3
    %v673 = vrot.slane %v386, 4
    %v674 = vrot.slane %v386, 5
    %v675 = vrot.slane %v386, 6
    %v676 = vrot.slane %v386, 7
    %v677 = vrot.slane %v387, 1
    %v678 = vrot.slane %v387, 2
    %v679 = vrot.slane %v387, 3
    %v680 = vrot.slane %v387, 4
    %v681 = vrot.slane %v387, 5
    %v682 = vrot.slane %v387, 6
    %v683 = vrot.slane %v387, 7
    %v684 = vrot.slane %v388, 1
    %v685 = vrot.slane %v388, 2
    %v686 = vrot.slane %v388, 3
    %v687 = vrot.slane %v388, 4
    %v688 = vrot.slane %v388, 5
    %v689 = vrot.slane %v388, 6
    %v690 = vrot.slane %v388, 7
    %v691 = vrot.slane %v389, 1
    %v692 = vrot.slane %v389, 2
    %v693 = vrot.slane %v389, 3
    %v694 = vrot.slane %v389, 4
    %v695 = vrot.slane %v389, 5
    %v696 = vrot.slane %v389, 6
    %v697 = vrot.slane %v389, 7
    %v698 = vrot.slane %v390, 1
    %v699 = vrot.slane %v390, 2
    %v700 = vrot.slane %v390, 3
    %v701 = vrot.slane %v390, 4
    %v702 = vrot.slane %v390, 5
    %v703 = vrot.slane %v390, 6
    %v704 = vrot.slane %v390, 7
    %v705 = vrot.slane %v391, 1
    %v706 = vrot.slane %v391, 2
    %v707 = vrot.slane %v391, 3
    %v708 = vrot.slane %v391, 4
    %v709 = vrot.slane %v391, 5
    %v710 = vrot.slane %v391, 6
    %v711 = vrot.slane %v391, 7
    %v712 = vrot.slane %v392, 1
    %v713 = vrot.slane %v392, 2
    %v714 = vrot.slane %v392, 3
    %v715 = vrot.slane %v392, 4
    %v716 = vrot.slane %v392, 5
    %v717 = vrot.slane %v392, 6
    %v718 = vrot.slane %v392, 7
    %v719 = vrot.slane %v393, 1
    %v720 = vrot.slane %v393, 2
    %v721 = vrot.slane %v393, 3
    %v722 = vrot.slane %v393, 4
    %v723 = vrot.slane %v393, 5
    %v724 = vrot.slane %v393, 6
    %v725 = vrot.slane %v393, 7
    %v726 = vrot.slane %v394, 1
    %v727 = vrot.slane %v394, 2
    %v728 = vrot.slane %v394, 3
    %v729 = vrot.slane %v394, 4
    %v730 = vrot.slane %v394, 5
    %v731 = vrot.slane %v394, 6
    %v732 = vrot.slane %v394, 7
    %v733 = vrot.slane %v395, 1
    %v734 = vrot.slane %v395, 2
    %v735 = vrot.slane %v395, 3
    %v736 = vrot.slane %v395, 4
    %v737 = vrot.slane %v395, 5
    %v738 = vrot.slane %v395, 6
    %v739 = vrot.slane %v395, 7
    %v740 = vrot.slane %v396, 1
    %v741 = vrot.slane %v396, 2
    %v742 = vrot.slane %v396, 3
    %v743 = vrot.slane %v396, 4
    %v744 = vrot.slane %v396, 5
    %v745 = vrot.slane %v396, 6
    %v746 = vrot.slane %v396, 7
    %v747 = vrot.slane %v397, 1
    %v748 = vrot.slane %v397, 2
    %v749 = vrot.slane %v397, 3
    %v750 = vrot.slane %v397, 4
    %v751 = vrot.slane %v397, 5
    %v752 = vrot.slane %v397, 6
    %v753 = vrot.slane %v397, 7
    %v754 = vrot.slane %v398, 1
    %v755 = vrot.slane %v398, 2
    %v756 = vrot.slane %v398, 3
    %v757 = vrot.slane %v398, 4
    %v758 = vrot.slane %v398, 5
    %v759 = vrot.slane %v398, 6
    %v760 = vrot.slane %v398, 7
    %v761 = vrot.slane %v399, 1
    %v762 = vrot.slane %v399, 2
    %v763 = vrot.slane %v399, 3
    %v764 = vrot.slane %v399, 4
    %v765 = vrot.slane %v399, 5
    %v766 = vrot.slane %v399, 6
    %v767 = vrot.slane %v399, 7
    %v768 = vrot.slane %v400, 1
    %v769 = vrot.slane %v400, 2
    %v770 = vrot.slane %v400, 3
    %v771 = vrot.slane %v400, 4
    %v772 = vrot.slane %v400, 5
    %v773 = vrot.slane %v400, 6
    %v774 = vrot.slane %v400, 7
    %v775 = vrot.slane %v401, 1
    %v776 = vrot.slane %v401, 2
    %v777 = vrot.slane %v401, 3
    %v778 = vrot.slane %v401, 4
    %v779 = vrot.slane %v401, 5
    %v780 = vrot.slane %v401, 6
    %v781 = vrot.slane %v401, 7
    %v782 = vrot.slane %v402, 1
    %v783 = vrot.slane %v402, 2
    %v784 = vrot.slane %v402, 3
    %v785 = vrot.slane %v402, 4
    %v786 = vrot.slane %v402, 5
    %v787 = vrot.slane %v402, 6
    %v788 = vrot.slane %v402, 7
    %v789 = vrot.slane %v403, 1
    %v790 = vrot.slane %v403, 2
    %v791 = vrot.slane %v403, 3
    %v792 = vrot.slane %v403, 4
    %v793 = vrot.slane %v403, 5
    %v794 = vrot.slane %v403, 6
    %v795 = vrot.slane %v403, 7
    %v796 = vrot.slane %v404, 1
    %v797 = vrot.slane %v404, 2
    %v798 = vrot.slane %v404, 3
    %v799 = vrot.slane %v404, 4
    %v800 = vrot.slane %v404, 5
    %v801 = vrot.slane %v404, 6
    %v802 = vrot.slane %v404, 7
    %v803 = vrot.slane %v405, 1
    %v804 = vrot.slane %v405, 2
    %v805 = vrot.slane %v405, 3
    %v806 = vrot.slane %v405, 4
    %v807 = vrot.slane %v405, 5
    %v808 = vrot.slane %v405, 6
    %v809 = vrot.slane %v405, 7
    %v810 = vrot.slane %v406, 1
    %v811 = vrot.slane %v406, 2
    %v812 = vrot.slane %v406, 3
    %v813 = vrot.slane %v406, 4
    %v814 = vrot.slane %v406, 5
    %v815 = vrot.slane %v406, 6
    %v816 = vrot.slane %v406, 7
    %v817 = vrot.slane %v407, 1
    %v818 = vrot.slane %v407, 2
    %v819 = vrot.slane %v407, 3
    %v820 = vrot.slane %v407, 4
    %v821 = vrot.slane %v407, 5
    %v822 = vrot.slane %v407, 6
    %v823 = vrot.slane %v407, 7
    %v824 = vrot.slane %v408, 1
    %v825 = vrot.slane %v408, 2
    %v826 = vrot.slane %v408, 3
    %v827 = vrot.slane %v408, 4
    %v828 = vrot.slane %v408, 5
    %v829 = vrot.slane %v408, 6
    %v830 = vrot.slane %v408, 7
    %v831 = vrot.slane %v409, 1
    %v832 = vrot.slane %v409, 2
    %v833 = vrot.slane %v409, 3
    %v834 = vrot.slane %v409, 4
    %v835 = vrot.slane %v409, 5
    %v836 = vrot.slane %v409, 6
    %v837 = vrot.slane %v409, 7
    %v838 = vrot.slane %v410, 1
    %v839 = vrot.slane %v410, 2
    %v840 = vrot.slane %v410, 3
    %v841 = vrot.slane %v410, 4
    %v842 = vrot.slane %v410, 5
    %v843 = vrot.slane %v410, 6
    %v844 = vrot.slane %v410, 7
    %v845 = vrot.slane %v411, 1
    %v846 = vrot.slane %v411, 2
    %v847 = vrot.slane %v411, 3
    %v848 = vrot.slane %v411, 4
    %v849 = vrot.slane %v411, 5
    %v850 = vrot.slane %v411, 6
    %v851 = vrot.slane %v411, 7
    %v852 = vrot.slane %v412, 1
    %v853 = vrot.slane %v412, 2
    %v854 = vrot.slane %v412, 3
    %v855 = vrot.slane %v412, 4
    %v856 = vrot.slane %v412, 5
    %v857 = vrot.slane %v412, 6
    %v858 = vrot.slane %v412, 7
    %v859 = vrot.slane %v413, 1
    %v860 = vrot.slane %v413, 2
    %v861 = vrot.slane %v413, 3
    %v862 = vrot.slane %v413, 4
    %v863 = vrot.slane %v413, 5
    %v864 = vrot.slane %v413, 6
    %v865 = vrot.slane %v413, 7
    %v866 = vrot.slane %v414, 1
    %v867 = vrot.slane %v414, 2
    %v868 = vrot.slane %v414, 3
    %v869 = vrot.slane %v414, 4
    %v870 = vrot.slane %v414, 5
    %v871 = vrot.slane %v414, 6
    %v872 = vrot.slane %v414, 7
    %v873 = vrot.slane %v415, 1
    %v874 = vrot.slane %v415, 2
    %v875 = vrot.slane %v415, 3
    %v876 = vrot.slane %v415, 4
    %v877 = vrot.slane %v415, 5
    %v878 = vrot.slane %v415, 6
    %v879 = vrot.slane %v415, 7
    %v880 = vrot.slane %v416, 1
    %v881 = vrot.slane %v416, 2
    %v882 = vrot.slane %v416, 3
    %v883 = vrot.slane %v416, 4
    %v884 = vrot.slane %v416, 5
    %v885 = vrot.slane %v416, 6
    %v886 = vrot.slane %v416, 7
    %v887 = vrot.slane %v417, 1
    %v888 = vrot.slane %v417, 2
    %v889 = vrot.slane %v417, 3
    %v890 = vrot.slane %v417, 4
    %v891 = vrot.slane %v417, 5
    %v892 = vrot.slane %v417, 6
    %v893 = vrot.slane %v417, 7
    %v894 = vrot.slane %v418, 1
    %v895 = vrot.slane %v418, 2
    %v896 = vrot.slane %v418, 3
    %v897 = vrot.slane %v418, 4
    %v898 = vrot.slane %v418, 5
    %v899 = vrot.slane %v418, 6
    %v900 = vrot.slane %v418, 7
    %v901 = vrot.slane %v419, 1
    %v902 = vrot.slane %v419, 2
    %v903 = vrot.slane %v419, 3
    %v904 = vrot.slane %v419, 4
    %v905 = vrot.slane %v419, 5
    %v906 = vrot.slane %v419, 6
    %v907 = vrot.slane %v419, 7
    %v908 = vrot.slane %v420, 1
    %v909 = vrot.slane %v420, 2
    %v910 = vrot.slane %v420, 3
    %v911 = vrot.slane %v420, 4
    %v912 = vrot.slane %v420, 5
    %v913 = vrot.slane %v420, 6
    %v914 = vrot.slane %v420, 7
    %v915 = vrot.slane %v421, 1
    %v916 = vrot.slane %v421, 2
    %v917 = vrot.slane %v421, 3
    %v918 = vrot.slane %v421, 4
    %v919 = vrot.slane %v421, 5
    %v920 = vrot.slane %v421, 6
    %v921 = vrot.slane %v421, 7
    %v922 = vrot.slane %v422, 1
    %v923 = vrot.slane %v422, 2
    %v924 = vrot.slane %v422, 3
    %v925 = vrot.slane %v422, 4
    %v926 = vrot.slane %v422, 5
    %v927 = vrot.slane %v422, 6
    %v928 = vrot.slane %v422, 7
    %v929 = vrot.slane %v423, 1
    %v930 = vrot.slane %v423, 2
    %v931 = vrot.slane %v423, 3
    %v932 = vrot.slane %v423, 4
    %v933 = vrot.slane %v423, 5
    %v934 = vrot.slane %v423, 6
    %v935 = vrot.slane %v423, 7
    %v936 = vrot.slane %v424, 1
    %v937 = vrot.slane %v424, 2
    %v938 = vrot.slane %v424, 3
    %v939 = vrot.slane %v424, 4
    %v940 = vrot.slane %v424, 5
    %v941 = vrot.slane %v424, 6
    %v942 = vrot.slane %v424, 7
    %v943 = vrot.slane %v425, 1
    %v944 = vrot.slane %v425, 2
    %v945 = vrot.slane %v425, 3
    %v946 = vrot.slane %v425, 4
    %v947 = vrot.slane %v425, 5
    %v948 = vrot.slane %v425, 6
    %v949 = vrot.slane %v425, 7
    %v950 = vrot.slane %v426, 1
    %v951 = vrot.slane %v426, 2
    %v952 = vrot.slane %v426, 3
    %v953 = vrot.slane %v426, 4
    %v954 = vrot.slane %v426, 5
    %v955 = vrot.slane %v426, 6
    %v956 = vrot.slane %v426, 7
    %v957 = vrot.slane %v427, 1
    %v958 = vrot.slane %v427, 2
    %v959 = vrot.slane %v427, 3
    %v960 = vrot.slane %v427, 4
    %v961 = vrot.slane %v427, 5
    %v962 = vrot.slane %v427, 6
    %v963 = vrot.slane %v427, 7
    %v964 = vrot.slane %v428, 1
    %v965 = vrot.slane %v428, 2
    %v966 = vrot.slane %v428, 3
    %v967 = vrot.slane %v428, 4
    %v968 = vrot.slane %v428, 5
    %v969 = vrot.slane %v428, 6
    %v970 = vrot.slane %v428, 7
    %v971 = vrot.slane %v429, 1
    %v972 = vrot.slane %v429, 2
    %v973 = vrot.slane %v429, 3
    %v974 = vrot.slane %v429, 4
    %v975 = vrot.slane %v429, 5
    %v976 = vrot.slane %v429, 6
    %v977 = vrot.slane %v429, 7
    %v978 = vrot.slane %v430, 1
    %v979 = vrot.slane %v430, 2
    %v980 = vrot.slane %v430, 3
    %v981 = vrot.slane %v430, 4
    %v982 = vrot.slane %v430, 5
    %v983 = vrot.slane %v430, 6
    %v984 = vrot.slane %v430, 7
    %v985 = vrot.slane %v431, 1
    %v986 = vrot.slane %v431, 2
    %v987 = vrot.slane %v431, 3
    %v988 = vrot.slane %v431, 4
    %v989 = vrot.slane %v431, 5
    %v990 = vrot.slane %v431, 6
    %v991 = vrot.slane %v431, 7
    %v992 = vrot.slane %v432, 1
    %v993 = vrot.slane %v432, 2
    %v994 = vrot.slane %v432, 3
    %v995 = vrot.slane %v432, 4
    %v996 = vrot.slane %v432, 5
    %v997 = vrot.slane %v432, 6
    %v998 = vrot.slane %v432, 7
    %v999 = vrot.slane %v433, 1
    %v1000 = vrot.slane %v433, 2
    %v1001 = vrot.slane %v433, 3
    %v1002 = vrot.slane %v433, 4
    %v1003 = vrot.slane %v433, 5
    %v1004 = vrot.slane %v433, 6
    %v1005 = vrot.slane %v433, 7
    %v1006 = vrot.slane %v434, 1
    %v1007 = vrot.slane %v434, 2
    %v1008 = vrot.slane %v434, 3
    %v1009 = vrot.slane %v434, 4
    %v1010 = vrot.slane %v434, 5
    %v1011 = vrot.slane %v434, 6
    %v1012 = vrot.slane %v434, 7
    %v1013 = vrot.slane %v435, 1
    %1519 = vst [vmem:[#allocation4] sm:$0xff] 0.0
    %1520 = vst [vmem:[#allocation4 + $0x8] sm:$0xf] 0.0
    %1521 = vst [vmem:[#allocation4 + $0x10] sm:$0xff] 0.0
    %1522 = vst [vmem:[#allocation4 + $0x18] sm:$0xf] 0.0
    %1523 = vst [vmem:[#allocation4 + $0x20] sm:$0xff] 0.0
    %1524 = vst [vmem:[#allocation4 + $0x28] sm:$0xf] 0.0
    %1525 = vst [vmem:[#allocation4 + $0x30] sm:$0xff] 0.0
    %1526 = vst [vmem:[#allocation4 + $0x38] sm:$0xf] 0.0
    %1527 = vst [vmem:[#allocation4 + $0x40] sm:$0xff] 0.0
    %1528 = vst [vmem:[#allocation4 + $0x48] sm:$0xf] 0.0
    %1529 = vst [vmem:[#allocation4 + $0x50] sm:$0xff] 0.0
    %1530 = vst [vmem:[#allocation4 + $0x58] sm:$0xf] 0.0
    %1531 = vst [vmem:[#allocation4 + $0x60] sm:$0xff] 0.0
    %1532 = vst [vmem:[#allocation4 + $0x68] sm:$0xf] 0.0
    %1533 = vst [vmem:[#allocation4 + $0x70] sm:$0xff] 0.0
    %1534 = vst [vmem:[#allocation4 + $0x78] sm:$0xf] 0.0
    %1535 = vst [vmem:[#allocation4 + $0x80] sm:$0xff] 0.0
    %1536 = vst [vmem:[#allocation4 + $0x88] sm:$0xf] 0.0
    %1537 = vst [vmem:[#allocation4 + $0x90] sm:$0xff] 0.0
    %1538 = vst [vmem:[#allocation4 + $0x98] sm:$0xf] 0.0
    %1539 = vst [vmem:[#allocation4 + $0xa0] sm:$0xff] 0.0
    %1540 = vst [vmem:[#allocation4 + $0xa8] sm:$0xf] 0.0
    %1541 = vst [vmem:[#allocation4 + $0xb0] sm:$0xff] 0.0
    %1542 = vst [vmem:[#allocation4 + $0xb8] sm:$0xf] 0.0
    %1543 = vst [vmem:[#allocation4 + $0xc0] sm:$0xff] 0.0
    %1544 = vst [vmem:[#allocation4 + $0xc8] sm:$0xf] 0.0
    %1545 = vst [vmem:[#allocation4 + $0xd0] sm:$0xff] 0.0
    %1546 = vst [vmem:[#allocation4 + $0xd8] sm:$0xf] 0.0
    %1547 = vst [vmem:[#allocation4 + $0xe0] sm:$0xff] 0.0
    %1548 = vst [vmem:[#allocation4 + $0xe8] sm:$0xf] 0.0
    %1549 = vst [vmem:[#allocation4 + $0xf0] sm:$0xff] 0.0
    %1550 = vst [vmem:[#allocation4 + $0xf8] sm:$0xf] 0.0
    %1551 = vst [vmem:[#allocation4 + $0x100] sm:$0xff] 0.0
    %1552 = vst [vmem:[#allocation4 + $0x108] sm:$0xf] 0.0
    %1553 = vst [vmem:[#allocation4 + $0x110] sm:$0xff] 0.0
    %1554 = vst [vmem:[#allocation4 + $0x118] sm:$0xf] 0.0
    %1555 = vst [vmem:[#allocation4 + $0x120] sm:$0xff] 0.0
    %1556 = vst [vmem:[#allocation4 + $0x128] sm:$0xf] 0.0
    %1557 = vst [vmem:[#allocation4 + $0x130] sm:$0xff] 0.0
    %1558 = vst [vmem:[#allocation4 + $0x138] sm:$0xf] 0.0
    %1559 = vst [vmem:[#allocation4 + $0x140] sm:$0xff] 0.0
    %1560 = vst [vmem:[#allocation4 + $0x148] sm:$0xf] 0.0
    %1561 = vst [vmem:[#allocation4 + $0x150] sm:$0xff] 0.0
    %1562 = vst [vmem:[#allocation4 + $0x158] sm:$0xf] 0.0
    %1563 = vst [vmem:[#allocation4 + $0x160] sm:$0xff] 0.0
    %1564 = vst [vmem:[#allocation4 + $0x168] sm:$0xf] 0.0
    %1565 = vst [vmem:[#allocation4 + $0x170] sm:$0xff] 0.0
    %1566 = vst [vmem:[#allocation4 + $0x178] sm:$0xf] 0.0
    %v1567 = vmax.f32 %v363, %v523
    %v1568 = vmax.f32 %v509, %v524
    %v1569 = vmax.f32 %v510, %v525
    %v1570 = vmax.f32 %v511, %v526
    %v1571 = vmax.f32 %v512, %v527
    %v1572 = vmax.f32 %v513, %v528
    %v1573 = vmax.f32 %v514, %v529
    %v1574 = vmax.f32 %v515, %v366
    %v1575 = vmax.f32 %v364, %v530
    %v1576 = vmax.f32 %v516, %v531
    %v1577 = vmax.f32 %v517, %v532
    %v1578 = vmax.f32 %v518, %v533
    %v1579 = vmax.f32 %v519, %v534
    %v1580 = vmax.f32 %v520, %v535
    %v1581 = vmax.f32 %v521, %v536
    %v1582 = vmax.f32 %v522, %v367
    %v1583 = vmax.f32 %v365, %v537
    %v1584 = vmax.f32 %v761, %v776
    %v1585 = vmax.f32 %v762, %v777
    %v1586 = vmax.f32 %v763, %v778
    %v1587 = vmax.f32 %v764, %v779
    %v1588 = vmax.f32 %v765, %v780
    %v1589 = vmax.f32 %v766, %v781
    %v1590 = vmax.f32 %v767, %v402
    %v1591 = vmax.f32 %v400, %v782
    %v1592 = vmax.f32 %v768, %v783
    %v1593 = vmax.f32 %v769, %v784
    %v1594 = vmax.f32 %v770, %v785
    %v1595 = vmax.f32 %v771, %v786
    %v1596 = vmax.f32 %v772, %v787
    %v1597 = vmax.f32 %v773, %v788
    %v1598 = vmax.f32 %v774, %v403
    %v1599 = vmax.f32 %v401, %v789
    %v1600 = vmax.f32 %v775, %v790
    %v1601 = vmax.f32 %v1567, %v538
    %v1602 = vmax.f32 %v1568, %v539
    %v1603 = vmax.f32 %v1569, %v540
    %v1604 = vmax.f32 %v1570, %v541
    %v1605 = vmax.f32 %v1571, %v542
    %v1606 = vmax.f32 %v1572, %v543
    %v1607 = vmax.f32 %v1573, %v368
    %v1608 = vmax.f32 %v1574, %v544
    %v1609 = vmax.f32 %v1575, %v545
    %v1610 = vmax.f32 %v1576, %v546
    %v1611 = vmax.f32 %v1577, %v547
    %v1612 = vmax.f32 %v1578, %v548
    %v1613 = vmax.f32 %v1579, %v549
    %v1614 = vmax.f32 %v1580, %v550
    %v1615 = vmax.f32 %v1581, %v369
    %v1616 = vmax.f32 %v1582, %v551
    %v1617 = vmax.f32 %v1583, %v552
    %v1618 = vmax.f32 %v1584, %v791
    %v1619 = vmax.f32 %v1585, %v792
    %v1620 = vmax.f32 %v1586, %v793
    %v1621 = vmax.f32 %v1587, %v794
    %v1622 = vmax.f32 %v1588, %v795
    %v1623 = vmax.f32 %v1589, %v404
    %v1624 = vmax.f32 %v1590, %v796
    %v1625 = vmax.f32 %v1591, %v797
    %v1626 = vmax.f32 %v1592, %v798
    %v1627 = vmax.f32 %v1593, %v799
    %v1628 = vmax.f32 %v1594, %v800
    %v1629 = vmax.f32 %v1595, %v801
    %v1630 = vmax.f32 %v1596, %v802
    %v1631 = vmax.f32 %v1597, %v405
    %v1632 = vmax.f32 %v1598, %v803
    %v1633 = vmax.f32 %v1599, %v804
    %v1634 = vmax.f32 %v1600, %v805
    %1669 = vst [vmem:[#allocation1] ss:$9 sm:$0xff] %v1601
    %s1670 = scalar_lea.vmem [#allocation1], 1
    %1671 = vst [vmem:[%s1670] ss:$9 sm:$0xff] %v1602
    %s1672 = scalar_lea.vmem [#allocation1], 2
    %1673 = vst [vmem:[%s1672] ss:$9 sm:$0xff] %v1603
    %s1674 = scalar_lea.vmem [#allocation1], 3
    %1675 = vst [vmem:[%s1674] ss:$9 sm:$0xff] %v1604
    %s1676 = scalar_lea.vmem [#allocation1], 4
    %1677 = vst [vmem:[%s1676] ss:$9 sm:$0xff] %v1605
    %s1678 = scalar_lea.vmem [#allocation1], 5
    %1679 = vst [vmem:[%s1678] ss:$9 sm:$0xff] %v1606
    %s1680 = scalar_lea.vmem [#allocation1], 6
    %1681 = vst [vmem:[%s1680] ss:$9 sm:$0xff] %v1607
    %s1682 = scalar_lea.vmem [#allocation1], 7
    %1683 = vst [vmem:[%s1682] ss:$9 sm:$0xff] %v1608
    %v1684 = vld [vmem:[#allocation1] sm:$0xff]
    %1685 = vst [vmem:[#allocation1] ss:$9 sm:$0xff] %v1609
    %1686 = vst [vmem:[%s1670] ss:$9 sm:$0xff] %v1610
    %1687 = vst [vmem:[%s1672] ss:$9 sm:$0xff] %v1611
    %1688 = vst [vmem:[%s1674] ss:$9 sm:$0xff] %v1612
    %1689 = vst [vmem:[%s1676] ss:$9 sm:$0xff] %v1613
    %1690 = vst [vmem:[%s1678] ss:$9 sm:$0xff] %v1614
    %1691 = vst [vmem:[%s1680] ss:$9 sm:$0xff] %v1615
    %1692 = vst [vmem:[%s1682] ss:$9 sm:$0xff] %v1616
    %v1693 = vld [vmem:[#allocation1] sm:$0xff]
    %1694 = vst [vmem:[#allocation1] ss:$9 sm:$0xff] %v1617
    %v1695 = vld [vmem:[#allocation1] sm:$0xff]
    %1696 = vst [vmem:[#allocation1] ss:$9 sm:$0xff] %v1618
    %1697 = vst [vmem:[%s1670] ss:$9 sm:$0xff] %v1619
    %1698 = vst [vmem:[%s1672] ss:$9 sm:$0xff] %v1620
    %1699 = vst [vmem:[%s1674] ss:$9 sm:$0xff] %v1621
    %1700 = vst [vmem:[%s1676] ss:$9 sm:$0xff] %v1622
    %1701 = vst [vmem:[%s1678] ss:$9 sm:$0xff] %v1623
    %1702 = vst [vmem:[%s1680] ss:$9 sm:$0xff] %v1624
    %1703 = vst [vmem:[%s1682] ss:$9 sm:$0xff] %v1625
    %v1704 = vld [vmem:[#allocation1] sm:$0xff]
    %1705 = vst [vmem:[#allocation1] ss:$9 sm:$0xff] %v1626
    %1706 = vst [vmem:[%s1670] ss:$9 sm:$0xff] %v1627
    %1707 = vst [vmem:[%s1672] ss:$9 sm:$0xff] %v1628
    %1708 = vst [vmem:[%s1674] ss:$9 sm:$0xff] %v1629
    %1709 = vst [vmem:[%s1676] ss:$9 sm:$0xff] %v1630
    %1710 = vst [vmem:[%s1678] ss:$9 sm:$0xff] %v1631
    %1711 = vst [vmem:[%s1680] ss:$9 sm:$0xff] %v1632
    %1712 = vst [vmem:[%s1682] ss:$9 sm:$0xff] %v1633
    %v1713 = vld [vmem:[#allocation1] sm:$0xff]
    %1714 = vst [vmem:[#allocation1] ss:$9 sm:$0xff] %v1634
    %v1715 = vld [vmem:[#allocation1] sm:$0xff]
    %1722 = vst [vmem:[#allocation2] sm:$0xff] %v1684
    %1723 = vst [vmem:[#allocation2 + $0x8] sm:$0xff] %v1693
    %1724 = vst [vmem:[#allocation2 + $0x10] sm:$0x1] %v1695
    %1725 = vst [vmem:[#allocation2 + $0xc0] sm:$0xff] %v1704
    %1726 = vst [vmem:[#allocation2 + $0xc8] sm:$0xff] %v1713
    %1727 = vst [vmem:[#allocation2 + $0xd0] sm:$0x1] %v1715
    %v1728 = vmax.f32 %v538, %v553
    %v1729 = vmax.f32 %v539, %v554
    %v1730 = vmax.f32 %v540, %v555
    %v1731 = vmax.f32 %v541, %v556
    %v1732 = vmax.f32 %v542, %v557
    %v1733 = vmax.f32 %v543, %v370
    %v1734 = vmax.f32 %v368, %v558
    %v1735 = vmax.f32 %v544, %v559
    %v1736 = vmax.f32 %v545, %v560
    %v1737 = vmax.f32 %v546, %v561
    %v1738 = vmax.f32 %v547, %v562
    %v1739 = vmax.f32 %v548, %v563
    %v1740 = vmax.f32 %v549, %v564
    %v1741 = vmax.f32 %v550, %v371
    %v1742 = vmax.f32 %v369, %v565
    %v1743 = vmax.f32 %v551, %v566
    %v1744 = vmax.f32 %v552, %v567
    %v1745 = vmax.f32 %v791, %v806
    %v1746 = vmax.f32 %v792, %v807
    %v1747 = vmax.f32 %v793, %v808
    %v1748 = vmax.f32 %v794, %v809
    %v1749 = vmax.f32 %v795, %v406
    %v1750 = vmax.f32 %v404, %v810
    %v1751 = vmax.f32 %v796, %v811
    %v1752 = vmax.f32 %v797, %v812
    %v1753 = vmax.f32 %v798, %v813
    %v1754 = vmax.f32 %v799, %v814
    %v1755 = vmax.f32 %v800, %v815
    %v1756 = vmax.f32 %v801, %v816
    %v1757 = vmax.f32 %v802, %v407
    %v1758 = vmax.f32 %v405, %v817
    %v1759 = vmax.f32 %v803, %v818
    %v1760 = vmax.f32 %v804, %v819
    %v1761 = vmax.f32 %v805, %v820
    %v1762 = vmax.f32 %v1728, %v568
    %v1763 = vmax.f32 %v1729, %v569
    %v1764 = vmax.f32 %v1730, %v570
    %v1765 = vmax.f32 %v1731, %v571
    %v1766 = vmax.f32 %v1732, %v372
    %v1767 = vmax.f32 %v1733, %v572
    %v1768 = vmax.f32 %v1734, %v573
    %v1769 = vmax.f32 %v1735, %v574
    %v1770 = vmax.f32 %v1736, %v575
    %v1771 = vmax.f32 %v1737, %v576
    %v1772 = vmax.f32 %v1738, %v577
    %v1773 = vmax.f32 %v1739, %v578
    %v1774 = vmax.f32 %v1740, %v373
    %v1775 = vmax.f32 %v1741, %v579
    %v1776 = vmax.f32 %v1742, %v580
    %v1777 = vmax.f32 %v1743, %v581
    %v1778 = vmax.f32 %v1744, %v582
    %v1779 = vmax.f32 %v1745, %v821
    %v1780 = vmax.f32 %v1746, %v822
    %v1781 = vmax.f32 %v1747, %v823
    %v1782 = vmax.f32 %v1748, %v408
    %v1783 = vmax.f32 %v1749, %v824
    %v1784 = vmax.f32 %v1750, %v825
    %v1785 = vmax.f32 %v1751, %v826
    %v1786 = vmax.f32 %v1752, %v827
    %v1787 = vmax.f32 %v1753, %v828
    %v1788 = vmax.f32 %v1754, %v829
    %v1789 = vmax.f32 %v1755, %v830
    %v1790 = vmax.f32 %v1756, %v409
    %v1791 = vmax.f32 %v1757, %v831
    %v1792 = vmax.f32 %v1758, %v832
    %v1793 = vmax.f32 %v1759, %v833
    %v1794 = vmax.f32 %v1760, %v834
    %v1795 = vmax.f32 %v1761, %v835
    %1830 = vst [vmem:[#allocation1] ss:$9 sm:$0xff] %v1762
    %s1831 = scalar_lea.vmem [#allocation1], 1
    %1832 = vst [vmem:[%s1831] ss:$9 sm:$0xff] %v1763
    %s1833 = scalar_lea.vmem [#allocation1], 2
    %1834 = vst [vmem:[%s1833] ss:$9 sm:$0xff] %v1764
    %s1835 = scalar_lea.vmem [#allocation1], 3
    %1836 = vst [vmem:[%s1835] ss:$9 sm:$0xff] %v1765
    %s1837 = scalar_lea.vmem [#allocation1], 4
    %1838 = vst [vmem:[%s1837] ss:$9 sm:$0xff] %v1766
    %s1839 = scalar_lea.vmem [#allocation1], 5
    %1840 = vst [vmem:[%s1839] ss:$9 sm:$0xff] %v1767
    %s1841 = scalar_lea.vmem [#allocation1], 6
    %1842 = vst [vmem:[%s1841] ss:$9 sm:$0xff] %v1768
    %s1843 = scalar_lea.vmem [#allocation1], 7
    %1844 = vst [vmem:[%s1843] ss:$9 sm:$0xff] %v1769
    %v1845 = vld [vmem:[#allocation1] sm:$0xff]
    %1846 = vst [vmem:[#allocation1] ss:$9 sm:$0xff] %v1770
    %1847 = vst [vmem:[%s1831] ss:$9 sm:$0xff] %v1771
    %1848 = vst [vmem:[%s1833] ss:$9 sm:$0xff] %v1772
    %1849 = vst [vmem:[%s1835] ss:$9 sm:$0xff] %v1773
    %1850 = vst [vmem:[%s1837] ss:$9 sm:$0xff] %v1774
    %1851 = vst [vmem:[%s1839] ss:$9 sm:$0xff] %v1775
    %1852 = vst [vmem:[%s1841] ss:$9 sm:$0xff] %v1776
    %1853 = vst [vmem:[%s1843] ss:$9 sm:$0xff] %v1777
    %v1854 = vld [vmem:[#allocation1] sm:$0xff]
    %1855 = vst [vmem:[#allocation1] ss:$9 sm:$0xff] %v1778
    %v1856 = vld [vmem:[#allocation1] sm:$0xff]
    %1857 = vst [vmem:[#allocation1] ss:$9 sm:$0xff] %v1779
    %1858 = vst [vmem:[%s1831] ss:$9 sm:$0xff] %v1780
    %1859 = vst [vmem:[%s1833] ss:$9 sm:$0xff] %v1781
    %1860 = vst [vmem:[%s1835] ss:$9 sm:$0xff] %v1782
    %1861 = vst [vmem:[%s1837] ss:$9 sm:$0xff] %v1783
    %1862 = vst [vmem:[%s1839] ss:$9 sm:$0xff] %v1784
    %1863 = vst [vmem:[%s1841] ss:$9 sm:$0xff] %v1785
    %1864 = vst [vmem:[%s1843] ss:$9 sm:$0xff] %v1786
    %v1865 = vld [vmem:[#allocation1] sm:$0xff]
    %1866 = vst [vmem:[#allocation1] ss:$9 sm:$0xff] %v1787
    %1867 = vst [vmem:[%s1831] ss:$9 sm:$0xff] %v1788
    %1868 = vst [vmem:[%s1833] ss:$9 sm:$0xff] %v1789
    %1869 = vst [vmem:[%s1835] ss:$9 sm:$0xff] %v1790
    %1870 = vst [vmem:[%s1837] ss:$9 sm:$0xff] %v1791
    %1871 = vst [vmem:[%s1839] ss:$9 sm:$0xff] %v1792
    %1872 = vst [vmem:[%s1841] ss:$9 sm:$0xff] %v1793
    %1873 = vst [vmem:[%s1843] ss:$9 sm:$0xff] %v1794
    %v1874 = vld [vmem:[#allocation1] sm:$0xff]
    %1875 = vst [vmem:[#allocation1] ss:$9 sm:$0xff] %v1795
    %v1876 = vld [vmem:[#allocation1] sm:$0xff]
    %s1883 = scalar_lea.vmem [#allocation2], 24
    %1884 = vst [vmem:[%s1883] sm:$0xff] %v1845
    %1885 = vst [vmem:[%s1883 + $0x8] sm:$0xff] %v1854
    %1886 = vst [vmem:[%s1883 + $0x10] sm:$0x1] %v1856
    %1887 = vst [vmem:[%s1883 + $0xc0] sm:$0xff] %v1865
    %1888 = vst [vmem:[%s1883 + $0xc8] sm:$0xff] %v1874
    %1889 = vst [vmem:[%s1883 + $0xd0] sm:$0x1] %v1876
    %v1890 = vmax.f32 %v568, %v583
    %v1891 = vmax.f32 %v569, %v584
    %v1892 = vmax.f32 %v570, %v585
    %v1893 = vmax.f32 %v571, %v374
    %v1894 = vmax.f32 %v372, %v586
    %v1895 = vmax.f32 %v572, %v587
    %v1896 = vmax.f32 %v573, %v588
    %v1897 = vmax.f32 %v574, %v589
    %v1898 = vmax.f32 %v575, %v590
    %v1899 = vmax.f32 %v576, %v591
    %v1900 = vmax.f32 %v577, %v592
    %v1901 = vmax.f32 %v578, %v375
    %v1902 = vmax.f32 %v373, %v593
    %v1903 = vmax.f32 %v579, %v594
    %v1904 = vmax.f32 %v580, %v595
    %v1905 = vmax.f32 %v581, %v596
    %v1906 = vmax.f32 %v582, %v597
    %v1907 = vmax.f32 %v821, %v836
    %v1908 = vmax.f32 %v822, %v837
    %v1909 = vmax.f32 %v823, %v410
    %v1910 = vmax.f32 %v408, %v838
    %v1911 = vmax.f32 %v824, %v839
    %v1912 = vmax.f32 %v825, %v840
    %v1913 = vmax.f32 %v826, %v841
    %v1914 = vmax.f32 %v827, %v842
    %v1915 = vmax.f32 %v828, %v843
    %v1916 = vmax.f32 %v829, %v844
    %v1917 = vmax.f32 %v830, %v411
    %v1918 = vmax.f32 %v409, %v845
    %v1919 = vmax.f32 %v831, %v846
    %v1920 = vmax.f32 %v832, %v847
    %v1921 = vmax.f32 %v833, %v848
    %v1922 = vmax.f32 %v834, %v849
    %v1923 = vmax.f32 %v835, %v850
    %v1924 = vmax.f32 %v1890, %v598
    %v1925 = vmax.f32 %v1891, %v599
    %v1926 = vmax.f32 %v1892, %v376
    %v1927 = vmax.f32 %v1893, %v600
    %v1928 = vmax.f32 %v1894, %v601
    %v1929 = vmax.f32 %v1895, %v602
    %v1930 = vmax.f32 %v1896, %v603
    %v1931 = vmax.f32 %v1897, %v604
    %v1932 = vmax.f32 %v1898, %v605
    %v1933 = vmax.f32 %v1899, %v606
    %v1934 = vmax.f32 %v1900, %v377
    %v1935 = vmax.f32 %v1901, %v607
    %v1936 = vmax.f32 %v1902, %v608
    %v1937 = vmax.f32 %v1903, %v609
    %v1938 = vmax.f32 %v1904, %v610
    %v1939 = vmax.f32 %v1905, %v611
    %v1940 = vmax.f32 %v1906, %v612
    %v1941 = vmax.f32 %v1907, %v851
    %v1942 = vmax.f32 %v1908, %v412
    %v1943 = vmax.f32 %v1909, %v852
    %v1944 = vmax.f32 %v1910, %v853
    %v1945 = vmax.f32 %v1911, %v854
    %v1946 = vmax.f32 %v1912, %v855
    %v1947 = vmax.f32 %v1913, %v856
    %v1948 = vmax.f32 %v1914, %v857
    %v1949 = vmax.f32 %v1915, %v858
    %v1950 = vmax.f32 %v1916, %v413
    %v1951 = vmax.f32 %v1917, %v859
    %v1952 = vmax.f32 %v1918, %v860
    %v1953 = vmax.f32 %v1919, %v861
    %v1954 = vmax.f32 %v1920, %v862
    %v1955 = vmax.f32 %v1921, %v863
    %v1956 = vmax.f32 %v1922, %v864
    %v1957 = vmax.f32 %v1923, %v865
    %1992 = vst [vmem:[#allocation1] ss:$9 sm:$0xff] %v1924
    %s1993 = scalar_lea.vmem [#allocation1], 1
    %1994 = vst [vmem:[%s1993] ss:$9 sm:$0xff] %v1925
    %s1995 = scalar_lea.vmem [#allocation1], 2
    %1996 = vst [vmem:[%s1995] ss:$9 sm:$0xff] %v1926
    %s1997 = scalar_lea.vmem [#allocation1], 3
    %1998 = vst [vmem:[%s1997] ss:$9 sm:$0xff] %v1927
    %s1999 = scalar_lea.vmem [#allocation1], 4
    %2000 = vst [vmem:[%s1999] ss:$9 sm:$0xff] %v1928
    %s2001 = scalar_lea.vmem [#allocation1], 5
    %2002 = vst [vmem:[%s2001] ss:$9 sm:$0xff] %v1929
    %s2003 = scalar_lea.vmem [#allocation1], 6
    %2004 = vst [vmem:[%s2003] ss:$9 sm:$0xff] %v1930
    %s2005 = scalar_lea.vmem [#allocation1], 7
    %2006 = vst [vmem:[%s2005] ss:$9 sm:$0xff] %v1931
    %v2007 = vld [vmem:[#allocation1] sm:$0xff]
    %2008 = vst [vmem:[#allocation1] ss:$9 sm:$0xff] %v1932
    %2009 = vst [vmem:[%s1993] ss:$9 sm:$0xff] %v1933
    %2010 = vst [vmem:[%s1995] ss:$9 sm:$0xff] %v1934
    %2011 = vst [vmem:[%s1997] ss:$9 sm:$0xff] %v1935
    %2012 = vst [vmem:[%s1999] ss:$9 sm:$0xff] %v1936
    %2013 = vst [vmem:[%s2001] ss:$9 sm:$0xff] %v1937
    %2014 = vst [vmem:[%s2003] ss:$9 sm:$0xff] %v1938
    %2015 = vst [vmem:[%s2005] ss:$9 sm:$0xff] %v1939
    %v2016 = vld [vmem:[#allocation1] sm:$0xff]
    %2017 = vst [vmem:[#allocation1] ss:$9 sm:$0xff] %v1940
    %v2018 = vld [vmem:[#allocation1] sm:$0xff]
    %2019 = vst [vmem:[#allocation1] ss:$9 sm:$0xff] %v1941
    %2020 = vst [vmem:[%s1993] ss:$9 sm:$0xff] %v1942
    %2021 = vst [vmem:[%s1995] ss:$9 sm:$0xff] %v1943
    %2022 = vst [vmem:[%s1997] ss:$9 sm:$0xff] %v1944
    %2023 = vst [vmem:[%s1999] ss:$9 sm:$0xff] %v1945
    %2024 = vst [vmem:[%s2001] ss:$9 sm:$0xff] %v1946
    %2025 = vst [vmem:[%s2003] ss:$9 sm:$0xff] %v1947
    %2026 = vst [vmem:[%s2005] ss:$9 sm:$0xff] %v1948
    %v2027 = vld [vmem:[#allocation1] sm:$0xff]
    %2028 = vst [vmem:[#allocation1] ss:$9 sm:$0xff] %v1949
    %2029 = vst [vmem:[%s1993] ss:$9 sm:$0xff] %v1950
    %2030 = vst [vmem:[%s1995] ss:$9 sm:$0xff] %v1951
    %2031 = vst [vmem:[%s1997] ss:$9 sm:$0xff] %v1952
    %2032 = vst [vmem:[%s1999] ss:$9 sm:$0xff] %v1953
    %2033 = vst [vmem:[%s2001] ss:$9 sm:$0xff] %v1954
    %2034 = vst [vmem:[%s2003] ss:$9 sm:$0xff] %v1955
    %2035 = vst [vmem:[%s2005] ss:$9 sm:$0xff] %v1956
    %v2036 = vld [vmem:[#allocation1] sm:$0xff]
    %2037 = vst [vmem:[#allocation1] ss:$9 sm:$0xff] %v1957
    %v2038 = vld [vmem:[#allocation1] sm:$0xff]
    %s2045 = scalar_lea.vmem [#allocation2], 48
    %2046 = vst [vmem:[%s2045] sm:$0xff] %v2007
    %2047 = vst [vmem:[%s2045 + $0x8] sm:$0xff] %v2016
    %2048 = vst [vmem:[%s2045 + $0x10] sm:$0x1] %v2018
    %2049 = vst [vmem:[%s2045 + $0xc0] sm:$0xff] %v2027
    %2050 = vst [vmem:[%s2045 + $0xc8] sm:$0xff] %v2036
    %2051 = vst [vmem:[%s2045 + $0xd0] sm:$0x1] %v2038
    %v2052 = vmax.f32 %v598, %v613
    %v2053 = vmax.f32 %v599, %v378
    %v2054 = vmax.f32 %v376, %v614
    %v2055 = vmax.f32 %v600, %v615
    %v2056 = vmax.f32 %v601, %v616
    %v2057 = vmax.f32 %v602, %v617
    %v2058 = vmax.f32 %v603, %v618
    %v2059 = vmax.f32 %v604, %v619
    %v2060 = vmax.f32 %v605, %v620
    %v2061 = vmax.f32 %v606, %v379
    %v2062 = vmax.f32 %v377, %v621
    %v2063 = vmax.f32 %v607, %v622
    %v2064 = vmax.f32 %v608, %v623
    %v2065 = vmax.f32 %v609, %v624
    %v2066 = vmax.f32 %v610, %v625
    %v2067 = vmax.f32 %v611, %v626
    %v2068 = vmax.f32 %v612, %v627
    %v2069 = vmax.f32 %v851, %v414
    %v2070 = vmax.f32 %v412, %v866
    %v2071 = vmax.f32 %v852, %v867
    %v2072 = vmax.f32 %v853, %v868
    %v2073 = vmax.f32 %v854, %v869
    %v2074 = vmax.f32 %v855, %v870
    %v2075 = vmax.f32 %v856, %v871
    %v2076 = vmax.f32 %v857, %v872
    %v2077 = vmax.f32 %v858, %v415
    %v2078 = vmax.f32 %v413, %v873
    %v2079 = vmax.f32 %v859, %v874
    %v2080 = vmax.f32 %v860, %v875
    %v2081 = vmax.f32 %v861, %v876
    %v2082 = vmax.f32 %v862, %v877
    %v2083 = vmax.f32 %v863, %v878
    %v2084 = vmax.f32 %v864, %v879
    %v2085 = vmax.f32 %v865, %v416
    %v2086 = vmax.f32 %v2052, %v380
    %v2087 = vmax.f32 %v2053, %v628
    %v2088 = vmax.f32 %v2054, %v629
    %v2089 = vmax.f32 %v2055, %v630
    %v2090 = vmax.f32 %v2056, %v631
    %v2091 = vmax.f32 %v2057, %v632
    %v2092 = vmax.f32 %v2058, %v633
    %v2093 = vmax.f32 %v2059, %v634
    %v2094 = vmax.f32 %v2060, %v381
    %v2095 = vmax.f32 %v2061, %v635
    %v2096 = vmax.f32 %v2062, %v636
    %v2097 = vmax.f32 %v2063, %v637
    %v2098 = vmax.f32 %v2064, %v638
    %v2099 = vmax.f32 %v2065, %v639
    %v2100 = vmax.f32 %v2066, %v640
    %v2101 = vmax.f32 %v2067, %v641
    %v2102 = vmax.f32 %v2068, %v382
    %v2103 = vmax.f32 %v2069, %v880
    %v2104 = vmax.f32 %v2070, %v881
    %v2105 = vmax.f32 %v2071, %v882
    %v2106 = vmax.f32 %v2072, %v883
    %v2107 = vmax.f32 %v2073, %v884
    %v2108 = vmax.f32 %v2074, %v885
    %v2109 = vmax.f32 %v2075, %v886
    %v2110 = vmax.f32 %v2076, %v417
    %v2111 = vmax.f32 %v2077, %v887
    %v2112 = vmax.f32 %v2078, %v888
    %v2113 = vmax.f32 %v2079, %v889
    %v2114 = vmax.f32 %v2080, %v890
    %v2115 = vmax.f32 %v2081, %v891
    %v2116 = vmax.f32 %v2082, %v892
    %v2117 = vmax.f32 %v2083, %v893
    %v2118 = vmax.f32 %v2084, %v418
    %v2119 = vmax.f32 %v2085, %v894
    %2154 = vst [vmem:[#allocation1] ss:$9 sm:$0xff] %v2086
    %s2155 = scalar_lea.vmem [#allocation1], 1
    %2156 = vst [vmem:[%s2155] ss:$9 sm:$0xff] %v2087
    %s2157 = scalar_lea.vmem [#allocation1], 2
    %2158 = vst [vmem:[%s2157] ss:$9 sm:$0xff] %v2088
    %s2159 = scalar_lea.vmem [#allocation1], 3
    %2160 = vst [vmem:[%s2159] ss:$9 sm:$0xff] %v2089
    %s2161 = scalar_lea.vmem [#allocation1], 4
    %2162 = vst [vmem:[%s2161] ss:$9 sm:$0xff] %v2090
    %s2163 = scalar_lea.vmem [#allocation1], 5
    %2164 = vst [vmem:[%s2163] ss:$9 sm:$0xff] %v2091
    %s2165 = scalar_lea.vmem [#allocation1], 6
    %2166 = vst [vmem:[%s2165] ss:$9 sm:$0xff] %v2092
    %s2167 = scalar_lea.vmem [#allocation1], 7
    %2168 = vst [vmem:[%s2167] ss:$9 sm:$0xff] %v2093
    %v2169 = vld [vmem:[#allocation1] sm:$0xff]
    %2170 = vst [vmem:[#allocation1] ss:$9 sm:$0xff] %v2094
    %2171 = vst [vmem:[%s2155] ss:$9 sm:$0xff] %v2095
    %2172 = vst [vmem:[%s2157] ss:$9 sm:$0xff] %v2096
    %2173 = vst [vmem:[%s2159] ss:$9 sm:$0xff] %v2097
    %2174 = vst [vmem:[%s2161] ss:$9 sm:$0xff] %v2098
    %2175 = vst [vmem:[%s2163] ss:$9 sm:$0xff] %v2099
    %2176 = vst [vmem:[%s2165] ss:$9 sm:$0xff] %v2100
    %2177 = vst [vmem:[%s2167] ss:$9 sm:$0xff] %v2101
    %v2178 = vld [vmem:[#allocation1] sm:$0xff]
    %2179 = vst [vmem:[#allocation1] ss:$9 sm:$0xff] %v2102
    %v2180 = vld [vmem:[#allocation1] sm:$0xff]
    %2181 = vst [vmem:[#allocation1] ss:$9 sm:$0xff] %v2103
    %2182 = vst [vmem:[%s2155] ss:$9 sm:$0xff] %v2104
    %2183 = vst [vmem:[%s2157] ss:$9 sm:$0xff] %v2105
    %2184 = vst [vmem:[%s2159] ss:$9 sm:$0xff] %v2106
    %2185 = vst [vmem:[%s2161] ss:$9 sm:$0xff] %v2107
    %2186 = vst [vmem:[%s2163] ss:$9 sm:$0xff] %v2108
    %2187 = vst [vmem:[%s2165] ss:$9 sm:$0xff] %v2109
    %2188 = vst [vmem:[%s2167] ss:$9 sm:$0xff] %v2110
    %v2189 = vld [vmem:[#allocation1] sm:$0xff]
    %2190 = vst [vmem:[#allocation1] ss:$9 sm:$0xff] %v2111
    %2191 = vst [vmem:[%s2155] ss:$9 sm:$0xff] %v2112
    %2192 = vst [vmem:[%s2157] ss:$9 sm:$0xff] %v2113
    %2193 = vst [vmem:[%s2159] ss:$9 sm:$0xff] %v2114
    %2194 = vst [vmem:[%s2161] ss:$9 sm:$0xff] %v2115
    %2195 = vst [vmem:[%s2163] ss:$9 sm:$0xff] %v2116
    %2196 = vst [vmem:[%s2165] ss:$9 sm:$0xff] %v2117
    %2197 = vst [vmem:[%s2167] ss:$9 sm:$0xff] %v2118
    %v2198 = vld [vmem:[#allocation1] sm:$0xff]
    %2199 = vst [vmem:[#allocation1] ss:$9 sm:$0xff] %v2119
    %v2200 = vld [vmem:[#allocation1] sm:$0xff]
    %s2207 = scalar_lea.vmem [#allocation2], 72
    %2208 = vst [vmem:[%s2207] sm:$0xff] %v2169
    %2209 = vst [vmem:[%s2207 + $0x8] sm:$0xff] %v2178
    %2210 = vst [vmem:[%s2207 + $0x10] sm:$0x1] %v2180
    %2211 = vst [vmem:[%s2207 + $0xc0] sm:$0xff] %v2189
    %2212 = vst [vmem:[%s2207 + $0xc8] sm:$0xff] %v2198
    %2213 = vst [vmem:[%s2207 + $0xd0] sm:$0x1] %v2200
    %v2214 = vmax.f32 %v380, %v642
    %v2215 = vmax.f32 %v628, %v643
    %v2216 = vmax.f32 %v629, %v644
    %v2217 = vmax.f32 %v630, %v645
    %v2218 = vmax.f32 %v631, %v646
    %v2219 = vmax.f32 %v632, %v647
    %v2220 = vmax.f32 %v633, %v648
    %v2221 = vmax.f32 %v634, %v383
    %v2222 = vmax.f32 %v381, %v649
    %v2223 = vmax.f32 %v635, %v650
    %v2224 = vmax.f32 %v636, %v651
    %v2225 = vmax.f32 %v637, %v652
    %v2226 = vmax.f32 %v638, %v653
    %v2227 = vmax.f32 %v639, %v654
    %v2228 = vmax.f32 %v640, %v655
    %v2229 = vmax.f32 %v641, %v384
    %v2230 = vmax.f32 %v382, %v656
    %v2231 = vmax.f32 %v880, %v895
    %v2232 = vmax.f32 %v881, %v896
    %v2233 = vmax.f32 %v882, %v897
    %v2234 = vmax.f32 %v883, %v898
    %v2235 = vmax.f32 %v884, %v899
    %v2236 = vmax.f32 %v885, %v900
    %v2237 = vmax.f32 %v886, %v419
    %v2238 = vmax.f32 %v417, %v901
    %v2239 = vmax.f32 %v887, %v902
    %v2240 = vmax.f32 %v888, %v903
    %v2241 = vmax.f32 %v889, %v904
    %v2242 = vmax.f32 %v890, %v905
    %v2243 = vmax.f32 %v891, %v906
    %v2244 = vmax.f32 %v892, %v907
    %v2245 = vmax.f32 %v893, %v420
    %v2246 = vmax.f32 %v418, %v908
    %v2247 = vmax.f32 %v894, %v909
    %v2248 = vmax.f32 %v2214, %v657
    %v2249 = vmax.f32 %v2215, %v658
    %v2250 = vmax.f32 %v2216, %v659
    %v2251 = vmax.f32 %v2217, %v660
    %v2252 = vmax.f32 %v2218, %v661
    %v2253 = vmax.f32 %v2219, %v662
    %v2254 = vmax.f32 %v2220, %v385
    %v2255 = vmax.f32 %v2221, %v663
    %v2256 = vmax.f32 %v2222, %v664
    %v2257 = vmax.f32 %v2223, %v665
    %v2258 = vmax.f32 %v2224, %v666
    %v2259 = vmax.f32 %v2225, %v667
    %v2260 = vmax.f32 %v2226, %v668
    %v2261 = vmax.f32 %v2227, %v669
    %v2262 = vmax.f32 %v2228, %v386
    %v2263 = vmax.f32 %v2229, %v670
    %v2264 = vmax.f32 %v2230, %v671
    %v2265 = vmax.f32 %v2231, %v910
    %v2266 = vmax.f32 %v2232, %v911
    %v2267 = vmax.f32 %v2233, %v912
    %v2268 = vmax.f32 %v2234, %v913
    %v2269 = vmax.f32 %v2235, %v914
    %v2270 = vmax.f32 %v2236, %v421
    %v2271 = vmax.f32 %v2237, %v915
    %v2272 = vmax.f32 %v2238, %v916
    %v2273 = vmax.f32 %v2239, %v917
    %v2274 = vmax.f32 %v2240, %v918
    %v2275 = vmax.f32 %v2241, %v919
    %v2276 = vmax.f32 %v2242, %v920
    %v2277 = vmax.f32 %v2243, %v921
    %v2278 = vmax.f32 %v2244, %v422
    %v2279 = vmax.f32 %v2245, %v922
    %v2280 = vmax.f32 %v2246, %v923
    %v2281 = vmax.f32 %v2247, %v924
    %2316 = vst [vmem:[#allocation1] ss:$9 sm:$0xff] %v2248
    %s2317 = scalar_lea.vmem [#allocation1], 1
    %2318 = vst [vmem:[%s2317] ss:$9 sm:$0xff] %v2249
    %s2319 = scalar_lea.vmem [#allocation1], 2
    %2320 = vst [vmem:[%s2319] ss:$9 sm:$0xff] %v2250
    %s2321 = scalar_lea.vmem [#allocation1], 3
    %2322 = vst [vmem:[%s2321] ss:$9 sm:$0xff] %v2251
    %s2323 = scalar_lea.vmem [#allocation1], 4
    %2324 = vst [vmem:[%s2323] ss:$9 sm:$0xff] %v2252
    %s2325 = scalar_lea.vmem [#allocation1], 5
    %2326 = vst [vmem:[%s2325] ss:$9 sm:$0xff] %v2253
    %s2327 = scalar_lea.vmem [#allocation1], 6
    %2328 = vst [vmem:[%s2327] ss:$9 sm:$0xff] %v2254
    %s2329 = scalar_lea.vmem [#allocation1], 7
    %2330 = vst [vmem:[%s2329] ss:$9 sm:$0xff] %v2255
    %v2331 = vld [vmem:[#allocation1] sm:$0xff]
    %2332 = vst [vmem:[#allocation1] ss:$9 sm:$0xff] %v2256
    %2333 = vst [vmem:[%s2317] ss:$9 sm:$0xff] %v2257
    %2334 = vst [vmem:[%s2319] ss:$9 sm:$0xff] %v2258
    %2335 = vst [vmem:[%s2321] ss:$9 sm:$0xff] %v2259
    %2336 = vst [vmem:[%s2323] ss:$9 sm:$0xff] %v2260
    %2337 = vst [vmem:[%s2325] ss:$9 sm:$0xff] %v2261
    %2338 = vst [vmem:[%s2327] ss:$9 sm:$0xff] %v2262
    %2339 = vst [vmem:[%s2329] ss:$9 sm:$0xff] %v2263
    %v2340 = vld [vmem:[#allocation1] sm:$0xff]
    %2341 = vst [vmem:[#allocation1] ss:$9 sm:$0xff] %v2264
    %v2342 = vld [vmem:[#allocation1] sm:$0xff]
    %2343 = vst [vmem:[#allocation1] ss:$9 sm:$0xff] %v2265
    %2344 = vst [vmem:[%s2317] ss:$9 sm:$0xff] %v2266
    %2345 = vst [vmem:[%s2319] ss:$9 sm:$0xff] %v2267
    %2346 = vst [vmem:[%s2321] ss:$9 sm:$0xff] %v2268
    %2347 = vst [vmem:[%s2323] ss:$9 sm:$0xff] %v2269
    %2348 = vst [vmem:[%s2325] ss:$9 sm:$0xff] %v2270
    %2349 = vst [vmem:[%s2327] ss:$9 sm:$0xff] %v2271
    %2350 = vst [vmem:[%s2329] ss:$9 sm:$0xff] %v2272
    %v2351 = vld [vmem:[#allocation1] sm:$0xff]
    %2352 = vst [vmem:[#allocation1] ss:$9 sm:$0xff] %v2273
    %2353 = vst [vmem:[%s2317] ss:$9 sm:$0xff] %v2274
    %2354 = vst [vmem:[%s2319] ss:$9 sm:$0xff] %v2275
    %2355 = vst [vmem:[%s2321] ss:$9 sm:$0xff] %v2276
    %2356 = vst [vmem:[%s2323] ss:$9 sm:$0xff] %v2277
    %2357 = vst [vmem:[%s2325] ss:$9 sm:$0xff] %v2278
    %2358 = vst [vmem:[%s2327] ss:$9 sm:$0xff] %v2279
    %2359 = vst [vmem:[%s2329] ss:$9 sm:$0xff] %v2280
    %v2360 = vld [vmem:[#allocation1] sm:$0xff]
    %2361 = vst [vmem:[#allocation1] ss:$9 sm:$0xff] %v2281
    %v2362 = vld [vmem:[#allocation1] sm:$0xff]
    %s2369 = scalar_lea.vmem [#allocation2], 96
    %2370 = vst [vmem:[%s2369] sm:$0xff] %v2331
    %2371 = vst [vmem:[%s2369 + $0x8] sm:$0xff] %v2340
    %2372 = vst [vmem:[%s2369 + $0x10] sm:$0x1] %v2342
    %2373 = vst [vmem:[%s2369 + $0xc0] sm:$0xff] %v2351
    %2374 = vst [vmem:[%s2369 + $0xc8] sm:$0xff] %v2360
    %2375 = vst [vmem:[%s2369 + $0xd0] sm:$0x1] %v2362
    %v2376 = vmax.f32 %v657, %v672
    %v2377 = vmax.f32 %v658, %v673
    %v2378 = vmax.f32 %v659, %v674
    %v2379 = vmax.f32 %v660, %v675
    %v2380 = vmax.f32 %v661, %v676
    %v2381 = vmax.f32 %v662, %v387
    %v2382 = vmax.f32 %v385, %v677
    %v2383 = vmax.f32 %v663, %v678
    %v2384 = vmax.f32 %v664, %v679
    %v2385 = vmax.f32 %v665, %v680
    %v2386 = vmax.f32 %v666, %v681
    %v2387 = vmax.f32 %v667, %v682
    %v2388 = vmax.f32 %v668, %v683
    %v2389 = vmax.f32 %v669, %v388
    %v2390 = vmax.f32 %v386, %v684
    %v2391 = vmax.f32 %v670, %v685
    %v2392 = vmax.f32 %v671, %v686
    %v2393 = vmax.f32 %v910, %v925
    %v2394 = vmax.f32 %v911, %v926
    %v2395 = vmax.f32 %v912, %v927
    %v2396 = vmax.f32 %v913, %v928
    %v2397 = vmax.f32 %v914, %v423
    %v2398 = vmax.f32 %v421, %v929
    %v2399 = vmax.f32 %v915, %v930
    %v2400 = vmax.f32 %v916, %v931
    %v2401 = vmax.f32 %v917, %v932
    %v2402 = vmax.f32 %v918, %v933
    %v2403 = vmax.f32 %v919, %v934
    %v2404 = vmax.f32 %v920, %v935
    %v2405 = vmax.f32 %v921, %v424
    %v2406 = vmax.f32 %v422, %v936
    %v2407 = vmax.f32 %v922, %v937
    %v2408 = vmax.f32 %v923, %v938
    %v2409 = vmax.f32 %v924, %v939
    %v2410 = vmax.f32 %v2376, %v687
    %v2411 = vmax.f32 %v2377, %v688
    %v2412 = vmax.f32 %v2378, %v689
    %v2413 = vmax.f32 %v2379, %v690
    %v2414 = vmax.f32 %v2380, %v389
    %v2415 = vmax.f32 %v2381, %v691
    %v2416 = vmax.f32 %v2382, %v692
    %v2417 = vmax.f32 %v2383, %v693
    %v2418 = vmax.f32 %v2384, %v694
    %v2419 = vmax.f32 %v2385, %v695
    %v2420 = vmax.f32 %v2386, %v696
    %v2421 = vmax.f32 %v2387, %v697
    %v2422 = vmax.f32 %v2388, %v390
    %v2423 = vmax.f32 %v2389, %v698
    %v2424 = vmax.f32 %v2390, %v699
    %v2425 = vmax.f32 %v2391, %v700
    %v2426 = vmax.f32 %v2392, %v701
    %v2427 = vmax.f32 %v2393, %v940
    %v2428 = vmax.f32 %v2394, %v941
    %v2429 = vmax.f32 %v2395, %v942
    %v2430 = vmax.f32 %v2396, %v425
    %v2431 = vmax.f32 %v2397, %v943
    %v2432 = vmax.f32 %v2398, %v944
    %v2433 = vmax.f32 %v2399, %v945
    %v2434 = vmax.f32 %v2400, %v946
    %v2435 = vmax.f32 %v2401, %v947
    %v2436 = vmax.f32 %v2402, %v948
    %v2437 = vmax.f32 %v2403, %v949
    %v2438 = vmax.f32 %v2404, %v426
    %v2439 = vmax.f32 %v2405, %v950
    %v2440 = vmax.f32 %v2406, %v951
    %v2441 = vmax.f32 %v2407, %v952
    %v2442 = vmax.f32 %v2408, %v953
    %v2443 = vmax.f32 %v2409, %v954
    %2478 = vst [vmem:[#allocation1] ss:$9 sm:$0xff] %v2410
    %s2479 = scalar_lea.vmem [#allocation1], 1
    %2480 = vst [vmem:[%s2479] ss:$9 sm:$0xff] %v2411
    %s2481 = scalar_lea.vmem [#allocation1], 2
    %2482 = vst [vmem:[%s2481] ss:$9 sm:$0xff] %v2412
    %s2483 = scalar_lea.vmem [#allocation1], 3
    %2484 = vst [vmem:[%s2483] ss:$9 sm:$0xff] %v2413
    %s2485 = scalar_lea.vmem [#allocation1], 4
    %2486 = vst [vmem:[%s2485] ss:$9 sm:$0xff] %v2414
    %s2487 = scalar_lea.vmem [#allocation1], 5
    %2488 = vst [vmem:[%s2487] ss:$9 sm:$0xff] %v2415
    %s2489 = scalar_lea.vmem [#allocation1], 6
    %2490 = vst [vmem:[%s2489] ss:$9 sm:$0xff] %v2416
    %s2491 = scalar_lea.vmem [#allocation1], 7
    %2492 = vst [vmem:[%s2491] ss:$9 sm:$0xff] %v2417
    %v2493 = vld [vmem:[#allocation1] sm:$0xff]
    %2494 = vst [vmem:[#allocation1] ss:$9 sm:$0xff] %v2418
    %2495 = vst [vmem:[%s2479] ss:$9 sm:$0xff] %v2419
    %2496 = vst [vmem:[%s2481] ss:$9 sm:$0xff] %v2420
    %2497 = vst [vmem:[%s2483] ss:$9 sm:$0xff] %v2421
    %2498 = vst [vmem:[%s2485] ss:$9 sm:$0xff] %v2422
    %2499 = vst [vmem:[%s2487] ss:$9 sm:$0xff] %v2423
    %2500 = vst [vmem:[%s2489] ss:$9 sm:$0xff] %v2424
    %2501 = vst [vmem:[%s2491] ss:$9 sm:$0xff] %v2425
    %v2502 = vld [vmem:[#allocation1] sm:$0xff]
    %2503 = vst [vmem:[#allocation1] ss:$9 sm:$0xff] %v2426
    %v2504 = vld [vmem:[#allocation1] sm:$0xff]
    %2505 = vst [vmem:[#allocation1] ss:$9 sm:$0xff] %v2427
    %2506 = vst [vmem:[%s2479] ss:$9 sm:$0xff] %v2428
    %2507 = vst [vmem:[%s2481] ss:$9 sm:$0xff] %v2429
    %2508 = vst [vmem:[%s2483] ss:$9 sm:$0xff] %v2430
    %2509 = vst [vmem:[%s2485] ss:$9 sm:$0xff] %v2431
    %2510 = vst [vmem:[%s2487] ss:$9 sm:$0xff] %v2432
    %2511 = vst [vmem:[%s2489] ss:$9 sm:$0xff] %v2433
    %2512 = vst [vmem:[%s2491] ss:$9 sm:$0xff] %v2434
    %v2513 = vld [vmem:[#allocation1] sm:$0xff]
    %2514 = vst [vmem:[#allocation1] ss:$9 sm:$0xff] %v2435
    %2515 = vst [vmem:[%s2479] ss:$9 sm:$0xff] %v2436
    %2516 = vst [vmem:[%s2481] ss:$9 sm:$0xff] %v2437
    %2517 = vst [vmem:[%s2483] ss:$9 sm:$0xff] %v2438
    %2518 = vst [vmem:[%s2485] ss:$9 sm:$0xff] %v2439
    %2519 = vst [vmem:[%s2487] ss:$9 sm:$0xff] %v2440
    %2520 = vst [vmem:[%s2489] ss:$9 sm:$0xff] %v2441
    %2521 = vst [vmem:[%s2491] ss:$9 sm:$0xff] %v2442
    %v2522 = vld [vmem:[#allocation1] sm:$0xff]
    %2523 = vst [vmem:[#allocation1] ss:$9 sm:$0xff] %v2443
    %v2524 = vld [vmem:[#allocation1] sm:$0xff]
    %s2531 = scalar_lea.vmem [#allocation2], 120
    %2532 = vst [vmem:[%s2531] sm:$0xff] %v2493
    %2533 = vst [vmem:[%s2531 + $0x8] sm:$0xff] %v2502
    %2534 = vst [vmem:[%s2531 + $0x10] sm:$0x1] %v2504
    %2535 = vst [vmem:[%s2531 + $0xc0] sm:$0xff] %v2513
    %2536 = vst [vmem:[%s2531 + $0xc8] sm:$0xff] %v2522
    %2537 = vst [vmem:[%s2531 + $0xd0] sm:$0x1] %v2524
    %v2538 = vmax.f32 %v687, %v702
    %v2539 = vmax.f32 %v688, %v703
    %v2540 = vmax.f32 %v689, %v704
    %v2541 = vmax.f32 %v690, %v391
    %v2542 = vmax.f32 %v389, %v705
    %v2543 = vmax.f32 %v691, %v706
    %v2544 = vmax.f32 %v692, %v707
    %v2545 = vmax.f32 %v693, %v708
    %v2546 = vmax.f32 %v694, %v709
    %v2547 = vmax.f32 %v695, %v710
    %v2548 = vmax.f32 %v696, %v711
    %v2549 = vmax.f32 %v697, %v392
    %v2550 = vmax.f32 %v390, %v712
    %v2551 = vmax.f32 %v698, %v713
    %v2552 = vmax.f32 %v699, %v714
    %v2553 = vmax.f32 %v700, %v715
    %v2554 = vmax.f32 %v701, %v716
    %v2555 = vmax.f32 %v940, %v955
    %v2556 = vmax.f32 %v941, %v956
    %v2557 = vmax.f32 %v942, %v427
    %v2558 = vmax.f32 %v425, %v957
    %v2559 = vmax.f32 %v943, %v958
    %v2560 = vmax.f32 %v944, %v959
    %v2561 = vmax.f32 %v945, %v960
    %v2562 = vmax.f32 %v946, %v961
    %v2563 = vmax.f32 %v947, %v962
    %v2564 = vmax.f32 %v948, %v963
    %v2565 = vmax.f32 %v949, %v428
    %v2566 = vmax.f32 %v426, %v964
    %v2567 = vmax.f32 %v950, %v965
    %v2568 = vmax.f32 %v951, %v966
    %v2569 = vmax.f32 %v952, %v967
    %v2570 = vmax.f32 %v953, %v968
    %v2571 = vmax.f32 %v954, %v969
    %v2572 = vmax.f32 %v2538, %v717
    %v2573 = vmax.f32 %v2539, %v718
    %v2574 = vmax.f32 %v2540, %v393
    %v2575 = vmax.f32 %v2541, %v719
    %v2576 = vmax.f32 %v2542, %v720
    %v2577 = vmax.f32 %v2543, %v721
    %v2578 = vmax.f32 %v2544, %v722
    %v2579 = vmax.f32 %v2545, %v723
    %v2580 = vmax.f32 %v2546, %v724
    %v2581 = vmax.f32 %v2547, %v725
    %v2582 = vmax.f32 %v2548, %v394
    %v2583 = vmax.f32 %v2549, %v726
    %v2584 = vmax.f32 %v2550, %v727
    %v2585 = vmax.f32 %v2551, %v728
    %v2586 = vmax.f32 %v2552, %v729
    %v2587 = vmax.f32 %v2553, %v730
    %v2588 = vmax.f32 %v2554, %v731
    %v2589 = vmax.f32 %v2555, %v970
    %v2590 = vmax.f32 %v2556, %v429
    %v2591 = vmax.f32 %v2557, %v971
    %v2592 = vmax.f32 %v2558, %v972
    %v2593 = vmax.f32 %v2559, %v973
    %v2594 = vmax.f32 %v2560, %v974
    %v2595 = vmax.f32 %v2561, %v975
    %v2596 = vmax.f32 %v2562, %v976
    %v2597 = vmax.f32 %v2563, %v977
    %v2598 = vmax.f32 %v2564, %v430
    %v2599 = vmax.f32 %v2565, %v978
    %v2600 = vmax.f32 %v2566, %v979
    %v2601 = vmax.f32 %v2567, %v980
    %v2602 = vmax.f32 %v2568, %v981
    %v2603 = vmax.f32 %v2569, %v982
    %v2604 = vmax.f32 %v2570, %v983
    %v2605 = vmax.f32 %v2571, %v984
    %2640 = vst [vmem:[#allocation1] ss:$9 sm:$0xff] %v2572
    %s2641 = scalar_lea.vmem [#allocation1], 1
    %2642 = vst [vmem:[%s2641] ss:$9 sm:$0xff] %v2573
    %s2643 = scalar_lea.vmem [#allocation1], 2
    %2644 = vst [vmem:[%s2643] ss:$9 sm:$0xff] %v2574
    %s2645 = scalar_lea.vmem [#allocation1], 3
    %2646 = vst [vmem:[%s2645] ss:$9 sm:$0xff] %v2575
    %s2647 = scalar_lea.vmem [#allocation1], 4
    %2648 = vst [vmem:[%s2647] ss:$9 sm:$0xff] %v2576
    %s2649 = scalar_lea.vmem [#allocation1], 5
    %2650 = vst [vmem:[%s2649] ss:$9 sm:$0xff] %v2577
    %s2651 = scalar_lea.vmem [#allocation1], 6
    %2652 = vst [vmem:[%s2651] ss:$9 sm:$0xff] %v2578
    %s2653 = scalar_lea.vmem [#allocation1], 7
    %2654 = vst [vmem:[%s2653] ss:$9 sm:$0xff] %v2579
    %v2655 = vld [vmem:[#allocation1] sm:$0xff]
    %2656 = vst [vmem:[#allocation1] ss:$9 sm:$0xff] %v2580
    %2657 = vst [vmem:[%s2641] ss:$9 sm:$0xff] %v2581
    %2658 = vst [vmem:[%s2643] ss:$9 sm:$0xff] %v2582
    %2659 = vst [vmem:[%s2645] ss:$9 sm:$0xff] %v2583
    %2660 = vst [vmem:[%s2647] ss:$9 sm:$0xff] %v2584
    %2661 = vst [vmem:[%s2649] ss:$9 sm:$0xff] %v2585
    %2662 = vst [vmem:[%s2651] ss:$9 sm:$0xff] %v2586
    %2663 = vst [vmem:[%s2653] ss:$9 sm:$0xff] %v2587
    %v2664 = vld [vmem:[#allocation1] sm:$0xff]
    %2665 = vst [vmem:[#allocation1] ss:$9 sm:$0xff] %v2588
    %v2666 = vld [vmem:[#allocation1] sm:$0xff]
    %2667 = vst [vmem:[#allocation1] ss:$9 sm:$0xff] %v2589
    %2668 = vst [vmem:[%s2641] ss:$9 sm:$0xff] %v2590
    %2669 = vst [vmem:[%s2643] ss:$9 sm:$0xff] %v2591
    %2670 = vst [vmem:[%s2645] ss:$9 sm:$0xff] %v2592
    %2671 = vst [vmem:[%s2647] ss:$9 sm:$0xff] %v2593
    %2672 = vst [vmem:[%s2649] ss:$9 sm:$0xff] %v2594
    %2673 = vst [vmem:[%s2651] ss:$9 sm:$0xff] %v2595
    %2674 = vst [vmem:[%s2653] ss:$9 sm:$0xff] %v2596
    %v2675 = vld [vmem:[#allocation1] sm:$0xff]
    %2676 = vst [vmem:[#allocation1] ss:$9 sm:$0xff] %v2597
    %2677 = vst [vmem:[%s2641] ss:$9 sm:$0xff] %v2598
    %2678 = vst [vmem:[%s2643] ss:$9 sm:$0xff] %v2599
    %2679 = vst [vmem:[%s2645] ss:$9 sm:$0xff] %v2600
    %2680 = vst [vmem:[%s2647] ss:$9 sm:$0xff] %v2601
    %2681 = vst [vmem:[%s2649] ss:$9 sm:$0xff] %v2602
    %2682 = vst [vmem:[%s2651] ss:$9 sm:$0xff] %v2603
    %2683 = vst [vmem:[%s2653] ss:$9 sm:$0xff] %v2604
    %v2684 = vld [vmem:[#allocation1] sm:$0xff]
    %2685 = vst [vmem:[#allocation1] ss:$9 sm:$0xff] %v2605
    %v2686 = vld [vmem:[#allocation1] sm:$0xff]
    %s2693 = scalar_lea.vmem [#allocation2], 144
    %2694 = vst [vmem:[%s2693] sm:$0xff] %v2655
    %2695 = vst [vmem:[%s2693 + $0x8] sm:$0xff] %v2664
    %2696 = vst [vmem:[%s2693 + $0x10] sm:$0x1] %v2666
    %2697 = vst [vmem:[%s2693 + $0xc0] sm:$0xff] %v2675
    %2698 = vst [vmem:[%s2693 + $0xc8] sm:$0xff] %v2684
    %2699 = vst [vmem:[%s2693 + $0xd0] sm:$0x1] %v2686
    %v2700 = vmax.f32 %v717, %v732
    %v2701 = vmax.f32 %v718, %v395
    %v2702 = vmax.f32 %v393, %v733
    %v2703 = vmax.f32 %v719, %v734
    %v2704 = vmax.f32 %v720, %v735
    %v2705 = vmax.f32 %v721, %v736
    %v2706 = vmax.f32 %v722, %v737
    %v2707 = vmax.f32 %v723, %v738
    %v2708 = vmax.f32 %v724, %v739
    %v2709 = vmax.f32 %v725, %v396
    %v2710 = vmax.f32 %v394, %v740
    %v2711 = vmax.f32 %v726, %v741
    %v2712 = vmax.f32 %v727, %v742
    %v2713 = vmax.f32 %v728, %v743
    %v2714 = vmax.f32 %v729, %v744
    %v2715 = vmax.f32 %v730, %v745
    %v2716 = vmax.f32 %v731, %v746
    %v2717 = vmax.f32 %v970, %v431
    %v2718 = vmax.f32 %v429, %v985
    %v2719 = vmax.f32 %v971, %v986
    %v2720 = vmax.f32 %v972, %v987
    %v2721 = vmax.f32 %v973, %v988
    %v2722 = vmax.f32 %v974, %v989
    %v2723 = vmax.f32 %v975, %v990
    %v2724 = vmax.f32 %v976, %v991
    %v2725 = vmax.f32 %v977, %v432
    %v2726 = vmax.f32 %v430, %v992
    %v2727 = vmax.f32 %v978, %v993
    %v2728 = vmax.f32 %v979, %v994
    %v2729 = vmax.f32 %v980, %v995
    %v2730 = vmax.f32 %v981, %v996
    %v2731 = vmax.f32 %v982, %v997
    %v2732 = vmax.f32 %v983, %v998
    %v2733 = vmax.f32 %v984, %v433
    %v2734 = vmax.f32 %v2700, %v397
    %v2735 = vmax.f32 %v2701, %v747
    %v2736 = vmax.f32 %v2702, %v748
    %v2737 = vmax.f32 %v2703, %v749
    %v2738 = vmax.f32 %v2704, %v750
    %v2739 = vmax.f32 %v2705, %v751
    %v2740 = vmax.f32 %v2706, %v752
    %v2741 = vmax.f32 %v2707, %v753
    %v2742 = vmax.f32 %v2708, %v398
    %v2743 = vmax.f32 %v2709, %v754
    %v2744 = vmax.f32 %v2710, %v755
    %v2745 = vmax.f32 %v2711, %v756
    %v2746 = vmax.f32 %v2712, %v757
    %v2747 = vmax.f32 %v2713, %v758
    %v2748 = vmax.f32 %v2714, %v759
    %v2749 = vmax.f32 %v2715, %v760
    %v2750 = vmax.f32 %v2716, %v399
    %v2751 = vmax.f32 %v2717, %v999
    %v2752 = vmax.f32 %v2718, %v1000
    %v2753 = vmax.f32 %v2719, %v1001
    %v2754 = vmax.f32 %v2720, %v1002
    %v2755 = vmax.f32 %v2721, %v1003
    %v2756 = vmax.f32 %v2722, %v1004
    %v2757 = vmax.f32 %v2723, %v1005
    %v2758 = vmax.f32 %v2724, %v434
    %v2759 = vmax.f32 %v2725, %v1006
    %v2760 = vmax.f32 %v2726, %v1007
    %v2761 = vmax.f32 %v2727, %v1008
    %v2762 = vmax.f32 %v2728, %v1009
    %v2763 = vmax.f32 %v2729, %v1010
    %v2764 = vmax.f32 %v2730, %v1011
    %v2765 = vmax.f32 %v2731, %v1012
    %v2766 = vmax.f32 %v2732, %v435
    %v2767 = vmax.f32 %v2733, %v1013
    %2802 = vst [vmem:[#allocation1] ss:$9 sm:$0xff] %v2734
    %s2803 = scalar_lea.vmem [#allocation1], 1
    %2804 = vst [vmem:[%s2803] ss:$9 sm:$0xff] %v2735
    %s2805 = scalar_lea.vmem [#allocation1], 2
    %2806 = vst [vmem:[%s2805] ss:$9 sm:$0xff] %v2736
    %s2807 = scalar_lea.vmem [#allocation1], 3
    %2808 = vst [vmem:[%s2807] ss:$9 sm:$0xff] %v2737
    %s2809 = scalar_lea.vmem [#allocation1], 4
    %2810 = vst [vmem:[%s2809] ss:$9 sm:$0xff] %v2738
    %s2811 = scalar_lea.vmem [#allocation1], 5
    %2812 = vst [vmem:[%s2811] ss:$9 sm:$0xff] %v2739
    %s2813 = scalar_lea.vmem [#allocation1], 6
    %2814 = vst [vmem:[%s2813] ss:$9 sm:$0xff] %v2740
    %s2815 = scalar_lea.vmem [#allocation1], 7
    %2816 = vst [vmem:[%s2815] ss:$9 sm:$0xff] %v2741
    %v2817 = vld [vmem:[#allocation1] sm:$0xff]
    %2818 = vst [vmem:[#allocation1] ss:$9 sm:$0xff] %v2742
    %2819 = vst [vmem:[%s2803] ss:$9 sm:$0xff] %v2743
    %2820 = vst [vmem:[%s2805] ss:$9 sm:$0xff] %v2744
    %2821 = vst [vmem:[%s2807] ss:$9 sm:$0xff] %v2745
    %2822 = vst [vmem:[%s2809] ss:$9 sm:$0xff] %v2746
    %2823 = vst [vmem:[%s2811] ss:$9 sm:$0xff] %v2747
    %2824 = vst [vmem:[%s2813] ss:$9 sm:$0xff] %v2748
    %2825 = vst [vmem:[%s2815] ss:$9 sm:$0xff] %v2749
    %v2826 = vld [vmem:[#allocation1] sm:$0xff]
    %2827 = vst [vmem:[#allocation1] ss:$9 sm:$0xff] %v2750
    %v2828 = vld [vmem:[#allocation1] sm:$0xff]
    %2829 = vst [vmem:[#allocation1] ss:$9 sm:$0xff] %v2751
    %2830 = vst [vmem:[%s2803] ss:$9 sm:$0xff] %v2752
    %2831 = vst [vmem:[%s2805] ss:$9 sm:$0xff] %v2753
    %2832 = vst [vmem:[%s2807] ss:$9 sm:$0xff] %v2754
    %2833 = vst [vmem:[%s2809] ss:$9 sm:$0xff] %v2755
    %2834 = vst [vmem:[%s2811] ss:$9 sm:$0xff] %v2756
    %2835 = vst [vmem:[%s2813] ss:$9 sm:$0xff] %v2757
    %2836 = vst [vmem:[%s2815] ss:$9 sm:$0xff] %v2758
    %v2837 = vld [vmem:[#allocation1] sm:$0xff]
    %2838 = vst [vmem:[#allocation1] ss:$9 sm:$0xff] %v2759
    %2839 = vst [vmem:[%s2803] ss:$9 sm:$0xff] %v2760
    %2840 = vst [vmem:[%s2805] ss:$9 sm:$0xff] %v2761
    %2841 = vst [vmem:[%s2807] ss:$9 sm:$0xff] %v2762
    %2842 = vst [vmem:[%s2809] ss:$9 sm:$0xff] %v2763
    %2843 = vst [vmem:[%s2811] ss:$9 sm:$0xff] %v2764
    %2844 = vst [vmem:[%s2813] ss:$9 sm:$0xff] %v2765
    %2845 = vst [vmem:[%s2815] ss:$9 sm:$0xff] %v2766
    %v2846 = vld [vmem:[#allocation1] sm:$0xff]
    %2847 = vst [vmem:[#allocation1] ss:$9 sm:$0xff] %v2767
    %v2848 = vld [vmem:[#allocation1] sm:$0xff]
    %s2855 = scalar_lea.vmem [#allocation2], 168
    %2856 = vst [vmem:[%s2855] sm:$0xff] %v2817
    %2857 = vst [vmem:[%s2855 + $0x8] sm:$0xff] %v2826
    %2858 = vst [vmem:[%s2855 + $0x10] sm:$0x1] %v2828
    %2859 = vst [vmem:[%s2855 + $0xc0] sm:$0xff] %v2837
    %2860 = vst [vmem:[%s2855 + $0xc8] sm:$0xff] %v2846
    %2861 = vst [vmem:[%s2855 + $0xd0] sm:$0x1] %v2848
    %v2862 = vld [vmem:[#allocation2] sm:$0x1]
    %v2863 = vld [vmem:[#allocation2 + $0x18] sm:$0x1]
    %v2864 = vld [vmem:[#allocation2 + $0x30] sm:$0x1]
    %v2865 = vld [vmem:[#allocation2 + $0x48] sm:$0x1]
    %v2866 = vld [vmem:[#allocation2 + $0x60] sm:$0x1]
    %v2867 = vld [vmem:[#allocation2 + $0x78] sm:$0x1]
    %v2868 = vld [vmem:[#allocation2 + $0x90] sm:$0x1]
    %v2869 = vld [vmem:[#allocation2 + $0xa8] sm:$0x1]
    %v2870 = vld [vmem:[#allocation2 + $0xc0] sm:$0x1]
    %v2871 = vld [vmem:[#allocation2 + $0xd8] sm:$0x1]
    %v2872 = vld [vmem:[#allocation2 + $0xf0] sm:$0x1]
    %v2873 = vld [vmem:[#allocation2 + $0x108] sm:$0x1]
    %v2874 = vld [vmem:[#allocation2 + $0x120] sm:$0x1]
    %v2875 = vld [vmem:[#allocation2 + $0x138] sm:$0x1]
    %v2876 = vld [vmem:[#allocation2 + $0x150] sm:$0x1]
    %v2877 = vld [vmem:[#allocation2 + $0x168] sm:$0x1]
    %v2878 = vld [vmem:[#allocation2 + $0x1] sm:$0x1]
    %v2879 = vld [vmem:[#allocation2 + $0x19] sm:$0x1]
    %v2880 = vld [vmem:[#allocation2 + $0x31] sm:$0x1]
    %v2881 = vld [vmem:[#allocation2 + $0x49] sm:$0x1]
    %v2882 = vld [vmem:[#allocation2 + $0x61] sm:$0x1]
    %v2883 = vld [vmem:[#allocation2 + $0x79] sm:$0x1]
    %v2884 = vld [vmem:[#allocation2 + $0x91] sm:$0x1]
    %v2885 = vld [vmem:[#allocation2 + $0xa9] sm:$0x1]
    %v2886 = vld [vmem:[#allocation2 + $0xc1] sm:$0x1]
    %v2887 = vld [vmem:[#allocation2 + $0xd9] sm:$0x1]
    %v2888 = vld [vmem:[#allocation2 + $0xf1] sm:$0x1]
    %v2889 = vld [vmem:[#allocation2 + $0x109] sm:$0x1]
    %v2890 = vld [vmem:[#allocation2 + $0x121] sm:$0x1]
    %v2891 = vld [vmem:[#allocation2 + $0x139] sm:$0x1]
    %v2892 = vld [vmem:[#allocation2 + $0x151] sm:$0x1]
    %v2893 = vld [vmem:[#allocation2 + $0x169] sm:$0x1]
    %v2894 = vmax.f32 %v2862, %v2878
    %v2895 = vmax.f32 %v2863, %v2879
    %v2896 = vmax.f32 %v2864, %v2880
    %v2897 = vmax.f32 %v2865, %v2881
    %v2898 = vmax.f32 %v2866, %v2882
    %v2899 = vmax.f32 %v2867, %v2883
    %v2900 = vmax.f32 %v2868, %v2884
    %v2901 = vmax.f32 %v2869, %v2885
    %v2902 = vmax.f32 %v2870, %v2886
    %v2903 = vmax.f32 %v2871, %v2887
    %v2904 = vmax.f32 %v2872, %v2888
    %v2905 = vmax.f32 %v2873, %v2889
    %v2906 = vmax.f32 %v2874, %v2890
    %v2907 = vmax.f32 %v2875, %v2891
    %v2908 = vmax.f32 %v2876, %v2892
    %v2909 = vmax.f32 %v2877, %v2893
    %v2910 = vld [vmem:[#allocation2 + $0x2] sm:$0x1]
    %v2911 = vld [vmem:[#allocation2 + $0x1a] sm:$0x1]
    %v2912 = vld [vmem:[#allocation2 + $0x32] sm:$0x1]
    %v2913 = vld [vmem:[#allocation2 + $0x4a] sm:$0x1]
    %v2914 = vld [vmem:[#allocation2 + $0x62] sm:$0x1]
    %v2915 = vld [vmem:[#allocation2 + $0x7a] sm:$0x1]
    %v2916 = vld [vmem:[#allocation2 + $0x92] sm:$0x1]
    %v2917 = vld [vmem:[#allocation2 + $0xaa] sm:$0x1]
    %v2918 = vld [vmem:[#allocation2 + $0xc2] sm:$0x1]
    %v2919 = vld [vmem:[#allocation2 + $0xda] sm:$0x1]
    %v2920 = vld [vmem:[#allocation2 + $0xf2] sm:$0x1]
    %v2921 = vld [vmem:[#allocation2 + $0x10a] sm:$0x1]
    %v2922 = vld [vmem:[#allocation2 + $0x122] sm:$0x1]
    %v2923 = vld [vmem:[#allocation2 + $0x13a] sm:$0x1]
    %v2924 = vld [vmem:[#allocation2 + $0x152] sm:$0x1]
    %v2925 = vld [vmem:[#allocation2 + $0x16a] sm:$0x1]
    %v2926 = vmax.f32 %v2894, %v2910
    %v2927 = vmax.f32 %v2895, %v2911
    %v2928 = vmax.f32 %v2896, %v2912
    %v2929 = vmax.f32 %v2897, %v2913
    %v2930 = vmax.f32 %v2898, %v2914
    %v2931 = vmax.f32 %v2899, %v2915
    %v2932 = vmax.f32 %v2900, %v2916
    %v2933 = vmax.f32 %v2901, %v2917
    %v2934 = vmax.f32 %v2902, %v2918
    %v2935 = vmax.f32 %v2903, %v2919
    %v2936 = vmax.f32 %v2904, %v2920
    %v2937 = vmax.f32 %v2905, %v2921
    %v2938 = vmax.f32 %v2906, %v2922
    %v2939 = vmax.f32 %v2907, %v2923
    %v2940 = vmax.f32 %v2908, %v2924
    %v2941 = vmax.f32 %v2909, %v2925
    %s2942 = scalar_lea.vmem [#allocation4], 32
    %2943 = vst [vmem:[%s2942 + $0x2] sm:$0x1] %v2926
    %2944 = vst [vmem:[%s2942 + $0x12] sm:$0x1] %v2927
    %2945 = vst [vmem:[%s2942 + $0x22] sm:$0x1] %v2928
    %2946 = vst [vmem:[%s2942 + $0x32] sm:$0x1] %v2929
    %2947 = vst [vmem:[%s2942 + $0x42] sm:$0x1] %v2930
    %2948 = vst [vmem:[%s2942 + $0x52] sm:$0x1] %v2931
    %2949 = vst [vmem:[%s2942 + $0x62] sm:$0x1] %v2932
    %2950 = vst [vmem:[%s2942 + $0x72] sm:$0x1] %v2933
    %2951 = vst [vmem:[%s2942 + $0xc2] sm:$0x1] %v2934
    %2952 = vst [vmem:[%s2942 + $0xd2] sm:$0x1] %v2935
    %2953 = vst [vmem:[%s2942 + $0xe2] sm:$0x1] %v2936
    %2954 = vst [vmem:[%s2942 + $0xf2] sm:$0x1] %v2937
    %2955 = vst [vmem:[%s2942 + $0x102] sm:$0x1] %v2938
    %2956 = vst [vmem:[%s2942 + $0x112] sm:$0x1] %v2939
    %2957 = vst [vmem:[%s2942 + $0x122] sm:$0x1] %v2940
    %2958 = vst [vmem:[%s2942 + $0x132] sm:$0x1] %v2941
    %v2959 = vld [vmem:[#allocation2 + $0x2] sm:$0x1]
    %v2960 = vld [vmem:[#allocation2 + $0x1a] sm:$0x1]
    %v2961 = vld [vmem:[#allocation2 + $0x32] sm:$0x1]
    %v2962 = vld [vmem:[#allocation2 + $0x4a] sm:$0x1]
    %v2963 = vld [vmem:[#allocation2 + $0x62] sm:$0x1]
    %v2964 = vld [vmem:[#allocation2 + $0x7a] sm:$0x1]
    %v2965 = vld [vmem:[#allocation2 + $0x92] sm:$0x1]
    %v2966 = vld [vmem:[#allocation2 + $0xaa] sm:$0x1]
    %v2967 = vld [vmem:[#allocation2 + $0xc2] sm:$0x1]
    %v2968 = vld [vmem:[#allocation2 + $0xda] sm:$0x1]
    %v2969 = vld [vmem:[#allocation2 + $0xf2] sm:$0x1]
    %v2970 = vld [vmem:[#allocation2 + $0x10a] sm:$0x1]
    %v2971 = vld [vmem:[#allocation2 + $0x122] sm:$0x1]
    %v2972 = vld [vmem:[#allocation2 + $0x13a] sm:$0x1]
    %v2973 = vld [vmem:[#allocation2 + $0x152] sm:$0x1]
    %v2974 = vld [vmem:[#allocation2 + $0x16a] sm:$0x1]
    %v2975 = vld [vmem:[#allocation2 + $0x3] sm:$0x1]
    %v2976 = vld [vmem:[#allocation2 + $0x1b] sm:$0x1]
    %v2977 = vld [vmem:[#allocation2 + $0x33] sm:$0x1]
    %v2978 = vld [vmem:[#allocation2 + $0x4b] sm:$0x1]
    %v2979 = vld [vmem:[#allocation2 + $0x63] sm:$0x1]
    %v2980 = vld [vmem:[#allocation2 + $0x7b] sm:$0x1]
    %v2981 = vld [vmem:[#allocation2 + $0x93] sm:$0x1]
    %v2982 = vld [vmem:[#allocation2 + $0xab] sm:$0x1]
    %v2983 = vld [vmem:[#allocation2 + $0xc3] sm:$0x1]
    %v2984 = vld [vmem:[#allocation2 + $0xdb] sm:$0x1]
    %v2985 = vld [vmem:[#allocation2 + $0xf3] sm:$0x1]
    %v2986 = vld [vmem:[#allocation2 + $0x10b] sm:$0x1]
    %v2987 = vld [vmem:[#allocation2 + $0x123] sm:$0x1]
    %v2988 = vld [vmem:[#allocation2 + $0x13b] sm:$0x1]
    %v2989 = vld [vmem:[#allocation2 + $0x153] sm:$0x1]
    %v2990 = vld [vmem:[#allocation2 + $0x16b] sm:$0x1]
    %v2991 = vmax.f32 %v2959, %v2975
    %v2992 = vmax.f32 %v2960, %v2976
    %v2993 = vmax.f32 %v2961, %v2977
    %v2994 = vmax.f32 %v2962, %v2978
    %v2995 = vmax.f32 %v2963, %v2979
    %v2996 = vmax.f32 %v2964, %v2980
    %v2997 = vmax.f32 %v2965, %v2981
    %v2998 = vmax.f32 %v2966, %v2982
    %v2999 = vmax.f32 %v2967, %v2983
    %v3000 = vmax.f32 %v2968, %v2984
    %v3001 = vmax.f32 %v2969, %v2985
    %v3002 = vmax.f32 %v2970, %v2986
    %v3003 = vmax.f32 %v2971, %v2987
    %v3004 = vmax.f32 %v2972, %v2988
    %v3005 = vmax.f32 %v2973, %v2989
    %v3006 = vmax.f32 %v2974, %v2990
    %v3007 = vld [vmem:[#allocation2 + $0x4] sm:$0x1]
    %v3008 = vld [vmem:[#allocation2 + $0x1c] sm:$0x1]
    %v3009 = vld [vmem:[#allocation2 + $0x34] sm:$0x1]
    %v3010 = vld [vmem:[#allocation2 + $0x4c] sm:$0x1]
    %v3011 = vld [vmem:[#allocation2 + $0x64] sm:$0x1]
    %v3012 = vld [vmem:[#allocation2 + $0x7c] sm:$0x1]
    %v3013 = vld [vmem:[#allocation2 + $0x94] sm:$0x1]
    %v3014 = vld [vmem:[#allocation2 + $0xac] sm:$0x1]
    %v3015 = vld [vmem:[#allocation2 + $0xc4] sm:$0x1]
    %v3016 = vld [vmem:[#allocation2 + $0xdc] sm:$0x1]
    %v3017 = vld [vmem:[#allocation2 + $0xf4] sm:$0x1]
    %v3018 = vld [vmem:[#allocation2 + $0x10c] sm:$0x1]
    %v3019 = vld [vmem:[#allocation2 + $0x124] sm:$0x1]
    %v3020 = vld [vmem:[#allocation2 + $0x13c] sm:$0x1]
    %v3021 = vld [vmem:[#allocation2 + $0x154] sm:$0x1]
    %v3022 = vld [vmem:[#allocation2 + $0x16c] sm:$0x1]
    %v3023 = vmax.f32 %v2991, %v3007
    %v3024 = vmax.f32 %v2992, %v3008
    %v3025 = vmax.f32 %v2993, %v3009
    %v3026 = vmax.f32 %v2994, %v3010
    %v3027 = vmax.f32 %v2995, %v3011
    %v3028 = vmax.f32 %v2996, %v3012
    %v3029 = vmax.f32 %v2997, %v3013
    %v3030 = vmax.f32 %v2998, %v3014
    %v3031 = vmax.f32 %v2999, %v3015
    %v3032 = vmax.f32 %v3000, %v3016
    %v3033 = vmax.f32 %v3001, %v3017
    %v3034 = vmax.f32 %v3002, %v3018
    %v3035 = vmax.f32 %v3003, %v3019
    %v3036 = vmax.f32 %v3004, %v3020
    %v3037 = vmax.f32 %v3005, %v3021
    %v3038 = vmax.f32 %v3006, %v3022
    %3039 = vst [vmem:[%s2942 + $0x3] sm:$0x1] %v3023
    %3040 = vst [vmem:[%s2942 + $0x13] sm:$0x1] %v3024
    %3041 = vst [vmem:[%s2942 + $0x23] sm:$0x1] %v3025
    %3042 = vst [vmem:[%s2942 + $0x33] sm:$0x1] %v3026
    %3043 = vst [vmem:[%s2942 + $0x43] sm:$0x1] %v3027
    %3044 = vst [vmem:[%s2942 + $0x53] sm:$0x1] %v3028
    %3045 = vst [vmem:[%s2942 + $0x63] sm:$0x1] %v3029
    %3046 = vst [vmem:[%s2942 + $0x73] sm:$0x1] %v3030
    %3047 = vst [vmem:[%s2942 + $0xc3] sm:$0x1] %v3031
    %3048 = vst [vmem:[%s2942 + $0xd3] sm:$0x1] %v3032
    %3049 = vst [vmem:[%s2942 + $0xe3] sm:$0x1] %v3033
    %3050 = vst [vmem:[%s2942 + $0xf3] sm:$0x1] %v3034
    %3051 = vst [vmem:[%s2942 + $0x103] sm:$0x1] %v3035
    %3052 = vst [vmem:[%s2942 + $0x113] sm:$0x1] %v3036
    %3053 = vst [vmem:[%s2942 + $0x123] sm:$0x1] %v3037
    %3054 = vst [vmem:[%s2942 + $0x133] sm:$0x1] %v3038
    %v3055 = vld [vmem:[#allocation2 + $0x4] sm:$0x1]
    %v3056 = vld [vmem:[#allocation2 + $0x1c] sm:$0x1]
    %v3057 = vld [vmem:[#allocation2 + $0x34] sm:$0x1]
    %v3058 = vld [vmem:[#allocation2 + $0x4c] sm:$0x1]
    %v3059 = vld [vmem:[#allocation2 + $0x64] sm:$0x1]
    %v3060 = vld [vmem:[#allocation2 + $0x7c] sm:$0x1]
    %v3061 = vld [vmem:[#allocation2 + $0x94] sm:$0x1]
    %v3062 = vld [vmem:[#allocation2 + $0xac] sm:$0x1]
    %v3063 = vld [vmem:[#allocation2 + $0xc4] sm:$0x1]
    %v3064 = vld [vmem:[#allocation2 + $0xdc] sm:$0x1]
    %v3065 = vld [vmem:[#allocation2 + $0xf4] sm:$0x1]
    %v3066 = vld [vmem:[#allocation2 + $0x10c] sm:$0x1]
    %v3067 = vld [vmem:[#allocation2 + $0x124] sm:$0x1]
    %v3068 = vld [vmem:[#allocation2 + $0x13c] sm:$0x1]
    %v3069 = vld [vmem:[#allocation2 + $0x154] sm:$0x1]
    %v3070 = vld [vmem:[#allocation2 + $0x16c] sm:$0x1]
    %v3071 = vld [vmem:[#allocation2 + $0x5] sm:$0x1]
    %v3072 = vld [vmem:[#allocation2 + $0x1d] sm:$0x1]
    %v3073 = vld [vmem:[#allocation2 + $0x35] sm:$0x1]
    %v3074 = vld [vmem:[#allocation2 + $0x4d] sm:$0x1]
    %v3075 = vld [vmem:[#allocation2 + $0x65] sm:$0x1]
    %v3076 = vld [vmem:[#allocation2 + $0x7d] sm:$0x1]
    %v3077 = vld [vmem:[#allocation2 + $0x95] sm:$0x1]
    %v3078 = vld [vmem:[#allocation2 + $0xad] sm:$0x1]
    %v3079 = vld [vmem:[#allocation2 + $0xc5] sm:$0x1]
    %v3080 = vld [vmem:[#allocation2 + $0xdd] sm:$0x1]
    %v3081 = vld [vmem:[#allocation2 + $0xf5] sm:$0x1]
    %v3082 = vld [vmem:[#allocation2 + $0x10d] sm:$0x1]
    %v3083 = vld [vmem:[#allocation2 + $0x125] sm:$0x1]
    %v3084 = vld [vmem:[#allocation2 + $0x13d] sm:$0x1]
    %v3085 = vld [vmem:[#allocation2 + $0x155] sm:$0x1]
    %v3086 = vld [vmem:[#allocation2 + $0x16d] sm:$0x1]
    %v3087 = vmax.f32 %v3055, %v3071
    %v3088 = vmax.f32 %v3056, %v3072
    %v3089 = vmax.f32 %v3057, %v3073
    %v3090 = vmax.f32 %v3058, %v3074
    %v3091 = vmax.f32 %v3059, %v3075
    %v3092 = vmax.f32 %v3060, %v3076
    %v3093 = vmax.f32 %v3061, %v3077
    %v3094 = vmax.f32 %v3062, %v3078
    %v3095 = vmax.f32 %v3063, %v3079
    %v3096 = vmax.f32 %v3064, %v3080
    %v3097 = vmax.f32 %v3065, %v3081
    %v3098 = vmax.f32 %v3066, %v3082
    %v3099 = vmax.f32 %v3067, %v3083
    %v3100 = vmax.f32 %v3068, %v3084
    %v3101 = vmax.f32 %v3069, %v3085
    %v3102 = vmax.f32 %v3070, %v3086
    %v3103 = vld [vmem:[#allocation2 + $0x6] sm:$0x1]
    %v3104 = vld [vmem:[#allocation2 + $0x1e] sm:$0x1]
    %v3105 = vld [vmem:[#allocation2 + $0x36] sm:$0x1]
    %v3106 = vld [vmem:[#allocation2 + $0x4e] sm:$0x1]
    %v3107 = vld [vmem:[#allocation2 + $0x66] sm:$0x1]
    %v3108 = vld [vmem:[#allocation2 + $0x7e] sm:$0x1]
    %v3109 = vld [vmem:[#allocation2 + $0x96] sm:$0x1]
    %v3110 = vld [vmem:[#allocation2 + $0xae] sm:$0x1]
    %v3111 = vld [vmem:[#allocation2 + $0xc6] sm:$0x1]
    %v3112 = vld [vmem:[#allocation2 + $0xde] sm:$0x1]
    %v3113 = vld [vmem:[#allocation2 + $0xf6] sm:$0x1]
    %v3114 = vld [vmem:[#allocation2 + $0x10e] sm:$0x1]
    %v3115 = vld [vmem:[#allocation2 + $0x126] sm:$0x1]
    %v3116 = vld [vmem:[#allocation2 + $0x13e] sm:$0x1]
    %v3117 = vld [vmem:[#allocation2 + $0x156] sm:$0x1]
    %v3118 = vld [vmem:[#allocation2 + $0x16e] sm:$0x1]
    %v3119 = vmax.f32 %v3087, %v3103
    %v3120 = vmax.f32 %v3088, %v3104
    %v3121 = vmax.f32 %v3089, %v3105
    %v3122 = vmax.f32 %v3090, %v3106
    %v3123 = vmax.f32 %v3091, %v3107
    %v3124 = vmax.f32 %v3092, %v3108
    %v3125 = vmax.f32 %v3093, %v3109
    %v3126 = vmax.f32 %v3094, %v3110
    %v3127 = vmax.f32 %v3095, %v3111
    %v3128 = vmax.f32 %v3096, %v3112
    %v3129 = vmax.f32 %v3097, %v3113
    %v3130 = vmax.f32 %v3098, %v3114
    %v3131 = vmax.f32 %v3099, %v3115
    %v3132 = vmax.f32 %v3100, %v3116
    %v3133 = vmax.f32 %v3101, %v3117
    %v3134 = vmax.f32 %v3102, %v3118
    %3135 = vst [vmem:[%s2942 + $0x4] sm:$0x1] %v3119
    %3136 = vst [vmem:[%s2942 + $0x14] sm:$0x1] %v3120
    %3137 = vst [vmem:[%s2942 + $0x24] sm:$0x1] %v3121
    %3138 = vst [vmem:[%s2942 + $0x34] sm:$0x1] %v3122
    %3139 = vst [vmem:[%s2942 + $0x44] sm:$0x1] %v3123
    %3140 = vst [vmem:[%s2942 + $0x54] sm:$0x1] %v3124
    %3141 = vst [vmem:[%s2942 + $0x64] sm:$0x1] %v3125
    %3142 = vst [vmem:[%s2942 + $0x74] sm:$0x1] %v3126
    %3143 = vst [vmem:[%s2942 + $0xc4] sm:$0x1] %v3127
    %3144 = vst [vmem:[%s2942 + $0xd4] sm:$0x1] %v3128
    %3145 = vst [vmem:[%s2942 + $0xe4] sm:$0x1] %v3129
    %3146 = vst [vmem:[%s2942 + $0xf4] sm:$0x1] %v3130
    %3147 = vst [vmem:[%s2942 + $0x104] sm:$0x1] %v3131
    %3148 = vst [vmem:[%s2942 + $0x114] sm:$0x1] %v3132
    %3149 = vst [vmem:[%s2942 + $0x124] sm:$0x1] %v3133
    %3150 = vst [vmem:[%s2942 + $0x134] sm:$0x1] %v3134
    %v3151 = vld [vmem:[#allocation2 + $0x6] sm:$0x1]
    %v3152 = vld [vmem:[#allocation2 + $0x1e] sm:$0x1]
    %v3153 = vld [vmem:[#allocation2 + $0x36] sm:$0x1]
    %v3154 = vld [vmem:[#allocation2 + $0x4e] sm:$0x1]
    %v3155 = vld [vmem:[#allocation2 + $0x66] sm:$0x1]
    %v3156 = vld [vmem:[#allocation2 + $0x7e] sm:$0x1]
    %v3157 = vld [vmem:[#allocation2 + $0x96] sm:$0x1]
    %v3158 = vld [vmem:[#allocation2 + $0xae] sm:$0x1]
    %v3159 = vld [vmem:[#allocation2 + $0xc6] sm:$0x1]
    %v3160 = vld [vmem:[#allocation2 + $0xde] sm:$0x1]
    %v3161 = vld [vmem:[#allocation2 + $0xf6] sm:$0x1]
    %v3162 = vld [vmem:[#allocation2 + $0x10e] sm:$0x1]
    %v3163 = vld [vmem:[#allocation2 + $0x126] sm:$0x1]
    %v3164 = vld [vmem:[#allocation2 + $0x13e] sm:$0x1]
    %v3165 = vld [vmem:[#allocation2 + $0x156] sm:$0x1]
    %v3166 = vld [vmem:[#allocation2 + $0x16e] sm:$0x1]
    %v3167 = vld [vmem:[#allocation2 + $0x7] sm:$0x1]
    %v3168 = vld [vmem:[#allocation2 + $0x1f] sm:$0x1]
    %v3169 = vld [vmem:[#allocation2 + $0x37] sm:$0x1]
    %v3170 = vld [vmem:[#allocation2 + $0x4f] sm:$0x1]
    %v3171 = vld [vmem:[#allocation2 + $0x67] sm:$0x1]
    %v3172 = vld [vmem:[#allocation2 + $0x7f] sm:$0x1]
    %v3173 = vld [vmem:[#allocation2 + $0x97] sm:$0x1]
    %v3174 = vld [vmem:[#allocation2 + $0xaf] sm:$0x1]
    %v3175 = vld [vmem:[#allocation2 + $0xc7] sm:$0x1]
    %v3176 = vld [vmem:[#allocation2 + $0xdf] sm:$0x1]
    %v3177 = vld [vmem:[#allocation2 + $0xf7] sm:$0x1]
    %v3178 = vld [vmem:[#allocation2 + $0x10f] sm:$0x1]
    %v3179 = vld [vmem:[#allocation2 + $0x127] sm:$0x1]
    %v3180 = vld [vmem:[#allocation2 + $0x13f] sm:$0x1]
    %v3181 = vld [vmem:[#allocation2 + $0x157] sm:$0x1]
    %v3182 = vld [vmem:[#allocation2 + $0x16f] sm:$0x1]
    %v3183 = vmax.f32 %v3151, %v3167
    %v3184 = vmax.f32 %v3152, %v3168
    %v3185 = vmax.f32 %v3153, %v3169
    %v3186 = vmax.f32 %v3154, %v3170
    %v3187 = vmax.f32 %v3155, %v3171
    %v3188 = vmax.f32 %v3156, %v3172
    %v3189 = vmax.f32 %v3157, %v3173
    %v3190 = vmax.f32 %v3158, %v3174
    %v3191 = vmax.f32 %v3159, %v3175
    %v3192 = vmax.f32 %v3160, %v3176
    %v3193 = vmax.f32 %v3161, %v3177
    %v3194 = vmax.f32 %v3162, %v3178
    %v3195 = vmax.f32 %v3163, %v3179
    %v3196 = vmax.f32 %v3164, %v3180
    %v3197 = vmax.f32 %v3165, %v3181
    %v3198 = vmax.f32 %v3166, %v3182
    %v3199 = vld [vmem:[#allocation2 + $0x8] sm:$0x1]
    %v3200 = vld [vmem:[#allocation2 + $0x20] sm:$0x1]
    %v3201 = vld [vmem:[#allocation2 + $0x38] sm:$0x1]
    %v3202 = vld [vmem:[#allocation2 + $0x50] sm:$0x1]
    %v3203 = vld [vmem:[#allocation2 + $0x68] sm:$0x1]
    %v3204 = vld [vmem:[#allocation2 + $0x80] sm:$0x1]
    %v3205 = vld [vmem:[#allocation2 + $0x98] sm:$0x1]
    %v3206 = vld [vmem:[#allocation2 + $0xb0] sm:$0x1]
    %v3207 = vld [vmem:[#allocation2 + $0xc8] sm:$0x1]
    %v3208 = vld [vmem:[#allocation2 + $0xe0] sm:$0x1]
    %v3209 = vld [vmem:[#allocation2 + $0xf8] sm:$0x1]
    %v3210 = vld [vmem:[#allocation2 + $0x110] sm:$0x1]
    %v3211 = vld [vmem:[#allocation2 + $0x128] sm:$0x1]
    %v3212 = vld [vmem:[#allocation2 + $0x140] sm:$0x1]
    %v3213 = vld [vmem:[#allocation2 + $0x158] sm:$0x1]
    %v3214 = vld [vmem:[#allocation2 + $0x170] sm:$0x1]
    %v3215 = vmax.f32 %v3183, %v3199
    %v3216 = vmax.f32 %v3184, %v3200
    %v3217 = vmax.f32 %v3185, %v3201
    %v3218 = vmax.f32 %v3186, %v3202
    %v3219 = vmax.f32 %v3187, %v3203
    %v3220 = vmax.f32 %v3188, %v3204
    %v3221 = vmax.f32 %v3189, %v3205
    %v3222 = vmax.f32 %v3190, %v3206
    %v3223 = vmax.f32 %v3191, %v3207
    %v3224 = vmax.f32 %v3192, %v3208
    %v3225 = vmax.f32 %v3193, %v3209
    %v3226 = vmax.f32 %v3194, %v3210
    %v3227 = vmax.f32 %v3195, %v3211
    %v3228 = vmax.f32 %v3196, %v3212
    %v3229 = vmax.f32 %v3197, %v3213
    %v3230 = vmax.f32 %v3198, %v3214
    %3231 = vst [vmem:[%s2942 + $0x5] sm:$0x1] %v3215
    %3232 = vst [vmem:[%s2942 + $0x15] sm:$0x1] %v3216
    %3233 = vst [vmem:[%s2942 + $0x25] sm:$0x1] %v3217
    %3234 = vst [vmem:[%s2942 + $0x35] sm:$0x1] %v3218
    %3235 = vst [vmem:[%s2942 + $0x45] sm:$0x1] %v3219
    %3236 = vst [vmem:[%s2942 + $0x55] sm:$0x1] %v3220
    %3237 = vst [vmem:[%s2942 + $0x65] sm:$0x1] %v3221
    %3238 = vst [vmem:[%s2942 + $0x75] sm:$0x1] %v3222
    %3239 = vst [vmem:[%s2942 + $0xc5] sm:$0x1] %v3223
    %3240 = vst [vmem:[%s2942 + $0xd5] sm:$0x1] %v3224
    %3241 = vst [vmem:[%s2942 + $0xe5] sm:$0x1] %v3225
    %3242 = vst [vmem:[%s2942 + $0xf5] sm:$0x1] %v3226
    %3243 = vst [vmem:[%s2942 + $0x105] sm:$0x1] %v3227
    %3244 = vst [vmem:[%s2942 + $0x115] sm:$0x1] %v3228
    %3245 = vst [vmem:[%s2942 + $0x125] sm:$0x1] %v3229
    %3246 = vst [vmem:[%s2942 + $0x135] sm:$0x1] %v3230
    %v3247 = vld [vmem:[#allocation2 + $0x8] sm:$0x1]
    %v3248 = vld [vmem:[#allocation2 + $0x20] sm:$0x1]
    %v3249 = vld [vmem:[#allocation2 + $0x38] sm:$0x1]
    %v3250 = vld [vmem:[#allocation2 + $0x50] sm:$0x1]
    %v3251 = vld [vmem:[#allocation2 + $0x68] sm:$0x1]
    %v3252 = vld [vmem:[#allocation2 + $0x80] sm:$0x1]
    %v3253 = vld [vmem:[#allocation2 + $0x98] sm:$0x1]
    %v3254 = vld [vmem:[#allocation2 + $0xb0] sm:$0x1]
    %v3255 = vld [vmem:[#allocation2 + $0xc8] sm:$0x1]
    %v3256 = vld [vmem:[#allocation2 + $0xe0] sm:$0x1]
    %v3257 = vld [vmem:[#allocation2 + $0xf8] sm:$0x1]
    %v3258 = vld [vmem:[#allocation2 + $0x110] sm:$0x1]
    %v3259 = vld [vmem:[#allocation2 + $0x128] sm:$0x1]
    %v3260 = vld [vmem:[#allocation2 + $0x140] sm:$0x1]
    %v3261 = vld [vmem:[#allocation2 + $0x158] sm:$0x1]
    %v3262 = vld [vmem:[#allocation2 + $0x170] sm:$0x1]
    %v3263 = vld [vmem:[#allocation2 + $0x9] sm:$0x1]
    %v3264 = vld [vmem:[#allocation2 + $0x21] sm:$0x1]
    %v3265 = vld [vmem:[#allocation2 + $0x39] sm:$0x1]
    %v3266 = vld [vmem:[#allocation2 + $0x51] sm:$0x1]
    %v3267 = vld [vmem:[#allocation2 + $0x69] sm:$0x1]
    %v3268 = vld [vmem:[#allocation2 + $0x81] sm:$0x1]
    %v3269 = vld [vmem:[#allocation2 + $0x99] sm:$0x1]
    %v3270 = vld [vmem:[#allocation2 + $0xb1] sm:$0x1]
    %v3271 = vld [vmem:[#allocation2 + $0xc9] sm:$0x1]
    %v3272 = vld [vmem:[#allocation2 + $0xe1] sm:$0x1]
    %v3273 = vld [vmem:[#allocation2 + $0xf9] sm:$0x1]
    %v3274 = vld [vmem:[#allocation2 + $0x111] sm:$0x1]
    %v3275 = vld [vmem:[#allocation2 + $0x129] sm:$0x1]
    %v3276 = vld [vmem:[#allocation2 + $0x141] sm:$0x1]
    %v3277 = vld [vmem:[#allocation2 + $0x159] sm:$0x1]
    %v3278 = vld [vmem:[#allocation2 + $0x171] sm:$0x1]
    %v3279 = vmax.f32 %v3247, %v3263
    %v3280 = vmax.f32 %v3248, %v3264
    %v3281 = vmax.f32 %v3249, %v3265
    %v3282 = vmax.f32 %v3250, %v3266
    %v3283 = vmax.f32 %v3251, %v3267
    %v3284 = vmax.f32 %v3252, %v3268
    %v3285 = vmax.f32 %v3253, %v3269
    %v3286 = vmax.f32 %v3254, %v3270
    %v3287 = vmax.f32 %v3255, %v3271
    %v3288 = vmax.f32 %v3256, %v3272
    %v3289 = vmax.f32 %v3257, %v3273
    %v3290 = vmax.f32 %v3258, %v3274
    %v3291 = vmax.f32 %v3259, %v3275
    %v3292 = vmax.f32 %v3260, %v3276
    %v3293 = vmax.f32 %v3261, %v3277
    %v3294 = vmax.f32 %v3262, %v3278
    %v3295 = vld [vmem:[#allocation2 + $0xa] sm:$0x1]
    %v3296 = vld [vmem:[#allocation2 + $0x22] sm:$0x1]
    %v3297 = vld [vmem:[#allocation2 + $0x3a] sm:$0x1]
    %v3298 = vld [vmem:[#allocation2 + $0x52] sm:$0x1]
    %v3299 = vld [vmem:[#allocation2 + $0x6a] sm:$0x1]
    %v3300 = vld [vmem:[#allocation2 + $0x82] sm:$0x1]
    %v3301 = vld [vmem:[#allocation2 + $0x9a] sm:$0x1]
    %v3302 = vld [vmem:[#allocation2 + $0xb2] sm:$0x1]
    %v3303 = vld [vmem:[#allocation2 + $0xca] sm:$0x1]
    %v3304 = vld [vmem:[#allocation2 + $0xe2] sm:$0x1]
    %v3305 = vld [vmem:[#allocation2 + $0xfa] sm:$0x1]
    %v3306 = vld [vmem:[#allocation2 + $0x112] sm:$0x1]
    %v3307 = vld [vmem:[#allocation2 + $0x12a] sm:$0x1]
    %v3308 = vld [vmem:[#allocation2 + $0x142] sm:$0x1]
    %v3309 = vld [vmem:[#allocation2 + $0x15a] sm:$0x1]
    %v3310 = vld [vmem:[#allocation2 + $0x172] sm:$0x1]
    %v3311 = vmax.f32 %v3279, %v3295
    %v3312 = vmax.f32 %v3280, %v3296
    %v3313 = vmax.f32 %v3281, %v3297
    %v3314 = vmax.f32 %v3282, %v3298
    %v3315 = vmax.f32 %v3283, %v3299
    %v3316 = vmax.f32 %v3284, %v3300
    %v3317 = vmax.f32 %v3285, %v3301
    %v3318 = vmax.f32 %v3286, %v3302
    %v3319 = vmax.f32 %v3287, %v3303
    %v3320 = vmax.f32 %v3288, %v3304
    %v3321 = vmax.f32 %v3289, %v3305
    %v3322 = vmax.f32 %v3290, %v3306
    %v3323 = vmax.f32 %v3291, %v3307
    %v3324 = vmax.f32 %v3292, %v3308
    %v3325 = vmax.f32 %v3293, %v3309
    %v3326 = vmax.f32 %v3294, %v3310
    %3327 = vst [vmem:[%s2942 + $0x6] sm:$0x1] %v3311
    %3328 = vst [vmem:[%s2942 + $0x16] sm:$0x1] %v3312
    %3329 = vst [vmem:[%s2942 + $0x26] sm:$0x1] %v3313
    %3330 = vst [vmem:[%s2942 + $0x36] sm:$0x1] %v3314
    %3331 = vst [vmem:[%s2942 + $0x46] sm:$0x1] %v3315
    %3332 = vst [vmem:[%s2942 + $0x56] sm:$0x1] %v3316
    %3333 = vst [vmem:[%s2942 + $0x66] sm:$0x1] %v3317
    %3334 = vst [vmem:[%s2942 + $0x76] sm:$0x1] %v3318
    %3335 = vst [vmem:[%s2942 + $0xc6] sm:$0x1] %v3319
    %3336 = vst [vmem:[%s2942 + $0xd6] sm:$0x1] %v3320
    %3337 = vst [vmem:[%s2942 + $0xe6] sm:$0x1] %v3321
    %3338 = vst [vmem:[%s2942 + $0xf6] sm:$0x1] %v3322
    %3339 = vst [vmem:[%s2942 + $0x106] sm:$0x1] %v3323
    %3340 = vst [vmem:[%s2942 + $0x116] sm:$0x1] %v3324
    %3341 = vst [vmem:[%s2942 + $0x126] sm:$0x1] %v3325
    %3342 = vst [vmem:[%s2942 + $0x136] sm:$0x1] %v3326
    %v3343 = vld [vmem:[#allocation2 + $0xa] sm:$0x1]
    %v3344 = vld [vmem:[#allocation2 + $0x22] sm:$0x1]
    %v3345 = vld [vmem:[#allocation2 + $0x3a] sm:$0x1]
    %v3346 = vld [vmem:[#allocation2 + $0x52] sm:$0x1]
    %v3347 = vld [vmem:[#allocation2 + $0x6a] sm:$0x1]
    %v3348 = vld [vmem:[#allocation2 + $0x82] sm:$0x1]
    %v3349 = vld [vmem:[#allocation2 + $0x9a] sm:$0x1]
    %v3350 = vld [vmem:[#allocation2 + $0xb2] sm:$0x1]
    %v3351 = vld [vmem:[#allocation2 + $0xca] sm:$0x1]
    %v3352 = vld [vmem:[#allocation2 + $0xe2] sm:$0x1]
    %v3353 = vld [vmem:[#allocation2 + $0xfa] sm:$0x1]
    %v3354 = vld [vmem:[#allocation2 + $0x112] sm:$0x1]
    %v3355 = vld [vmem:[#allocation2 + $0x12a] sm:$0x1]
    %v3356 = vld [vmem:[#allocation2 + $0x142] sm:$0x1]
    %v3357 = vld [vmem:[#allocation2 + $0x15a] sm:$0x1]
    %v3358 = vld [vmem:[#allocation2 + $0x172] sm:$0x1]
    %v3359 = vld [vmem:[#allocation2 + $0xb] sm:$0x1]
    %v3360 = vld [vmem:[#allocation2 + $0x23] sm:$0x1]
    %v3361 = vld [vmem:[#allocation2 + $0x3b] sm:$0x1]
    %v3362 = vld [vmem:[#allocation2 + $0x53] sm:$0x1]
    %v3363 = vld [vmem:[#allocation2 + $0x6b] sm:$0x1]
    %v3364 = vld [vmem:[#allocation2 + $0x83] sm:$0x1]
    %v3365 = vld [vmem:[#allocation2 + $0x9b] sm:$0x1]
    %v3366 = vld [vmem:[#allocation2 + $0xb3] sm:$0x1]
    %v3367 = vld [vmem:[#allocation2 + $0xcb] sm:$0x1]
    %v3368 = vld [vmem:[#allocation2 + $0xe3] sm:$0x1]
    %v3369 = vld [vmem:[#allocation2 + $0xfb] sm:$0x1]
    %v3370 = vld [vmem:[#allocation2 + $0x113] sm:$0x1]
    %v3371 = vld [vmem:[#allocation2 + $0x12b] sm:$0x1]
    %v3372 = vld [vmem:[#allocation2 + $0x143] sm:$0x1]
    %v3373 = vld [vmem:[#allocation2 + $0x15b] sm:$0x1]
    %v3374 = vld [vmem:[#allocation2 + $0x173] sm:$0x1]
    %v3375 = vmax.f32 %v3343, %v3359
    %v3376 = vmax.f32 %v3344, %v3360
    %v3377 = vmax.f32 %v3345, %v3361
    %v3378 = vmax.f32 %v3346, %v3362
    %v3379 = vmax.f32 %v3347, %v3363
    %v3380 = vmax.f32 %v3348, %v3364
    %v3381 = vmax.f32 %v3349, %v3365
    %v3382 = vmax.f32 %v3350, %v3366
    %v3383 = vmax.f32 %v3351, %v3367
    %v3384 = vmax.f32 %v3352, %v3368
    %v3385 = vmax.f32 %v3353, %v3369
    %v3386 = vmax.f32 %v3354, %v3370
    %v3387 = vmax.f32 %v3355, %v3371
    %v3388 = vmax.f32 %v3356, %v3372
    %v3389 = vmax.f32 %v3357, %v3373
    %v3390 = vmax.f32 %v3358, %v3374
    %v3391 = vld [vmem:[#allocation2 + $0xc] sm:$0x1]
    %v3392 = vld [vmem:[#allocation2 + $0x24] sm:$0x1]
    %v3393 = vld [vmem:[#allocation2 + $0x3c] sm:$0x1]
    %v3394 = vld [vmem:[#allocation2 + $0x54] sm:$0x1]
    %v3395 = vld [vmem:[#allocation2 + $0x6c] sm:$0x1]
    %v3396 = vld [vmem:[#allocation2 + $0x84] sm:$0x1]
    %v3397 = vld [vmem:[#allocation2 + $0x9c] sm:$0x1]
    %v3398 = vld [vmem:[#allocation2 + $0xb4] sm:$0x1]
    %v3399 = vld [vmem:[#allocation2 + $0xcc] sm:$0x1]
    %v3400 = vld [vmem:[#allocation2 + $0xe4] sm:$0x1]
    %v3401 = vld [vmem:[#allocation2 + $0xfc] sm:$0x1]
    %v3402 = vld [vmem:[#allocation2 + $0x114] sm:$0x1]
    %v3403 = vld [vmem:[#allocation2 + $0x12c] sm:$0x1]
    %v3404 = vld [vmem:[#allocation2 + $0x144] sm:$0x1]
    %v3405 = vld [vmem:[#allocation2 + $0x15c] sm:$0x1]
    %v3406 = vld [vmem:[#allocation2 + $0x174] sm:$0x1]
    %v3407 = vmax.f32 %v3375, %v3391
    %v3408 = vmax.f32 %v3376, %v3392
    %v3409 = vmax.f32 %v3377, %v3393
    %v3410 = vmax.f32 %v3378, %v3394
    %v3411 = vmax.f32 %v3379, %v3395
    %v3412 = vmax.f32 %v3380, %v3396
    %v3413 = vmax.f32 %v3381, %v3397
    %v3414 = vmax.f32 %v3382, %v3398
    %v3415 = vmax.f32 %v3383, %v3399
    %v3416 = vmax.f32 %v3384, %v3400
    %v3417 = vmax.f32 %v3385, %v3401
    %v3418 = vmax.f32 %v3386, %v3402
    %v3419 = vmax.f32 %v3387, %v3403
    %v3420 = vmax.f32 %v3388, %v3404
    %v3421 = vmax.f32 %v3389, %v3405
    %v3422 = vmax.f32 %v3390, %v3406
    %3423 = vst [vmem:[%s2942 + $0x7] sm:$0x1] %v3407
    %3424 = vst [vmem:[%s2942 + $0x17] sm:$0x1] %v3408
    %3425 = vst [vmem:[%s2942 + $0x27] sm:$0x1] %v3409
    %3426 = vst [vmem:[%s2942 + $0x37] sm:$0x1] %v3410
    %3427 = vst [vmem:[%s2942 + $0x47] sm:$0x1] %v3411
    %3428 = vst [vmem:[%s2942 + $0x57] sm:$0x1] %v3412
    %3429 = vst [vmem:[%s2942 + $0x67] sm:$0x1] %v3413
    %3430 = vst [vmem:[%s2942 + $0x77] sm:$0x1] %v3414
    %3431 = vst [vmem:[%s2942 + $0xc7] sm:$0x1] %v3415
    %3432 = vst [vmem:[%s2942 + $0xd7] sm:$0x1] %v3416
    %3433 = vst [vmem:[%s2942 + $0xe7] sm:$0x1] %v3417
    %3434 = vst [vmem:[%s2942 + $0xf7] sm:$0x1] %v3418
    %3435 = vst [vmem:[%s2942 + $0x107] sm:$0x1] %v3419
    %3436 = vst [vmem:[%s2942 + $0x117] sm:$0x1] %v3420
    %3437 = vst [vmem:[%s2942 + $0x127] sm:$0x1] %v3421
    %3438 = vst [vmem:[%s2942 + $0x137] sm:$0x1] %v3422
    %v3439 = vld [vmem:[#allocation2 + $0xc] sm:$0x1]
    %v3440 = vld [vmem:[#allocation2 + $0x24] sm:$0x1]
    %v3441 = vld [vmem:[#allocation2 + $0x3c] sm:$0x1]
    %v3442 = vld [vmem:[#allocation2 + $0x54] sm:$0x1]
    %v3443 = vld [vmem:[#allocation2 + $0x6c] sm:$0x1]
    %v3444 = vld [vmem:[#allocation2 + $0x84] sm:$0x1]
    %v3445 = vld [vmem:[#allocation2 + $0x9c] sm:$0x1]
    %v3446 = vld [vmem:[#allocation2 + $0xb4] sm:$0x1]
    %v3447 = vld [vmem:[#allocation2 + $0xcc] sm:$0x1]
    %v3448 = vld [vmem:[#allocation2 + $0xe4] sm:$0x1]
    %v3449 = vld [vmem:[#allocation2 + $0xfc] sm:$0x1]
    %v3450 = vld [vmem:[#allocation2 + $0x114] sm:$0x1]
    %v3451 = vld [vmem:[#allocation2 + $0x12c] sm:$0x1]
    %v3452 = vld [vmem:[#allocation2 + $0x144] sm:$0x1]
    %v3453 = vld [vmem:[#allocation2 + $0x15c] sm:$0x1]
    %v3454 = vld [vmem:[#allocation2 + $0x174] sm:$0x1]
    %v3455 = vld [vmem:[#allocation2 + $0xd] sm:$0x1]
    %v3456 = vld [vmem:[#allocation2 + $0x25] sm:$0x1]
    %v3457 = vld [vmem:[#allocation2 + $0x3d] sm:$0x1]
    %v3458 = vld [vmem:[#allocation2 + $0x55] sm:$0x1]
    %v3459 = vld [vmem:[#allocation2 + $0x6d] sm:$0x1]
    %v3460 = vld [vmem:[#allocation2 + $0x85] sm:$0x1]
    %v3461 = vld [vmem:[#allocation2 + $0x9d] sm:$0x1]
    %v3462 = vld [vmem:[#allocation2 + $0xb5] sm:$0x1]
    %v3463 = vld [vmem:[#allocation2 + $0xcd] sm:$0x1]
    %v3464 = vld [vmem:[#allocation2 + $0xe5] sm:$0x1]
    %v3465 = vld [vmem:[#allocation2 + $0xfd] sm:$0x1]
    %v3466 = vld [vmem:[#allocation2 + $0x115] sm:$0x1]
    %v3467 = vld [vmem:[#allocation2 + $0x12d] sm:$0x1]
    %v3468 = vld [vmem:[#allocation2 + $0x145] sm:$0x1]
    %v3469 = vld [vmem:[#allocation2 + $0x15d] sm:$0x1]
    %v3470 = vld [vmem:[#allocation2 + $0x175] sm:$0x1]
    %v3471 = vmax.f32 %v3439, %v3455
    %v3472 = vmax.f32 %v3440, %v3456
    %v3473 = vmax.f32 %v3441, %v3457
    %v3474 = vmax.f32 %v3442, %v3458
    %v3475 = vmax.f32 %v3443, %v3459
    %v3476 = vmax.f32 %v3444, %v3460
    %v3477 = vmax.f32 %v3445, %v3461
    %v3478 = vmax.f32 %v3446, %v3462
    %v3479 = vmax.f32 %v3447, %v3463
    %v3480 = vmax.f32 %v3448, %v3464
    %v3481 = vmax.f32 %v3449, %v3465
    %v3482 = vmax.f32 %v3450, %v3466
    %v3483 = vmax.f32 %v3451, %v3467
    %v3484 = vmax.f32 %v3452, %v3468
    %v3485 = vmax.f32 %v3453, %v3469
    %v3486 = vmax.f32 %v3454, %v3470
    %v3487 = vld [vmem:[#allocation2 + $0xe] sm:$0x1]
    %v3488 = vld [vmem:[#allocation2 + $0x26] sm:$0x1]
    %v3489 = vld [vmem:[#allocation2 + $0x3e] sm:$0x1]
    %v3490 = vld [vmem:[#allocation2 + $0x56] sm:$0x1]
    %v3491 = vld [vmem:[#allocation2 + $0x6e] sm:$0x1]
    %v3492 = vld [vmem:[#allocation2 + $0x86] sm:$0x1]
    %v3493 = vld [vmem:[#allocation2 + $0x9e] sm:$0x1]
    %v3494 = vld [vmem:[#allocation2 + $0xb6] sm:$0x1]
    %v3495 = vld [vmem:[#allocation2 + $0xce] sm:$0x1]
    %v3496 = vld [vmem:[#allocation2 + $0xe6] sm:$0x1]
    %v3497 = vld [vmem:[#allocation2 + $0xfe] sm:$0x1]
    %v3498 = vld [vmem:[#allocation2 + $0x116] sm:$0x1]
    %v3499 = vld [vmem:[#allocation2 + $0x12e] sm:$0x1]
    %v3500 = vld [vmem:[#allocation2 + $0x146] sm:$0x1]
    %v3501 = vld [vmem:[#allocation2 + $0x15e] sm:$0x1]
    %v3502 = vld [vmem:[#allocation2 + $0x176] sm:$0x1]
    %v3503 = vmax.f32 %v3471, %v3487
    %v3504 = vmax.f32 %v3472, %v3488
    %v3505 = vmax.f32 %v3473, %v3489
    %v3506 = vmax.f32 %v3474, %v3490
    %v3507 = vmax.f32 %v3475, %v3491
    %v3508 = vmax.f32 %v3476, %v3492
    %v3509 = vmax.f32 %v3477, %v3493
    %v3510 = vmax.f32 %v3478, %v3494
    %v3511 = vmax.f32 %v3479, %v3495
    %v3512 = vmax.f32 %v3480, %v3496
    %v3513 = vmax.f32 %v3481, %v3497
    %v3514 = vmax.f32 %v3482, %v3498
    %v3515 = vmax.f32 %v3483, %v3499
    %v3516 = vmax.f32 %v3484, %v3500
    %v3517 = vmax.f32 %v3485, %v3501
    %v3518 = vmax.f32 %v3486, %v3502
    %3519 = vst [vmem:[%s2942 + $0x8] sm:$0x1] %v3503
    %3520 = vst [vmem:[%s2942 + $0x18] sm:$0x1] %v3504
    %3521 = vst [vmem:[%s2942 + $0x28] sm:$0x1] %v3505
    %3522 = vst [vmem:[%s2942 + $0x38] sm:$0x1] %v3506
    %3523 = vst [vmem:[%s2942 + $0x48] sm:$0x1] %v3507
    %3524 = vst [vmem:[%s2942 + $0x58] sm:$0x1] %v3508
    %3525 = vst [vmem:[%s2942 + $0x68] sm:$0x1] %v3509
    %3526 = vst [vmem:[%s2942 + $0x78] sm:$0x1] %v3510
    %3527 = vst [vmem:[%s2942 + $0xc8] sm:$0x1] %v3511
    %3528 = vst [vmem:[%s2942 + $0xd8] sm:$0x1] %v3512
    %3529 = vst [vmem:[%s2942 + $0xe8] sm:$0x1] %v3513
    %3530 = vst [vmem:[%s2942 + $0xf8] sm:$0x1] %v3514
    %3531 = vst [vmem:[%s2942 + $0x108] sm:$0x1] %v3515
    %3532 = vst [vmem:[%s2942 + $0x118] sm:$0x1] %v3516
    %3533 = vst [vmem:[%s2942 + $0x128] sm:$0x1] %v3517
    %3534 = vst [vmem:[%s2942 + $0x138] sm:$0x1] %v3518
    %v3535 = vld [vmem:[#allocation2 + $0xe] sm:$0x1]
    %v3536 = vld [vmem:[#allocation2 + $0x26] sm:$0x1]
    %v3537 = vld [vmem:[#allocation2 + $0x3e] sm:$0x1]
    %v3538 = vld [vmem:[#allocation2 + $0x56] sm:$0x1]
    %v3539 = vld [vmem:[#allocation2 + $0x6e] sm:$0x1]
    %v3540 = vld [vmem:[#allocation2 + $0x86] sm:$0x1]
    %v3541 = vld [vmem:[#allocation2 + $0x9e] sm:$0x1]
    %v3542 = vld [vmem:[#allocation2 + $0xb6] sm:$0x1]
    %v3543 = vld [vmem:[#allocation2 + $0xce] sm:$0x1]
    %v3544 = vld [vmem:[#allocation2 + $0xe6] sm:$0x1]
    %v3545 = vld [vmem:[#allocation2 + $0xfe] sm:$0x1]
    %v3546 = vld [vmem:[#allocation2 + $0x116] sm:$0x1]
    %v3547 = vld [vmem:[#allocation2 + $0x12e] sm:$0x1]
    %v3548 = vld [vmem:[#allocation2 + $0x146] sm:$0x1]
    %v3549 = vld [vmem:[#allocation2 + $0x15e] sm:$0x1]
    %v3550 = vld [vmem:[#allocation2 + $0x176] sm:$0x1]
    %v3551 = vld [vmem:[#allocation2 + $0xf] sm:$0x1]
    %v3552 = vld [vmem:[#allocation2 + $0x27] sm:$0x1]
    %v3553 = vld [vmem:[#allocation2 + $0x3f] sm:$0x1]
    %v3554 = vld [vmem:[#allocation2 + $0x57] sm:$0x1]
    %v3555 = vld [vmem:[#allocation2 + $0x6f] sm:$0x1]
    %v3556 = vld [vmem:[#allocation2 + $0x87] sm:$0x1]
    %v3557 = vld [vmem:[#allocation2 + $0x9f] sm:$0x1]
    %v3558 = vld [vmem:[#allocation2 + $0xb7] sm:$0x1]
    %v3559 = vld [vmem:[#allocation2 + $0xcf] sm:$0x1]
    %v3560 = vld [vmem:[#allocation2 + $0xe7] sm:$0x1]
    %v3561 = vld [vmem:[#allocation2 + $0xff] sm:$0x1]
    %v3562 = vld [vmem:[#allocation2 + $0x117] sm:$0x1]
    %v3563 = vld [vmem:[#allocation2 + $0x12f] sm:$0x1]
    %v3564 = vld [vmem:[#allocation2 + $0x147] sm:$0x1]
    %v3565 = vld [vmem:[#allocation2 + $0x15f] sm:$0x1]
    %v3566 = vld [vmem:[#allocation2 + $0x177] sm:$0x1]
    %v3567 = vmax.f32 %v3535, %v3551
    %v3568 = vmax.f32 %v3536, %v3552
    %v3569 = vmax.f32 %v3537, %v3553
    %v3570 = vmax.f32 %v3538, %v3554
    %v3571 = vmax.f32 %v3539, %v3555
    %v3572 = vmax.f32 %v3540, %v3556
    %v3573 = vmax.f32 %v3541, %v3557
    %v3574 = vmax.f32 %v3542, %v3558
    %v3575 = vmax.f32 %v3543, %v3559
    %v3576 = vmax.f32 %v3544, %v3560
    %v3577 = vmax.f32 %v3545, %v3561
    %v3578 = vmax.f32 %v3546, %v3562
    %v3579 = vmax.f32 %v3547, %v3563
    %v3580 = vmax.f32 %v3548, %v3564
    %v3581 = vmax.f32 %v3549, %v3565
    %v3582 = vmax.f32 %v3550, %v3566
    %v3583 = vld [vmem:[#allocation2 + $0x10] sm:$0x1]
    %v3584 = vld [vmem:[#allocation2 + $0x28] sm:$0x1]
    %v3585 = vld [vmem:[#allocation2 + $0x40] sm:$0x1]
    %v3586 = vld [vmem:[#allocation2 + $0x58] sm:$0x1]
    %v3587 = vld [vmem:[#allocation2 + $0x70] sm:$0x1]
    %v3588 = vld [vmem:[#allocation2 + $0x88] sm:$0x1]
    %v3589 = vld [vmem:[#allocation2 + $0xa0] sm:$0x1]
    %v3590 = vld [vmem:[#allocation2 + $0xb8] sm:$0x1]
    %v3591 = vld [vmem:[#allocation2 + $0xd0] sm:$0x1]
    %v3592 = vld [vmem:[#allocation2 + $0xe8] sm:$0x1]
    %v3593 = vld [vmem:[#allocation2 + $0x100] sm:$0x1]
    %v3594 = vld [vmem:[#allocation2 + $0x118] sm:$0x1]
    %v3595 = vld [vmem:[#allocation2 + $0x130] sm:$0x1]
    %v3596 = vld [vmem:[#allocation2 + $0x148] sm:$0x1]
    %v3597 = vld [vmem:[#allocation2 + $0x160] sm:$0x1]
    %v3598 = vld [vmem:[#allocation2 + $0x178] sm:$0x1]
    %v3599 = vmax.f32 %v3567, %v3583
    %v3600 = vmax.f32 %v3568, %v3584
    %v3601 = vmax.f32 %v3569, %v3585
    %v3602 = vmax.f32 %v3570, %v3586
    %v3603 = vmax.f32 %v3571, %v3587
    %v3604 = vmax.f32 %v3572, %v3588
    %v3605 = vmax.f32 %v3573, %v3589
    %v3606 = vmax.f32 %v3574, %v3590
    %v3607 = vmax.f32 %v3575, %v3591
    %v3608 = vmax.f32 %v3576, %v3592
    %v3609 = vmax.f32 %v3577, %v3593
    %v3610 = vmax.f32 %v3578, %v3594
    %v3611 = vmax.f32 %v3579, %v3595
    %v3612 = vmax.f32 %v3580, %v3596
    %v3613 = vmax.f32 %v3581, %v3597
    %v3614 = vmax.f32 %v3582, %v3598
    %3615 = vst [vmem:[%s2942 + $0x9] sm:$0x1] %v3599
    %3616 = vst [vmem:[%s2942 + $0x19] sm:$0x1] %v3600
    %3617 = vst [vmem:[%s2942 + $0x29] sm:$0x1] %v3601
    %3618 = vst [vmem:[%s2942 + $0x39] sm:$0x1] %v3602
    %3619 = vst [vmem:[%s2942 + $0x49] sm:$0x1] %v3603
    %3620 = vst [vmem:[%s2942 + $0x59] sm:$0x1] %v3604
    %3621 = vst [vmem:[%s2942 + $0x69] sm:$0x1] %v3605
    %3622 = vst [vmem:[%s2942 + $0x79] sm:$0x1] %v3606
    %3623 = vst [vmem:[%s2942 + $0xc9] sm:$0x1] %v3607
    %3624 = vst [vmem:[%s2942 + $0xd9] sm:$0x1] %v3608
    %3625 = vst [vmem:[%s2942 + $0xe9] sm:$0x1] %v3609
    %3626 = vst [vmem:[%s2942 + $0xf9] sm:$0x1] %v3610
    %3627 = vst [vmem:[%s2942 + $0x109] sm:$0x1] %v3611
    %3628 = vst [vmem:[%s2942 + $0x119] sm:$0x1] %v3612
    %3629 = vst [vmem:[%s2942 + $0x129] sm:$0x1] %v3613
    %3630 = vst [vmem:[%s2942 + $0x139] sm:$0x1] %v3614
    %v3631 = vld [vmem:[%s9 + $0x1] sm:$0x1]
    %v3632 = vld [vmem:[#allocation4] sm:$0xff]
    %v3633 = vld [vmem:[#allocation4 + $0x10] sm:$0xff]
    %v3634 = vld [vmem:[#allocation4 + $0x20] sm:$0xff]
    %v3635 = vld [vmem:[#allocation4 + $0x30] sm:$0xff]
    %v3636 = vld [vmem:[#allocation4 + $0x40] sm:$0xff]
    %v3637 = vld [vmem:[#allocation4 + $0x50] sm:$0xff]
    %v3638 = vld [vmem:[#allocation4 + $0x60] sm:$0xff]
    %v3639 = vld [vmem:[#allocation4 + $0x70] sm:$0xff]
    %v3640 = vld [vmem:[#allocation4 + $0xc0] sm:$0xff]
    %v3641 = vld [vmem:[#allocation4 + $0xd0] sm:$0xff]
    %v3642 = vld [vmem:[#allocation4 + $0xe0] sm:$0xff]
    %v3643 = vld [vmem:[#allocation4 + $0xf0] sm:$0xff]
    %v3644 = vld [vmem:[#allocation4 + $0x100] sm:$0xff]
    %v3645 = vld [vmem:[#allocation4 + $0x110] sm:$0xff]
    %v3646 = vld [vmem:[#allocation4 + $0x120] sm:$0xff]
    %v3647 = vld [vmem:[#allocation4 + $0x130] sm:$0xff]
    %v3648 = vld [vmem:[%s2] sm:$0xff]
    %v3649 = vld [vmem:[%s2 + $0x8] sm:$0xff]
    %v3650 = vld [vmem:[%s2 + $0x10] sm:$0xff]
    %v3651 = vld [vmem:[%s2 + $0x18] sm:$0xff]
    %v3652 = vld [vmem:[%s2 + $0x20] sm:$0xff]
    %v3653 = vld [vmem:[%s2 + $0x28] sm:$0xff]
    %v3654 = vld [vmem:[%s2 + $0x30] sm:$0xff]
    %v3655 = vld [vmem:[%s2 + $0x38] sm:$0xff]
    %v3656 = vld [vmem:[%s2 + $0x40] sm:$0xff]
    %v3657 = vld [vmem:[%s2 + $0x48] sm:$0xff]
    %v3658 = vld [vmem:[%s2 + $0x50] sm:$0xff]
    %v3659 = vld [vmem:[%s2 + $0x58] sm:$0xff]
    %v3660 = vld [vmem:[%s2 + $0x60] sm:$0xff]
    %v3661 = vld [vmem:[%s2 + $0x68] sm:$0xff]
    %v3662 = vld [vmem:[%s2 + $0x70] sm:$0xff]
    %v3663 = vld [vmem:[%s2 + $0x78] sm:$0xff]
    %v3664 = vld [vmem:[#allocation4 + $0x1] sm:$0xff]
    %v3665 = vld [vmem:[#allocation4 + $0x11] sm:$0xff]
    %v3666 = vld [vmem:[#allocation4 + $0x21] sm:$0xff]
    %v3667 = vld [vmem:[#allocation4 + $0x31] sm:$0xff]
    %v3668 = vld [vmem:[#allocation4 + $0x41] sm:$0xff]
    %v3669 = vld [vmem:[#allocation4 + $0x51] sm:$0xff]
    %v3670 = vld [vmem:[#allocation4 + $0x61] sm:$0xff]
    %v3671 = vld [vmem:[#allocation4 + $0x71] sm:$0xff]
    %v3672 = vld [vmem:[#allocation4 + $0xc1] sm:$0xff]
    %v3673 = vld [vmem:[#allocation4 + $0xd1] sm:$0xff]
    %v3674 = vld [vmem:[#allocation4 + $0xe1] sm:$0xff]
    %v3675 = vld [vmem:[#allocation4 + $0xf1] sm:$0xff]
    %v3676 = vld [vmem:[#allocation4 + $0x101] sm:$0xff]
    %v3677 = vld [vmem:[#allocation4 + $0x111] sm:$0xff]
    %v3678 = vld [vmem:[#allocation4 + $0x121] sm:$0xff]
    %v3679 = vld [vmem:[#allocation4 + $0x131] sm:$0xff]
    %s3680 = scalar_lea.vmem %s2, 128
    %v3681 = vld [vmem:[%s3680] sm:$0xff]
    %v3682 = vld [vmem:[%s3680 + $0x8] sm:$0xff]
    %v3683 = vld [vmem:[%s3680 + $0x10] sm:$0xff]
    %v3684 = vld [vmem:[%s3680 + $0x18] sm:$0xff]
    %v3685 = vld [vmem:[%s3680 + $0x20] sm:$0xff]
    %v3686 = vld [vmem:[%s3680 + $0x28] sm:$0xff]
    %v3687 = vld [vmem:[%s3680 + $0x30] sm:$0xff]
    %v3688 = vld [vmem:[%s3680 + $0x38] sm:$0xff]
    %v3689 = vld [vmem:[%s3680 + $0x40] sm:$0xff]
    %v3690 = vld [vmem:[%s3680 + $0x48] sm:$0xff]
    %v3691 = vld [vmem:[%s3680 + $0x50] sm:$0xff]
    %v3692 = vld [vmem:[%s3680 + $0x58] sm:$0xff]
    %v3693 = vld [vmem:[%s3680 + $0x60] sm:$0xff]
    %v3694 = vld [vmem:[%s3680 + $0x68] sm:$0xff]
    %v3695 = vld [vmem:[%s3680 + $0x70] sm:$0xff]
    %v3696 = vld [vmem:[%s3680 + $0x78] sm:$0xff]
    %3697 = vmatpush.msra.mxu0 %v3696
    %3698 = vmatpush.msra.mxu0 %v3695
    %3699 = vmatpush.msra.mxu0 %v3694
    %3700 = vmatpush.msra.mxu0 %v3693
    %3701 = vmatpush.msra.mxu0 %v3692
    %3702 = vmatpush.msra.mxu0 %v3691
    %3703 = vmatpush.msra.mxu0 %v3690
    %3704 = vmatpush.msra.mxu0 %v3689
    %3705 = vmatpush.msra.mxu0 %v3688
    %3706 = vmatpush.msra.mxu0 %v3687
    %3707 = vmatpush.msra.mxu0 %v3686
    %3708 = vmatpush.msra.mxu0 %v3685
    %3709 = vmatpush.msra.mxu0 %v3684
    %3710 = vmatpush.msra.mxu0 %v3683
    %3711 = vmatpush.msra.mxu0 %v3682
    %3712 = vmatpush.msra.mxu0 %v3681
    %3713 = vmatmul.f32.gmra.mxu0 %v3664
    %v3714 = vpop.f32.mrf.mxu0
    %v3715 = vadd.f32 0.0, %v3714
    %3716 = vmatmul.f32.gmra.mxu0 %v3665
    %v3717 = vpop.f32.mrf.mxu0
    %v3718 = vadd.f32 0.0, %v3717
    %3719 = vmatmul.f32.gmra.mxu0 %v3666
    %v3720 = vpop.f32.mrf.mxu0
    %v3721 = vadd.f32 0.0, %v3720
    %3722 = vmatmul.f32.gmra.mxu0 %v3667
    %v3723 = vpop.f32.mrf.mxu0
    %v3724 = vadd.f32 0.0, %v3723
    %3725 = vmatmul.f32.gmra.mxu0 %v3668
    %v3726 = vpop.f32.mrf.mxu0
    %v3727 = vadd.f32 0.0, %v3726
    %3728 = vmatmul.f32.gmra.mxu0 %v3669
    %v3729 = vpop.f32.mrf.mxu0
    %v3730 = vadd.f32 0.0, %v3729
    %3731 = vmatmul.f32.gmra.mxu0 %v3670
    %v3732 = vpop.f32.mrf.mxu0
    %v3733 = vadd.f32 0.0, %v3732
    %3734 = vmatmul.f32.gmra.mxu0 %v3671
    %v3735 = vpop.f32.mrf.mxu0
    %3736 = vmatmul.f32.gmra.mxu0 %v3672
    %v3737 = vpop.f32.mrf.mxu0
    %v3738 = vadd.f32 0.0, %v3737
    %3739 = vmatmul.f32.gmra.mxu0 %v3673
    %v3740 = vpop.f32.mrf.mxu0
    %v3741 = vadd.f32 0.0, %v3740
    %3742 = vmatmul.f32.gmra.mxu0 %v3674
    %v3743 = vpop.f32.mrf.mxu0
    %v3744 = vadd.f32 0.0, %v3743
    %3745 = vmatmul.f32.gmra.mxu0 %v3675
    %v3746 = vpop.f32.mrf.mxu0
    %v3747 = vadd.f32 0.0, %v3746
    %3748 = vmatmul.f32.gmra.mxu0 %v3676
    %v3749 = vpop.f32.mrf.mxu0
    %v3750 = vadd.f32 0.0, %v3749
    %3751 = vmatmul.f32.gmra.mxu0 %v3677
    %v3752 = vpop.f32.mrf.mxu0
    %v3753 = vadd.f32 0.0, %v3752
    %3754 = vmatmul.f32.gmra.mxu0 %v3678
    %v3755 = vpop.f32.mrf.mxu0
    %v3756 = vadd.f32 0.0, %v3755
    %3757 = vmatmul.f32.gmra.mxu0 %v3679
    %v3758 = vpop.f32.mrf.mxu0
    %3759 = vdwg.mxu0
    %3760 = vmatpush.msra.mxu0 %v3663
    %3761 = vmatpush.msra.mxu0 %v3662
    %3762 = vmatpush.msra.mxu0 %v3661
    %3763 = vmatpush.msra.mxu0 %v3660
    %3764 = vmatpush.msra.mxu0 %v3659
    %3765 = vmatpush.msra.mxu0 %v3658
    %3766 = vmatpush.msra.mxu0 %v3657
    %3767 = vmatpush.msra.mxu0 %v3656
    %3768 = vmatpush.msra.mxu0 %v3655
    %3769 = vmatpush.msra.mxu0 %v3654
    %3770 = vmatpush.msra.mxu0 %v3653
    %3771 = vmatpush.msra.mxu0 %v3652
    %3772 = vmatpush.msra.mxu0 %v3651
    %3773 = vmatpush.msra.mxu0 %v3650
    %3774 = vmatpush.msra.mxu0 %v3649
    %3775 = vmatpush.msra.mxu0 %v3648
    %3776 = vmatmul.f32.gmra.mxu0 %v3632
    %v3777 = vpop.f32.mrf.mxu0
    %v3778 = vadd.f32 %v3715, %v3777
    %3779 = vmatmul.f32.gmra.mxu0 %v3633
    %v3780 = vpop.f32.mrf.mxu0
    %v3781 = vadd.f32 %v3718, %v3780
    %3782 = vmatmul.f32.gmra.mxu0 %v3634
    %v3783 = vpop.f32.mrf.mxu0
    %v3784 = vadd.f32 %v3721, %v3783
    %3785 = vmatmul.f32.gmra.mxu0 %v3635
    %v3786 = vpop.f32.mrf.mxu0
    %v3787 = vadd.f32 %v3724, %v3786
    %3788 = vmatmul.f32.gmra.mxu0 %v3636
    %v3789 = vpop.f32.mrf.mxu0
    %v3790 = vadd.f32 %v3727, %v3789
    %3791 = vmatmul.f32.gmra.mxu0 %v3637
    %v3792 = vpop.f32.mrf.mxu0
    %v3793 = vadd.f32 %v3730, %v3792
    %3794 = vmatmul.f32.gmra.mxu0 %v3638
    %v3795 = vpop.f32.mrf.mxu0
    %v3796 = vadd.f32 %v3733, %v3795
    %3797 = vmatmul.f32.gmra.mxu0 %v3639
    %v3798 = vpop.f32.mrf.mxu0
    %3799 = vmatmul.f32.gmra.mxu0 %v3640
    %v3800 = vpop.f32.mrf.mxu0
    %v3801 = vadd.f32 %v3738, %v3800
    %3802 = vmatmul.f32.gmra.mxu0 %v3641
    %v3803 = vpop.f32.mrf.mxu0
    %v3804 = vadd.f32 %v3741, %v3803
    %3805 = vmatmul.f32.gmra.mxu0 %v3642
    %v3806 = vpop.f32.mrf.mxu0
    %v3807 = vadd.f32 %v3744, %v3806
    %3808 = vmatmul.f32.gmra.mxu0 %v3643
    %v3809 = vpop.f32.mrf.mxu0
    %v3810 = vadd.f32 %v3747, %v3809
    %3811 = vmatmul.f32.gmra.mxu0 %v3644
    %v3812 = vpop.f32.mrf.mxu0
    %v3813 = vadd.f32 %v3750, %v3812
    %3814 = vmatmul.f32.gmra.mxu0 %v3645
    %v3815 = vpop.f32.mrf.mxu0
    %v3816 = vadd.f32 %v3753, %v3815
    %3817 = vmatmul.f32.gmra.mxu0 %v3646
    %v3818 = vpop.f32.mrf.mxu0
    %v3819 = vadd.f32 %v3756, %v3818
    %3820 = vmatmul.f32.gmra.mxu0 %v3647
    %v3821 = vpop.f32.mrf.mxu0
    %3822 = vdwg.mxu0
    %v3823 = vld [vmem:[#allocation4 + $0x2] sm:$0xff]
    %v3824 = vld [vmem:[#allocation4 + $0x12] sm:$0xff]
    %v3825 = vld [vmem:[#allocation4 + $0x22] sm:$0xff]
    %v3826 = vld [vmem:[#allocation4 + $0x32] sm:$0xff]
    %v3827 = vld [vmem:[#allocation4 + $0x42] sm:$0xff]
    %v3828 = vld [vmem:[#allocation4 + $0x52] sm:$0xff]
    %v3829 = vld [vmem:[#allocation4 + $0x62] sm:$0xff]
    %v3830 = vld [vmem:[#allocation4 + $0x72] sm:$0xff]
    %v3831 = vld [vmem:[#allocation4 + $0xc2] sm:$0xff]
    %v3832 = vld [vmem:[#allocation4 + $0xd2] sm:$0xff]
    %v3833 = vld [vmem:[#allocation4 + $0xe2] sm:$0xff]
    %v3834 = vld [vmem:[#allocation4 + $0xf2] sm:$0xff]
    %v3835 = vld [vmem:[#allocation4 + $0x102] sm:$0xff]
    %v3836 = vld [vmem:[#allocation4 + $0x112] sm:$0xff]
    %v3837 = vld [vmem:[#allocation4 + $0x122] sm:$0xff]
    %v3838 = vld [vmem:[#allocation4 + $0x132] sm:$0xff]
    %s3839 = scalar_lea.vmem %s2, 256
    %v3840 = vld [vmem:[%s3839] sm:$0xff]
    %v3841 = vld [vmem:[%s3839 + $0x8] sm:$0xff]
    %v3842 = vld [vmem:[%s3839 + $0x10] sm:$0xff]
    %v3843 = vld [vmem:[%s3839 + $0x18] sm:$0xff]
    %v3844 = vld [vmem:[%s3839 + $0x20] sm:$0xff]
    %v3845 = vld [vmem:[%s3839 + $0x28] sm:$0xff]
    %v3846 = vld [vmem:[%s3839 + $0x30] sm:$0xff]
    %v3847 = vld [vmem:[%s3839 + $0x38] sm:$0xff]
    %v3848 = vld [vmem:[%s3839 + $0x40] sm:$0xff]
    %v3849 = vld [vmem:[%s3839 + $0x48] sm:$0xff]
    %v3850 = vld [vmem:[%s3839 + $0x50] sm:$0xff]
    %v3851 = vld [vmem:[%s3839 + $0x58] sm:$0xff]
    %v3852 = vld [vmem:[%s3839 + $0x60] sm:$0xff]
    %v3853 = vld [vmem:[%s3839 + $0x68] sm:$0xff]
    %v3854 = vld [vmem:[%s3839 + $0x70] sm:$0xff]
    %v3855 = vld [vmem:[%s3839 + $0x78] sm:$0xff]
    %3856 = vmatpush.msra.mxu0 %v3855
    %3857 = vmatpush.msra.mxu0 %v3854
    %3858 = vmatpush.msra.mxu0 %v3853
    %3859 = vmatpush.msra.mxu0 %v3852
    %3860 = vmatpush.msra.mxu0 %v3851
    %3861 = vmatpush.msra.mxu0 %v3850
    %3862 = vmatpush.msra.mxu0 %v3849
    %3863 = vmatpush.msra.mxu0 %v3848
    %3864 = vmatpush.msra.mxu0 %v3847
    %3865 = vmatpush.msra.mxu0 %v3846
    %3866 = vmatpush.msra.mxu0 %v3845
    %3867 = vmatpush.msra.mxu0 %v3844
    %3868 = vmatpush.msra.mxu0 %v3843
    %3869 = vmatpush.msra.mxu0 %v3842
    %3870 = vmatpush.msra.mxu0 %v3841
    %3871 = vmatpush.msra.mxu0 %v3840
    %3872 = vmatmul.f32.gmra.mxu0 %v3823
    %v3873 = vpop.f32.mrf.mxu0
    %v3874 = vadd.f32 0.0, %v3873
    %3875 = vmatmul.f32.gmra.mxu0 %v3824
    %v3876 = vpop.f32.mrf.mxu0
    %v3877 = vadd.f32 0.0, %v3876
    %3878 = vmatmul.f32.gmra.mxu0 %v3825
    %v3879 = vpop.f32.mrf.mxu0
    %v3880 = vadd.f32 0.0, %v3879
    %3881 = vmatmul.f32.gmra.mxu0 %v3826
    %v3882 = vpop.f32.mrf.mxu0
    %v3883 = vadd.f32 0.0, %v3882
    %3884 = vmatmul.f32.gmra.mxu0 %v3827
    %v3885 = vpop.f32.mrf.mxu0
    %v3886 = vadd.f32 0.0, %v3885
    %3887 = vmatmul.f32.gmra.mxu0 %v3828
    %v3888 = vpop.f32.mrf.mxu0
    %v3889 = vadd.f32 0.0, %v3888
    %3890 = vmatmul.f32.gmra.mxu0 %v3829
    %v3891 = vpop.f32.mrf.mxu0
    %v3892 = vadd.f32 0.0, %v3891
    %3893 = vmatmul.f32.gmra.mxu0 %v3830
    %v3894 = vpop.f32.mrf.mxu0
    %3895 = vmatmul.f32.gmra.mxu0 %v3831
    %v3896 = vpop.f32.mrf.mxu0
    %v3897 = vadd.f32 0.0, %v3896
    %3898 = vmatmul.f32.gmra.mxu0 %v3832
    %v3899 = vpop.f32.mrf.mxu0
    %v3900 = vadd.f32 0.0, %v3899
    %3901 = vmatmul.f32.gmra.mxu0 %v3833
    %v3902 = vpop.f32.mrf.mxu0
    %v3903 = vadd.f32 0.0, %v3902
    %3904 = vmatmul.f32.gmra.mxu0 %v3834
    %v3905 = vpop.f32.mrf.mxu0
    %v3906 = vadd.f32 0.0, %v3905
    %3907 = vmatmul.f32.gmra.mxu0 %v3835
    %v3908 = vpop.f32.mrf.mxu0
    %v3909 = vadd.f32 0.0, %v3908
    %3910 = vmatmul.f32.gmra.mxu0 %v3836
    %v3911 = vpop.f32.mrf.mxu0
    %v3912 = vadd.f32 0.0, %v3911
    %3913 = vmatmul.f32.gmra.mxu0 %v3837
    %v3914 = vpop.f32.mrf.mxu0
    %v3915 = vadd.f32 0.0, %v3914
    %3916 = vmatmul.f32.gmra.mxu0 %v3838
    %v3917 = vpop.f32.mrf.mxu0
    %3918 = vdwg.mxu0
    %v3919 = vadd.f32 %v3778, %v3874
    %v3920 = vadd.f32 %v3781, %v3877
    %v3921 = vadd.f32 %v3784, %v3880
    %v3922 = vadd.f32 %v3787, %v3883
    %v3923 = vadd.f32 %v3790, %v3886
    %v3924 = vadd.f32 %v3793, %v3889
    %v3925 = vadd.f32 %v3796, %v3892
    %v3926 = vadd.f32 %v3801, %v3897
    %v3927 = vadd.f32 %v3804, %v3900
    %v3928 = vadd.f32 %v3807, %v3903
    %v3929 = vadd.f32 %v3810, %v3906
    %v3930 = vadd.f32 %v3813, %v3909
    %v3931 = vadd.f32 %v3816, %v3912
    %v3932 = vadd.f32 %v3819, %v3915
    %v3933 = vld [vmem:[#allocation4 + $0x3] sm:$0xff]
    %v3934 = vld [vmem:[#allocation4 + $0x13] sm:$0xff]
    %v3935 = vld [vmem:[#allocation4 + $0x23] sm:$0xff]
    %v3936 = vld [vmem:[#allocation4 + $0x33] sm:$0xff]
    %v3937 = vld [vmem:[#allocation4 + $0x43] sm:$0xff]
    %v3938 = vld [vmem:[#allocation4 + $0x53] sm:$0xff]
    %v3939 = vld [vmem:[#allocation4 + $0x63] sm:$0xff]
    %v3940 = vld [vmem:[#allocation4 + $0x73] sm:$0xff]
    %v3941 = vld [vmem:[#allocation4 + $0xc3] sm:$0xff]
    %v3942 = vld [vmem:[#allocation4 + $0xd3] sm:$0xff]
    %v3943 = vld [vmem:[#allocation4 + $0xe3] sm:$0xff]
    %v3944 = vld [vmem:[#allocation4 + $0xf3] sm:$0xff]
    %v3945 = vld [vmem:[#allocation4 + $0x103] sm:$0xff]
    %v3946 = vld [vmem:[#allocation4 + $0x113] sm:$0xff]
    %v3947 = vld [vmem:[#allocation4 + $0x123] sm:$0xff]
    %v3948 = vld [vmem:[#allocation4 + $0x133] sm:$0xff]
    %s3949 = scalar_lea.vmem %s2, 384
    %v3950 = vld [vmem:[%s3949] sm:$0xff]
    %v3951 = vld [vmem:[%s3949 + $0x8] sm:$0xff]
    %v3952 = vld [vmem:[%s3949 + $0x10] sm:$0xff]
    %v3953 = vld [vmem:[%s3949 + $0x18] sm:$0xff]
    %v3954 = vld [vmem:[%s3949 + $0x20] sm:$0xff]
    %v3955 = vld [vmem:[%s3949 + $0x28] sm:$0xff]
    %v3956 = vld [vmem:[%s3949 + $0x30] sm:$0xff]
    %v3957 = vld [vmem:[%s3949 + $0x38] sm:$0xff]
    %v3958 = vld [vmem:[%s3949 + $0x40] sm:$0xff]
    %v3959 = vld [vmem:[%s3949 + $0x48] sm:$0xff]
    %v3960 = vld [vmem:[%s3949 + $0x50] sm:$0xff]
    %v3961 = vld [vmem:[%s3949 + $0x58] sm:$0xff]
    %v3962 = vld [vmem:[%s3949 + $0x60] sm:$0xff]
    %v3963 = vld [vmem:[%s3949 + $0x68] sm:$0xff]
    %v3964 = vld [vmem:[%s3949 + $0x70] sm:$0xff]
    %v3965 = vld [vmem:[%s3949 + $0x78] sm:$0xff]
    %3966 = vmatpush.msra.mxu0 %v3965
    %3967 = vmatpush.msra.mxu0 %v3964
    %3968 = vmatpush.msra.mxu0 %v3963
    %3969 = vmatpush.msra.mxu0 %v3962
    %3970 = vmatpush.msra.mxu0 %v3961
    %3971 = vmatpush.msra.mxu0 %v3960
    %3972 = vmatpush.msra.mxu0 %v3959
    %3973 = vmatpush.msra.mxu0 %v3958
    %3974 = vmatpush.msra.mxu0 %v3957
    %3975 = vmatpush.msra.mxu0 %v3956
    %3976 = vmatpush.msra.mxu0 %v3955
    %3977 = vmatpush.msra.mxu0 %v3954
    %3978 = vmatpush.msra.mxu0 %v3953
    %3979 = vmatpush.msra.mxu0 %v3952
    %3980 = vmatpush.msra.mxu0 %v3951
    %3981 = vmatpush.msra.mxu0 %v3950
    %3982 = vmatmul.f32.gmra.mxu0 %v3933
    %v3983 = vpop.f32.mrf.mxu0
    %v3984 = vadd.f32 0.0, %v3983
    %3985 = vmatmul.f32.gmra.mxu0 %v3934
    %v3986 = vpop.f32.mrf.mxu0
    %v3987 = vadd.f32 0.0, %v3986
    %3988 = vmatmul.f32.gmra.mxu0 %v3935
    %v3989 = vpop.f32.mrf.mxu0
    %v3990 = vadd.f32 0.0, %v3989
    %3991 = vmatmul.f32.gmra.mxu0 %v3936
    %v3992 = vpop.f32.mrf.mxu0
    %v3993 = vadd.f32 0.0, %v3992
    %3994 = vmatmul.f32.gmra.mxu0 %v3937
    %v3995 = vpop.f32.mrf.mxu0
    %v3996 = vadd.f32 0.0, %v3995
    %3997 = vmatmul.f32.gmra.mxu0 %v3938
    %v3998 = vpop.f32.mrf.mxu0
    %v3999 = vadd.f32 0.0, %v3998
    %4000 = vmatmul.f32.gmra.mxu0 %v3939
    %v4001 = vpop.f32.mrf.mxu0
    %v4002 = vadd.f32 0.0, %v4001
    %4003 = vmatmul.f32.gmra.mxu0 %v3940
    %v4004 = vpop.f32.mrf.mxu0
    %4005 = vmatmul.f32.gmra.mxu0 %v3941
    %v4006 = vpop.f32.mrf.mxu0
    %v4007 = vadd.f32 0.0, %v4006
    %4008 = vmatmul.f32.gmra.mxu0 %v3942
    %v4009 = vpop.f32.mrf.mxu0
    %v4010 = vadd.f32 0.0, %v4009
    %4011 = vmatmul.f32.gmra.mxu0 %v3943
    %v4012 = vpop.f32.mrf.mxu0
    %v4013 = vadd.f32 0.0, %v4012
    %4014 = vmatmul.f32.gmra.mxu0 %v3944
    %v4015 = vpop.f32.mrf.mxu0
    %v4016 = vadd.f32 0.0, %v4015
    %4017 = vmatmul.f32.gmra.mxu0 %v3945
    %v4018 = vpop.f32.mrf.mxu0
    %v4019 = vadd.f32 0.0, %v4018
    %4020 = vmatmul.f32.gmra.mxu0 %v3946
    %v4021 = vpop.f32.mrf.mxu0
    %v4022 = vadd.f32 0.0, %v4021
    %4023 = vmatmul.f32.gmra.mxu0 %v3947
    %v4024 = vpop.f32.mrf.mxu0
    %v4025 = vadd.f32 0.0, %v4024
    %4026 = vmatmul.f32.gmra.mxu0 %v3948
    %v4027 = vpop.f32.mrf.mxu0
    %4028 = vdwg.mxu0
    %v4029 = vadd.f32 %v3919, %v3984
    %v4030 = vadd.f32 %v3920, %v3987
    %v4031 = vadd.f32 %v3921, %v3990
    %v4032 = vadd.f32 %v3922, %v3993
    %v4033 = vadd.f32 %v3923, %v3996
    %v4034 = vadd.f32 %v3924, %v3999
    %v4035 = vadd.f32 %v3925, %v4002
    %v4036 = vadd.f32 %v3926, %v4007
    %v4037 = vadd.f32 %v3927, %v4010
    %v4038 = vadd.f32 %v3928, %v4013
    %v4039 = vadd.f32 %v3929, %v4016
    %v4040 = vadd.f32 %v3930, %v4019
    %v4041 = vadd.f32 %v3931, %v4022
    %v4042 = vadd.f32 %v3932, %v4025
    %v4043 = vld [vmem:[#allocation4 + $0x4] sm:$0xff]
    %v4044 = vld [vmem:[#allocation4 + $0x14] sm:$0xff]
    %v4045 = vld [vmem:[#allocation4 + $0x24] sm:$0xff]
    %v4046 = vld [vmem:[#allocation4 + $0x34] sm:$0xff]
    %v4047 = vld [vmem:[#allocation4 + $0x44] sm:$0xff]
    %v4048 = vld [vmem:[#allocation4 + $0x54] sm:$0xff]
    %v4049 = vld [vmem:[#allocation4 + $0x64] sm:$0xff]
    %v4050 = vld [vmem:[#allocation4 + $0x74] sm:$0xff]
    %v4051 = vld [vmem:[#allocation4 + $0xc4] sm:$0xff]
    %v4052 = vld [vmem:[#allocation4 + $0xd4] sm:$0xff]
    %v4053 = vld [vmem:[#allocation4 + $0xe4] sm:$0xff]
    %v4054 = vld [vmem:[#allocation4 + $0xf4] sm:$0xff]
    %v4055 = vld [vmem:[#allocation4 + $0x104] sm:$0xff]
    %v4056 = vld [vmem:[#allocation4 + $0x114] sm:$0xff]
    %v4057 = vld [vmem:[#allocation4 + $0x124] sm:$0xff]
    %v4058 = vld [vmem:[#allocation4 + $0x134] sm:$0xff]
    %s4059 = scalar_lea.vmem %s2, 512
    %v4060 = vld [vmem:[%s4059] sm:$0xff]
    %v4061 = vld [vmem:[%s4059 + $0x8] sm:$0xff]
    %v4062 = vld [vmem:[%s4059 + $0x10] sm:$0xff]
    %v4063 = vld [vmem:[%s4059 + $0x18] sm:$0xff]
    %v4064 = vld [vmem:[%s4059 + $0x20] sm:$0xff]
    %v4065 = vld [vmem:[%s4059 + $0x28] sm:$0xff]
    %v4066 = vld [vmem:[%s4059 + $0x30] sm:$0xff]
    %v4067 = vld [vmem:[%s4059 + $0x38] sm:$0xff]
    %v4068 = vld [vmem:[%s4059 + $0x40] sm:$0xff]
    %v4069 = vld [vmem:[%s4059 + $0x48] sm:$0xff]
    %v4070 = vld [vmem:[%s4059 + $0x50] sm:$0xff]
    %v4071 = vld [vmem:[%s4059 + $0x58] sm:$0xff]
    %v4072 = vld [vmem:[%s4059 + $0x60] sm:$0xff]
    %v4073 = vld [vmem:[%s4059 + $0x68] sm:$0xff]
    %v4074 = vld [vmem:[%s4059 + $0x70] sm:$0xff]
    %v4075 = vld [vmem:[%s4059 + $0x78] sm:$0xff]
    %4076 = vmatpush.msra.mxu0 %v4075
    %4077 = vmatpush.msra.mxu0 %v4074
    %4078 = vmatpush.msra.mxu0 %v4073
    %4079 = vmatpush.msra.mxu0 %v4072
    %4080 = vmatpush.msra.mxu0 %v4071
    %4081 = vmatpush.msra.mxu0 %v4070
    %4082 = vmatpush.msra.mxu0 %v4069
    %4083 = vmatpush.msra.mxu0 %v4068
    %4084 = vmatpush.msra.mxu0 %v4067
    %4085 = vmatpush.msra.mxu0 %v4066
    %4086 = vmatpush.msra.mxu0 %v4065
    %4087 = vmatpush.msra.mxu0 %v4064
    %4088 = vmatpush.msra.mxu0 %v4063
    %4089 = vmatpush.msra.mxu0 %v4062
    %4090 = vmatpush.msra.mxu0 %v4061
    %4091 = vmatpush.msra.mxu0 %v4060
    %4092 = vmatmul.f32.gmra.mxu0 %v4043
    %v4093 = vpop.f32.mrf.mxu0
    %v4094 = vadd.f32 0.0, %v4093
    %4095 = vmatmul.f32.gmra.mxu0 %v4044
    %v4096 = vpop.f32.mrf.mxu0
    %v4097 = vadd.f32 0.0, %v4096
    %4098 = vmatmul.f32.gmra.mxu0 %v4045
    %v4099 = vpop.f32.mrf.mxu0
    %v4100 = vadd.f32 0.0, %v4099
    %4101 = vmatmul.f32.gmra.mxu0 %v4046
    %v4102 = vpop.f32.mrf.mxu0
    %v4103 = vadd.f32 0.0, %v4102
    %4104 = vmatmul.f32.gmra.mxu0 %v4047
    %v4105 = vpop.f32.mrf.mxu0
    %v4106 = vadd.f32 0.0, %v4105
    %4107 = vmatmul.f32.gmra.mxu0 %v4048
    %v4108 = vpop.f32.mrf.mxu0
    %v4109 = vadd.f32 0.0, %v4108
    %4110 = vmatmul.f32.gmra.mxu0 %v4049
    %v4111 = vpop.f32.mrf.mxu0
    %v4112 = vadd.f32 0.0, %v4111
    %4113 = vmatmul.f32.gmra.mxu0 %v4050
    %v4114 = vpop.f32.mrf.mxu0
    %4115 = vmatmul.f32.gmra.mxu0 %v4051
    %v4116 = vpop.f32.mrf.mxu0
    %v4117 = vadd.f32 0.0, %v4116
    %4118 = vmatmul.f32.gmra.mxu0 %v4052
    %v4119 = vpop.f32.mrf.mxu0
    %v4120 = vadd.f32 0.0, %v4119
    %4121 = vmatmul.f32.gmra.mxu0 %v4053
    %v4122 = vpop.f32.mrf.mxu0
    %v4123 = vadd.f32 0.0, %v4122
    %4124 = vmatmul.f32.gmra.mxu0 %v4054
    %v4125 = vpop.f32.mrf.mxu0
    %v4126 = vadd.f32 0.0, %v4125
    %4127 = vmatmul.f32.gmra.mxu0 %v4055
    %v4128 = vpop.f32.mrf.mxu0
    %v4129 = vadd.f32 0.0, %v4128
    %4130 = vmatmul.f32.gmra.mxu0 %v4056
    %v4131 = vpop.f32.mrf.mxu0
    %v4132 = vadd.f32 0.0, %v4131
    %4133 = vmatmul.f32.gmra.mxu0 %v4057
    %v4134 = vpop.f32.mrf.mxu0
    %v4135 = vadd.f32 0.0, %v4134
    %4136 = vmatmul.f32.gmra.mxu0 %v4058
    %v4137 = vpop.f32.mrf.mxu0
    %4138 = vdwg.mxu0
    %v4139 = vadd.f32 %v4029, %v4094
    %v4140 = vadd.f32 %v4030, %v4097
    %v4141 = vadd.f32 %v4031, %v4100
    %v4142 = vadd.f32 %v4032, %v4103
    %v4143 = vadd.f32 %v4033, %v4106
    %v4144 = vadd.f32 %v4034, %v4109
    %v4145 = vadd.f32 %v4035, %v4112
    %v4146 = vadd.f32 %v4036, %v4117
    %v4147 = vadd.f32 %v4037, %v4120
    %v4148 = vadd.f32 %v4038, %v4123
    %v4149 = vadd.f32 %v4039, %v4126
    %v4150 = vadd.f32 %v4040, %v4129
    %v4151 = vadd.f32 %v4041, %v4132
    %v4152 = vadd.f32 %v4042, %v4135
    %s4153 = scalar_lea.vmem [#allocation4], 16
    %v4154 = vld [vmem:[%s4153] sm:$0xff]
    %v4155 = vld [vmem:[%s4153 + $0x10] sm:$0xff]
    %v4156 = vld [vmem:[%s4153 + $0x20] sm:$0xff]
    %v4157 = vld [vmem:[%s4153 + $0x30] sm:$0xff]
    %v4158 = vld [vmem:[%s4153 + $0x40] sm:$0xff]
    %v4159 = vld [vmem:[%s4153 + $0x50] sm:$0xff]
    %v4160 = vld [vmem:[%s4153 + $0x60] sm:$0xff]
    %v4161 = vld [vmem:[%s4153 + $0x70] sm:$0xff]
    %v4162 = vld [vmem:[%s4153 + $0xc0] sm:$0xff]
    %v4163 = vld [vmem:[%s4153 + $0xd0] sm:$0xff]
    %v4164 = vld [vmem:[%s4153 + $0xe0] sm:$0xff]
    %v4165 = vld [vmem:[%s4153 + $0xf0] sm:$0xff]
    %v4166 = vld [vmem:[%s4153 + $0x100] sm:$0xff]
    %v4167 = vld [vmem:[%s4153 + $0x110] sm:$0xff]
    %v4168 = vld [vmem:[%s4153 + $0x120] sm:$0xff]
    %v4169 = vld [vmem:[%s4153 + $0x130] sm:$0xff]
    %s4170 = scalar_lea.vmem %s2, 640
    %v4171 = vld [vmem:[%s4170] sm:$0xff]
    %v4172 = vld [vmem:[%s4170 + $0x8] sm:$0xff]
    %v4173 = vld [vmem:[%s4170 + $0x10] sm:$0xff]
    %v4174 = vld [vmem:[%s4170 + $0x18] sm:$0xff]
    %v4175 = vld [vmem:[%s4170 + $0x20] sm:$0xff]
    %v4176 = vld [vmem:[%s4170 + $0x28] sm:$0xff]
    %v4177 = vld [vmem:[%s4170 + $0x30] sm:$0xff]
    %v4178 = vld [vmem:[%s4170 + $0x38] sm:$0xff]
    %v4179 = vld [vmem:[%s4170 + $0x40] sm:$0xff]
    %v4180 = vld [vmem:[%s4170 + $0x48] sm:$0xff]
    %v4181 = vld [vmem:[%s4170 + $0x50] sm:$0xff]
    %v4182 = vld [vmem:[%s4170 + $0x58] sm:$0xff]
    %v4183 = vld [vmem:[%s4170 + $0x60] sm:$0xff]
    %v4184 = vld [vmem:[%s4170 + $0x68] sm:$0xff]
    %v4185 = vld [vmem:[%s4170 + $0x70] sm:$0xff]
    %v4186 = vld [vmem:[%s4170 + $0x78] sm:$0xff]
    %4187 = vmatpush.msra.mxu0 %v4186
    %4188 = vmatpush.msra.mxu0 %v4185
    %4189 = vmatpush.msra.mxu0 %v4184
    %4190 = vmatpush.msra.mxu0 %v4183
    %4191 = vmatpush.msra.mxu0 %v4182
    %4192 = vmatpush.msra.mxu0 %v4181
    %4193 = vmatpush.msra.mxu0 %v4180
    %4194 = vmatpush.msra.mxu0 %v4179
    %4195 = vmatpush.msra.mxu0 %v4178
    %4196 = vmatpush.msra.mxu0 %v4177
    %4197 = vmatpush.msra.mxu0 %v4176
    %4198 = vmatpush.msra.mxu0 %v4175
    %4199 = vmatpush.msra.mxu0 %v4174
    %4200 = vmatpush.msra.mxu0 %v4173
    %4201 = vmatpush.msra.mxu0 %v4172
    %4202 = vmatpush.msra.mxu0 %v4171
    %4203 = vmatmul.f32.gmra.mxu0 %v4154
    %v4204 = vpop.f32.mrf.mxu0
    %v4205 = vadd.f32 0.0, %v4204
    %4206 = vmatmul.f32.gmra.mxu0 %v4155
    %v4207 = vpop.f32.mrf.mxu0
    %v4208 = vadd.f32 0.0, %v4207
    %4209 = vmatmul.f32.gmra.mxu0 %v4156
    %v4210 = vpop.f32.mrf.mxu0
    %v4211 = vadd.f32 0.0, %v4210
    %4212 = vmatmul.f32.gmra.mxu0 %v4157
    %v4213 = vpop.f32.mrf.mxu0
    %v4214 = vadd.f32 0.0, %v4213
    %4215 = vmatmul.f32.gmra.mxu0 %v4158
    %v4216 = vpop.f32.mrf.mxu0
    %v4217 = vadd.f32 0.0, %v4216
    %4218 = vmatmul.f32.gmra.mxu0 %v4159
    %v4219 = vpop.f32.mrf.mxu0
    %v4220 = vadd.f32 0.0, %v4219
    %4221 = vmatmul.f32.gmra.mxu0 %v4160
    %v4222 = vpop.f32.mrf.mxu0
    %v4223 = vadd.f32 0.0, %v4222
    %4224 = vmatmul.f32.gmra.mxu0 %v4161
    %v4225 = vpop.f32.mrf.mxu0
    %4226 = vmatmul.f32.gmra.mxu0 %v4162
    %v4227 = vpop.f32.mrf.mxu0
    %v4228 = vadd.f32 0.0, %v4227
    %4229 = vmatmul.f32.gmra.mxu0 %v4163
    %v4230 = vpop.f32.mrf.mxu0
    %v4231 = vadd.f32 0.0, %v4230
    %4232 = vmatmul.f32.gmra.mxu0 %v4164
    %v4233 = vpop.f32.mrf.mxu0
    %v4234 = vadd.f32 0.0, %v4233
    %4235 = vmatmul.f32.gmra.mxu0 %v4165
    %v4236 = vpop.f32.mrf.mxu0
    %v4237 = vadd.f32 0.0, %v4236
    %4238 = vmatmul.f32.gmra.mxu0 %v4166
    %v4239 = vpop.f32.mrf.mxu0
    %v4240 = vadd.f32 0.0, %v4239
    %4241 = vmatmul.f32.gmra.mxu0 %v4167
    %v4242 = vpop.f32.mrf.mxu0
    %v4243 = vadd.f32 0.0, %v4242
    %4244 = vmatmul.f32.gmra.mxu0 %v4168
    %v4245 = vpop.f32.mrf.mxu0
    %v4246 = vadd.f32 0.0, %v4245
    %4247 = vmatmul.f32.gmra.mxu0 %v4169
    %v4248 = vpop.f32.mrf.mxu0
    %4249 = vdwg.mxu0
    %v4250 = vadd.f32 %v4139, %v4205
    %v4251 = vadd.f32 %v4140, %v4208
    %v4252 = vadd.f32 %v4141, %v4211
    %v4253 = vadd.f32 %v4142, %v4214
    %v4254 = vadd.f32 %v4143, %v4217
    %v4255 = vadd.f32 %v4144, %v4220
    %v4256 = vadd.f32 %v4145, %v4223
    %v4257 = vadd.f32 %v4146, %v4228
    %v4258 = vadd.f32 %v4147, %v4231
    %v4259 = vadd.f32 %v4148, %v4234
    %v4260 = vadd.f32 %v4149, %v4237
    %v4261 = vadd.f32 %v4150, %v4240
    %v4262 = vadd.f32 %v4151, %v4243
    %v4263 = vadd.f32 %v4152, %v4246
    %v4264 = vld [vmem:[%s4153 + $0x1] sm:$0xff]
    %v4265 = vld [vmem:[%s4153 + $0x11] sm:$0xff]
    %v4266 = vld [vmem:[%s4153 + $0x21] sm:$0xff]
    %v4267 = vld [vmem:[%s4153 + $0x31] sm:$0xff]
    %v4268 = vld [vmem:[%s4153 + $0x41] sm:$0xff]
    %v4269 = vld [vmem:[%s4153 + $0x51] sm:$0xff]
    %v4270 = vld [vmem:[%s4153 + $0x61] sm:$0xff]
    %v4271 = vld [vmem:[%s4153 + $0x71] sm:$0xff]
    %v4272 = vld [vmem:[%s4153 + $0xc1] sm:$0xff]
    %v4273 = vld [vmem:[%s4153 + $0xd1] sm:$0xff]
    %v4274 = vld [vmem:[%s4153 + $0xe1] sm:$0xff]
    %v4275 = vld [vmem:[%s4153 + $0xf1] sm:$0xff]
    %v4276 = vld [vmem:[%s4153 + $0x101] sm:$0xff]
    %v4277 = vld [vmem:[%s4153 + $0x111] sm:$0xff]
    %v4278 = vld [vmem:[%s4153 + $0x121] sm:$0xff]
    %v4279 = vld [vmem:[%s4153 + $0x131] sm:$0xff]
    %s4280 = scalar_lea.vmem %s2, 768
    %v4281 = vld [vmem:[%s4280] sm:$0xff]
    %v4282 = vld [vmem:[%s4280 + $0x8] sm:$0xff]
    %v4283 = vld [vmem:[%s4280 + $0x10] sm:$0xff]
    %v4284 = vld [vmem:[%s4280 + $0x18] sm:$0xff]
    %v4285 = vld [vmem:[%s4280 + $0x20] sm:$0xff]
    %v4286 = vld [vmem:[%s4280 + $0x28] sm:$0xff]
    %v4287 = vld [vmem:[%s4280 + $0x30] sm:$0xff]
    %v4288 = vld [vmem:[%s4280 + $0x38] sm:$0xff]
    %v4289 = vld [vmem:[%s4280 + $0x40] sm:$0xff]
    %v4290 = vld [vmem:[%s4280 + $0x48] sm:$0xff]
    %v4291 = vld [vmem:[%s4280 + $0x50] sm:$0xff]
    %v4292 = vld [vmem:[%s4280 + $0x58] sm:$0xff]
    %v4293 = vld [vmem:[%s4280 + $0x60] sm:$0xff]
    %v4294 = vld [vmem:[%s4280 + $0x68] sm:$0xff]
    %v4295 = vld [vmem:[%s4280 + $0x70] sm:$0xff]
    %v4296 = vld [vmem:[%s4280 + $0x78] sm:$0xff]
    %4297 = vmatpush.msra.mxu0 %v4296
    %4298 = vmatpush.msra.mxu0 %v4295
    %4299 = vmatpush.msra.mxu0 %v4294
    %4300 = vmatpush.msra.mxu0 %v4293
    %4301 = vmatpush.msra.mxu0 %v4292
    %4302 = vmatpush.msra.mxu0 %v4291
    %4303 = vmatpush.msra.mxu0 %v4290
    %4304 = vmatpush.msra.mxu0 %v4289
    %4305 = vmatpush.msra.mxu0 %v4288
    %4306 = vmatpush.msra.mxu0 %v4287
    %4307 = vmatpush.msra.mxu0 %v4286
    %4308 = vmatpush.msra.mxu0 %v4285
    %4309 = vmatpush.msra.mxu0 %v4284
    %4310 = vmatpush.msra.mxu0 %v4283
    %4311 = vmatpush.msra.mxu0 %v4282
    %4312 = vmatpush.msra.mxu0 %v4281
    %4313 = vmatmul.f32.gmra.mxu0 %v4264
    %v4314 = vpop.f32.mrf.mxu0
    %v4315 = vadd.f32 0.0, %v4314
    %4316 = vmatmul.f32.gmra.mxu0 %v4265
    %v4317 = vpop.f32.mrf.mxu0
    %v4318 = vadd.f32 0.0, %v4317
    %4319 = vmatmul.f32.gmra.mxu0 %v4266
    %v4320 = vpop.f32.mrf.mxu0
    %v4321 = vadd.f32 0.0, %v4320
    %4322 = vmatmul.f32.gmra.mxu0 %v4267
    %v4323 = vpop.f32.mrf.mxu0
    %v4324 = vadd.f32 0.0, %v4323
    %4325 = vmatmul.f32.gmra.mxu0 %v4268
    %v4326 = vpop.f32.mrf.mxu0
    %v4327 = vadd.f32 0.0, %v4326
    %4328 = vmatmul.f32.gmra.mxu0 %v4269
    %v4329 = vpop.f32.mrf.mxu0
    %v4330 = vadd.f32 0.0, %v4329
    %4331 = vmatmul.f32.gmra.mxu0 %v4270
    %v4332 = vpop.f32.mrf.mxu0
    %v4333 = vadd.f32 0.0, %v4332
    %4334 = vmatmul.f32.gmra.mxu0 %v4271
    %v4335 = vpop.f32.mrf.mxu0
    %4336 = vmatmul.f32.gmra.mxu0 %v4272
    %v4337 = vpop.f32.mrf.mxu0
    %v4338 = vadd.f32 0.0, %v4337
    %4339 = vmatmul.f32.gmra.mxu0 %v4273
    %v4340 = vpop.f32.mrf.mxu0
    %v4341 = vadd.f32 0.0, %v4340
    %4342 = vmatmul.f32.gmra.mxu0 %v4274
    %v4343 = vpop.f32.mrf.mxu0
    %v4344 = vadd.f32 0.0, %v4343
    %4345 = vmatmul.f32.gmra.mxu0 %v4275
    %v4346 = vpop.f32.mrf.mxu0
    %v4347 = vadd.f32 0.0, %v4346
    %4348 = vmatmul.f32.gmra.mxu0 %v4276
    %v4349 = vpop.f32.mrf.mxu0
    %v4350 = vadd.f32 0.0, %v4349
    %4351 = vmatmul.f32.gmra.mxu0 %v4277
    %v4352 = vpop.f32.mrf.mxu0
    %v4353 = vadd.f32 0.0, %v4352
    %4354 = vmatmul.f32.gmra.mxu0 %v4278
    %v4355 = vpop.f32.mrf.mxu0
    %v4356 = vadd.f32 0.0, %v4355
    %4357 = vmatmul.f32.gmra.mxu0 %v4279
    %v4358 = vpop.f32.mrf.mxu0
    %4359 = vdwg.mxu0
    %v4360 = vadd.f32 %v4250, %v4315
    %v4361 = vadd.f32 %v4251, %v4318
    %v4362 = vadd.f32 %v4252, %v4321
    %v4363 = vadd.f32 %v4253, %v4324
    %v4364 = vadd.f32 %v4254, %v4327
    %v4365 = vadd.f32 %v4255, %v4330
    %v4366 = vadd.f32 %v4256, %v4333
    %v4367 = vadd.f32 %v4257, %v4338
    %v4368 = vadd.f32 %v4258, %v4341
    %v4369 = vadd.f32 %v4259, %v4344
    %v4370 = vadd.f32 %v4260, %v4347
    %v4371 = vadd.f32 %v4261, %v4350
    %v4372 = vadd.f32 %v4262, %v4353
    %v4373 = vadd.f32 %v4263, %v4356
    %v4374 = vld [vmem:[%s4153 + $0x2] sm:$0xff]
    %v4375 = vld [vmem:[%s4153 + $0x12] sm:$0xff]
    %v4376 = vld [vmem:[%s4153 + $0x22] sm:$0xff]
    %v4377 = vld [vmem:[%s4153 + $0x32] sm:$0xff]
    %v4378 = vld [vmem:[%s4153 + $0x42] sm:$0xff]
    %v4379 = vld [vmem:[%s4153 + $0x52] sm:$0xff]
    %v4380 = vld [vmem:[%s4153 + $0x62] sm:$0xff]
    %v4381 = vld [vmem:[%s4153 + $0x72] sm:$0xff]
    %v4382 = vld [vmem:[%s4153 + $0xc2] sm:$0xff]
    %v4383 = vld [vmem:[%s4153 + $0xd2] sm:$0xff]
    %v4384 = vld [vmem:[%s4153 + $0xe2] sm:$0xff]
    %v4385 = vld [vmem:[%s4153 + $0xf2] sm:$0xff]
    %v4386 = vld [vmem:[%s4153 + $0x102] sm:$0xff]
    %v4387 = vld [vmem:[%s4153 + $0x112] sm:$0xff]
    %v4388 = vld [vmem:[%s4153 + $0x122] sm:$0xff]
    %v4389 = vld [vmem:[%s4153 + $0x132] sm:$0xff]
    %s4390 = scalar_lea.vmem %s2, 896
    %v4391 = vld [vmem:[%s4390] sm:$0xff]
    %v4392 = vld [vmem:[%s4390 + $0x8] sm:$0xff]
    %v4393 = vld [vmem:[%s4390 + $0x10] sm:$0xff]
    %v4394 = vld [vmem:[%s4390 + $0x18] sm:$0xff]
    %v4395 = vld [vmem:[%s4390 + $0x20] sm:$0xff]
    %v4396 = vld [vmem:[%s4390 + $0x28] sm:$0xff]
    %v4397 = vld [vmem:[%s4390 + $0x30] sm:$0xff]
    %v4398 = vld [vmem:[%s4390 + $0x38] sm:$0xff]
    %v4399 = vld [vmem:[%s4390 + $0x40] sm:$0xff]
    %v4400 = vld [vmem:[%s4390 + $0x48] sm:$0xff]
    %v4401 = vld [vmem:[%s4390 + $0x50] sm:$0xff]
    %v4402 = vld [vmem:[%s4390 + $0x58] sm:$0xff]
    %v4403 = vld [vmem:[%s4390 + $0x60] sm:$0xff]
    %v4404 = vld [vmem:[%s4390 + $0x68] sm:$0xff]
    %v4405 = vld [vmem:[%s4390 + $0x70] sm:$0xff]
    %v4406 = vld [vmem:[%s4390 + $0x78] sm:$0xff]
    %4407 = vmatpush.msra.mxu0 %v4406
    %4408 = vmatpush.msra.mxu0 %v4405
    %4409 = vmatpush.msra.mxu0 %v4404
    %4410 = vmatpush.msra.mxu0 %v4403
    %4411 = vmatpush.msra.mxu0 %v4402
    %4412 = vmatpush.msra.mxu0 %v4401
    %4413 = vmatpush.msra.mxu0 %v4400
    %4414 = vmatpush.msra.mxu0 %v4399
    %4415 = vmatpush.msra.mxu0 %v4398
    %4416 = vmatpush.msra.mxu0 %v4397
    %4417 = vmatpush.msra.mxu0 %v4396
    %4418 = vmatpush.msra.mxu0 %v4395
    %4419 = vmatpush.msra.mxu0 %v4394
    %4420 = vmatpush.msra.mxu0 %v4393
    %4421 = vmatpush.msra.mxu0 %v4392
    %4422 = vmatpush.msra.mxu0 %v4391
    %4423 = vmatmul.f32.gmra.mxu0 %v4374
    %v4424 = vpop.f32.mrf.mxu0
    %v4425 = vadd.f32 0.0, %v4424
    %4426 = vmatmul.f32.gmra.mxu0 %v4375
    %v4427 = vpop.f32.mrf.mxu0
    %v4428 = vadd.f32 0.0, %v4427
    %4429 = vmatmul.f32.gmra.mxu0 %v4376
    %v4430 = vpop.f32.mrf.mxu0
    %v4431 = vadd.f32 0.0, %v4430
    %4432 = vmatmul.f32.gmra.mxu0 %v4377
    %v4433 = vpop.f32.mrf.mxu0
    %v4434 = vadd.f32 0.0, %v4433
    %4435 = vmatmul.f32.gmra.mxu0 %v4378
    %v4436 = vpop.f32.mrf.mxu0
    %v4437 = vadd.f32 0.0, %v4436
    %4438 = vmatmul.f32.gmra.mxu0 %v4379
    %v4439 = vpop.f32.mrf.mxu0
    %v4440 = vadd.f32 0.0, %v4439
    %4441 = vmatmul.f32.gmra.mxu0 %v4380
    %v4442 = vpop.f32.mrf.mxu0
    %v4443 = vadd.f32 0.0, %v4442
    %4444 = vmatmul.f32.gmra.mxu0 %v4381
    %v4445 = vpop.f32.mrf.mxu0
    %4446 = vmatmul.f32.gmra.mxu0 %v4382
    %v4447 = vpop.f32.mrf.mxu0
    %v4448 = vadd.f32 0.0, %v4447
    %4449 = vmatmul.f32.gmra.mxu0 %v4383
    %v4450 = vpop.f32.mrf.mxu0
    %v4451 = vadd.f32 0.0, %v4450
    %4452 = vmatmul.f32.gmra.mxu0 %v4384
    %v4453 = vpop.f32.mrf.mxu0
    %v4454 = vadd.f32 0.0, %v4453
    %4455 = vmatmul.f32.gmra.mxu0 %v4385
    %v4456 = vpop.f32.mrf.mxu0
    %v4457 = vadd.f32 0.0, %v4456
    %4458 = vmatmul.f32.gmra.mxu0 %v4386
    %v4459 = vpop.f32.mrf.mxu0
    %v4460 = vadd.f32 0.0, %v4459
    %4461 = vmatmul.f32.gmra.mxu0 %v4387
    %v4462 = vpop.f32.mrf.mxu0
    %v4463 = vadd.f32 0.0, %v4462
    %4464 = vmatmul.f32.gmra.mxu0 %v4388
    %v4465 = vpop.f32.mrf.mxu0
    %v4466 = vadd.f32 0.0, %v4465
    %4467 = vmatmul.f32.gmra.mxu0 %v4389
    %v4468 = vpop.f32.mrf.mxu0
    %4469 = vdwg.mxu0
    %v4470 = vadd.f32 %v4360, %v4425
    %v4471 = vadd.f32 %v4361, %v4428
    %v4472 = vadd.f32 %v4362, %v4431
    %v4473 = vadd.f32 %v4363, %v4434
    %v4474 = vadd.f32 %v4364, %v4437
    %v4475 = vadd.f32 %v4365, %v4440
    %v4476 = vadd.f32 %v4366, %v4443
    %v4477 = vadd.f32 %v4367, %v4448
    %v4478 = vadd.f32 %v4368, %v4451
    %v4479 = vadd.f32 %v4369, %v4454
    %v4480 = vadd.f32 %v4370, %v4457
    %v4481 = vadd.f32 %v4371, %v4460
    %v4482 = vadd.f32 %v4372, %v4463
    %v4483 = vadd.f32 %v4373, %v4466
    %v4484 = vld [vmem:[%s4153 + $0x3] sm:$0xff]
    %v4485 = vld [vmem:[%s4153 + $0x13] sm:$0xff]
    %v4486 = vld [vmem:[%s4153 + $0x23] sm:$0xff]
    %v4487 = vld [vmem:[%s4153 + $0x33] sm:$0xff]
    %v4488 = vld [vmem:[%s4153 + $0x43] sm:$0xff]
    %v4489 = vld [vmem:[%s4153 + $0x53] sm:$0xff]
    %v4490 = vld [vmem:[%s4153 + $0x63] sm:$0xff]
    %v4491 = vld [vmem:[%s4153 + $0x73] sm:$0xff]
    %v4492 = vld [vmem:[%s4153 + $0xc3] sm:$0xff]
    %v4493 = vld [vmem:[%s4153 + $0xd3] sm:$0xff]
    %v4494 = vld [vmem:[%s4153 + $0xe3] sm:$0xff]
    %v4495 = vld [vmem:[%s4153 + $0xf3] sm:$0xff]
    %v4496 = vld [vmem:[%s4153 + $0x103] sm:$0xff]
    %v4497 = vld [vmem:[%s4153 + $0x113] sm:$0xff]
    %v4498 = vld [vmem:[%s4153 + $0x123] sm:$0xff]
    %v4499 = vld [vmem:[%s4153 + $0x133] sm:$0xff]
    %s4500 = scalar_lea.vmem %s2, 1024
    %v4501 = vld [vmem:[%s4500] sm:$0xff]
    %v4502 = vld [vmem:[%s4500 + $0x8] sm:$0xff]
    %v4503 = vld [vmem:[%s4500 + $0x10] sm:$0xff]
    %v4504 = vld [vmem:[%s4500 + $0x18] sm:$0xff]
    %v4505 = vld [vmem:[%s4500 + $0x20] sm:$0xff]
    %v4506 = vld [vmem:[%s4500 + $0x28] sm:$0xff]
    %v4507 = vld [vmem:[%s4500 + $0x30] sm:$0xff]
    %v4508 = vld [vmem:[%s4500 + $0x38] sm:$0xff]
    %v4509 = vld [vmem:[%s4500 + $0x40] sm:$0xff]
    %v4510 = vld [vmem:[%s4500 + $0x48] sm:$0xff]
    %v4511 = vld [vmem:[%s4500 + $0x50] sm:$0xff]
    %v4512 = vld [vmem:[%s4500 + $0x58] sm:$0xff]
    %v4513 = vld [vmem:[%s4500 + $0x60] sm:$0xff]
    %v4514 = vld [vmem:[%s4500 + $0x68] sm:$0xff]
    %v4515 = vld [vmem:[%s4500 + $0x70] sm:$0xff]
    %v4516 = vld [vmem:[%s4500 + $0x78] sm:$0xff]
    %4517 = vmatpush.msra.mxu0 %v4516
    %4518 = vmatpush.msra.mxu0 %v4515
    %4519 = vmatpush.msra.mxu0 %v4514
    %4520 = vmatpush.msra.mxu0 %v4513
    %4521 = vmatpush.msra.mxu0 %v4512
    %4522 = vmatpush.msra.mxu0 %v4511
    %4523 = vmatpush.msra.mxu0 %v4510
    %4524 = vmatpush.msra.mxu0 %v4509
    %4525 = vmatpush.msra.mxu0 %v4508
    %4526 = vmatpush.msra.mxu0 %v4507
    %4527 = vmatpush.msra.mxu0 %v4506
    %4528 = vmatpush.msra.mxu0 %v4505
    %4529 = vmatpush.msra.mxu0 %v4504
    %4530 = vmatpush.msra.mxu0 %v4503
    %4531 = vmatpush.msra.mxu0 %v4502
    %4532 = vmatpush.msra.mxu0 %v4501
    %4533 = vmatmul.f32.gmra.mxu0 %v4484
    %v4534 = vpop.f32.mrf.mxu0
    %v4535 = vadd.f32 0.0, %v4534
    %4536 = vmatmul.f32.gmra.mxu0 %v4485
    %v4537 = vpop.f32.mrf.mxu0
    %v4538 = vadd.f32 0.0, %v4537
    %4539 = vmatmul.f32.gmra.mxu0 %v4486
    %v4540 = vpop.f32.mrf.mxu0
    %v4541 = vadd.f32 0.0, %v4540
    %4542 = vmatmul.f32.gmra.mxu0 %v4487
    %v4543 = vpop.f32.mrf.mxu0
    %v4544 = vadd.f32 0.0, %v4543
    %4545 = vmatmul.f32.gmra.mxu0 %v4488
    %v4546 = vpop.f32.mrf.mxu0
    %v4547 = vadd.f32 0.0, %v4546
    %4548 = vmatmul.f32.gmra.mxu0 %v4489
    %v4549 = vpop.f32.mrf.mxu0
    %v4550 = vadd.f32 0.0, %v4549
    %4551 = vmatmul.f32.gmra.mxu0 %v4490
    %v4552 = vpop.f32.mrf.mxu0
    %v4553 = vadd.f32 0.0, %v4552
    %4554 = vmatmul.f32.gmra.mxu0 %v4491
    %v4555 = vpop.f32.mrf.mxu0
    %4556 = vmatmul.f32.gmra.mxu0 %v4492
    %v4557 = vpop.f32.mrf.mxu0
    %v4558 = vadd.f32 0.0, %v4557
    %4559 = vmatmul.f32.gmra.mxu0 %v4493
    %v4560 = vpop.f32.mrf.mxu0
    %v4561 = vadd.f32 0.0, %v4560
    %4562 = vmatmul.f32.gmra.mxu0 %v4494
    %v4563 = vpop.f32.mrf.mxu0
    %v4564 = vadd.f32 0.0, %v4563
    %4565 = vmatmul.f32.gmra.mxu0 %v4495
    %v4566 = vpop.f32.mrf.mxu0
    %v4567 = vadd.f32 0.0, %v4566
    %4568 = vmatmul.f32.gmra.mxu0 %v4496
    %v4569 = vpop.f32.mrf.mxu0
    %v4570 = vadd.f32 0.0, %v4569
    %4571 = vmatmul.f32.gmra.mxu0 %v4497
    %v4572 = vpop.f32.mrf.mxu0
    %v4573 = vadd.f32 0.0, %v4572
    %4574 = vmatmul.f32.gmra.mxu0 %v4498
    %v4575 = vpop.f32.mrf.mxu0
    %v4576 = vadd.f32 0.0, %v4575
    %4577 = vmatmul.f32.gmra.mxu0 %v4499
    %v4578 = vpop.f32.mrf.mxu0
    %4579 = vdwg.mxu0
    %v4580 = vadd.f32 %v4470, %v4535
    %v4581 = vadd.f32 %v4471, %v4538
    %v4582 = vadd.f32 %v4472, %v4541
    %v4583 = vadd.f32 %v4473, %v4544
    %v4584 = vadd.f32 %v4474, %v4547
    %v4585 = vadd.f32 %v4475, %v4550
    %v4586 = vadd.f32 %v4476, %v4553
    %v4587 = vadd.f32 %v4477, %v4558
    %v4588 = vadd.f32 %v4478, %v4561
    %v4589 = vadd.f32 %v4479, %v4564
    %v4590 = vadd.f32 %v4480, %v4567
    %v4591 = vadd.f32 %v4481, %v4570
    %v4592 = vadd.f32 %v4482, %v4573
    %v4593 = vadd.f32 %v4483, %v4576
    %v4594 = vld [vmem:[%s4153 + $0x4] sm:$0xff]
    %v4595 = vld [vmem:[%s4153 + $0x14] sm:$0xff]
    %v4596 = vld [vmem:[%s4153 + $0x24] sm:$0xff]
    %v4597 = vld [vmem:[%s4153 + $0x34] sm:$0xff]
    %v4598 = vld [vmem:[%s4153 + $0x44] sm:$0xff]
    %v4599 = vld [vmem:[%s4153 + $0x54] sm:$0xff]
    %v4600 = vld [vmem:[%s4153 + $0x64] sm:$0xff]
    %v4601 = vld [vmem:[%s4153 + $0x74] sm:$0xff]
    %v4602 = vld [vmem:[%s4153 + $0xc4] sm:$0xff]
    %v4603 = vld [vmem:[%s4153 + $0xd4] sm:$0xff]
    %v4604 = vld [vmem:[%s4153 + $0xe4] sm:$0xff]
    %v4605 = vld [vmem:[%s4153 + $0xf4] sm:$0xff]
    %v4606 = vld [vmem:[%s4153 + $0x104] sm:$0xff]
    %v4607 = vld [vmem:[%s4153 + $0x114] sm:$0xff]
    %v4608 = vld [vmem:[%s4153 + $0x124] sm:$0xff]
    %v4609 = vld [vmem:[%s4153 + $0x134] sm:$0xff]
    %s4610 = scalar_lea.vmem %s2, 1152
    %v4611 = vld [vmem:[%s4610] sm:$0xff]
    %v4612 = vld [vmem:[%s4610 + $0x8] sm:$0xff]
    %v4613 = vld [vmem:[%s4610 + $0x10] sm:$0xff]
    %v4614 = vld [vmem:[%s4610 + $0x18] sm:$0xff]
    %v4615 = vld [vmem:[%s4610 + $0x20] sm:$0xff]
    %v4616 = vld [vmem:[%s4610 + $0x28] sm:$0xff]
    %v4617 = vld [vmem:[%s4610 + $0x30] sm:$0xff]
    %v4618 = vld [vmem:[%s4610 + $0x38] sm:$0xff]
    %v4619 = vld [vmem:[%s4610 + $0x40] sm:$0xff]
    %v4620 = vld [vmem:[%s4610 + $0x48] sm:$0xff]
    %v4621 = vld [vmem:[%s4610 + $0x50] sm:$0xff]
    %v4622 = vld [vmem:[%s4610 + $0x58] sm:$0xff]
    %v4623 = vld [vmem:[%s4610 + $0x60] sm:$0xff]
    %v4624 = vld [vmem:[%s4610 + $0x68] sm:$0xff]
    %v4625 = vld [vmem:[%s4610 + $0x70] sm:$0xff]
    %v4626 = vld [vmem:[%s4610 + $0x78] sm:$0xff]
    %4627 = vmatpush.msra.mxu0 %v4626
    %4628 = vmatpush.msra.mxu0 %v4625
    %4629 = vmatpush.msra.mxu0 %v4624
    %4630 = vmatpush.msra.mxu0 %v4623
    %4631 = vmatpush.msra.mxu0 %v4622
    %4632 = vmatpush.msra.mxu0 %v4621
    %4633 = vmatpush.msra.mxu0 %v4620
    %4634 = vmatpush.msra.mxu0 %v4619
    %4635 = vmatpush.msra.mxu0 %v4618
    %4636 = vmatpush.msra.mxu0 %v4617
    %4637 = vmatpush.msra.mxu0 %v4616
    %4638 = vmatpush.msra.mxu0 %v4615
    %4639 = vmatpush.msra.mxu0 %v4614
    %4640 = vmatpush.msra.mxu0 %v4613
    %4641 = vmatpush.msra.mxu0 %v4612
    %4642 = vmatpush.msra.mxu0 %v4611
    %4643 = vmatmul.f32.gmra.mxu0 %v4594
    %v4644 = vpop.f32.mrf.mxu0
    %v4645 = vadd.f32 0.0, %v4644
    %4646 = vmatmul.f32.gmra.mxu0 %v4595
    %v4647 = vpop.f32.mrf.mxu0
    %v4648 = vadd.f32 0.0, %v4647
    %4649 = vmatmul.f32.gmra.mxu0 %v4596
    %v4650 = vpop.f32.mrf.mxu0
    %v4651 = vadd.f32 0.0, %v4650
    %4652 = vmatmul.f32.gmra.mxu0 %v4597
    %v4653 = vpop.f32.mrf.mxu0
    %v4654 = vadd.f32 0.0, %v4653
    %4655 = vmatmul.f32.gmra.mxu0 %v4598
    %v4656 = vpop.f32.mrf.mxu0
    %v4657 = vadd.f32 0.0, %v4656
    %4658 = vmatmul.f32.gmra.mxu0 %v4599
    %v4659 = vpop.f32.mrf.mxu0
    %v4660 = vadd.f32 0.0, %v4659
    %4661 = vmatmul.f32.gmra.mxu0 %v4600
    %v4662 = vpop.f32.mrf.mxu0
    %v4663 = vadd.f32 0.0, %v4662
    %4664 = vmatmul.f32.gmra.mxu0 %v4601
    %v4665 = vpop.f32.mrf.mxu0
    %4666 = vmatmul.f32.gmra.mxu0 %v4602
    %v4667 = vpop.f32.mrf.mxu0
    %v4668 = vadd.f32 0.0, %v4667
    %4669 = vmatmul.f32.gmra.mxu0 %v4603
    %v4670 = vpop.f32.mrf.mxu0
    %v4671 = vadd.f32 0.0, %v4670
    %4672 = vmatmul.f32.gmra.mxu0 %v4604
    %v4673 = vpop.f32.mrf.mxu0
    %v4674 = vadd.f32 0.0, %v4673
    %4675 = vmatmul.f32.gmra.mxu0 %v4605
    %v4676 = vpop.f32.mrf.mxu0
    %v4677 = vadd.f32 0.0, %v4676
    %4678 = vmatmul.f32.gmra.mxu0 %v4606
    %v4679 = vpop.f32.mrf.mxu0
    %v4680 = vadd.f32 0.0, %v4679
    %4681 = vmatmul.f32.gmra.mxu0 %v4607
    %v4682 = vpop.f32.mrf.mxu0
    %v4683 = vadd.f32 0.0, %v4682
    %4684 = vmatmul.f32.gmra.mxu0 %v4608
    %v4685 = vpop.f32.mrf.mxu0
    %v4686 = vadd.f32 0.0, %v4685
    %4687 = vmatmul.f32.gmra.mxu0 %v4609
    %v4688 = vpop.f32.mrf.mxu0
    %4689 = vdwg.mxu0
    %v4690 = vadd.f32 %v4580, %v4645
    %v4691 = vadd.f32 %v4581, %v4648
    %v4692 = vadd.f32 %v4582, %v4651
    %v4693 = vadd.f32 %v4583, %v4654
    %v4694 = vadd.f32 %v4584, %v4657
    %v4695 = vadd.f32 %v4585, %v4660
    %v4696 = vadd.f32 %v4586, %v4663
    %v4697 = vadd.f32 %v4587, %v4668
    %v4698 = vadd.f32 %v4588, %v4671
    %v4699 = vadd.f32 %v4589, %v4674
    %v4700 = vadd.f32 %v4590, %v4677
    %v4701 = vadd.f32 %v4591, %v4680
    %v4702 = vadd.f32 %v4592, %v4683
    %v4703 = vadd.f32 %v4593, %v4686
    %v4704 = vld [vmem:[%s2942] sm:$0xff]
    %v4705 = vld [vmem:[%s2942 + $0x10] sm:$0xff]
    %v4706 = vld [vmem:[%s2942 + $0x20] sm:$0xff]
    %v4707 = vld [vmem:[%s2942 + $0x30] sm:$0xff]
    %v4708 = vld [vmem:[%s2942 + $0x40] sm:$0xff]
    %v4709 = vld [vmem:[%s2942 + $0x50] sm:$0xff]
    %v4710 = vld [vmem:[%s2942 + $0x60] sm:$0xff]
    %v4711 = vld [vmem:[%s2942 + $0x70] sm:$0xff]
    %v4712 = vld [vmem:[%s2942 + $0xc0] sm:$0xff]
    %v4713 = vld [vmem:[%s2942 + $0xd0] sm:$0xff]
    %v4714 = vld [vmem:[%s2942 + $0xe0] sm:$0xff]
    %v4715 = vld [vmem:[%s2942 + $0xf0] sm:$0xff]
    %v4716 = vld [vmem:[%s2942 + $0x100] sm:$0xff]
    %v4717 = vld [vmem:[%s2942 + $0x110] sm:$0xff]
    %v4718 = vld [vmem:[%s2942 + $0x120] sm:$0xff]
    %v4719 = vld [vmem:[%s2942 + $0x130] sm:$0xff]
    %s4720 = scalar_lea.vmem %s2, 1280
    %v4721 = vld [vmem:[%s4720] sm:$0xff]
    %v4722 = vld [vmem:[%s4720 + $0x8] sm:$0xff]
    %v4723 = vld [vmem:[%s4720 + $0x10] sm:$0xff]
    %v4724 = vld [vmem:[%s4720 + $0x18] sm:$0xff]
    %v4725 = vld [vmem:[%s4720 + $0x20] sm:$0xff]
    %v4726 = vld [vmem:[%s4720 + $0x28] sm:$0xff]
    %v4727 = vld [vmem:[%s4720 + $0x30] sm:$0xff]
    %v4728 = vld [vmem:[%s4720 + $0x38] sm:$0xff]
    %v4729 = vld [vmem:[%s4720 + $0x40] sm:$0xff]
    %v4730 = vld [vmem:[%s4720 + $0x48] sm:$0xff]
    %v4731 = vld [vmem:[%s4720 + $0x50] sm:$0xff]
    %v4732 = vld [vmem:[%s4720 + $0x58] sm:$0xff]
    %v4733 = vld [vmem:[%s4720 + $0x60] sm:$0xff]
    %v4734 = vld [vmem:[%s4720 + $0x68] sm:$0xff]
    %v4735 = vld [vmem:[%s4720 + $0x70] sm:$0xff]
    %v4736 = vld [vmem:[%s4720 + $0x78] sm:$0xff]
    %4737 = vmatpush.msra.mxu0 %v4736
    %4738 = vmatpush.msra.mxu0 %v4735
    %4739 = vmatpush.msra.mxu0 %v4734
    %4740 = vmatpush.msra.mxu0 %v4733
    %4741 = vmatpush.msra.mxu0 %v4732
    %4742 = vmatpush.msra.mxu0 %v4731
    %4743 = vmatpush.msra.mxu0 %v4730
    %4744 = vmatpush.msra.mxu0 %v4729
    %4745 = vmatpush.msra.mxu0 %v4728
    %4746 = vmatpush.msra.mxu0 %v4727
    %4747 = vmatpush.msra.mxu0 %v4726
    %4748 = vmatpush.msra.mxu0 %v4725
    %4749 = vmatpush.msra.mxu0 %v4724
    %4750 = vmatpush.msra.mxu0 %v4723
    %4751 = vmatpush.msra.mxu0 %v4722
    %4752 = vmatpush.msra.mxu0 %v4721
    %4753 = vmatmul.f32.gmra.mxu0 %v4704
    %v4754 = vpop.f32.mrf.mxu0
    %v4755 = vadd.f32 0.0, %v4754
    %4756 = vmatmul.f32.gmra.mxu0 %v4705
    %v4757 = vpop.f32.mrf.mxu0
    %v4758 = vadd.f32 0.0, %v4757
    %4759 = vmatmul.f32.gmra.mxu0 %v4706
    %v4760 = vpop.f32.mrf.mxu0
    %v4761 = vadd.f32 0.0, %v4760
    %4762 = vmatmul.f32.gmra.mxu0 %v4707
    %v4763 = vpop.f32.mrf.mxu0
    %v4764 = vadd.f32 0.0, %v4763
    %4765 = vmatmul.f32.gmra.mxu0 %v4708
    %v4766 = vpop.f32.mrf.mxu0
    %v4767 = vadd.f32 0.0, %v4766
    %4768 = vmatmul.f32.gmra.mxu0 %v4709
    %v4769 = vpop.f32.mrf.mxu0
    %v4770 = vadd.f32 0.0, %v4769
    %4771 = vmatmul.f32.gmra.mxu0 %v4710
    %v4772 = vpop.f32.mrf.mxu0
    %v4773 = vadd.f32 0.0, %v4772
    %4774 = vmatmul.f32.gmra.mxu0 %v4711
    %v4775 = vpop.f32.mrf.mxu0
    %4776 = vmatmul.f32.gmra.mxu0 %v4712
    %v4777 = vpop.f32.mrf.mxu0
    %v4778 = vadd.f32 0.0, %v4777
    %4779 = vmatmul.f32.gmra.mxu0 %v4713
    %v4780 = vpop.f32.mrf.mxu0
    %v4781 = vadd.f32 0.0, %v4780
    %4782 = vmatmul.f32.gmra.mxu0 %v4714
    %v4783 = vpop.f32.mrf.mxu0
    %v4784 = vadd.f32 0.0, %v4783
    %4785 = vmatmul.f32.gmra.mxu0 %v4715
    %v4786 = vpop.f32.mrf.mxu0
    %v4787 = vadd.f32 0.0, %v4786
    %4788 = vmatmul.f32.gmra.mxu0 %v4716
    %v4789 = vpop.f32.mrf.mxu0
    %v4790 = vadd.f32 0.0, %v4789
    %4791 = vmatmul.f32.gmra.mxu0 %v4717
    %v4792 = vpop.f32.mrf.mxu0
    %v4793 = vadd.f32 0.0, %v4792
    %4794 = vmatmul.f32.gmra.mxu0 %v4718
    %v4795 = vpop.f32.mrf.mxu0
    %v4796 = vadd.f32 0.0, %v4795
    %4797 = vmatmul.f32.gmra.mxu0 %v4719
    %v4798 = vpop.f32.mrf.mxu0
    %4799 = vdwg.mxu0
    %v4800 = vadd.f32 %v4690, %v4755
    %v4801 = vadd.f32 %v4691, %v4758
    %v4802 = vadd.f32 %v4692, %v4761
    %v4803 = vadd.f32 %v4693, %v4764
    %v4804 = vadd.f32 %v4694, %v4767
    %v4805 = vadd.f32 %v4695, %v4770
    %v4806 = vadd.f32 %v4696, %v4773
    %v4807 = vadd.f32 %v4697, %v4778
    %v4808 = vadd.f32 %v4698, %v4781
    %v4809 = vadd.f32 %v4699, %v4784
    %v4810 = vadd.f32 %v4700, %v4787
    %v4811 = vadd.f32 %v4701, %v4790
    %v4812 = vadd.f32 %v4702, %v4793
    %v4813 = vadd.f32 %v4703, %v4796
    %v4814 = vld [vmem:[%s2942 + $0x1] sm:$0xff]
    %v4815 = vld [vmem:[%s2942 + $0x11] sm:$0xff]
    %v4816 = vld [vmem:[%s2942 + $0x21] sm:$0xff]
    %v4817 = vld [vmem:[%s2942 + $0x31] sm:$0xff]
    %v4818 = vld [vmem:[%s2942 + $0x41] sm:$0xff]
    %v4819 = vld [vmem:[%s2942 + $0x51] sm:$0xff]
    %v4820 = vld [vmem:[%s2942 + $0x61] sm:$0xff]
    %v4821 = vld [vmem:[%s2942 + $0x71] sm:$0xff]
    %v4822 = vld [vmem:[%s2942 + $0xc1] sm:$0xff]
    %v4823 = vld [vmem:[%s2942 + $0xd1] sm:$0xff]
    %v4824 = vld [vmem:[%s2942 + $0xe1] sm:$0xff]
    %v4825 = vld [vmem:[%s2942 + $0xf1] sm:$0xff]
    %v4826 = vld [vmem:[%s2942 + $0x101] sm:$0xff]
    %v4827 = vld [vmem:[%s2942 + $0x111] sm:$0xff]
    %v4828 = vld [vmem:[%s2942 + $0x121] sm:$0xff]
    %v4829 = vld [vmem:[%s2942 + $0x131] sm:$0xff]
    %s4830 = scalar_lea.vmem %s2, 1408
    %v4831 = vld [vmem:[%s4830] sm:$0xff]
    %v4832 = vld [vmem:[%s4830 + $0x8] sm:$0xff]
    %v4833 = vld [vmem:[%s4830 + $0x10] sm:$0xff]
    %v4834 = vld [vmem:[%s4830 + $0x18] sm:$0xff]
    %v4835 = vld [vmem:[%s4830 + $0x20] sm:$0xff]
    %v4836 = vld [vmem:[%s4830 + $0x28] sm:$0xff]
    %v4837 = vld [vmem:[%s4830 + $0x30] sm:$0xff]
    %v4838 = vld [vmem:[%s4830 + $0x38] sm:$0xff]
    %v4839 = vld [vmem:[%s4830 + $0x40] sm:$0xff]
    %v4840 = vld [vmem:[%s4830 + $0x48] sm:$0xff]
    %v4841 = vld [vmem:[%s4830 + $0x50] sm:$0xff]
    %v4842 = vld [vmem:[%s4830 + $0x58] sm:$0xff]
    %v4843 = vld [vmem:[%s4830 + $0x60] sm:$0xff]
    %v4844 = vld [vmem:[%s4830 + $0x68] sm:$0xff]
    %v4845 = vld [vmem:[%s4830 + $0x70] sm:$0xff]
    %v4846 = vld [vmem:[%s4830 + $0x78] sm:$0xff]
    %4847 = vmatpush.msra.mxu0 %v4846
    %4848 = vmatpush.msra.mxu0 %v4845
    %4849 = vmatpush.msra.mxu0 %v4844
    %4850 = vmatpush.msra.mxu0 %v4843
    %4851 = vmatpush.msra.mxu0 %v4842
    %4852 = vmatpush.msra.mxu0 %v4841
    %4853 = vmatpush.msra.mxu0 %v4840
    %4854 = vmatpush.msra.mxu0 %v4839
    %4855 = vmatpush.msra.mxu0 %v4838
    %4856 = vmatpush.msra.mxu0 %v4837
    %4857 = vmatpush.msra.mxu0 %v4836
    %4858 = vmatpush.msra.mxu0 %v4835
    %4859 = vmatpush.msra.mxu0 %v4834
    %4860 = vmatpush.msra.mxu0 %v4833
    %4861 = vmatpush.msra.mxu0 %v4832
    %4862 = vmatpush.msra.mxu0 %v4831
    %4863 = vmatmul.f32.gmra.mxu0 %v4814
    %v4864 = vpop.f32.mrf.mxu0
    %v4865 = vadd.f32 0.0, %v4864
    %4866 = vmatmul.f32.gmra.mxu0 %v4815
    %v4867 = vpop.f32.mrf.mxu0
    %v4868 = vadd.f32 0.0, %v4867
    %4869 = vmatmul.f32.gmra.mxu0 %v4816
    %v4870 = vpop.f32.mrf.mxu0
    %v4871 = vadd.f32 0.0, %v4870
    %4872 = vmatmul.f32.gmra.mxu0 %v4817
    %v4873 = vpop.f32.mrf.mxu0
    %v4874 = vadd.f32 0.0, %v4873
    %4875 = vmatmul.f32.gmra.mxu0 %v4818
    %v4876 = vpop.f32.mrf.mxu0
    %v4877 = vadd.f32 0.0, %v4876
    %4878 = vmatmul.f32.gmra.mxu0 %v4819
    %v4879 = vpop.f32.mrf.mxu0
    %v4880 = vadd.f32 0.0, %v4879
    %4881 = vmatmul.f32.gmra.mxu0 %v4820
    %v4882 = vpop.f32.mrf.mxu0
    %v4883 = vadd.f32 0.0, %v4882
    %4884 = vmatmul.f32.gmra.mxu0 %v4821
    %v4885 = vpop.f32.mrf.mxu0
    %4886 = vmatmul.f32.gmra.mxu0 %v4822
    %v4887 = vpop.f32.mrf.mxu0
    %v4888 = vadd.f32 0.0, %v4887
    %4889 = vmatmul.f32.gmra.mxu0 %v4823
    %v4890 = vpop.f32.mrf.mxu0
    %v4891 = vadd.f32 0.0, %v4890
    %4892 = vmatmul.f32.gmra.mxu0 %v4824
    %v4893 = vpop.f32.mrf.mxu0
    %v4894 = vadd.f32 0.0, %v4893
    %4895 = vmatmul.f32.gmra.mxu0 %v4825
    %v4896 = vpop.f32.mrf.mxu0
    %v4897 = vadd.f32 0.0, %v4896
    %4898 = vmatmul.f32.gmra.mxu0 %v4826
    %v4899 = vpop.f32.mrf.mxu0
    %v4900 = vadd.f32 0.0, %v4899
    %4901 = vmatmul.f32.gmra.mxu0 %v4827
    %v4902 = vpop.f32.mrf.mxu0
    %v4903 = vadd.f32 0.0, %v4902
    %4904 = vmatmul.f32.gmra.mxu0 %v4828
    %v4905 = vpop.f32.mrf.mxu0
    %v4906 = vadd.f32 0.0, %v4905
    %4907 = vmatmul.f32.gmra.mxu0 %v4829
    %v4908 = vpop.f32.mrf.mxu0
    %4909 = vdwg.mxu0
    %v4910 = vadd.f32 %v4800, %v4865
    %v4911 = vadd.f32 %v4801, %v4868
    %v4912 = vadd.f32 %v4802, %v4871
    %v4913 = vadd.f32 %v4803, %v4874
    %v4914 = vadd.f32 %v4804, %v4877
    %v4915 = vadd.f32 %v4805, %v4880
    %v4916 = vadd.f32 %v4806, %v4883
    %v4917 = vadd.f32 %v4807, %v4888
    %v4918 = vadd.f32 %v4808, %v4891
    %v4919 = vadd.f32 %v4809, %v4894
    %v4920 = vadd.f32 %v4810, %v4897
    %v4921 = vadd.f32 %v4811, %v4900
    %v4922 = vadd.f32 %v4812, %v4903
    %v4923 = vadd.f32 %v4813, %v4906
    %v4924 = vld [vmem:[%s2942 + $0x2] sm:$0xff]
    %v4925 = vld [vmem:[%s2942 + $0x12] sm:$0xff]
    %v4926 = vld [vmem:[%s2942 + $0x22] sm:$0xff]
    %v4927 = vld [vmem:[%s2942 + $0x32] sm:$0xff]
    %v4928 = vld [vmem:[%s2942 + $0x42] sm:$0xff]
    %v4929 = vld [vmem:[%s2942 + $0x52] sm:$0xff]
    %v4930 = vld [vmem:[%s2942 + $0x62] sm:$0xff]
    %v4931 = vld [vmem:[%s2942 + $0x72] sm:$0xff]
    %v4932 = vld [vmem:[%s2942 + $0xc2] sm:$0xff]
    %v4933 = vld [vmem:[%s2942 + $0xd2] sm:$0xff]
    %v4934 = vld [vmem:[%s2942 + $0xe2] sm:$0xff]
    %v4935 = vld [vmem:[%s2942 + $0xf2] sm:$0xff]
    %v4936 = vld [vmem:[%s2942 + $0x102] sm:$0xff]
    %v4937 = vld [vmem:[%s2942 + $0x112] sm:$0xff]
    %v4938 = vld [vmem:[%s2942 + $0x122] sm:$0xff]
    %v4939 = vld [vmem:[%s2942 + $0x132] sm:$0xff]
    %s4940 = scalar_lea.vmem %s2, 1536
    %v4941 = vld [vmem:[%s4940] sm:$0xff]
    %v4942 = vld [vmem:[%s4940 + $0x8] sm:$0xff]
    %v4943 = vld [vmem:[%s4940 + $0x10] sm:$0xff]
    %v4944 = vld [vmem:[%s4940 + $0x18] sm:$0xff]
    %v4945 = vld [vmem:[%s4940 + $0x20] sm:$0xff]
    %v4946 = vld [vmem:[%s4940 + $0x28] sm:$0xff]
    %v4947 = vld [vmem:[%s4940 + $0x30] sm:$0xff]
    %v4948 = vld [vmem:[%s4940 + $0x38] sm:$0xff]
    %v4949 = vld [vmem:[%s4940 + $0x40] sm:$0xff]
    %v4950 = vld [vmem:[%s4940 + $0x48] sm:$0xff]
    %v4951 = vld [vmem:[%s4940 + $0x50] sm:$0xff]
    %v4952 = vld [vmem:[%s4940 + $0x58] sm:$0xff]
    %v4953 = vld [vmem:[%s4940 + $0x60] sm:$0xff]
    %v4954 = vld [vmem:[%s4940 + $0x68] sm:$0xff]
    %v4955 = vld [vmem:[%s4940 + $0x70] sm:$0xff]
    %v4956 = vld [vmem:[%s4940 + $0x78] sm:$0xff]
    %4957 = vmatpush.msra.mxu0 %v4956
    %4958 = vmatpush.msra.mxu0 %v4955
    %4959 = vmatpush.msra.mxu0 %v4954
    %4960 = vmatpush.msra.mxu0 %v4953
    %4961 = vmatpush.msra.mxu0 %v4952
    %4962 = vmatpush.msra.mxu0 %v4951
    %4963 = vmatpush.msra.mxu0 %v4950
    %4964 = vmatpush.msra.mxu0 %v4949
    %4965 = vmatpush.msra.mxu0 %v4948
    %4966 = vmatpush.msra.mxu0 %v4947
    %4967 = vmatpush.msra.mxu0 %v4946
    %4968 = vmatpush.msra.mxu0 %v4945
    %4969 = vmatpush.msra.mxu0 %v4944
    %4970 = vmatpush.msra.mxu0 %v4943
    %4971 = vmatpush.msra.mxu0 %v4942
    %4972 = vmatpush.msra.mxu0 %v4941
    %4973 = vmatmul.f32.gmra.mxu0 %v4924
    %v4974 = vpop.f32.mrf.mxu0
    %v4975 = vadd.f32 0.0, %v4974
    %4976 = vmatmul.f32.gmra.mxu0 %v4925
    %v4977 = vpop.f32.mrf.mxu0
    %v4978 = vadd.f32 0.0, %v4977
    %4979 = vmatmul.f32.gmra.mxu0 %v4926
    %v4980 = vpop.f32.mrf.mxu0
    %v4981 = vadd.f32 0.0, %v4980
    %4982 = vmatmul.f32.gmra.mxu0 %v4927
    %v4983 = vpop.f32.mrf.mxu0
    %v4984 = vadd.f32 0.0, %v4983
    %4985 = vmatmul.f32.gmra.mxu0 %v4928
    %v4986 = vpop.f32.mrf.mxu0
    %v4987 = vadd.f32 0.0, %v4986
    %4988 = vmatmul.f32.gmra.mxu0 %v4929
    %v4989 = vpop.f32.mrf.mxu0
    %v4990 = vadd.f32 0.0, %v4989
    %4991 = vmatmul.f32.gmra.mxu0 %v4930
    %v4992 = vpop.f32.mrf.mxu0
    %v4993 = vadd.f32 0.0, %v4992
    %4994 = vmatmul.f32.gmra.mxu0 %v4931
    %v4995 = vpop.f32.mrf.mxu0
    %4996 = vmatmul.f32.gmra.mxu0 %v4932
    %v4997 = vpop.f32.mrf.mxu0
    %v4998 = vadd.f32 0.0, %v4997
    %4999 = vmatmul.f32.gmra.mxu0 %v4933
    %v5000 = vpop.f32.mrf.mxu0
    %v5001 = vadd.f32 0.0, %v5000
    %5002 = vmatmul.f32.gmra.mxu0 %v4934
    %v5003 = vpop.f32.mrf.mxu0
    %v5004 = vadd.f32 0.0, %v5003
    %5005 = vmatmul.f32.gmra.mxu0 %v4935
    %v5006 = vpop.f32.mrf.mxu0
    %v5007 = vadd.f32 0.0, %v5006
    %5008 = vmatmul.f32.gmra.mxu0 %v4936
    %v5009 = vpop.f32.mrf.mxu0
    %v5010 = vadd.f32 0.0, %v5009
    %5011 = vmatmul.f32.gmra.mxu0 %v4937
    %v5012 = vpop.f32.mrf.mxu0
    %v5013 = vadd.f32 0.0, %v5012
    %5014 = vmatmul.f32.gmra.mxu0 %v4938
    %v5015 = vpop.f32.mrf.mxu0
    %v5016 = vadd.f32 0.0, %v5015
    %5017 = vmatmul.f32.gmra.mxu0 %v4939
    %v5018 = vpop.f32.mrf.mxu0
    %5019 = vdwg.mxu0
    %v5020 = vadd.f32 %v4910, %v4975
    %v5021 = vadd.f32 %v4911, %v4978
    %v5022 = vadd.f32 %v4912, %v4981
    %v5023 = vadd.f32 %v4913, %v4984
    %v5024 = vadd.f32 %v4914, %v4987
    %v5025 = vadd.f32 %v4915, %v4990
    %v5026 = vadd.f32 %v4916, %v4993
    %v5027 = vadd.f32 %v4917, %v4998
    %v5028 = vadd.f32 %v4918, %v5001
    %v5029 = vadd.f32 %v4919, %v5004
    %v5030 = vadd.f32 %v4920, %v5007
    %v5031 = vadd.f32 %v4921, %v5010
    %v5032 = vadd.f32 %v4922, %v5013
    %v5033 = vadd.f32 %v4923, %v5016
    %v5034 = vld [vmem:[%s2942 + $0x3] sm:$0xff]
    %v5035 = vld [vmem:[%s2942 + $0x13] sm:$0xff]
    %v5036 = vld [vmem:[%s2942 + $0x23] sm:$0xff]
    %v5037 = vld [vmem:[%s2942 + $0x33] sm:$0xff]
    %v5038 = vld [vmem:[%s2942 + $0x43] sm:$0xff]
    %v5039 = vld [vmem:[%s2942 + $0x53] sm:$0xff]
    %v5040 = vld [vmem:[%s2942 + $0x63] sm:$0xff]
    %v5041 = vld [vmem:[%s2942 + $0x73] sm:$0xff]
    %v5042 = vld [vmem:[%s2942 + $0xc3] sm:$0xff]
    %v5043 = vld [vmem:[%s2942 + $0xd3] sm:$0xff]
    %v5044 = vld [vmem:[%s2942 + $0xe3] sm:$0xff]
    %v5045 = vld [vmem:[%s2942 + $0xf3] sm:$0xff]
    %v5046 = vld [vmem:[%s2942 + $0x103] sm:$0xff]
    %v5047 = vld [vmem:[%s2942 + $0x113] sm:$0xff]
    %v5048 = vld [vmem:[%s2942 + $0x123] sm:$0xff]
    %v5049 = vld [vmem:[%s2942 + $0x133] sm:$0xff]
    %s5050 = scalar_lea.vmem %s2, 1664
    %v5051 = vld [vmem:[%s5050] sm:$0xff]
    %v5052 = vld [vmem:[%s5050 + $0x8] sm:$0xff]
    %v5053 = vld [vmem:[%s5050 + $0x10] sm:$0xff]
    %v5054 = vld [vmem:[%s5050 + $0x18] sm:$0xff]
    %v5055 = vld [vmem:[%s5050 + $0x20] sm:$0xff]
    %v5056 = vld [vmem:[%s5050 + $0x28] sm:$0xff]
    %v5057 = vld [vmem:[%s5050 + $0x30] sm:$0xff]
    %v5058 = vld [vmem:[%s5050 + $0x38] sm:$0xff]
    %v5059 = vld [vmem:[%s5050 + $0x40] sm:$0xff]
    %v5060 = vld [vmem:[%s5050 + $0x48] sm:$0xff]
    %v5061 = vld [vmem:[%s5050 + $0x50] sm:$0xff]
    %v5062 = vld [vmem:[%s5050 + $0x58] sm:$0xff]
    %v5063 = vld [vmem:[%s5050 + $0x60] sm:$0xff]
    %v5064 = vld [vmem:[%s5050 + $0x68] sm:$0xff]
    %v5065 = vld [vmem:[%s5050 + $0x70] sm:$0xff]
    %v5066 = vld [vmem:[%s5050 + $0x78] sm:$0xff]
    %5067 = vmatpush.msra.mxu0 %v5066
    %5068 = vmatpush.msra.mxu0 %v5065
    %5069 = vmatpush.msra.mxu0 %v5064
    %5070 = vmatpush.msra.mxu0 %v5063
    %5071 = vmatpush.msra.mxu0 %v5062
    %5072 = vmatpush.msra.mxu0 %v5061
    %5073 = vmatpush.msra.mxu0 %v5060
    %5074 = vmatpush.msra.mxu0 %v5059
    %5075 = vmatpush.msra.mxu0 %v5058
    %5076 = vmatpush.msra.mxu0 %v5057
    %5077 = vmatpush.msra.mxu0 %v5056
    %5078 = vmatpush.msra.mxu0 %v5055
    %5079 = vmatpush.msra.mxu0 %v5054
    %5080 = vmatpush.msra.mxu0 %v5053
    %5081 = vmatpush.msra.mxu0 %v5052
    %5082 = vmatpush.msra.mxu0 %v5051
    %5083 = vmatmul.f32.gmra.mxu0 %v5034
    %v5084 = vpop.f32.mrf.mxu0
    %v5085 = vadd.f32 0.0, %v5084
    %5086 = vmatmul.f32.gmra.mxu0 %v5035
    %v5087 = vpop.f32.mrf.mxu0
    %v5088 = vadd.f32 0.0, %v5087
    %5089 = vmatmul.f32.gmra.mxu0 %v5036
    %v5090 = vpop.f32.mrf.mxu0
    %v5091 = vadd.f32 0.0, %v5090
    %5092 = vmatmul.f32.gmra.mxu0 %v5037
    %v5093 = vpop.f32.mrf.mxu0
    %v5094 = vadd.f32 0.0, %v5093
    %5095 = vmatmul.f32.gmra.mxu0 %v5038
    %v5096 = vpop.f32.mrf.mxu0
    %v5097 = vadd.f32 0.0, %v5096
    %5098 = vmatmul.f32.gmra.mxu0 %v5039
    %v5099 = vpop.f32.mrf.mxu0
    %v5100 = vadd.f32 0.0, %v5099
    %5101 = vmatmul.f32.gmra.mxu0 %v5040
    %v5102 = vpop.f32.mrf.mxu0
    %v5103 = vadd.f32 0.0, %v5102
    %5104 = vmatmul.f32.gmra.mxu0 %v5041
    %v5105 = vpop.f32.mrf.mxu0
    %5106 = vmatmul.f32.gmra.mxu0 %v5042
    %v5107 = vpop.f32.mrf.mxu0
    %v5108 = vadd.f32 0.0, %v5107
    %5109 = vmatmul.f32.gmra.mxu0 %v5043
    %v5110 = vpop.f32.mrf.mxu0
    %v5111 = vadd.f32 0.0, %v5110
    %5112 = vmatmul.f32.gmra.mxu0 %v5044
    %v5113 = vpop.f32.mrf.mxu0
    %v5114 = vadd.f32 0.0, %v5113
    %5115 = vmatmul.f32.gmra.mxu0 %v5045
    %v5116 = vpop.f32.mrf.mxu0
    %v5117 = vadd.f32 0.0, %v5116
    %5118 = vmatmul.f32.gmra.mxu0 %v5046
    %v5119 = vpop.f32.mrf.mxu0
    %v5120 = vadd.f32 0.0, %v5119
    %5121 = vmatmul.f32.gmra.mxu0 %v5047
    %v5122 = vpop.f32.mrf.mxu0
    %v5123 = vadd.f32 0.0, %v5122
    %5124 = vmatmul.f32.gmra.mxu0 %v5048
    %v5125 = vpop.f32.mrf.mxu0
    %v5126 = vadd.f32 0.0, %v5125
    %5127 = vmatmul.f32.gmra.mxu0 %v5049
    %v5128 = vpop.f32.mrf.mxu0
    %5129 = vdwg.mxu0
    %v5130 = vadd.f32 %v5020, %v5085
    %v5131 = vadd.f32 %v5021, %v5088
    %v5132 = vadd.f32 %v5022, %v5091
    %v5133 = vadd.f32 %v5023, %v5094
    %v5134 = vadd.f32 %v5024, %v5097
    %v5135 = vadd.f32 %v5025, %v5100
    %v5136 = vadd.f32 %v5026, %v5103
    %v5137 = vadd.f32 %v5027, %v5108
    %v5138 = vadd.f32 %v5028, %v5111
    %v5139 = vadd.f32 %v5029, %v5114
    %v5140 = vadd.f32 %v5030, %v5117
    %v5141 = vadd.f32 %v5031, %v5120
    %v5142 = vadd.f32 %v5032, %v5123
    %v5143 = vadd.f32 %v5033, %v5126
    %v5144 = vld [vmem:[%s2942 + $0x4] sm:$0xff]
    %v5145 = vld [vmem:[%s2942 + $0x14] sm:$0xff]
    %v5146 = vld [vmem:[%s2942 + $0x24] sm:$0xff]
    %v5147 = vld [vmem:[%s2942 + $0x34] sm:$0xff]
    %v5148 = vld [vmem:[%s2942 + $0x44] sm:$0xff]
    %v5149 = vld [vmem:[%s2942 + $0x54] sm:$0xff]
    %v5150 = vld [vmem:[%s2942 + $0x64] sm:$0xff]
    %v5151 = vld [vmem:[%s2942 + $0x74] sm:$0xff]
    %v5152 = vld [vmem:[%s2942 + $0xc4] sm:$0xff]
    %v5153 = vld [vmem:[%s2942 + $0xd4] sm:$0xff]
    %v5154 = vld [vmem:[%s2942 + $0xe4] sm:$0xff]
    %v5155 = vld [vmem:[%s2942 + $0xf4] sm:$0xff]
    %v5156 = vld [vmem:[%s2942 + $0x104] sm:$0xff]
    %v5157 = vld [vmem:[%s2942 + $0x114] sm:$0xff]
    %v5158 = vld [vmem:[%s2942 + $0x124] sm:$0xff]
    %v5159 = vld [vmem:[%s2942 + $0x134] sm:$0xff]
    %s5160 = scalar_lea.vmem %s2, 1792
    %v5161 = vld [vmem:[%s5160] sm:$0xff]
    %v5162 = vld [vmem:[%s5160 + $0x8] sm:$0xff]
    %v5163 = vld [vmem:[%s5160 + $0x10] sm:$0xff]
    %v5164 = vld [vmem:[%s5160 + $0x18] sm:$0xff]
    %v5165 = vld [vmem:[%s5160 + $0x20] sm:$0xff]
    %v5166 = vld [vmem:[%s5160 + $0x28] sm:$0xff]
    %v5167 = vld [vmem:[%s5160 + $0x30] sm:$0xff]
    %v5168 = vld [vmem:[%s5160 + $0x38] sm:$0xff]
    %v5169 = vld [vmem:[%s5160 + $0x40] sm:$0xff]
    %v5170 = vld [vmem:[%s5160 + $0x48] sm:$0xff]
    %v5171 = vld [vmem:[%s5160 + $0x50] sm:$0xff]
    %v5172 = vld [vmem:[%s5160 + $0x58] sm:$0xff]
    %v5173 = vld [vmem:[%s5160 + $0x60] sm:$0xff]
    %v5174 = vld [vmem:[%s5160 + $0x68] sm:$0xff]
    %v5175 = vld [vmem:[%s5160 + $0x70] sm:$0xff]
    %v5176 = vld [vmem:[%s5160 + $0x78] sm:$0xff]
    %5177 = vmatpush.msra.mxu0 %v5176
    %5178 = vmatpush.msra.mxu0 %v5175
    %5179 = vmatpush.msra.mxu0 %v5174
    %5180 = vmatpush.msra.mxu0 %v5173
    %5181 = vmatpush.msra.mxu0 %v5172
    %5182 = vmatpush.msra.mxu0 %v5171
    %5183 = vmatpush.msra.mxu0 %v5170
    %5184 = vmatpush.msra.mxu0 %v5169
    %5185 = vmatpush.msra.mxu0 %v5168
    %5186 = vmatpush.msra.mxu0 %v5167
    %5187 = vmatpush.msra.mxu0 %v5166
    %5188 = vmatpush.msra.mxu0 %v5165
    %5189 = vmatpush.msra.mxu0 %v5164
    %5190 = vmatpush.msra.mxu0 %v5163
    %5191 = vmatpush.msra.mxu0 %v5162
    %5192 = vmatpush.msra.mxu0 %v5161
    %5193 = vmatmul.f32.gmra.mxu0 %v5144
    %v5194 = vpop.f32.mrf.mxu0
    %v5195 = vadd.f32 0.0, %v5194
    %5196 = vmatmul.f32.gmra.mxu0 %v5145
    %v5197 = vpop.f32.mrf.mxu0
    %v5198 = vadd.f32 0.0, %v5197
    %5199 = vmatmul.f32.gmra.mxu0 %v5146
    %v5200 = vpop.f32.mrf.mxu0
    %v5201 = vadd.f32 0.0, %v5200
    %5202 = vmatmul.f32.gmra.mxu0 %v5147
    %v5203 = vpop.f32.mrf.mxu0
    %v5204 = vadd.f32 0.0, %v5203
    %5205 = vmatmul.f32.gmra.mxu0 %v5148
    %v5206 = vpop.f32.mrf.mxu0
    %v5207 = vadd.f32 0.0, %v5206
    %5208 = vmatmul.f32.gmra.mxu0 %v5149
    %v5209 = vpop.f32.mrf.mxu0
    %v5210 = vadd.f32 0.0, %v5209
    %5211 = vmatmul.f32.gmra.mxu0 %v5150
    %v5212 = vpop.f32.mrf.mxu0
    %v5213 = vadd.f32 0.0, %v5212
    %5214 = vmatmul.f32.gmra.mxu0 %v5151
    %v5215 = vpop.f32.mrf.mxu0
    %5216 = vmatmul.f32.gmra.mxu0 %v5152
    %v5217 = vpop.f32.mrf.mxu0
    %v5218 = vadd.f32 0.0, %v5217
    %5219 = vmatmul.f32.gmra.mxu0 %v5153
    %v5220 = vpop.f32.mrf.mxu0
    %v5221 = vadd.f32 0.0, %v5220
    %5222 = vmatmul.f32.gmra.mxu0 %v5154
    %v5223 = vpop.f32.mrf.mxu0
    %v5224 = vadd.f32 0.0, %v5223
    %5225 = vmatmul.f32.gmra.mxu0 %v5155
    %v5226 = vpop.f32.mrf.mxu0
    %v5227 = vadd.f32 0.0, %v5226
    %5228 = vmatmul.f32.gmra.mxu0 %v5156
    %v5229 = vpop.f32.mrf.mxu0
    %v5230 = vadd.f32 0.0, %v5229
    %5231 = vmatmul.f32.gmra.mxu0 %v5157
    %v5232 = vpop.f32.mrf.mxu0
    %v5233 = vadd.f32 0.0, %v5232
    %5234 = vmatmul.f32.gmra.mxu0 %v5158
    %v5235 = vpop.f32.mrf.mxu0
    %v5236 = vadd.f32 0.0, %v5235
    %5237 = vmatmul.f32.gmra.mxu0 %v5159
    %v5238 = vpop.f32.mrf.mxu0
    %5239 = vdwg.mxu0
    %v5240 = vadd.f32 %v5130, %v5195
    %v5241 = vadd.f32 %v5131, %v5198
    %v5242 = vadd.f32 %v5132, %v5201
    %v5243 = vadd.f32 %v5133, %v5204
    %v5244 = vadd.f32 %v5134, %v5207
    %v5245 = vadd.f32 %v5135, %v5210
    %v5246 = vadd.f32 %v5136, %v5213
    %v5247 = vadd.f32 %v5137, %v5218
    %v5248 = vadd.f32 %v5138, %v5221
    %v5249 = vadd.f32 %v5139, %v5224
    %v5250 = vadd.f32 %v5140, %v5227
    %v5251 = vadd.f32 %v5141, %v5230
    %v5252 = vadd.f32 %v5142, %v5233
    %v5253 = vadd.f32 %v5143, %v5236
    %s5254 = scalar_lea.vmem [#allocation4], 48
    %v5255 = vld [vmem:[%s5254] sm:$0xff]
    %v5256 = vld [vmem:[%s5254 + $0x10] sm:$0xff]
    %v5257 = vld [vmem:[%s5254 + $0x20] sm:$0xff]
    %v5258 = vld [vmem:[%s5254 + $0x30] sm:$0xff]
    %v5259 = vld [vmem:[%s5254 + $0x40] sm:$0xff]
    %v5260 = vld [vmem:[%s5254 + $0x50] sm:$0xff]
    %v5261 = vld [vmem:[%s5254 + $0x60] sm:$0xff]
    %v5262 = vld [vmem:[%s5254 + $0x70] sm:$0xff]
    %v5263 = vld [vmem:[%s5254 + $0xc0] sm:$0xff]
    %v5264 = vld [vmem:[%s5254 + $0xd0] sm:$0xff]
    %v5265 = vld [vmem:[%s5254 + $0xe0] sm:$0xff]
    %v5266 = vld [vmem:[%s5254 + $0xf0] sm:$0xff]
    %v5267 = vld [vmem:[%s5254 + $0x100] sm:$0xff]
    %v5268 = vld [vmem:[%s5254 + $0x110] sm:$0xff]
    %v5269 = vld [vmem:[%s5254 + $0x120] sm:$0xff]
    %v5270 = vld [vmem:[%s5254 + $0x130] sm:$0xff]
    %s5271 = scalar_lea.vmem %s2, 1920
    %v5272 = vld [vmem:[%s5271] sm:$0xff]
    %v5273 = vld [vmem:[%s5271 + $0x8] sm:$0xff]
    %v5274 = vld [vmem:[%s5271 + $0x10] sm:$0xff]
    %v5275 = vld [vmem:[%s5271 + $0x18] sm:$0xff]
    %v5276 = vld [vmem:[%s5271 + $0x20] sm:$0xff]
    %v5277 = vld [vmem:[%s5271 + $0x28] sm:$0xff]
    %v5278 = vld [vmem:[%s5271 + $0x30] sm:$0xff]
    %v5279 = vld [vmem:[%s5271 + $0x38] sm:$0xff]
    %v5280 = vld [vmem:[%s5271 + $0x40] sm:$0xff]
    %v5281 = vld [vmem:[%s5271 + $0x48] sm:$0xff]
    %v5282 = vld [vmem:[%s5271 + $0x50] sm:$0xff]
    %v5283 = vld [vmem:[%s5271 + $0x58] sm:$0xff]
    %v5284 = vld [vmem:[%s5271 + $0x60] sm:$0xff]
    %v5285 = vld [vmem:[%s5271 + $0x68] sm:$0xff]
    %v5286 = vld [vmem:[%s5271 + $0x70] sm:$0xff]
    %v5287 = vld [vmem:[%s5271 + $0x78] sm:$0xff]
    %5288 = vmatpush.msra.mxu0 %v5287
    %5289 = vmatpush.msra.mxu0 %v5286
    %5290 = vmatpush.msra.mxu0 %v5285
    %5291 = vmatpush.msra.mxu0 %v5284
    %5292 = vmatpush.msra.mxu0 %v5283
    %5293 = vmatpush.msra.mxu0 %v5282
    %5294 = vmatpush.msra.mxu0 %v5281
    %5295 = vmatpush.msra.mxu0 %v5280
    %5296 = vmatpush.msra.mxu0 %v5279
    %5297 = vmatpush.msra.mxu0 %v5278
    %5298 = vmatpush.msra.mxu0 %v5277
    %5299 = vmatpush.msra.mxu0 %v5276
    %5300 = vmatpush.msra.mxu0 %v5275
    %5301 = vmatpush.msra.mxu0 %v5274
    %5302 = vmatpush.msra.mxu0 %v5273
    %5303 = vmatpush.msra.mxu0 %v5272
    %5304 = vmatmul.f32.gmra.mxu0 %v5255
    %v5305 = vpop.f32.mrf.mxu0
    %v5306 = vadd.f32 0.0, %v5305
    %5307 = vmatmul.f32.gmra.mxu0 %v5256
    %v5308 = vpop.f32.mrf.mxu0
    %v5309 = vadd.f32 0.0, %v5308
    %5310 = vmatmul.f32.gmra.mxu0 %v5257
    %v5311 = vpop.f32.mrf.mxu0
    %v5312 = vadd.f32 0.0, %v5311
    %5313 = vmatmul.f32.gmra.mxu0 %v5258
    %v5314 = vpop.f32.mrf.mxu0
    %v5315 = vadd.f32 0.0, %v5314
    %5316 = vmatmul.f32.gmra.mxu0 %v5259
    %v5317 = vpop.f32.mrf.mxu0
    %v5318 = vadd.f32 0.0, %v5317
    %5319 = vmatmul.f32.gmra.mxu0 %v5260
    %v5320 = vpop.f32.mrf.mxu0
    %v5321 = vadd.f32 0.0, %v5320
    %5322 = vmatmul.f32.gmra.mxu0 %v5261
    %v5323 = vpop.f32.mrf.mxu0
    %v5324 = vadd.f32 0.0, %v5323
    %5325 = vmatmul.f32.gmra.mxu0 %v5262
    %v5326 = vpop.f32.mrf.mxu0
    %5327 = vmatmul.f32.gmra.mxu0 %v5263
    %v5328 = vpop.f32.mrf.mxu0
    %v5329 = vadd.f32 0.0, %v5328
    %5330 = vmatmul.f32.gmra.mxu0 %v5264
    %v5331 = vpop.f32.mrf.mxu0
    %v5332 = vadd.f32 0.0, %v5331
    %5333 = vmatmul.f32.gmra.mxu0 %v5265
    %v5334 = vpop.f32.mrf.mxu0
    %v5335 = vadd.f32 0.0, %v5334
    %5336 = vmatmul.f32.gmra.mxu0 %v5266
    %v5337 = vpop.f32.mrf.mxu0
    %v5338 = vadd.f32 0.0, %v5337
    %5339 = vmatmul.f32.gmra.mxu0 %v5267
    %v5340 = vpop.f32.mrf.mxu0
    %v5341 = vadd.f32 0.0, %v5340
    %5342 = vmatmul.f32.gmra.mxu0 %v5268
    %v5343 = vpop.f32.mrf.mxu0
    %v5344 = vadd.f32 0.0, %v5343
    %5345 = vmatmul.f32.gmra.mxu0 %v5269
    %v5346 = vpop.f32.mrf.mxu0
    %v5347 = vadd.f32 0.0, %v5346
    %5348 = vmatmul.f32.gmra.mxu0 %v5270
    %v5349 = vpop.f32.mrf.mxu0
    %5350 = vdwg.mxu0
    %v5351 = vadd.f32 %v5240, %v5306
    %v5352 = vadd.f32 %v5241, %v5309
    %v5353 = vadd.f32 %v5242, %v5312
    %v5354 = vadd.f32 %v5243, %v5315
    %v5355 = vadd.f32 %v5244, %v5318
    %v5356 = vadd.f32 %v5245, %v5321
    %v5357 = vadd.f32 %v5246, %v5324
    %v5358 = vadd.f32 %v5247, %v5329
    %v5359 = vadd.f32 %v5248, %v5332
    %v5360 = vadd.f32 %v5249, %v5335
    %v5361 = vadd.f32 %v5250, %v5338
    %v5362 = vadd.f32 %v5251, %v5341
    %v5363 = vadd.f32 %v5252, %v5344
    %v5364 = vadd.f32 %v5253, %v5347
    %v5365 = vld [vmem:[%s5254 + $0x1] sm:$0xff]
    %v5366 = vld [vmem:[%s5254 + $0x11] sm:$0xff]
    %v5367 = vld [vmem:[%s5254 + $0x21] sm:$0xff]
    %v5368 = vld [vmem:[%s5254 + $0x31] sm:$0xff]
    %v5369 = vld [vmem:[%s5254 + $0x41] sm:$0xff]
    %v5370 = vld [vmem:[%s5254 + $0x51] sm:$0xff]
    %v5371 = vld [vmem:[%s5254 + $0x61] sm:$0xff]
    %v5372 = vld [vmem:[%s5254 + $0x71] sm:$0xff]
    %v5373 = vld [vmem:[%s5254 + $0xc1] sm:$0xff]
    %v5374 = vld [vmem:[%s5254 + $0xd1] sm:$0xff]
    %v5375 = vld [vmem:[%s5254 + $0xe1] sm:$0xff]
    %v5376 = vld [vmem:[%s5254 + $0xf1] sm:$0xff]
    %v5377 = vld [vmem:[%s5254 + $0x101] sm:$0xff]
    %v5378 = vld [vmem:[%s5254 + $0x111] sm:$0xff]
    %v5379 = vld [vmem:[%s5254 + $0x121] sm:$0xff]
    %v5380 = vld [vmem:[%s5254 + $0x131] sm:$0xff]
    %s5381 = scalar_lea.vmem %s2, 2048
    %v5382 = vld [vmem:[%s5381] sm:$0xff]
    %v5383 = vld [vmem:[%s5381 + $0x8] sm:$0xff]
    %v5384 = vld [vmem:[%s5381 + $0x10] sm:$0xff]
    %v5385 = vld [vmem:[%s5381 + $0x18] sm:$0xff]
    %v5386 = vld [vmem:[%s5381 + $0x20] sm:$0xff]
    %v5387 = vld [vmem:[%s5381 + $0x28] sm:$0xff]
    %v5388 = vld [vmem:[%s5381 + $0x30] sm:$0xff]
    %v5389 = vld [vmem:[%s5381 + $0x38] sm:$0xff]
    %v5390 = vld [vmem:[%s5381 + $0x40] sm:$0xff]
    %v5391 = vld [vmem:[%s5381 + $0x48] sm:$0xff]
    %v5392 = vld [vmem:[%s5381 + $0x50] sm:$0xff]
    %v5393 = vld [vmem:[%s5381 + $0x58] sm:$0xff]
    %v5394 = vld [vmem:[%s5381 + $0x60] sm:$0xff]
    %v5395 = vld [vmem:[%s5381 + $0x68] sm:$0xff]
    %v5396 = vld [vmem:[%s5381 + $0x70] sm:$0xff]
    %v5397 = vld [vmem:[%s5381 + $0x78] sm:$0xff]
    %5398 = vmatpush.msra.mxu0 %v5397
    %5399 = vmatpush.msra.mxu0 %v5396
    %5400 = vmatpush.msra.mxu0 %v5395
    %5401 = vmatpush.msra.mxu0 %v5394
    %5402 = vmatpush.msra.mxu0 %v5393
    %5403 = vmatpush.msra.mxu0 %v5392
    %5404 = vmatpush.msra.mxu0 %v5391
    %5405 = vmatpush.msra.mxu0 %v5390
    %5406 = vmatpush.msra.mxu0 %v5389
    %5407 = vmatpush.msra.mxu0 %v5388
    %5408 = vmatpush.msra.mxu0 %v5387
    %5409 = vmatpush.msra.mxu0 %v5386
    %5410 = vmatpush.msra.mxu0 %v5385
    %5411 = vmatpush.msra.mxu0 %v5384
    %5412 = vmatpush.msra.mxu0 %v5383
    %5413 = vmatpush.msra.mxu0 %v5382
    %5414 = vmatmul.f32.gmra.mxu0 %v5365
    %v5415 = vpop.f32.mrf.mxu0
    %v5416 = vadd.f32 0.0, %v5415
    %5417 = vmatmul.f32.gmra.mxu0 %v5366
    %v5418 = vpop.f32.mrf.mxu0
    %v5419 = vadd.f32 0.0, %v5418
    %5420 = vmatmul.f32.gmra.mxu0 %v5367
    %v5421 = vpop.f32.mrf.mxu0
    %v5422 = vadd.f32 0.0, %v5421
    %5423 = vmatmul.f32.gmra.mxu0 %v5368
    %v5424 = vpop.f32.mrf.mxu0
    %v5425 = vadd.f32 0.0, %v5424
    %5426 = vmatmul.f32.gmra.mxu0 %v5369
    %v5427 = vpop.f32.mrf.mxu0
    %v5428 = vadd.f32 0.0, %v5427
    %5429 = vmatmul.f32.gmra.mxu0 %v5370
    %v5430 = vpop.f32.mrf.mxu0
    %v5431 = vadd.f32 0.0, %v5430
    %5432 = vmatmul.f32.gmra.mxu0 %v5371
    %v5433 = vpop.f32.mrf.mxu0
    %v5434 = vadd.f32 0.0, %v5433
    %5435 = vmatmul.f32.gmra.mxu0 %v5372
    %v5436 = vpop.f32.mrf.mxu0
    %5437 = vmatmul.f32.gmra.mxu0 %v5373
    %v5438 = vpop.f32.mrf.mxu0
    %v5439 = vadd.f32 0.0, %v5438
    %5440 = vmatmul.f32.gmra.mxu0 %v5374
    %v5441 = vpop.f32.mrf.mxu0
    %v5442 = vadd.f32 0.0, %v5441
    %5443 = vmatmul.f32.gmra.mxu0 %v5375
    %v5444 = vpop.f32.mrf.mxu0
    %v5445 = vadd.f32 0.0, %v5444
    %5446 = vmatmul.f32.gmra.mxu0 %v5376
    %v5447 = vpop.f32.mrf.mxu0
    %v5448 = vadd.f32 0.0, %v5447
    %5449 = vmatmul.f32.gmra.mxu0 %v5377
    %v5450 = vpop.f32.mrf.mxu0
    %v5451 = vadd.f32 0.0, %v5450
    %5452 = vmatmul.f32.gmra.mxu0 %v5378
    %v5453 = vpop.f32.mrf.mxu0
    %v5454 = vadd.f32 0.0, %v5453
    %5455 = vmatmul.f32.gmra.mxu0 %v5379
    %v5456 = vpop.f32.mrf.mxu0
    %v5457 = vadd.f32 0.0, %v5456
    %5458 = vmatmul.f32.gmra.mxu0 %v5380
    %v5459 = vpop.f32.mrf.mxu0
    %5460 = vdwg.mxu0
    %v5461 = vadd.f32 %v5351, %v5416
    %v5462 = vadd.f32 %v5352, %v5419
    %v5463 = vadd.f32 %v5353, %v5422
    %v5464 = vadd.f32 %v5354, %v5425
    %v5465 = vadd.f32 %v5355, %v5428
    %v5466 = vadd.f32 %v5356, %v5431
    %v5467 = vadd.f32 %v5357, %v5434
    %v5468 = vadd.f32 %v5358, %v5439
    %v5469 = vadd.f32 %v5359, %v5442
    %v5470 = vadd.f32 %v5360, %v5445
    %v5471 = vadd.f32 %v5361, %v5448
    %v5472 = vadd.f32 %v5362, %v5451
    %v5473 = vadd.f32 %v5363, %v5454
    %v5474 = vadd.f32 %v5364, %v5457
    %v5475 = vld [vmem:[%s5254 + $0x2] sm:$0xff]
    %v5476 = vld [vmem:[%s5254 + $0x12] sm:$0xff]
    %v5477 = vld [vmem:[%s5254 + $0x22] sm:$0xff]
    %v5478 = vld [vmem:[%s5254 + $0x32] sm:$0xff]
    %v5479 = vld [vmem:[%s5254 + $0x42] sm:$0xff]
    %v5480 = vld [vmem:[%s5254 + $0x52] sm:$0xff]
    %v5481 = vld [vmem:[%s5254 + $0x62] sm:$0xff]
    %v5482 = vld [vmem:[%s5254 + $0x72] sm:$0xff]
    %v5483 = vld [vmem:[%s5254 + $0xc2] sm:$0xff]
    %v5484 = vld [vmem:[%s5254 + $0xd2] sm:$0xff]
    %v5485 = vld [vmem:[%s5254 + $0xe2] sm:$0xff]
    %v5486 = vld [vmem:[%s5254 + $0xf2] sm:$0xff]
    %v5487 = vld [vmem:[%s5254 + $0x102] sm:$0xff]
    %v5488 = vld [vmem:[%s5254 + $0x112] sm:$0xff]
    %v5489 = vld [vmem:[%s5254 + $0x122] sm:$0xff]
    %v5490 = vld [vmem:[%s5254 + $0x132] sm:$0xff]
    %s5491 = scalar_lea.vmem %s2, 2176
    %v5492 = vld [vmem:[%s5491] sm:$0xff]
    %v5493 = vld [vmem:[%s5491 + $0x8] sm:$0xff]
    %v5494 = vld [vmem:[%s5491 + $0x10] sm:$0xff]
    %v5495 = vld [vmem:[%s5491 + $0x18] sm:$0xff]
    %v5496 = vld [vmem:[%s5491 + $0x20] sm:$0xff]
    %v5497 = vld [vmem:[%s5491 + $0x28] sm:$0xff]
    %v5498 = vld [vmem:[%s5491 + $0x30] sm:$0xff]
    %v5499 = vld [vmem:[%s5491 + $0x38] sm:$0xff]
    %v5500 = vld [vmem:[%s5491 + $0x40] sm:$0xff]
    %v5501 = vld [vmem:[%s5491 + $0x48] sm:$0xff]
    %v5502 = vld [vmem:[%s5491 + $0x50] sm:$0xff]
    %v5503 = vld [vmem:[%s5491 + $0x58] sm:$0xff]
    %v5504 = vld [vmem:[%s5491 + $0x60] sm:$0xff]
    %v5505 = vld [vmem:[%s5491 + $0x68] sm:$0xff]
    %v5506 = vld [vmem:[%s5491 + $0x70] sm:$0xff]
    %v5507 = vld [vmem:[%s5491 + $0x78] sm:$0xff]
    %5508 = vmatpush.msra.mxu0 %v5507
    %5509 = vmatpush.msra.mxu0 %v5506
    %5510 = vmatpush.msra.mxu0 %v5505
    %5511 = vmatpush.msra.mxu0 %v5504
    %5512 = vmatpush.msra.mxu0 %v5503
    %5513 = vmatpush.msra.mxu0 %v5502
    %5514 = vmatpush.msra.mxu0 %v5501
    %5515 = vmatpush.msra.mxu0 %v5500
    %5516 = vmatpush.msra.mxu0 %v5499
    %5517 = vmatpush.msra.mxu0 %v5498
    %5518 = vmatpush.msra.mxu0 %v5497
    %5519 = vmatpush.msra.mxu0 %v5496
    %5520 = vmatpush.msra.mxu0 %v5495
    %5521 = vmatpush.msra.mxu0 %v5494
    %5522 = vmatpush.msra.mxu0 %v5493
    %5523 = vmatpush.msra.mxu0 %v5492
    %5524 = vmatmul.f32.gmra.mxu0 %v5475
    %v5525 = vpop.f32.mrf.mxu0
    %v5526 = vadd.f32 0.0, %v5525
    %5527 = vmatmul.f32.gmra.mxu0 %v5476
    %v5528 = vpop.f32.mrf.mxu0
    %v5529 = vadd.f32 0.0, %v5528
    %5530 = vmatmul.f32.gmra.mxu0 %v5477
    %v5531 = vpop.f32.mrf.mxu0
    %v5532 = vadd.f32 0.0, %v5531
    %5533 = vmatmul.f32.gmra.mxu0 %v5478
    %v5534 = vpop.f32.mrf.mxu0
    %v5535 = vadd.f32 0.0, %v5534
    %5536 = vmatmul.f32.gmra.mxu0 %v5479
    %v5537 = vpop.f32.mrf.mxu0
    %v5538 = vadd.f32 0.0, %v5537
    %5539 = vmatmul.f32.gmra.mxu0 %v5480
    %v5540 = vpop.f32.mrf.mxu0
    %v5541 = vadd.f32 0.0, %v5540
    %5542 = vmatmul.f32.gmra.mxu0 %v5481
    %v5543 = vpop.f32.mrf.mxu0
    %v5544 = vadd.f32 0.0, %v5543
    %5545 = vmatmul.f32.gmra.mxu0 %v5482
    %v5546 = vpop.f32.mrf.mxu0
    %5547 = vmatmul.f32.gmra.mxu0 %v5483
    %v5548 = vpop.f32.mrf.mxu0
    %v5549 = vadd.f32 0.0, %v5548
    %5550 = vmatmul.f32.gmra.mxu0 %v5484
    %v5551 = vpop.f32.mrf.mxu0
    %v5552 = vadd.f32 0.0, %v5551
    %5553 = vmatmul.f32.gmra.mxu0 %v5485
    %v5554 = vpop.f32.mrf.mxu0
    %v5555 = vadd.f32 0.0, %v5554
    %5556 = vmatmul.f32.gmra.mxu0 %v5486
    %v5557 = vpop.f32.mrf.mxu0
    %v5558 = vadd.f32 0.0, %v5557
    %5559 = vmatmul.f32.gmra.mxu0 %v5487
    %v5560 = vpop.f32.mrf.mxu0
    %v5561 = vadd.f32 0.0, %v5560
    %5562 = vmatmul.f32.gmra.mxu0 %v5488
    %v5563 = vpop.f32.mrf.mxu0
    %v5564 = vadd.f32 0.0, %v5563
    %5565 = vmatmul.f32.gmra.mxu0 %v5489
    %v5566 = vpop.f32.mrf.mxu0
    %v5567 = vadd.f32 0.0, %v5566
    %5568 = vmatmul.f32.gmra.mxu0 %v5490
    %v5569 = vpop.f32.mrf.mxu0
    %5570 = vdwg.mxu0
    %v5571 = vadd.f32 %v5461, %v5526
    %v5572 = vadd.f32 %v5462, %v5529
    %v5573 = vadd.f32 %v5463, %v5532
    %v5574 = vadd.f32 %v5464, %v5535
    %v5575 = vadd.f32 %v5465, %v5538
    %v5576 = vadd.f32 %v5466, %v5541
    %v5577 = vadd.f32 %v5467, %v5544
    %v5578 = vadd.f32 %v5468, %v5549
    %v5579 = vadd.f32 %v5469, %v5552
    %v5580 = vadd.f32 %v5470, %v5555
    %v5581 = vadd.f32 %v5471, %v5558
    %v5582 = vadd.f32 %v5472, %v5561
    %v5583 = vadd.f32 %v5473, %v5564
    %v5584 = vadd.f32 %v5474, %v5567
    %v5585 = vld [vmem:[%s5254 + $0x3] sm:$0xff]
    %v5586 = vld [vmem:[%s5254 + $0x13] sm:$0xff]
    %v5587 = vld [vmem:[%s5254 + $0x23] sm:$0xff]
    %v5588 = vld [vmem:[%s5254 + $0x33] sm:$0xff]
    %v5589 = vld [vmem:[%s5254 + $0x43] sm:$0xff]
    %v5590 = vld [vmem:[%s5254 + $0x53] sm:$0xff]
    %v5591 = vld [vmem:[%s5254 + $0x63] sm:$0xff]
    %v5592 = vld [vmem:[%s5254 + $0x73] sm:$0xff]
    %v5593 = vld [vmem:[%s5254 + $0xc3] sm:$0xff]
    %v5594 = vld [vmem:[%s5254 + $0xd3] sm:$0xff]
    %v5595 = vld [vmem:[%s5254 + $0xe3] sm:$0xff]
    %v5596 = vld [vmem:[%s5254 + $0xf3] sm:$0xff]
    %v5597 = vld [vmem:[%s5254 + $0x103] sm:$0xff]
    %v5598 = vld [vmem:[%s5254 + $0x113] sm:$0xff]
    %v5599 = vld [vmem:[%s5254 + $0x123] sm:$0xff]
    %v5600 = vld [vmem:[%s5254 + $0x133] sm:$0xff]
    %s5601 = scalar_lea.vmem %s2, 2304
    %v5602 = vld [vmem:[%s5601] sm:$0xff]
    %v5603 = vld [vmem:[%s5601 + $0x8] sm:$0xff]
    %v5604 = vld [vmem:[%s5601 + $0x10] sm:$0xff]
    %v5605 = vld [vmem:[%s5601 + $0x18] sm:$0xff]
    %v5606 = vld [vmem:[%s5601 + $0x20] sm:$0xff]
    %v5607 = vld [vmem:[%s5601 + $0x28] sm:$0xff]
    %v5608 = vld [vmem:[%s5601 + $0x30] sm:$0xff]
    %v5609 = vld [vmem:[%s5601 + $0x38] sm:$0xff]
    %v5610 = vld [vmem:[%s5601 + $0x40] sm:$0xff]
    %v5611 = vld [vmem:[%s5601 + $0x48] sm:$0xff]
    %v5612 = vld [vmem:[%s5601 + $0x50] sm:$0xff]
    %v5613 = vld [vmem:[%s5601 + $0x58] sm:$0xff]
    %v5614 = vld [vmem:[%s5601 + $0x60] sm:$0xff]
    %v5615 = vld [vmem:[%s5601 + $0x68] sm:$0xff]
    %v5616 = vld [vmem:[%s5601 + $0x70] sm:$0xff]
    %v5617 = vld [vmem:[%s5601 + $0x78] sm:$0xff]
    %5618 = vmatpush.msra.mxu0 %v5617
    %5619 = vmatpush.msra.mxu0 %v5616
    %5620 = vmatpush.msra.mxu0 %v5615
    %5621 = vmatpush.msra.mxu0 %v5614
    %5622 = vmatpush.msra.mxu0 %v5613
    %5623 = vmatpush.msra.mxu0 %v5612
    %5624 = vmatpush.msra.mxu0 %v5611
    %5625 = vmatpush.msra.mxu0 %v5610
    %5626 = vmatpush.msra.mxu0 %v5609
    %5627 = vmatpush.msra.mxu0 %v5608
    %5628 = vmatpush.msra.mxu0 %v5607
    %5629 = vmatpush.msra.mxu0 %v5606
    %5630 = vmatpush.msra.mxu0 %v5605
    %5631 = vmatpush.msra.mxu0 %v5604
    %5632 = vmatpush.msra.mxu0 %v5603
    %5633 = vmatpush.msra.mxu0 %v5602
    %5634 = vmatmul.f32.gmra.mxu0 %v5585
    %v5635 = vpop.f32.mrf.mxu0
    %v5636 = vadd.f32 0.0, %v5635
    %5637 = vmatmul.f32.gmra.mxu0 %v5586
    %v5638 = vpop.f32.mrf.mxu0
    %v5639 = vadd.f32 0.0, %v5638
    %5640 = vmatmul.f32.gmra.mxu0 %v5587
    %v5641 = vpop.f32.mrf.mxu0
    %v5642 = vadd.f32 0.0, %v5641
    %5643 = vmatmul.f32.gmra.mxu0 %v5588
    %v5644 = vpop.f32.mrf.mxu0
    %v5645 = vadd.f32 0.0, %v5644
    %5646 = vmatmul.f32.gmra.mxu0 %v5589
    %v5647 = vpop.f32.mrf.mxu0
    %v5648 = vadd.f32 0.0, %v5647
    %5649 = vmatmul.f32.gmra.mxu0 %v5590
    %v5650 = vpop.f32.mrf.mxu0
    %v5651 = vadd.f32 0.0, %v5650
    %5652 = vmatmul.f32.gmra.mxu0 %v5591
    %v5653 = vpop.f32.mrf.mxu0
    %v5654 = vadd.f32 0.0, %v5653
    %5655 = vmatmul.f32.gmra.mxu0 %v5592
    %v5656 = vpop.f32.mrf.mxu0
    %5657 = vmatmul.f32.gmra.mxu0 %v5593
    %v5658 = vpop.f32.mrf.mxu0
    %v5659 = vadd.f32 0.0, %v5658
    %5660 = vmatmul.f32.gmra.mxu0 %v5594
    %v5661 = vpop.f32.mrf.mxu0
    %v5662 = vadd.f32 0.0, %v5661
    %5663 = vmatmul.f32.gmra.mxu0 %v5595
    %v5664 = vpop.f32.mrf.mxu0
    %v5665 = vadd.f32 0.0, %v5664
    %5666 = vmatmul.f32.gmra.mxu0 %v5596
    %v5667 = vpop.f32.mrf.mxu0
    %v5668 = vadd.f32 0.0, %v5667
    %5669 = vmatmul.f32.gmra.mxu0 %v5597
    %v5670 = vpop.f32.mrf.mxu0
    %v5671 = vadd.f32 0.0, %v5670
    %5672 = vmatmul.f32.gmra.mxu0 %v5598
    %v5673 = vpop.f32.mrf.mxu0
    %v5674 = vadd.f32 0.0, %v5673
    %5675 = vmatmul.f32.gmra.mxu0 %v5599
    %v5676 = vpop.f32.mrf.mxu0
    %v5677 = vadd.f32 0.0, %v5676
    %5678 = vmatmul.f32.gmra.mxu0 %v5600
    %v5679 = vpop.f32.mrf.mxu0
    %5680 = vdwg.mxu0
    %v5681 = vadd.f32 %v5571, %v5636
    %v5682 = vadd.f32 %v5572, %v5639
    %v5683 = vadd.f32 %v5573, %v5642
    %v5684 = vadd.f32 %v5574, %v5645
    %v5685 = vadd.f32 %v5575, %v5648
    %v5686 = vadd.f32 %v5576, %v5651
    %v5687 = vadd.f32 %v5577, %v5654
    %v5688 = vadd.f32 %v5578, %v5659
    %v5689 = vadd.f32 %v5579, %v5662
    %v5690 = vadd.f32 %v5580, %v5665
    %v5691 = vadd.f32 %v5581, %v5668
    %v5692 = vadd.f32 %v5582, %v5671
    %v5693 = vadd.f32 %v5583, %v5674
    %v5694 = vadd.f32 %v5584, %v5677
    %v5695 = vld [vmem:[%s5254 + $0x4] sm:$0xff]
    %v5696 = vld [vmem:[%s5254 + $0x14] sm:$0xff]
    %v5697 = vld [vmem:[%s5254 + $0x24] sm:$0xff]
    %v5698 = vld [vmem:[%s5254 + $0x34] sm:$0xff]
    %v5699 = vld [vmem:[%s5254 + $0x44] sm:$0xff]
    %v5700 = vld [vmem:[%s5254 + $0x54] sm:$0xff]
    %v5701 = vld [vmem:[%s5254 + $0x64] sm:$0xff]
    %v5702 = vld [vmem:[%s5254 + $0x74] sm:$0xff]
    %v5703 = vld [vmem:[%s5254 + $0xc4] sm:$0xff]
    %v5704 = vld [vmem:[%s5254 + $0xd4] sm:$0xff]
    %v5705 = vld [vmem:[%s5254 + $0xe4] sm:$0xff]
    %v5706 = vld [vmem:[%s5254 + $0xf4] sm:$0xff]
    %v5707 = vld [vmem:[%s5254 + $0x104] sm:$0xff]
    %v5708 = vld [vmem:[%s5254 + $0x114] sm:$0xff]
    %v5709 = vld [vmem:[%s5254 + $0x124] sm:$0xff]
    %v5710 = vld [vmem:[%s5254 + $0x134] sm:$0xff]
    %s5711 = scalar_lea.vmem %s2, 2432
    %v5712 = vld [vmem:[%s5711] sm:$0xff]
    %v5713 = vld [vmem:[%s5711 + $0x8] sm:$0xff]
    %v5714 = vld [vmem:[%s5711 + $0x10] sm:$0xff]
    %v5715 = vld [vmem:[%s5711 + $0x18] sm:$0xff]
    %v5716 = vld [vmem:[%s5711 + $0x20] sm:$0xff]
    %v5717 = vld [vmem:[%s5711 + $0x28] sm:$0xff]
    %v5718 = vld [vmem:[%s5711 + $0x30] sm:$0xff]
    %v5719 = vld [vmem:[%s5711 + $0x38] sm:$0xff]
    %v5720 = vld [vmem:[%s5711 + $0x40] sm:$0xff]
    %v5721 = vld [vmem:[%s5711 + $0x48] sm:$0xff]
    %v5722 = vld [vmem:[%s5711 + $0x50] sm:$0xff]
    %v5723 = vld [vmem:[%s5711 + $0x58] sm:$0xff]
    %v5724 = vld [vmem:[%s5711 + $0x60] sm:$0xff]
    %v5725 = vld [vmem:[%s5711 + $0x68] sm:$0xff]
    %v5726 = vld [vmem:[%s5711 + $0x70] sm:$0xff]
    %v5727 = vld [vmem:[%s5711 + $0x78] sm:$0xff]
    %5728 = vmatpush.msra.mxu0 %v5727
    %5729 = vmatpush.msra.mxu0 %v5726
    %5730 = vmatpush.msra.mxu0 %v5725
    %5731 = vmatpush.msra.mxu0 %v5724
    %5732 = vmatpush.msra.mxu0 %v5723
    %5733 = vmatpush.msra.mxu0 %v5722
    %5734 = vmatpush.msra.mxu0 %v5721
    %5735 = vmatpush.msra.mxu0 %v5720
    %5736 = vmatpush.msra.mxu0 %v5719
    %5737 = vmatpush.msra.mxu0 %v5718
    %5738 = vmatpush.msra.mxu0 %v5717
    %5739 = vmatpush.msra.mxu0 %v5716
    %5740 = vmatpush.msra.mxu0 %v5715
    %5741 = vmatpush.msra.mxu0 %v5714
    %5742 = vmatpush.msra.mxu0 %v5713
    %5743 = vmatpush.msra.mxu0 %v5712
    %5744 = vmatmul.f32.gmra.mxu0 %v5695
    %v5745 = vpop.f32.mrf.mxu0
    %v5746 = vadd.f32 0.0, %v5745
    %5747 = vmatmul.f32.gmra.mxu0 %v5696
    %v5748 = vpop.f32.mrf.mxu0
    %v5749 = vadd.f32 0.0, %v5748
    %5750 = vmatmul.f32.gmra.mxu0 %v5697
    %v5751 = vpop.f32.mrf.mxu0
    %v5752 = vadd.f32 0.0, %v5751
    %5753 = vmatmul.f32.gmra.mxu0 %v5698
    %v5754 = vpop.f32.mrf.mxu0
    %v5755 = vadd.f32 0.0, %v5754
    %5756 = vmatmul.f32.gmra.mxu0 %v5699
    %v5757 = vpop.f32.mrf.mxu0
    %v5758 = vadd.f32 0.0, %v5757
    %5759 = vmatmul.f32.gmra.mxu0 %v5700
    %v5760 = vpop.f32.mrf.mxu0
    %v5761 = vadd.f32 0.0, %v5760
    %5762 = vmatmul.f32.gmra.mxu0 %v5701
    %v5763 = vpop.f32.mrf.mxu0
    %v5764 = vadd.f32 0.0, %v5763
    %5765 = vmatmul.f32.gmra.mxu0 %v5702
    %v5766 = vpop.f32.mrf.mxu0
    %5767 = vmatmul.f32.gmra.mxu0 %v5703
    %v5768 = vpop.f32.mrf.mxu0
    %v5769 = vadd.f32 0.0, %v5768
    %5770 = vmatmul.f32.gmra.mxu0 %v5704
    %v5771 = vpop.f32.mrf.mxu0
    %v5772 = vadd.f32 0.0, %v5771
    %5773 = vmatmul.f32.gmra.mxu0 %v5705
    %v5774 = vpop.f32.mrf.mxu0
    %v5775 = vadd.f32 0.0, %v5774
    %5776 = vmatmul.f32.gmra.mxu0 %v5706
    %v5777 = vpop.f32.mrf.mxu0
    %v5778 = vadd.f32 0.0, %v5777
    %5779 = vmatmul.f32.gmra.mxu0 %v5707
    %v5780 = vpop.f32.mrf.mxu0
    %v5781 = vadd.f32 0.0, %v5780
    %5782 = vmatmul.f32.gmra.mxu0 %v5708
    %v5783 = vpop.f32.mrf.mxu0
    %v5784 = vadd.f32 0.0, %v5783
    %5785 = vmatmul.f32.gmra.mxu0 %v5709
    %v5786 = vpop.f32.mrf.mxu0
    %v5787 = vadd.f32 0.0, %v5786
    %5788 = vmatmul.f32.gmra.mxu0 %v5710
    %v5789 = vpop.f32.mrf.mxu0
    %5790 = vdwg.mxu0
    %v5791 = vadd.f32 %v5681, %v5746
    %v5792 = vadd.f32 %v5682, %v5749
    %v5793 = vadd.f32 %v5683, %v5752
    %v5794 = vadd.f32 %v5684, %v5755
    %v5795 = vadd.f32 %v5685, %v5758
    %v5796 = vadd.f32 %v5686, %v5761
    %v5797 = vadd.f32 %v5687, %v5764
    %v5798 = vadd.f32 %v5688, %v5769
    %v5799 = vadd.f32 %v5689, %v5772
    %v5800 = vadd.f32 %v5690, %v5775
    %v5801 = vadd.f32 %v5691, %v5778
    %v5802 = vadd.f32 %v5692, %v5781
    %v5803 = vadd.f32 %v5693, %v5784
    %v5804 = vadd.f32 %v5694, %v5787
    %s5805 = scalar_lea.vmem [#allocation4], 64
    %v5806 = vld [vmem:[%s5805] sm:$0xff]
    %v5807 = vld [vmem:[%s5805 + $0x10] sm:$0xff]
    %v5808 = vld [vmem:[%s5805 + $0x20] sm:$0xff]
    %v5809 = vld [vmem:[%s5805 + $0x30] sm:$0xff]
    %v5810 = vld [vmem:[%s5805 + $0x40] sm:$0xff]
    %v5811 = vld [vmem:[%s5805 + $0x50] sm:$0xff]
    %v5812 = vld [vmem:[%s5805 + $0x60] sm:$0xff]
    %v5813 = vld [vmem:[%s5805 + $0x70] sm:$0xff]
    %v5814 = vld [vmem:[%s5805 + $0xc0] sm:$0xff]
    %v5815 = vld [vmem:[%s5805 + $0xd0] sm:$0xff]
    %v5816 = vld [vmem:[%s5805 + $0xe0] sm:$0xff]
    %v5817 = vld [vmem:[%s5805 + $0xf0] sm:$0xff]
    %v5818 = vld [vmem:[%s5805 + $0x100] sm:$0xff]
    %v5819 = vld [vmem:[%s5805 + $0x110] sm:$0xff]
    %v5820 = vld [vmem:[%s5805 + $0x120] sm:$0xff]
    %v5821 = vld [vmem:[%s5805 + $0x130] sm:$0xff]
    %s5822 = scalar_lea.vmem %s2, 2560
    %v5823 = vld [vmem:[%s5822] sm:$0xff]
    %v5824 = vld [vmem:[%s5822 + $0x8] sm:$0xff]
    %v5825 = vld [vmem:[%s5822 + $0x10] sm:$0xff]
    %v5826 = vld [vmem:[%s5822 + $0x18] sm:$0xff]
    %v5827 = vld [vmem:[%s5822 + $0x20] sm:$0xff]
    %v5828 = vld [vmem:[%s5822 + $0x28] sm:$0xff]
    %v5829 = vld [vmem:[%s5822 + $0x30] sm:$0xff]
    %v5830 = vld [vmem:[%s5822 + $0x38] sm:$0xff]
    %v5831 = vld [vmem:[%s5822 + $0x40] sm:$0xff]
    %v5832 = vld [vmem:[%s5822 + $0x48] sm:$0xff]
    %v5833 = vld [vmem:[%s5822 + $0x50] sm:$0xff]
    %v5834 = vld [vmem:[%s5822 + $0x58] sm:$0xff]
    %v5835 = vld [vmem:[%s5822 + $0x60] sm:$0xff]
    %v5836 = vld [vmem:[%s5822 + $0x68] sm:$0xff]
    %v5837 = vld [vmem:[%s5822 + $0x70] sm:$0xff]
    %v5838 = vld [vmem:[%s5822 + $0x78] sm:$0xff]
    %5839 = vmatpush.msra.mxu0 %v5838
    %5840 = vmatpush.msra.mxu0 %v5837
    %5841 = vmatpush.msra.mxu0 %v5836
    %5842 = vmatpush.msra.mxu0 %v5835
    %5843 = vmatpush.msra.mxu0 %v5834
    %5844 = vmatpush.msra.mxu0 %v5833
    %5845 = vmatpush.msra.mxu0 %v5832
    %5846 = vmatpush.msra.mxu0 %v5831
    %5847 = vmatpush.msra.mxu0 %v5830
    %5848 = vmatpush.msra.mxu0 %v5829
    %5849 = vmatpush.msra.mxu0 %v5828
    %5850 = vmatpush.msra.mxu0 %v5827
    %5851 = vmatpush.msra.mxu0 %v5826
    %5852 = vmatpush.msra.mxu0 %v5825
    %5853 = vmatpush.msra.mxu0 %v5824
    %5854 = vmatpush.msra.mxu0 %v5823
    %5855 = vmatmul.f32.gmra.mxu0 %v5806
    %v5856 = vpop.f32.mrf.mxu0
    %v5857 = vadd.f32 0.0, %v5856
    %5858 = vmatmul.f32.gmra.mxu0 %v5807
    %v5859 = vpop.f32.mrf.mxu0
    %v5860 = vadd.f32 0.0, %v5859
    %5861 = vmatmul.f32.gmra.mxu0 %v5808
    %v5862 = vpop.f32.mrf.mxu0
    %v5863 = vadd.f32 0.0, %v5862
    %5864 = vmatmul.f32.gmra.mxu0 %v5809
    %v5865 = vpop.f32.mrf.mxu0
    %v5866 = vadd.f32 0.0, %v5865
    %5867 = vmatmul.f32.gmra.mxu0 %v5810
    %v5868 = vpop.f32.mrf.mxu0
    %v5869 = vadd.f32 0.0, %v5868
    %5870 = vmatmul.f32.gmra.mxu0 %v5811
    %v5871 = vpop.f32.mrf.mxu0
    %v5872 = vadd.f32 0.0, %v5871
    %5873 = vmatmul.f32.gmra.mxu0 %v5812
    %v5874 = vpop.f32.mrf.mxu0
    %v5875 = vadd.f32 0.0, %v5874
    %5876 = vmatmul.f32.gmra.mxu0 %v5813
    %v5877 = vpop.f32.mrf.mxu0
    %5878 = vmatmul.f32.gmra.mxu0 %v5814
    %v5879 = vpop.f32.mrf.mxu0
    %v5880 = vadd.f32 0.0, %v5879
    %5881 = vmatmul.f32.gmra.mxu0 %v5815
    %v5882 = vpop.f32.mrf.mxu0
    %v5883 = vadd.f32 0.0, %v5882
    %5884 = vmatmul.f32.gmra.mxu0 %v5816
    %v5885 = vpop.f32.mrf.mxu0
    %v5886 = vadd.f32 0.0, %v5885
    %5887 = vmatmul.f32.gmra.mxu0 %v5817
    %v5888 = vpop.f32.mrf.mxu0
    %v5889 = vadd.f32 0.0, %v5888
    %5890 = vmatmul.f32.gmra.mxu0 %v5818
    %v5891 = vpop.f32.mrf.mxu0
    %v5892 = vadd.f32 0.0, %v5891
    %5893 = vmatmul.f32.gmra.mxu0 %v5819
    %v5894 = vpop.f32.mrf.mxu0
    %v5895 = vadd.f32 0.0, %v5894
    %5896 = vmatmul.f32.gmra.mxu0 %v5820
    %v5897 = vpop.f32.mrf.mxu0
    %v5898 = vadd.f32 0.0, %v5897
    %5899 = vmatmul.f32.gmra.mxu0 %v5821
    %v5900 = vpop.f32.mrf.mxu0
    %5901 = vdwg.mxu0
    %v5902 = vadd.f32 %v5791, %v5857
    %v5903 = vadd.f32 %v5792, %v5860
    %v5904 = vadd.f32 %v5793, %v5863
    %v5905 = vadd.f32 %v5794, %v5866
    %v5906 = vadd.f32 %v5795, %v5869
    %v5907 = vadd.f32 %v5796, %v5872
    %v5908 = vadd.f32 %v5797, %v5875
    %v5909 = vadd.f32 %v5798, %v5880
    %v5910 = vadd.f32 %v5799, %v5883
    %v5911 = vadd.f32 %v5800, %v5886
    %v5912 = vadd.f32 %v5801, %v5889
    %v5913 = vadd.f32 %v5802, %v5892
    %v5914 = vadd.f32 %v5803, %v5895
    %v5915 = vadd.f32 %v5804, %v5898
    %v5916 = vld [vmem:[%s5805 + $0x1] sm:$0xff]
    %v5917 = vld [vmem:[%s5805 + $0x11] sm:$0xff]
    %v5918 = vld [vmem:[%s5805 + $0x21] sm:$0xff]
    %v5919 = vld [vmem:[%s5805 + $0x31] sm:$0xff]
    %v5920 = vld [vmem:[%s5805 + $0x41] sm:$0xff]
    %v5921 = vld [vmem:[%s5805 + $0x51] sm:$0xff]
    %v5922 = vld [vmem:[%s5805 + $0x61] sm:$0xff]
    %v5923 = vld [vmem:[%s5805 + $0x71] sm:$0xff]
    %v5924 = vld [vmem:[%s5805 + $0xc1] sm:$0xff]
    %v5925 = vld [vmem:[%s5805 + $0xd1] sm:$0xff]
    %v5926 = vld [vmem:[%s5805 + $0xe1] sm:$0xff]
    %v5927 = vld [vmem:[%s5805 + $0xf1] sm:$0xff]
    %v5928 = vld [vmem:[%s5805 + $0x101] sm:$0xff]
    %v5929 = vld [vmem:[%s5805 + $0x111] sm:$0xff]
    %v5930 = vld [vmem:[%s5805 + $0x121] sm:$0xff]
    %v5931 = vld [vmem:[%s5805 + $0x131] sm:$0xff]
    %s5932 = scalar_lea.vmem %s2, 2688
    %v5933 = vld [vmem:[%s5932] sm:$0xff]
    %v5934 = vld [vmem:[%s5932 + $0x8] sm:$0xff]
    %v5935 = vld [vmem:[%s5932 + $0x10] sm:$0xff]
    %v5936 = vld [vmem:[%s5932 + $0x18] sm:$0xff]
    %v5937 = vld [vmem:[%s5932 + $0x20] sm:$0xff]
    %v5938 = vld [vmem:[%s5932 + $0x28] sm:$0xff]
    %v5939 = vld [vmem:[%s5932 + $0x30] sm:$0xff]
    %v5940 = vld [vmem:[%s5932 + $0x38] sm:$0xff]
    %v5941 = vld [vmem:[%s5932 + $0x40] sm:$0xff]
    %v5942 = vld [vmem:[%s5932 + $0x48] sm:$0xff]
    %v5943 = vld [vmem:[%s5932 + $0x50] sm:$0xff]
    %v5944 = vld [vmem:[%s5932 + $0x58] sm:$0xff]
    %v5945 = vld [vmem:[%s5932 + $0x60] sm:$0xff]
    %v5946 = vld [vmem:[%s5932 + $0x68] sm:$0xff]
    %v5947 = vld [vmem:[%s5932 + $0x70] sm:$0xff]
    %v5948 = vld [vmem:[%s5932 + $0x78] sm:$0xff]
    %5949 = vmatpush.msra.mxu0 %v5948
    %5950 = vmatpush.msra.mxu0 %v5947
    %5951 = vmatpush.msra.mxu0 %v5946
    %5952 = vmatpush.msra.mxu0 %v5945
    %5953 = vmatpush.msra.mxu0 %v5944
    %5954 = vmatpush.msra.mxu0 %v5943
    %5955 = vmatpush.msra.mxu0 %v5942
    %5956 = vmatpush.msra.mxu0 %v5941
    %5957 = vmatpush.msra.mxu0 %v5940
    %5958 = vmatpush.msra.mxu0 %v5939
    %5959 = vmatpush.msra.mxu0 %v5938
    %5960 = vmatpush.msra.mxu0 %v5937
    %5961 = vmatpush.msra.mxu0 %v5936
    %5962 = vmatpush.msra.mxu0 %v5935
    %5963 = vmatpush.msra.mxu0 %v5934
    %5964 = vmatpush.msra.mxu0 %v5933
    %5965 = vmatmul.f32.gmra.mxu0 %v5916
    %v5966 = vpop.f32.mrf.mxu0
    %v5967 = vadd.f32 0.0, %v5966
    %5968 = vmatmul.f32.gmra.mxu0 %v5917
    %v5969 = vpop.f32.mrf.mxu0
    %v5970 = vadd.f32 0.0, %v5969
    %5971 = vmatmul.f32.gmra.mxu0 %v5918
    %v5972 = vpop.f32.mrf.mxu0
    %v5973 = vadd.f32 0.0, %v5972
    %5974 = vmatmul.f32.gmra.mxu0 %v5919
    %v5975 = vpop.f32.mrf.mxu0
    %v5976 = vadd.f32 0.0, %v5975
    %5977 = vmatmul.f32.gmra.mxu0 %v5920
    %v5978 = vpop.f32.mrf.mxu0
    %v5979 = vadd.f32 0.0, %v5978
    %5980 = vmatmul.f32.gmra.mxu0 %v5921
    %v5981 = vpop.f32.mrf.mxu0
    %v5982 = vadd.f32 0.0, %v5981
    %5983 = vmatmul.f32.gmra.mxu0 %v5922
    %v5984 = vpop.f32.mrf.mxu0
    %v5985 = vadd.f32 0.0, %v5984
    %5986 = vmatmul.f32.gmra.mxu0 %v5923
    %v5987 = vpop.f32.mrf.mxu0
    %5988 = vmatmul.f32.gmra.mxu0 %v5924
    %v5989 = vpop.f32.mrf.mxu0
    %v5990 = vadd.f32 0.0, %v5989
    %5991 = vmatmul.f32.gmra.mxu0 %v5925
    %v5992 = vpop.f32.mrf.mxu0
    %v5993 = vadd.f32 0.0, %v5992
    %5994 = vmatmul.f32.gmra.mxu0 %v5926
    %v5995 = vpop.f32.mrf.mxu0
    %v5996 = vadd.f32 0.0, %v5995
    %5997 = vmatmul.f32.gmra.mxu0 %v5927
    %v5998 = vpop.f32.mrf.mxu0
    %v5999 = vadd.f32 0.0, %v5998
    %6000 = vmatmul.f32.gmra.mxu0 %v5928
    %v6001 = vpop.f32.mrf.mxu0
    %v6002 = vadd.f32 0.0, %v6001
    %6003 = vmatmul.f32.gmra.mxu0 %v5929
    %v6004 = vpop.f32.mrf.mxu0
    %v6005 = vadd.f32 0.0, %v6004
    %6006 = vmatmul.f32.gmra.mxu0 %v5930
    %v6007 = vpop.f32.mrf.mxu0
    %v6008 = vadd.f32 0.0, %v6007
    %6009 = vmatmul.f32.gmra.mxu0 %v5931
    %v6010 = vpop.f32.mrf.mxu0
    %6011 = vdwg.mxu0
    %v6012 = vadd.f32 %v5902, %v5967
    %v6013 = vadd.f32 %v5903, %v5970
    %v6014 = vadd.f32 %v5904, %v5973
    %v6015 = vadd.f32 %v5905, %v5976
    %v6016 = vadd.f32 %v5906, %v5979
    %v6017 = vadd.f32 %v5907, %v5982
    %v6018 = vadd.f32 %v5908, %v5985
    %v6019 = vadd.f32 %v5909, %v5990
    %v6020 = vadd.f32 %v5910, %v5993
    %v6021 = vadd.f32 %v5911, %v5996
    %v6022 = vadd.f32 %v5912, %v5999
    %v6023 = vadd.f32 %v5913, %v6002
    %v6024 = vadd.f32 %v5914, %v6005
    %v6025 = vadd.f32 %v5915, %v6008
    %v6026 = vld [vmem:[%s5805 + $0x2] sm:$0xff]
    %v6027 = vld [vmem:[%s5805 + $0x12] sm:$0xff]
    %v6028 = vld [vmem:[%s5805 + $0x22] sm:$0xff]
    %v6029 = vld [vmem:[%s5805 + $0x32] sm:$0xff]
    %v6030 = vld [vmem:[%s5805 + $0x42] sm:$0xff]
    %v6031 = vld [vmem:[%s5805 + $0x52] sm:$0xff]
    %v6032 = vld [vmem:[%s5805 + $0x62] sm:$0xff]
    %v6033 = vld [vmem:[%s5805 + $0x72] sm:$0xff]
    %v6034 = vld [vmem:[%s5805 + $0xc2] sm:$0xff]
    %v6035 = vld [vmem:[%s5805 + $0xd2] sm:$0xff]
    %v6036 = vld [vmem:[%s5805 + $0xe2] sm:$0xff]
    %v6037 = vld [vmem:[%s5805 + $0xf2] sm:$0xff]
    %v6038 = vld [vmem:[%s5805 + $0x102] sm:$0xff]
    %v6039 = vld [vmem:[%s5805 + $0x112] sm:$0xff]
    %v6040 = vld [vmem:[%s5805 + $0x122] sm:$0xff]
    %v6041 = vld [vmem:[%s5805 + $0x132] sm:$0xff]
    %s6042 = scalar_lea.vmem %s2, 2816
    %v6043 = vld [vmem:[%s6042] sm:$0xff]
    %v6044 = vld [vmem:[%s6042 + $0x8] sm:$0xff]
    %v6045 = vld [vmem:[%s6042 + $0x10] sm:$0xff]
    %v6046 = vld [vmem:[%s6042 + $0x18] sm:$0xff]
    %v6047 = vld [vmem:[%s6042 + $0x20] sm:$0xff]
    %v6048 = vld [vmem:[%s6042 + $0x28] sm:$0xff]
    %v6049 = vld [vmem:[%s6042 + $0x30] sm:$0xff]
    %v6050 = vld [vmem:[%s6042 + $0x38] sm:$0xff]
    %v6051 = vld [vmem:[%s6042 + $0x40] sm:$0xff]
    %v6052 = vld [vmem:[%s6042 + $0x48] sm:$0xff]
    %v6053 = vld [vmem:[%s6042 + $0x50] sm:$0xff]
    %v6054 = vld [vmem:[%s6042 + $0x58] sm:$0xff]
    %v6055 = vld [vmem:[%s6042 + $0x60] sm:$0xff]
    %v6056 = vld [vmem:[%s6042 + $0x68] sm:$0xff]
    %v6057 = vld [vmem:[%s6042 + $0x70] sm:$0xff]
    %v6058 = vld [vmem:[%s6042 + $0x78] sm:$0xff]
    %6059 = vmatpush.msra.mxu0 %v6058
    %6060 = vmatpush.msra.mxu0 %v6057
    %6061 = vmatpush.msra.mxu0 %v6056
    %6062 = vmatpush.msra.mxu0 %v6055
    %6063 = vmatpush.msra.mxu0 %v6054
    %6064 = vmatpush.msra.mxu0 %v6053
    %6065 = vmatpush.msra.mxu0 %v6052
    %6066 = vmatpush.msra.mxu0 %v6051
    %6067 = vmatpush.msra.mxu0 %v6050
    %6068 = vmatpush.msra.mxu0 %v6049
    %6069 = vmatpush.msra.mxu0 %v6048
    %6070 = vmatpush.msra.mxu0 %v6047
    %6071 = vmatpush.msra.mxu0 %v6046
    %6072 = vmatpush.msra.mxu0 %v6045
    %6073 = vmatpush.msra.mxu0 %v6044
    %6074 = vmatpush.msra.mxu0 %v6043
    %6075 = vmatmul.f32.gmra.mxu0 %v6026
    %v6076 = vpop.f32.mrf.mxu0
    %v6077 = vadd.f32 0.0, %v6076
    %6078 = vmatmul.f32.gmra.mxu0 %v6027
    %v6079 = vpop.f32.mrf.mxu0
    %v6080 = vadd.f32 0.0, %v6079
    %6081 = vmatmul.f32.gmra.mxu0 %v6028
    %v6082 = vpop.f32.mrf.mxu0
    %v6083 = vadd.f32 0.0, %v6082
    %6084 = vmatmul.f32.gmra.mxu0 %v6029
    %v6085 = vpop.f32.mrf.mxu0
    %v6086 = vadd.f32 0.0, %v6085
    %6087 = vmatmul.f32.gmra.mxu0 %v6030
    %v6088 = vpop.f32.mrf.mxu0
    %v6089 = vadd.f32 0.0, %v6088
    %6090 = vmatmul.f32.gmra.mxu0 %v6031
    %v6091 = vpop.f32.mrf.mxu0
    %v6092 = vadd.f32 0.0, %v6091
    %6093 = vmatmul.f32.gmra.mxu0 %v6032
    %v6094 = vpop.f32.mrf.mxu0
    %v6095 = vadd.f32 0.0, %v6094
    %6096 = vmatmul.f32.gmra.mxu0 %v6033
    %v6097 = vpop.f32.mrf.mxu0
    %6098 = vmatmul.f32.gmra.mxu0 %v6034
    %v6099 = vpop.f32.mrf.mxu0
    %v6100 = vadd.f32 0.0, %v6099
    %6101 = vmatmul.f32.gmra.mxu0 %v6035
    %v6102 = vpop.f32.mrf.mxu0
    %v6103 = vadd.f32 0.0, %v6102
    %6104 = vmatmul.f32.gmra.mxu0 %v6036
    %v6105 = vpop.f32.mrf.mxu0
    %v6106 = vadd.f32 0.0, %v6105
    %6107 = vmatmul.f32.gmra.mxu0 %v6037
    %v6108 = vpop.f32.mrf.mxu0
    %v6109 = vadd.f32 0.0, %v6108
    %6110 = vmatmul.f32.gmra.mxu0 %v6038
    %v6111 = vpop.f32.mrf.mxu0
    %v6112 = vadd.f32 0.0, %v6111
    %6113 = vmatmul.f32.gmra.mxu0 %v6039
    %v6114 = vpop.f32.mrf.mxu0
    %v6115 = vadd.f32 0.0, %v6114
    %6116 = vmatmul.f32.gmra.mxu0 %v6040
    %v6117 = vpop.f32.mrf.mxu0
    %v6118 = vadd.f32 0.0, %v6117
    %6119 = vmatmul.f32.gmra.mxu0 %v6041
    %v6120 = vpop.f32.mrf.mxu0
    %6121 = vdwg.mxu0
    %v6122 = vadd.f32 %v6012, %v6077
    %v6123 = vadd.f32 %v6013, %v6080
    %v6124 = vadd.f32 %v6014, %v6083
    %v6125 = vadd.f32 %v6015, %v6086
    %v6126 = vadd.f32 %v6016, %v6089
    %v6127 = vadd.f32 %v6017, %v6092
    %v6128 = vadd.f32 %v6018, %v6095
    %v6129 = vadd.f32 %v6019, %v6100
    %v6130 = vadd.f32 %v6020, %v6103
    %v6131 = vadd.f32 %v6021, %v6106
    %v6132 = vadd.f32 %v6022, %v6109
    %v6133 = vadd.f32 %v6023, %v6112
    %v6134 = vadd.f32 %v6024, %v6115
    %v6135 = vadd.f32 %v6025, %v6118
    %v6136 = vld [vmem:[%s5805 + $0x3] sm:$0xff]
    %v6137 = vld [vmem:[%s5805 + $0x13] sm:$0xff]
    %v6138 = vld [vmem:[%s5805 + $0x23] sm:$0xff]
    %v6139 = vld [vmem:[%s5805 + $0x33] sm:$0xff]
    %v6140 = vld [vmem:[%s5805 + $0x43] sm:$0xff]
    %v6141 = vld [vmem:[%s5805 + $0x53] sm:$0xff]
    %v6142 = vld [vmem:[%s5805 + $0x63] sm:$0xff]
    %v6143 = vld [vmem:[%s5805 + $0x73] sm:$0xff]
    %v6144 = vld [vmem:[%s5805 + $0xc3] sm:$0xff]
    %v6145 = vld [vmem:[%s5805 + $0xd3] sm:$0xff]
    %v6146 = vld [vmem:[%s5805 + $0xe3] sm:$0xff]
    %v6147 = vld [vmem:[%s5805 + $0xf3] sm:$0xff]
    %v6148 = vld [vmem:[%s5805 + $0x103] sm:$0xff]
    %v6149 = vld [vmem:[%s5805 + $0x113] sm:$0xff]
    %v6150 = vld [vmem:[%s5805 + $0x123] sm:$0xff]
    %v6151 = vld [vmem:[%s5805 + $0x133] sm:$0xff]
    %s6152 = scalar_lea.vmem %s2, 2944
    %v6153 = vld [vmem:[%s6152] sm:$0xff]
    %v6154 = vld [vmem:[%s6152 + $0x8] sm:$0xff]
    %v6155 = vld [vmem:[%s6152 + $0x10] sm:$0xff]
    %v6156 = vld [vmem:[%s6152 + $0x18] sm:$0xff]
    %v6157 = vld [vmem:[%s6152 + $0x20] sm:$0xff]
    %v6158 = vld [vmem:[%s6152 + $0x28] sm:$0xff]
    %v6159 = vld [vmem:[%s6152 + $0x30] sm:$0xff]
    %v6160 = vld [vmem:[%s6152 + $0x38] sm:$0xff]
    %v6161 = vld [vmem:[%s6152 + $0x40] sm:$0xff]
    %v6162 = vld [vmem:[%s6152 + $0x48] sm:$0xff]
    %v6163 = vld [vmem:[%s6152 + $0x50] sm:$0xff]
    %v6164 = vld [vmem:[%s6152 + $0x58] sm:$0xff]
    %v6165 = vld [vmem:[%s6152 + $0x60] sm:$0xff]
    %v6166 = vld [vmem:[%s6152 + $0x68] sm:$0xff]
    %v6167 = vld [vmem:[%s6152 + $0x70] sm:$0xff]
    %v6168 = vld [vmem:[%s6152 + $0x78] sm:$0xff]
    %6169 = vmatpush.msra.mxu0 %v6168
    %6170 = vmatpush.msra.mxu0 %v6167
    %6171 = vmatpush.msra.mxu0 %v6166
    %6172 = vmatpush.msra.mxu0 %v6165
    %6173 = vmatpush.msra.mxu0 %v6164
    %6174 = vmatpush.msra.mxu0 %v6163
    %6175 = vmatpush.msra.mxu0 %v6162
    %6176 = vmatpush.msra.mxu0 %v6161
    %6177 = vmatpush.msra.mxu0 %v6160
    %6178 = vmatpush.msra.mxu0 %v6159
    %6179 = vmatpush.msra.mxu0 %v6158
    %6180 = vmatpush.msra.mxu0 %v6157
    %6181 = vmatpush.msra.mxu0 %v6156
    %6182 = vmatpush.msra.mxu0 %v6155
    %6183 = vmatpush.msra.mxu0 %v6154
    %6184 = vmatpush.msra.mxu0 %v6153
    %6185 = vmatmul.f32.gmra.mxu0 %v6136
    %v6186 = vpop.f32.mrf.mxu0
    %v6187 = vadd.f32 0.0, %v6186
    %6188 = vmatmul.f32.gmra.mxu0 %v6137
    %v6189 = vpop.f32.mrf.mxu0
    %v6190 = vadd.f32 0.0, %v6189
    %6191 = vmatmul.f32.gmra.mxu0 %v6138
    %v6192 = vpop.f32.mrf.mxu0
    %v6193 = vadd.f32 0.0, %v6192
    %6194 = vmatmul.f32.gmra.mxu0 %v6139
    %v6195 = vpop.f32.mrf.mxu0
    %v6196 = vadd.f32 0.0, %v6195
    %6197 = vmatmul.f32.gmra.mxu0 %v6140
    %v6198 = vpop.f32.mrf.mxu0
    %v6199 = vadd.f32 0.0, %v6198
    %6200 = vmatmul.f32.gmra.mxu0 %v6141
    %v6201 = vpop.f32.mrf.mxu0
    %v6202 = vadd.f32 0.0, %v6201
    %6203 = vmatmul.f32.gmra.mxu0 %v6142
    %v6204 = vpop.f32.mrf.mxu0
    %v6205 = vadd.f32 0.0, %v6204
    %6206 = vmatmul.f32.gmra.mxu0 %v6143
    %v6207 = vpop.f32.mrf.mxu0
    %6208 = vmatmul.f32.gmra.mxu0 %v6144
    %v6209 = vpop.f32.mrf.mxu0
    %v6210 = vadd.f32 0.0, %v6209
    %6211 = vmatmul.f32.gmra.mxu0 %v6145
    %v6212 = vpop.f32.mrf.mxu0
    %v6213 = vadd.f32 0.0, %v6212
    %6214 = vmatmul.f32.gmra.mxu0 %v6146
    %v6215 = vpop.f32.mrf.mxu0
    %v6216 = vadd.f32 0.0, %v6215
    %6217 = vmatmul.f32.gmra.mxu0 %v6147
    %v6218 = vpop.f32.mrf.mxu0
    %v6219 = vadd.f32 0.0, %v6218
    %6220 = vmatmul.f32.gmra.mxu0 %v6148
    %v6221 = vpop.f32.mrf.mxu0
    %v6222 = vadd.f32 0.0, %v6221
    %6223 = vmatmul.f32.gmra.mxu0 %v6149
    %v6224 = vpop.f32.mrf.mxu0
    %v6225 = vadd.f32 0.0, %v6224
    %6226 = vmatmul.f32.gmra.mxu0 %v6150
    %v6227 = vpop.f32.mrf.mxu0
    %v6228 = vadd.f32 0.0, %v6227
    %6229 = vmatmul.f32.gmra.mxu0 %v6151
    %v6230 = vpop.f32.mrf.mxu0
    %6231 = vdwg.mxu0
    %v6232 = vadd.f32 %v6122, %v6187
    %v6233 = vadd.f32 %v6123, %v6190
    %v6234 = vadd.f32 %v6124, %v6193
    %v6235 = vadd.f32 %v6125, %v6196
    %v6236 = vadd.f32 %v6126, %v6199
    %v6237 = vadd.f32 %v6127, %v6202
    %v6238 = vadd.f32 %v6128, %v6205
    %v6239 = vadd.f32 %v6129, %v6210
    %v6240 = vadd.f32 %v6130, %v6213
    %v6241 = vadd.f32 %v6131, %v6216
    %v6242 = vadd.f32 %v6132, %v6219
    %v6243 = vadd.f32 %v6133, %v6222
    %v6244 = vadd.f32 %v6134, %v6225
    %v6245 = vadd.f32 %v6135, %v6228
    %v6246 = vld [vmem:[%s5805 + $0x4] sm:$0xff]
    %v6247 = vld [vmem:[%s5805 + $0x14] sm:$0xff]
    %v6248 = vld [vmem:[%s5805 + $0x24] sm:$0xff]
    %v6249 = vld [vmem:[%s5805 + $0x34] sm:$0xff]
    %v6250 = vld [vmem:[%s5805 + $0x44] sm:$0xff]
    %v6251 = vld [vmem:[%s5805 + $0x54] sm:$0xff]
    %v6252 = vld [vmem:[%s5805 + $0x64] sm:$0xff]
    %v6253 = vld [vmem:[%s5805 + $0x74] sm:$0xff]
    %v6254 = vld [vmem:[%s5805 + $0xc4] sm:$0xff]
    %v6255 = vld [vmem:[%s5805 + $0xd4] sm:$0xff]
    %v6256 = vld [vmem:[%s5805 + $0xe4] sm:$0xff]
    %v6257 = vld [vmem:[%s5805 + $0xf4] sm:$0xff]
    %v6258 = vld [vmem:[%s5805 + $0x104] sm:$0xff]
    %v6259 = vld [vmem:[%s5805 + $0x114] sm:$0xff]
    %v6260 = vld [vmem:[%s5805 + $0x124] sm:$0xff]
    %v6261 = vld [vmem:[%s5805 + $0x134] sm:$0xff]
    %s6262 = scalar_lea.vmem %s2, 3072
    %v6263 = vld [vmem:[%s6262] sm:$0xff]
    %v6264 = vld [vmem:[%s6262 + $0x8] sm:$0xff]
    %v6265 = vld [vmem:[%s6262 + $0x10] sm:$0xff]
    %v6266 = vld [vmem:[%s6262 + $0x18] sm:$0xff]
    %v6267 = vld [vmem:[%s6262 + $0x20] sm:$0xff]
    %v6268 = vld [vmem:[%s6262 + $0x28] sm:$0xff]
    %v6269 = vld [vmem:[%s6262 + $0x30] sm:$0xff]
    %v6270 = vld [vmem:[%s6262 + $0x38] sm:$0xff]
    %v6271 = vld [vmem:[%s6262 + $0x40] sm:$0xff]
    %v6272 = vld [vmem:[%s6262 + $0x48] sm:$0xff]
    %v6273 = vld [vmem:[%s6262 + $0x50] sm:$0xff]
    %v6274 = vld [vmem:[%s6262 + $0x58] sm:$0xff]
    %v6275 = vld [vmem:[%s6262 + $0x60] sm:$0xff]
    %v6276 = vld [vmem:[%s6262 + $0x68] sm:$0xff]
    %v6277 = vld [vmem:[%s6262 + $0x70] sm:$0xff]
    %v6278 = vld [vmem:[%s6262 + $0x78] sm:$0xff]
    %6279 = vmatpush.msra.mxu0 %v6278
    %6280 = vmatpush.msra.mxu0 %v6277
    %6281 = vmatpush.msra.mxu0 %v6276
    %6282 = vmatpush.msra.mxu0 %v6275
    %6283 = vmatpush.msra.mxu0 %v6274
    %6284 = vmatpush.msra.mxu0 %v6273
    %6285 = vmatpush.msra.mxu0 %v6272
    %6286 = vmatpush.msra.mxu0 %v6271
    %6287 = vmatpush.msra.mxu0 %v6270
    %6288 = vmatpush.msra.mxu0 %v6269
    %6289 = vmatpush.msra.mxu0 %v6268
    %6290 = vmatpush.msra.mxu0 %v6267
    %6291 = vmatpush.msra.mxu0 %v6266
    %6292 = vmatpush.msra.mxu0 %v6265
    %6293 = vmatpush.msra.mxu0 %v6264
    %6294 = vmatpush.msra.mxu0 %v6263
    %6295 = vmatmul.f32.gmra.mxu0 %v6246
    %v6296 = vpop.f32.mrf.mxu0
    %v6297 = vadd.f32 0.0, %v6296
    %6298 = vmatmul.f32.gmra.mxu0 %v6247
    %v6299 = vpop.f32.mrf.mxu0
    %v6300 = vadd.f32 0.0, %v6299
    %6301 = vmatmul.f32.gmra.mxu0 %v6248
    %v6302 = vpop.f32.mrf.mxu0
    %v6303 = vadd.f32 0.0, %v6302
    %6304 = vmatmul.f32.gmra.mxu0 %v6249
    %v6305 = vpop.f32.mrf.mxu0
    %v6306 = vadd.f32 0.0, %v6305
    %6307 = vmatmul.f32.gmra.mxu0 %v6250
    %v6308 = vpop.f32.mrf.mxu0
    %v6309 = vadd.f32 0.0, %v6308
    %6310 = vmatmul.f32.gmra.mxu0 %v6251
    %v6311 = vpop.f32.mrf.mxu0
    %v6312 = vadd.f32 0.0, %v6311
    %6313 = vmatmul.f32.gmra.mxu0 %v6252
    %v6314 = vpop.f32.mrf.mxu0
    %v6315 = vadd.f32 0.0, %v6314
    %6316 = vmatmul.f32.gmra.mxu0 %v6253
    %v6317 = vpop.f32.mrf.mxu0
    %6318 = vmatmul.f32.gmra.mxu0 %v6254
    %v6319 = vpop.f32.mrf.mxu0
    %v6320 = vadd.f32 0.0, %v6319
    %6321 = vmatmul.f32.gmra.mxu0 %v6255
    %v6322 = vpop.f32.mrf.mxu0
    %v6323 = vadd.f32 0.0, %v6322
    %6324 = vmatmul.f32.gmra.mxu0 %v6256
    %v6325 = vpop.f32.mrf.mxu0
    %v6326 = vadd.f32 0.0, %v6325
    %6327 = vmatmul.f32.gmra.mxu0 %v6257
    %v6328 = vpop.f32.mrf.mxu0
    %v6329 = vadd.f32 0.0, %v6328
    %6330 = vmatmul.f32.gmra.mxu0 %v6258
    %v6331 = vpop.f32.mrf.mxu0
    %v6332 = vadd.f32 0.0, %v6331
    %6333 = vmatmul.f32.gmra.mxu0 %v6259
    %v6334 = vpop.f32.mrf.mxu0
    %v6335 = vadd.f32 0.0, %v6334
    %6336 = vmatmul.f32.gmra.mxu0 %v6260
    %v6337 = vpop.f32.mrf.mxu0
    %v6338 = vadd.f32 0.0, %v6337
    %6339 = vmatmul.f32.gmra.mxu0 %v6261
    %v6340 = vpop.f32.mrf.mxu0
    %6341 = vdwg.mxu0
    %v6342 = vadd.f32 %v6232, %v6297
    %v6343 = vadd.f32 %v6233, %v6300
    %v6344 = vadd.f32 %v6234, %v6303
    %v6345 = vadd.f32 %v6235, %v6306
    %v6346 = vadd.f32 %v6236, %v6309
    %v6347 = vadd.f32 %v6237, %v6312
    %v6348 = vadd.f32 %v6238, %v6315
    %v6349 = vadd.f32 %v6239, %v6320
    %v6350 = vadd.f32 %v6240, %v6323
    %v6351 = vadd.f32 %v6241, %v6326
    %v6352 = vadd.f32 %v6242, %v6329
    %v6353 = vadd.f32 %v6243, %v6332
    %v6354 = vadd.f32 %v6244, %v6335
    %v6355 = vadd.f32 %v6245, %v6338
    %v6356 = vperm.slane %v3631, 0
    %v6357 = vadd.f32 %v6342, %v6356
    %v6358 = vadd.f32 %v6343, %v6356
    %v6359 = vadd.f32 %v6344, %v6356
    %v6360 = vadd.f32 %v6345, %v6356
    %v6361 = vadd.f32 %v6346, %v6356
    %v6362 = vadd.f32 %v6347, %v6356
    %v6363 = vadd.f32 %v6348, %v6356
    %v6364 = vadd.f32 %v6349, %v6356
    %v6365 = vadd.f32 %v6350, %v6356
    %v6366 = vadd.f32 %v6351, %v6356
    %v6367 = vadd.f32 %v6352, %v6356
    %v6368 = vadd.f32 %v6353, %v6356
    %v6369 = vadd.f32 %v6354, %v6356
    %v6370 = vadd.f32 %v6355, %v6356
    %v6371 = vmax.f32 %v6357, 0.0
    %v6372 = vmax.f32 %v6358, 0.0
    %v6373 = vmax.f32 %v6359, 0.0
    %v6374 = vmax.f32 %v6360, 0.0
    %v6375 = vmax.f32 %v6361, 0.0
    %v6376 = vmax.f32 %v6362, 0.0
    %v6377 = vmax.f32 %v6363, 0.0
    %v6378 = vmax.f32 %v6364, 0.0
    %v6379 = vmax.f32 %v6365, 0.0
    %v6380 = vmax.f32 %v6366, 0.0
    %v6381 = vmax.f32 %v6367, 0.0
    %v6382 = vmax.f32 %v6368, 0.0
    %v6383 = vmax.f32 %v6369, 0.0
    %v6384 = vmax.f32 %v6370, 0.0
    %6385 = vst [vmem:[#allocation5] sm:$0x1f] 0.0
    %6386 = vst [vmem:[#allocation5 + $0x8] sm:$0x1f] 0.0
    %6387 = vst [vmem:[#allocation5 + $0x10] sm:$0x1f] 0.0
    %6388 = vst [vmem:[#allocation5 + $0x18] sm:$0x1f] 0.0
    %6389 = vst [vmem:[#allocation5 + $0x20] sm:$0x1f] 0.0
    %6390 = vst [vmem:[#allocation5 + $0x28] sm:$0x1f] 0.0
    %6391 = vst [vmem:[#allocation5 + $0x30] sm:$0x1f] 0.0
    %6392 = vst [vmem:[#allocation5 + $0x38] sm:$0x1f] 0.0
    %6393 = vst [vmem:[#allocation5 + $0x40] sm:$0x1f] 0.0
    %6394 = vst [vmem:[#allocation5 + $0x48] sm:$0x1f] 0.0
    %v6395 = vmax.f32 %v6371, %v6372
    %v6396 = vmax.f32 %v6378, %v6379
    %v6397 = vmax.f32 %v6395, %v6373
    %v6398 = vmax.f32 %v6396, %v6380
    %6399 = vst [vmem:[#allocation3] sm:$0xff] %v6397
    %6400 = vst [vmem:[#allocation3 + $0x18] sm:$0xff] %v6398
    %v6401 = vmax.f32 %v6373, %v6374
    %v6402 = vmax.f32 %v6380, %v6381
    %v6403 = vmax.f32 %v6401, %v6375
    %v6404 = vmax.f32 %v6402, %v6382
    %s6405 = scalar_lea.vmem [#allocation3], 8
    %6406 = vst [vmem:[%s6405] sm:$0xff] %v6403
    %6407 = vst [vmem:[%s6405 + $0x18] sm:$0xff] %v6404
    %v6408 = vmax.f32 %v6375, %v6376
    %v6409 = vmax.f32 %v6382, %v6383
    %v6410 = vmax.f32 %v6408, %v6377
    %v6411 = vmax.f32 %v6409, %v6384
    %s6412 = scalar_lea.vmem [#allocation3], 16
    %6413 = vst [vmem:[%s6412] sm:$0xff] %v6410
    %6414 = vst [vmem:[%s6412 + $0x18] sm:$0xff] %v6411
    %v6415 = vld [vmem:[#allocation3] sm:$0x1]
    %v6416 = vld [vmem:[#allocation3 + $0x8] sm:$0x1]
    %v6417 = vld [vmem:[#allocation3 + $0x10] sm:$0x1]
    %v6418 = vld [vmem:[#allocation3 + $0x18] sm:$0x1]
    %v6419 = vld [vmem:[#allocation3 + $0x20] sm:$0x1]
    %v6420 = vld [vmem:[#allocation3 + $0x28] sm:$0x1]
    %v6421 = vld [vmem:[#allocation3 + $0x1] sm:$0x1]
    %v6422 = vld [vmem:[#allocation3 + $0x9] sm:$0x1]
    %v6423 = vld [vmem:[#allocation3 + $0x11] sm:$0x1]
    %v6424 = vld [vmem:[#allocation3 + $0x19] sm:$0x1]
    %v6425 = vld [vmem:[#allocation3 + $0x21] sm:$0x1]
    %v6426 = vld [vmem:[#allocation3 + $0x29] sm:$0x1]
    %v6427 = vmax.f32 %v6415, %v6421
    %v6428 = vmax.f32 %v6416, %v6422
    %v6429 = vmax.f32 %v6417, %v6423
    %v6430 = vmax.f32 %v6418, %v6424
    %v6431 = vmax.f32 %v6419, %v6425
    %v6432 = vmax.f32 %v6420, %v6426
    %v6433 = vld [vmem:[#allocation3 + $0x2] sm:$0x1]
    %v6434 = vld [vmem:[#allocation3 + $0xa] sm:$0x1]
    %v6435 = vld [vmem:[#allocation3 + $0x12] sm:$0x1]
    %v6436 = vld [vmem:[#allocation3 + $0x1a] sm:$0x1]
    %v6437 = vld [vmem:[#allocation3 + $0x22] sm:$0x1]
    %v6438 = vld [vmem:[#allocation3 + $0x2a] sm:$0x1]
    %v6439 = vmax.f32 %v6427, %v6433
    %v6440 = vmax.f32 %v6428, %v6434
    %v6441 = vmax.f32 %v6429, %v6435
    %v6442 = vmax.f32 %v6430, %v6436
    %v6443 = vmax.f32 %v6431, %v6437
    %v6444 = vmax.f32 %v6432, %v6438
    %s6445 = scalar_lea.vmem [#allocation5], 8
    %6446 = vst [vmem:[%s6445 + $0x1] sm:$0x1] %v6439
    %6447 = vst [vmem:[%s6445 + $0x9] sm:$0x1] %v6440
    %6448 = vst [vmem:[%s6445 + $0x11] sm:$0x1] %v6441
    %6449 = vst [vmem:[%s6445 + $0x29] sm:$0x1] %v6442
    %6450 = vst [vmem:[%s6445 + $0x31] sm:$0x1] %v6443
    %6451 = vst [vmem:[%s6445 + $0x39] sm:$0x1] %v6444
    %v6452 = vld [vmem:[#allocation3 + $0x2] sm:$0x1]
    %v6453 = vld [vmem:[#allocation3 + $0xa] sm:$0x1]
    %v6454 = vld [vmem:[#allocation3 + $0x12] sm:$0x1]
    %v6455 = vld [vmem:[#allocation3 + $0x1a] sm:$0x1]
    %v6456 = vld [vmem:[#allocation3 + $0x22] sm:$0x1]
    %v6457 = vld [vmem:[#allocation3 + $0x2a] sm:$0x1]
    %v6458 = vld [vmem:[#allocation3 + $0x3] sm:$0x1]
    %v6459 = vld [vmem:[#allocation3 + $0xb] sm:$0x1]
    %v6460 = vld [vmem:[#allocation3 + $0x13] sm:$0x1]
    %v6461 = vld [vmem:[#allocation3 + $0x1b] sm:$0x1]
    %v6462 = vld [vmem:[#allocation3 + $0x23] sm:$0x1]
    %v6463 = vld [vmem:[#allocation3 + $0x2b] sm:$0x1]
    %v6464 = vmax.f32 %v6452, %v6458
    %v6465 = vmax.f32 %v6453, %v6459
    %v6466 = vmax.f32 %v6454, %v6460
    %v6467 = vmax.f32 %v6455, %v6461
    %v6468 = vmax.f32 %v6456, %v6462
    %v6469 = vmax.f32 %v6457, %v6463
    %v6470 = vld [vmem:[#allocation3 + $0x4] sm:$0x1]
    %v6471 = vld [vmem:[#allocation3 + $0xc] sm:$0x1]
    %v6472 = vld [vmem:[#allocation3 + $0x14] sm:$0x1]
    %v6473 = vld [vmem:[#allocation3 + $0x1c] sm:$0x1]
    %v6474 = vld [vmem:[#allocation3 + $0x24] sm:$0x1]
    %v6475 = vld [vmem:[#allocation3 + $0x2c] sm:$0x1]
    %v6476 = vmax.f32 %v6464, %v6470
    %v6477 = vmax.f32 %v6465, %v6471
    %v6478 = vmax.f32 %v6466, %v6472
    %v6479 = vmax.f32 %v6467, %v6473
    %v6480 = vmax.f32 %v6468, %v6474
    %v6481 = vmax.f32 %v6469, %v6475
    %6482 = vst [vmem:[%s6445 + $0x2] sm:$0x1] %v6476
    %6483 = vst [vmem:[%s6445 + $0xa] sm:$0x1] %v6477
    %6484 = vst [vmem:[%s6445 + $0x12] sm:$0x1] %v6478
    %6485 = vst [vmem:[%s6445 + $0x2a] sm:$0x1] %v6479
    %6486 = vst [vmem:[%s6445 + $0x32] sm:$0x1] %v6480
    %6487 = vst [vmem:[%s6445 + $0x3a] sm:$0x1] %v6481
    %v6488 = vld [vmem:[#allocation3 + $0x4] sm:$0x1]
    %v6489 = vld [vmem:[#allocation3 + $0xc] sm:$0x1]
    %v6490 = vld [vmem:[#allocation3 + $0x14] sm:$0x1]
    %v6491 = vld [vmem:[#allocation3 + $0x1c] sm:$0x1]
    %v6492 = vld [vmem:[#allocation3 + $0x24] sm:$0x1]
    %v6493 = vld [vmem:[#allocation3 + $0x2c] sm:$0x1]
    %v6494 = vld [vmem:[#allocation3 + $0x5] sm:$0x1]
    %v6495 = vld [vmem:[#allocation3 + $0xd] sm:$0x1]
    %v6496 = vld [vmem:[#allocation3 + $0x15] sm:$0x1]
    %v6497 = vld [vmem:[#allocation3 + $0x1d] sm:$0x1]
    %v6498 = vld [vmem:[#allocation3 + $0x25] sm:$0x1]
    %v6499 = vld [vmem:[#allocation3 + $0x2d] sm:$0x1]
    %v6500 = vmax.f32 %v6488, %v6494
    %v6501 = vmax.f32 %v6489, %v6495
    %v6502 = vmax.f32 %v6490, %v6496
    %v6503 = vmax.f32 %v6491, %v6497
    %v6504 = vmax.f32 %v6492, %v6498
    %v6505 = vmax.f32 %v6493, %v6499
    %v6506 = vld [vmem:[#allocation3 + $0x6] sm:$0x1]
    %v6507 = vld [vmem:[#allocation3 + $0xe] sm:$0x1]
    %v6508 = vld [vmem:[#allocation3 + $0x16] sm:$0x1]
    %v6509 = vld [vmem:[#allocation3 + $0x1e] sm:$0x1]
    %v6510 = vld [vmem:[#allocation3 + $0x26] sm:$0x1]
    %v6511 = vld [vmem:[#allocation3 + $0x2e] sm:$0x1]
    %v6512 = vmax.f32 %v6500, %v6506
    %v6513 = vmax.f32 %v6501, %v6507
    %v6514 = vmax.f32 %v6502, %v6508
    %v6515 = vmax.f32 %v6503, %v6509
    %v6516 = vmax.f32 %v6504, %v6510
    %v6517 = vmax.f32 %v6505, %v6511
    %6518 = vst [vmem:[%s6445 + $0x3] sm:$0x1] %v6512
    %6519 = vst [vmem:[%s6445 + $0xb] sm:$0x1] %v6513
    %6520 = vst [vmem:[%s6445 + $0x13] sm:$0x1] %v6514
    %6521 = vst [vmem:[%s6445 + $0x2b] sm:$0x1] %v6515
    %6522 = vst [vmem:[%s6445 + $0x33] sm:$0x1] %v6516
    %6523 = vst [vmem:[%s6445 + $0x3b] sm:$0x1] %v6517
    %v6524 = vld [vmem:[%s9 + $0x2] sm:$0x1]
    %v6525 = vld [vmem:[#allocation5] sm:$0x7]
    %v6526 = vld [vmem:[#allocation5 + $0x8] sm:$0x7]
    %v6527 = vld [vmem:[#allocation5 + $0x10] sm:$0x7]
    %v6528 = vld [vmem:[#allocation5 + $0x28] sm:$0x7]
    %v6529 = vld [vmem:[#allocation5 + $0x30] sm:$0x7]
    %v6530 = vld [vmem:[#allocation5 + $0x38] sm:$0x7]
    %v6537 = vrot.slane %v6525, 1
    %v6538 = vrot.slane %v6525, 2
    %v6539 = vrot.slane %v6526, 1
    %v6540 = vrot.slane %v6526, 2
    %v6541 = vrot.slane %v6527, 1
    %v6542 = vrot.slane %v6527, 2
    %v6543 = vrot.slane %v6528, 1
    %v6544 = vrot.slane %v6528, 2
    %v6545 = vrot.slane %v6529, 1
    %v6546 = vrot.slane %v6529, 2
    %v6547 = vrot.slane %v6530, 1
    %v6548 = vrot.slane %v6530, 2
    %v6549 = vld [vmem:[%s3] sm:$0xff]
    %v6550 = vld [vmem:[%s3 + $0x8] sm:$0xff]
    %v6551 = vld [vmem:[%s3 + $0x10] sm:$0xff]
    %v6552 = vld [vmem:[%s3 + $0x18] sm:$0xff]
    %v6553 = vld [vmem:[%s3 + $0x20] sm:$0xff]
    %v6554 = vld [vmem:[%s3 + $0x28] sm:$0xff]
    %v6555 = vld [vmem:[%s3 + $0x30] sm:$0xff]
    %v6556 = vld [vmem:[%s3 + $0x38] sm:$0xff]
    %v6557 = vld [vmem:[%s3 + $0x40] sm:$0xff]
    %v6558 = vld [vmem:[%s3 + $0x48] sm:$0xff]
    %v6559 = vld [vmem:[%s3 + $0x50] sm:$0xff]
    %v6560 = vld [vmem:[%s3 + $0x58] sm:$0xff]
    %v6561 = vld [vmem:[%s3 + $0x60] sm:$0xff]
    %v6562 = vld [vmem:[%s3 + $0x68] sm:$0xff]
    %v6563 = vld [vmem:[%s3 + $0x70] sm:$0xff]
    %v6564 = vld [vmem:[%s3 + $0x78] sm:$0xff]
    %v6565 = vld [vmem:[#allocation5 + $0x1] sm:$0x7]
    %v6566 = vld [vmem:[#allocation5 + $0x9] sm:$0x7]
    %v6567 = vld [vmem:[#allocation5 + $0x11] sm:$0x7]
    %v6568 = vld [vmem:[#allocation5 + $0x29] sm:$0x7]
    %v6569 = vld [vmem:[#allocation5 + $0x31] sm:$0x7]
    %v6570 = vld [vmem:[#allocation5 + $0x39] sm:$0x7]
    %v6577 = vrot.slane %v6565, 1
    %v6578 = vrot.slane %v6565, 2
    %v6579 = vrot.slane %v6566, 1
    %v6580 = vrot.slane %v6566, 2
    %v6581 = vrot.slane %v6567, 1
    %v6582 = vrot.slane %v6567, 2
    %v6583 = vrot.slane %v6568, 1
    %v6584 = vrot.slane %v6568, 2
    %v6585 = vrot.slane %v6569, 1
    %v6586 = vrot.slane %v6569, 2
    %v6587 = vrot.slane %v6570, 1
    %v6588 = vrot.slane %v6570, 2
    %s6589 = scalar_lea.vmem %s3, 128
    %v6590 = vld [vmem:[%s6589] sm:$0xff]
    %v6591 = vld [vmem:[%s6589 + $0x8] sm:$0xff]
    %v6592 = vld [vmem:[%s6589 + $0x10] sm:$0xff]
    %v6593 = vld [vmem:[%s6589 + $0x18] sm:$0xff]
    %v6594 = vld [vmem:[%s6589 + $0x20] sm:$0xff]
    %v6595 = vld [vmem:[%s6589 + $0x28] sm:$0xff]
    %v6596 = vld [vmem:[%s6589 + $0x30] sm:$0xff]
    %v6597 = vld [vmem:[%s6589 + $0x38] sm:$0xff]
    %v6598 = vld [vmem:[%s6589 + $0x40] sm:$0xff]
    %v6599 = vld [vmem:[%s6589 + $0x48] sm:$0xff]
    %v6600 = vld [vmem:[%s6589 + $0x50] sm:$0xff]
    %v6601 = vld [vmem:[%s6589 + $0x58] sm:$0xff]
    %v6602 = vld [vmem:[%s6589 + $0x60] sm:$0xff]
    %v6603 = vld [vmem:[%s6589 + $0x68] sm:$0xff]
    %v6604 = vld [vmem:[%s6589 + $0x70] sm:$0xff]
    %v6605 = vld [vmem:[%s6589 + $0x78] sm:$0xff]
    %6606 = vst [vmem:[#allocation1] ss:$9 sm:$0xff] %v6565
    %s6607 = scalar_lea.vmem [#allocation1], 1
    %6608 = vst [vmem:[%s6607] ss:$9 sm:$0xff] %v6577
    %s6609 = scalar_lea.vmem [#allocation1], 2
    %6610 = vst [vmem:[%s6609] ss:$9 sm:$0xff] %v6578
    %s6611 = scalar_lea.vmem [#allocation1], 3
    %6612 = vst [vmem:[%s6611] ss:$9 sm:$0xff] %v6566
    %s6613 = scalar_lea.vmem [#allocation1], 4
    %6614 = vst [vmem:[%s6613] ss:$9 sm:$0xff] %v6579
    %s6615 = scalar_lea.vmem [#allocation1], 5
    %6616 = vst [vmem:[%s6615] ss:$9 sm:$0xff] %v6580
    %s6617 = scalar_lea.vmem [#allocation1], 6
    %6618 = vst [vmem:[%s6617] ss:$9 sm:$0xff] %v6567
    %s6619 = scalar_lea.vmem [#allocation1], 7
    %6620 = vst [vmem:[%s6619] ss:$9 sm:$0xff] %v6581
    %v6621 = vld [vmem:[#allocation1] sm:$0xff]
    %6622 = vst [vmem:[#allocation1] ss:$9 sm:$0xff] %v6582
    %6623 = vst [vmem:[%s6607] ss:$9 sm:$0xff] %v6568
    %6624 = vst [vmem:[%s6609] ss:$9 sm:$0xff] %v6583
    %6625 = vst [vmem:[%s6611] ss:$9 sm:$0xff] %v6584
    %6626 = vst [vmem:[%s6613] ss:$9 sm:$0xff] %v6569
    %6627 = vst [vmem:[%s6615] ss:$9 sm:$0xff] %v6585
    %6628 = vst [vmem:[%s6617] ss:$9 sm:$0xff] %v6586
    %6629 = vst [vmem:[%s6619] ss:$9 sm:$0xff] %v6570
    %v6630 = vld [vmem:[#allocation1] sm:$0xff]
    %6631 = vst [vmem:[#allocation1] ss:$9 sm:$0xff] %v6587
    %6632 = vst [vmem:[%s6607] ss:$9 sm:$0xff] %v6588
    %v6633 = vld [vmem:[#allocation1] sm:$0xff]
    %6637 = vmatpush.msra.mxu0 %v6605
    %6638 = vmatpush.msra.mxu0 %v6604
    %6639 = vmatpush.msra.mxu0 %v6603
    %6640 = vmatpush.msra.mxu0 %v6602
    %6641 = vmatpush.msra.mxu0 %v6601
    %6642 = vmatpush.msra.mxu0 %v6600
    %6643 = vmatpush.msra.mxu0 %v6599
    %6644 = vmatpush.msra.mxu0 %v6598
    %6645 = vmatpush.msra.mxu0 %v6597
    %6646 = vmatpush.msra.mxu0 %v6596
    %6647 = vmatpush.msra.mxu0 %v6595
    %6648 = vmatpush.msra.mxu0 %v6594
    %6649 = vmatpush.msra.mxu0 %v6593
    %6650 = vmatpush.msra.mxu0 %v6592
    %6651 = vmatpush.msra.mxu0 %v6591
    %6652 = vmatpush.msra.mxu0 %v6590
    %6653 = vmatmul.f32.gmra.mxu0 %v6621
    %v6654 = vpop.f32.mrf.mxu0
    %v6655 = vadd.f32 0.0, %v6654
    %6656 = vmatmul.f32.gmra.mxu0 %v6630
    %v6657 = vpop.f32.mrf.mxu0
    %v6658 = vadd.f32 0.0, %v6657
    %6659 = vmatmul.f32.gmra.mxu0 %v6633
    %v6660 = vpop.f32.mrf.mxu0
    %v6661 = vadd.f32 0.0, %v6660
    %6662 = vdwg.mxu0
    %6663 = vst [vmem:[#allocation1] ss:$9 sm:$0xff] %v6525
    %s6664 = scalar_lea.vmem [#allocation1], 1
    %6665 = vst [vmem:[%s6664] ss:$9 sm:$0xff] %v6537
    %s6666 = scalar_lea.vmem [#allocation1], 2
    %6667 = vst [vmem:[%s6666] ss:$9 sm:$0xff] %v6538
    %s6668 = scalar_lea.vmem [#allocation1], 3
    %6669 = vst [vmem:[%s6668] ss:$9 sm:$0xff] %v6526
    %s6670 = scalar_lea.vmem [#allocation1], 4
    %6671 = vst [vmem:[%s6670] ss:$9 sm:$0xff] %v6539
    %s6672 = scalar_lea.vmem [#allocation1], 5
    %6673 = vst [vmem:[%s6672] ss:$9 sm:$0xff] %v6540
    %s6674 = scalar_lea.vmem [#allocation1], 6
    %6675 = vst [vmem:[%s6674] ss:$9 sm:$0xff] %v6527
    %s6676 = scalar_lea.vmem [#allocation1], 7
    %6677 = vst [vmem:[%s6676] ss:$9 sm:$0xff] %v6541
    %v6678 = vld [vmem:[#allocation1] sm:$0xff]
    %6679 = vst [vmem:[#allocation1] ss:$9 sm:$0xff] %v6542
    %6680 = vst [vmem:[%s6664] ss:$9 sm:$0xff] %v6528
    %6681 = vst [vmem:[%s6666] ss:$9 sm:$0xff] %v6543
    %6682 = vst [vmem:[%s6668] ss:$9 sm:$0xff] %v6544
    %6683 = vst [vmem:[%s6670] ss:$9 sm:$0xff] %v6529
    %6684 = vst [vmem:[%s6672] ss:$9 sm:$0xff] %v6545
    %6685 = vst [vmem:[%s6674] ss:$9 sm:$0xff] %v6546
    %6686 = vst [vmem:[%s6676] ss:$9 sm:$0xff] %v6530
    %v6687 = vld [vmem:[#allocation1] sm:$0xff]
    %6688 = vst [vmem:[#allocation1] ss:$9 sm:$0xff] %v6547
    %6689 = vst [vmem:[%s6664] ss:$9 sm:$0xff] %v6548
    %v6690 = vld [vmem:[#allocation1] sm:$0xff]
    %6694 = vmatpush.msra.mxu0 %v6564
    %6695 = vmatpush.msra.mxu0 %v6563
    %6696 = vmatpush.msra.mxu0 %v6562
    %6697 = vmatpush.msra.mxu0 %v6561
    %6698 = vmatpush.msra.mxu0 %v6560
    %6699 = vmatpush.msra.mxu0 %v6559
    %6700 = vmatpush.msra.mxu0 %v6558
    %6701 = vmatpush.msra.mxu0 %v6557
    %6702 = vmatpush.msra.mxu0 %v6556
    %6703 = vmatpush.msra.mxu0 %v6555
    %6704 = vmatpush.msra.mxu0 %v6554
    %6705 = vmatpush.msra.mxu0 %v6553
    %6706 = vmatpush.msra.mxu0 %v6552
    %6707 = vmatpush.msra.mxu0 %v6551
    %6708 = vmatpush.msra.mxu0 %v6550
    %6709 = vmatpush.msra.mxu0 %v6549
    %6710 = vmatmul.f32.gmra.mxu0 %v6678
    %v6711 = vpop.f32.mrf.mxu0
    %v6712 = vadd.f32 %v6655, %v6711
    %6713 = vmatmul.f32.gmra.mxu0 %v6687
    %v6714 = vpop.f32.mrf.mxu0
    %v6715 = vadd.f32 %v6658, %v6714
    %6716 = vmatmul.f32.gmra.mxu0 %v6690
    %v6717 = vpop.f32.mrf.mxu0
    %v6718 = vadd.f32 %v6661, %v6717
    %6719 = vdwg.mxu0
    %v6720 = vld [vmem:[#allocation5 + $0x2] sm:$0x7]
    %v6721 = vld [vmem:[#allocation5 + $0xa] sm:$0x7]
    %v6722 = vld [vmem:[#allocation5 + $0x12] sm:$0x7]
    %v6723 = vld [vmem:[#allocation5 + $0x2a] sm:$0x7]
    %v6724 = vld [vmem:[#allocation5 + $0x32] sm:$0x7]
    %v6725 = vld [vmem:[#allocation5 + $0x3a] sm:$0x7]
    %v6732 = vrot.slane %v6720, 1
    %v6733 = vrot.slane %v6720, 2
    %v6734 = vrot.slane %v6721, 1
    %v6735 = vrot.slane %v6721, 2
    %v6736 = vrot.slane %v6722, 1
    %v6737 = vrot.slane %v6722, 2
    %v6738 = vrot.slane %v6723, 1
    %v6739 = vrot.slane %v6723, 2
    %v6740 = vrot.slane %v6724, 1
    %v6741 = vrot.slane %v6724, 2
    %v6742 = vrot.slane %v6725, 1
    %v6743 = vrot.slane %v6725, 2
    %s6744 = scalar_lea.vmem %s3, 256
    %v6745 = vld [vmem:[%s6744] sm:$0xff]
    %v6746 = vld [vmem:[%s6744 + $0x8] sm:$0xff]
    %v6747 = vld [vmem:[%s6744 + $0x10] sm:$0xff]
    %v6748 = vld [vmem:[%s6744 + $0x18] sm:$0xff]
    %v6749 = vld [vmem:[%s6744 + $0x20] sm:$0xff]
    %v6750 = vld [vmem:[%s6744 + $0x28] sm:$0xff]
    %v6751 = vld [vmem:[%s6744 + $0x30] sm:$0xff]
    %v6752 = vld [vmem:[%s6744 + $0x38] sm:$0xff]
    %v6753 = vld [vmem:[%s6744 + $0x40] sm:$0xff]
    %v6754 = vld [vmem:[%s6744 + $0x48] sm:$0xff]
    %v6755 = vld [vmem:[%s6744 + $0x50] sm:$0xff]
    %v6756 = vld [vmem:[%s6744 + $0x58] sm:$0xff]
    %v6757 = vld [vmem:[%s6744 + $0x60] sm:$0xff]
    %v6758 = vld [vmem:[%s6744 + $0x68] sm:$0xff]
    %v6759 = vld [vmem:[%s6744 + $0x70] sm:$0xff]
    %v6760 = vld [vmem:[%s6744 + $0x78] sm:$0xff]
    %6761 = vst [vmem:[#allocation1] ss:$9 sm:$0xff] %v6720
    %s6762 = scalar_lea.vmem [#allocation1], 1
    %6763 = vst [vmem:[%s6762] ss:$9 sm:$0xff] %v6732
    %s6764 = scalar_lea.vmem [#allocation1], 2
    %6765 = vst [vmem:[%s6764] ss:$9 sm:$0xff] %v6733
    %s6766 = scalar_lea.vmem [#allocation1], 3
    %6767 = vst [vmem:[%s6766] ss:$9 sm:$0xff] %v6721
    %s6768 = scalar_lea.vmem [#allocation1], 4
    %6769 = vst [vmem:[%s6768] ss:$9 sm:$0xff] %v6734
    %s6770 = scalar_lea.vmem [#allocation1], 5
    %6771 = vst [vmem:[%s6770] ss:$9 sm:$0xff] %v6735
    %s6772 = scalar_lea.vmem [#allocation1], 6
    %6773 = vst [vmem:[%s6772] ss:$9 sm:$0xff] %v6722
    %s6774 = scalar_lea.vmem [#allocation1], 7
    %6775 = vst [vmem:[%s6774] ss:$9 sm:$0xff] %v6736
    %v6776 = vld [vmem:[#allocation1] sm:$0xff]
    %6777 = vst [vmem:[#allocation1] ss:$9 sm:$0xff] %v6737
    %6778 = vst [vmem:[%s6762] ss:$9 sm:$0xff] %v6723
    %6779 = vst [vmem:[%s6764] ss:$9 sm:$0xff] %v6738
    %6780 = vst [vmem:[%s6766] ss:$9 sm:$0xff] %v6739
    %6781 = vst [vmem:[%s6768] ss:$9 sm:$0xff] %v6724
    %6782 = vst [vmem:[%s6770] ss:$9 sm:$0xff] %v6740
    %6783 = vst [vmem:[%s6772] ss:$9 sm:$0xff] %v6741
    %6784 = vst [vmem:[%s6774] ss:$9 sm:$0xff] %v6725
    %v6785 = vld [vmem:[#allocation1] sm:$0xff]
    %6786 = vst [vmem:[#allocation1] ss:$9 sm:$0xff] %v6742
    %6787 = vst [vmem:[%s6762] ss:$9 sm:$0xff] %v6743
    %v6788 = vld [vmem:[#allocation1] sm:$0xff]
    %6792 = vmatpush.msra.mxu0 %v6760
    %6793 = vmatpush.msra.mxu0 %v6759
    %6794 = vmatpush.msra.mxu0 %v6758
    %6795 = vmatpush.msra.mxu0 %v6757
    %6796 = vmatpush.msra.mxu0 %v6756
    %6797 = vmatpush.msra.mxu0 %v6755
    %6798 = vmatpush.msra.mxu0 %v6754
    %6799 = vmatpush.msra.mxu0 %v6753
    %6800 = vmatpush.msra.mxu0 %v6752
    %6801 = vmatpush.msra.mxu0 %v6751
    %6802 = vmatpush.msra.mxu0 %v6750
    %6803 = vmatpush.msra.mxu0 %v6749
    %6804 = vmatpush.msra.mxu0 %v6748
    %6805 = vmatpush.msra.mxu0 %v6747
    %6806 = vmatpush.msra.mxu0 %v6746
    %6807 = vmatpush.msra.mxu0 %v6745
    %6808 = vmatmul.f32.gmra.mxu0 %v6776
    %v6809 = vpop.f32.mrf.mxu0
    %v6810 = vadd.f32 0.0, %v6809
    %6811 = vmatmul.f32.gmra.mxu0 %v6785
    %v6812 = vpop.f32.mrf.mxu0
    %v6813 = vadd.f32 0.0, %v6812
    %6814 = vmatmul.f32.gmra.mxu0 %v6788
    %v6815 = vpop.f32.mrf.mxu0
    %v6816 = vadd.f32 0.0, %v6815
    %6817 = vdwg.mxu0
    %v6818 = vadd.f32 %v6712, %v6810
    %v6819 = vadd.f32 %v6715, %v6813
    %v6820 = vadd.f32 %v6718, %v6816
    %v6821 = vld [vmem:[%s6445] sm:$0x7]
    %v6822 = vld [vmem:[%s6445 + $0x8] sm:$0x7]
    %v6823 = vld [vmem:[%s6445 + $0x10] sm:$0x7]
    %v6824 = vld [vmem:[%s6445 + $0x28] sm:$0x7]
    %v6825 = vld [vmem:[%s6445 + $0x30] sm:$0x7]
    %v6826 = vld [vmem:[%s6445 + $0x38] sm:$0x7]
    %v6833 = vrot.slane %v6821, 1
    %v6834 = vrot.slane %v6821, 2
    %v6835 = vrot.slane %v6822, 1
    %v6836 = vrot.slane %v6822, 2
    %v6837 = vrot.slane %v6823, 1
    %v6838 = vrot.slane %v6823, 2
    %v6839 = vrot.slane %v6824, 1
    %v6840 = vrot.slane %v6824, 2
    %v6841 = vrot.slane %v6825, 1
    %v6842 = vrot.slane %v6825, 2
    %v6843 = vrot.slane %v6826, 1
    %v6844 = vrot.slane %v6826, 2
    %s6845 = scalar_lea.vmem %s3, 384
    %v6846 = vld [vmem:[%s6845] sm:$0xff]
    %v6847 = vld [vmem:[%s6845 + $0x8] sm:$0xff]
    %v6848 = vld [vmem:[%s6845 + $0x10] sm:$0xff]
    %v6849 = vld [vmem:[%s6845 + $0x18] sm:$0xff]
    %v6850 = vld [vmem:[%s6845 + $0x20] sm:$0xff]
    %v6851 = vld [vmem:[%s6845 + $0x28] sm:$0xff]
    %v6852 = vld [vmem:[%s6845 + $0x30] sm:$0xff]
    %v6853 = vld [vmem:[%s6845 + $0x38] sm:$0xff]
    %v6854 = vld [vmem:[%s6845 + $0x40] sm:$0xff]
    %v6855 = vld [vmem:[%s6845 + $0x48] sm:$0xff]
    %v6856 = vld [vmem:[%s6845 + $0x50] sm:$0xff]
    %v6857 = vld [vmem:[%s6845 + $0x58] sm:$0xff]
    %v6858 = vld [vmem:[%s6845 + $0x60] sm:$0xff]
    %v6859 = vld [vmem:[%s6845 + $0x68] sm:$0xff]
    %v6860 = vld [vmem:[%s6845 + $0x70] sm:$0xff]
    %v6861 = vld [vmem:[%s6845 + $0x78] sm:$0xff]
    %6862 = vst [vmem:[#allocation1] ss:$9 sm:$0xff] %v6821
    %s6863 = scalar_lea.vmem [#allocation1], 1
    %6864 = vst [vmem:[%s6863] ss:$9 sm:$0xff] %v6833
    %s6865 = scalar_lea.vmem [#allocation1], 2
    %6866 = vst [vmem:[%s6865] ss:$9 sm:$0xff] %v6834
    %s6867 = scalar_lea.vmem [#allocation1], 3
    %6868 = vst [vmem:[%s6867] ss:$9 sm:$0xff] %v6822
    %s6869 = scalar_lea.vmem [#allocation1], 4
    %6870 = vst [vmem:[%s6869] ss:$9 sm:$0xff] %v6835
    %s6871 = scalar_lea.vmem [#allocation1], 5
    %6872 = vst [vmem:[%s6871] ss:$9 sm:$0xff] %v6836
    %s6873 = scalar_lea.vmem [#allocation1], 6
    %6874 = vst [vmem:[%s6873] ss:$9 sm:$0xff] %v6823
    %s6875 = scalar_lea.vmem [#allocation1], 7
    %6876 = vst [vmem:[%s6875] ss:$9 sm:$0xff] %v6837
    %v6877 = vld [vmem:[#allocation1] sm:$0xff]
    %6878 = vst [vmem:[#allocation1] ss:$9 sm:$0xff] %v6838
    %6879 = vst [vmem:[%s6863] ss:$9 sm:$0xff] %v6824
    %6880 = vst [vmem:[%s6865] ss:$9 sm:$0xff] %v6839
    %6881 = vst [vmem:[%s6867] ss:$9 sm:$0xff] %v6840
    %6882 = vst [vmem:[%s6869] ss:$9 sm:$0xff] %v6825
    %6883 = vst [vmem:[%s6871] ss:$9 sm:$0xff] %v6841
    %6884 = vst [vmem:[%s6873] ss:$9 sm:$0xff] %v6842
    %6885 = vst [vmem:[%s6875] ss:$9 sm:$0xff] %v6826
    %v6886 = vld [vmem:[#allocation1] sm:$0xff]
    %6887 = vst [vmem:[#allocation1] ss:$9 sm:$0xff] %v6843
    %6888 = vst [vmem:[%s6863] ss:$9 sm:$0xff] %v6844
    %v6889 = vld [vmem:[#allocation1] sm:$0xff]
    %6893 = vmatpush.msra.mxu0 %v6861
    %6894 = vmatpush.msra.mxu0 %v6860
    %6895 = vmatpush.msra.mxu0 %v6859
    %6896 = vmatpush.msra.mxu0 %v6858
    %6897 = vmatpush.msra.mxu0 %v6857
    %6898 = vmatpush.msra.mxu0 %v6856
    %6899 = vmatpush.msra.mxu0 %v6855
    %6900 = vmatpush.msra.mxu0 %v6854
    %6901 = vmatpush.msra.mxu0 %v6853
    %6902 = vmatpush.msra.mxu0 %v6852
    %6903 = vmatpush.msra.mxu0 %v6851
    %6904 = vmatpush.msra.mxu0 %v6850
    %6905 = vmatpush.msra.mxu0 %v6849
    %6906 = vmatpush.msra.mxu0 %v6848
    %6907 = vmatpush.msra.mxu0 %v6847
    %6908 = vmatpush.msra.mxu0 %v6846
    %6909 = vmatmul.f32.gmra.mxu0 %v6877
    %v6910 = vpop.f32.mrf.mxu0
    %v6911 = vadd.f32 0.0, %v6910
    %6912 = vmatmul.f32.gmra.mxu0 %v6886
    %v6913 = vpop.f32.mrf.mxu0
    %v6914 = vadd.f32 0.0, %v6913
    %6915 = vmatmul.f32.gmra.mxu0 %v6889
    %v6916 = vpop.f32.mrf.mxu0
    %v6917 = vadd.f32 0.0, %v6916
    %6918 = vdwg.mxu0
    %v6919 = vadd.f32 %v6818, %v6911
    %v6920 = vadd.f32 %v6819, %v6914
    %v6921 = vadd.f32 %v6820, %v6917
    %v6922 = vld [vmem:[%s6445 + $0x1] sm:$0x7]
    %v6923 = vld [vmem:[%s6445 + $0x9] sm:$0x7]
    %v6924 = vld [vmem:[%s6445 + $0x11] sm:$0x7]
    %v6925 = vld [vmem:[%s6445 + $0x29] sm:$0x7]
    %v6926 = vld [vmem:[%s6445 + $0x31] sm:$0x7]
    %v6927 = vld [vmem:[%s6445 + $0x39] sm:$0x7]
    %v6934 = vrot.slane %v6922, 1
    %v6935 = vrot.slane %v6922, 2
    %v6936 = vrot.slane %v6923, 1
    %v6937 = vrot.slane %v6923, 2
    %v6938 = vrot.slane %v6924, 1
    %v6939 = vrot.slane %v6924, 2
    %v6940 = vrot.slane %v6925, 1
    %v6941 = vrot.slane %v6925, 2
    %v6942 = vrot.slane %v6926, 1
    %v6943 = vrot.slane %v6926, 2
    %v6944 = vrot.slane %v6927, 1
    %v6945 = vrot.slane %v6927, 2
    %s6946 = scalar_lea.vmem %s3, 512
    %v6947 = vld [vmem:[%s6946] sm:$0xff]
    %v6948 = vld [vmem:[%s6946 + $0x8] sm:$0xff]
    %v6949 = vld [vmem:[%s6946 + $0x10] sm:$0xff]
    %v6950 = vld [vmem:[%s6946 + $0x18] sm:$0xff]
    %v6951 = vld [vmem:[%s6946 + $0x20] sm:$0xff]
    %v6952 = vld [vmem:[%s6946 + $0x28] sm:$0xff]
    %v6953 = vld [vmem:[%s6946 + $0x30] sm:$0xff]
    %v6954 = vld [vmem:[%s6946 + $0x38] sm:$0xff]
    %v6955 = vld [vmem:[%s6946 + $0x40] sm:$0xff]
    %v6956 = vld [vmem:[%s6946 + $0x48] sm:$0xff]
    %v6957 = vld [vmem:[%s6946 + $0x50] sm:$0xff]
    %v6958 = vld [vmem:[%s6946 + $0x58] sm:$0xff]
    %v6959 = vld [vmem:[%s6946 + $0x60] sm:$0xff]
    %v6960 = vld [vmem:[%s6946 + $0x68] sm:$0xff]
    %v6961 = vld [vmem:[%s6946 + $0x70] sm:$0xff]
    %v6962 = vld [vmem:[%s6946 + $0x78] sm:$0xff]
    %6963 = vst [vmem:[#allocation1] ss:$9 sm:$0xff] %v6922
    %s6964 = scalar_lea.vmem [#allocation1], 1
    %6965 = vst [vmem:[%s6964] ss:$9 sm:$0xff] %v6934
    %s6966 = scalar_lea.vmem [#allocation1], 2
    %6967 = vst [vmem:[%s6966] ss:$9 sm:$0xff] %v6935
    %s6968 = scalar_lea.vmem [#allocation1], 3
    %6969 = vst [vmem:[%s6968] ss:$9 sm:$0xff] %v6923
    %s6970 = scalar_lea.vmem [#allocation1], 4
    %6971 = vst [vmem:[%s6970] ss:$9 sm:$0xff] %v6936
    %s6972 = scalar_lea.vmem [#allocation1], 5
    %6973 = vst [vmem:[%s6972] ss:$9 sm:$0xff] %v6937
    %s6974 = scalar_lea.vmem [#allocation1], 6
    %6975 = vst [vmem:[%s6974] ss:$9 sm:$0xff] %v6924
    %s6976 = scalar_lea.vmem [#allocation1], 7
    %6977 = vst [vmem:[%s6976] ss:$9 sm:$0xff] %v6938
    %v6978 = vld [vmem:[#allocation1] sm:$0xff]
    %6979 = vst [vmem:[#allocation1] ss:$9 sm:$0xff] %v6939
    %6980 = vst [vmem:[%s6964] ss:$9 sm:$0xff] %v6925
    %6981 = vst [vmem:[%s6966] ss:$9 sm:$0xff] %v6940
    %6982 = vst [vmem:[%s6968] ss:$9 sm:$0xff] %v6941
    %6983 = vst [vmem:[%s6970] ss:$9 sm:$0xff] %v6926
    %6984 = vst [vmem:[%s6972] ss:$9 sm:$0xff] %v6942
    %6985 = vst [vmem:[%s6974] ss:$9 sm:$0xff] %v6943
    %6986 = vst [vmem:[%s6976] ss:$9 sm:$0xff] %v6927
    %v6987 = vld [vmem:[#allocation1] sm:$0xff]
    %6988 = vst [vmem:[#allocation1] ss:$9 sm:$0xff] %v6944
    %6989 = vst [vmem:[%s6964] ss:$9 sm:$0xff] %v6945
    %v6990 = vld [vmem:[#allocation1] sm:$0xff]
    %6994 = vmatpush.msra.mxu0 %v6962
    %6995 = vmatpush.msra.mxu0 %v6961
    %6996 = vmatpush.msra.mxu0 %v6960
    %6997 = vmatpush.msra.mxu0 %v6959
    %6998 = vmatpush.msra.mxu0 %v6958
    %6999 = vmatpush.msra.mxu0 %v6957
    %7000 = vmatpush.msra.mxu0 %v6956
    %7001 = vmatpush.msra.mxu0 %v6955
    %7002 = vmatpush.msra.mxu0 %v6954
    %7003 = vmatpush.msra.mxu0 %v6953
    %7004 = vmatpush.msra.mxu0 %v6952
    %7005 = vmatpush.msra.mxu0 %v6951
    %7006 = vmatpush.msra.mxu0 %v6950
    %7007 = vmatpush.msra.mxu0 %v6949
    %7008 = vmatpush.msra.mxu0 %v6948
    %7009 = vmatpush.msra.mxu0 %v6947
    %7010 = vmatmul.f32.gmra.mxu0 %v6978
    %v7011 = vpop.f32.mrf.mxu0
    %v7012 = vadd.f32 0.0, %v7011
    %7013 = vmatmul.f32.gmra.mxu0 %v6987
    %v7014 = vpop.f32.mrf.mxu0
    %v7015 = vadd.f32 0.0, %v7014
    %7016 = vmatmul.f32.gmra.mxu0 %v6990
    %v7017 = vpop.f32.mrf.mxu0
    %v7018 = vadd.f32 0.0, %v7017
    %7019 = vdwg.mxu0
    %v7020 = vadd.f32 %v6919, %v7012
    %v7021 = vadd.f32 %v6920, %v7015
    %v7022 = vadd.f32 %v6921, %v7018
    %v7023 = vld [vmem:[%s6445 + $0x2] sm:$0x7]
    %v7024 = vld [vmem:[%s6445 + $0xa] sm:$0x7]
    %v7025 = vld [vmem:[%s6445 + $0x12] sm:$0x7]
    %v7026 = vld [vmem:[%s6445 + $0x2a] sm:$0x7]
    %v7027 = vld [vmem:[%s6445 + $0x32] sm:$0x7]
    %v7028 = vld [vmem:[%s6445 + $0x3a] sm:$0x7]
    %v7035 = vrot.slane %v7023, 1
    %v7036 = vrot.slane %v7023, 2
    %v7037 = vrot.slane %v7024, 1
    %v7038 = vrot.slane %v7024, 2
    %v7039 = vrot.slane %v7025, 1
    %v7040 = vrot.slane %v7025, 2
    %v7041 = vrot.slane %v7026, 1
    %v7042 = vrot.slane %v7026, 2
    %v7043 = vrot.slane %v7027, 1
    %v7044 = vrot.slane %v7027, 2
    %v7045 = vrot.slane %v7028, 1
    %v7046 = vrot.slane %v7028, 2
    %s7047 = scalar_lea.vmem %s3, 640
    %v7048 = vld [vmem:[%s7047] sm:$0xff]
    %v7049 = vld [vmem:[%s7047 + $0x8] sm:$0xff]
    %v7050 = vld [vmem:[%s7047 + $0x10] sm:$0xff]
    %v7051 = vld [vmem:[%s7047 + $0x18] sm:$0xff]
    %v7052 = vld [vmem:[%s7047 + $0x20] sm:$0xff]
    %v7053 = vld [vmem:[%s7047 + $0x28] sm:$0xff]
    %v7054 = vld [vmem:[%s7047 + $0x30] sm:$0xff]
    %v7055 = vld [vmem:[%s7047 + $0x38] sm:$0xff]
    %v7056 = vld [vmem:[%s7047 + $0x40] sm:$0xff]
    %v7057 = vld [vmem:[%s7047 + $0x48] sm:$0xff]
    %v7058 = vld [vmem:[%s7047 + $0x50] sm:$0xff]
    %v7059 = vld [vmem:[%s7047 + $0x58] sm:$0xff]
    %v7060 = vld [vmem:[%s7047 + $0x60] sm:$0xff]
    %v7061 = vld [vmem:[%s7047 + $0x68] sm:$0xff]
    %v7062 = vld [vmem:[%s7047 + $0x70] sm:$0xff]
    %v7063 = vld [vmem:[%s7047 + $0x78] sm:$0xff]
    %7064 = vst [vmem:[#allocation1] ss:$9 sm:$0xff] %v7023
    %s7065 = scalar_lea.vmem [#allocation1], 1
    %7066 = vst [vmem:[%s7065] ss:$9 sm:$0xff] %v7035
    %s7067 = scalar_lea.vmem [#allocation1], 2
    %7068 = vst [vmem:[%s7067] ss:$9 sm:$0xff] %v7036
    %s7069 = scalar_lea.vmem [#allocation1], 3
    %7070 = vst [vmem:[%s7069] ss:$9 sm:$0xff] %v7024
    %s7071 = scalar_lea.vmem [#allocation1], 4
    %7072 = vst [vmem:[%s7071] ss:$9 sm:$0xff] %v7037
    %s7073 = scalar_lea.vmem [#allocation1], 5
    %7074 = vst [vmem:[%s7073] ss:$9 sm:$0xff] %v7038
    %s7075 = scalar_lea.vmem [#allocation1], 6
    %7076 = vst [vmem:[%s7075] ss:$9 sm:$0xff] %v7025
    %s7077 = scalar_lea.vmem [#allocation1], 7
    %7078 = vst [vmem:[%s7077] ss:$9 sm:$0xff] %v7039
    %v7079 = vld [vmem:[#allocation1] sm:$0xff]
    %7080 = vst [vmem:[#allocation1] ss:$9 sm:$0xff] %v7040
    %7081 = vst [vmem:[%s7065] ss:$9 sm:$0xff] %v7026
    %7082 = vst [vmem:[%s7067] ss:$9 sm:$0xff] %v7041
    %7083 = vst [vmem:[%s7069] ss:$9 sm:$0xff] %v7042
    %7084 = vst [vmem:[%s7071] ss:$9 sm:$0xff] %v7027
    %7085 = vst [vmem:[%s7073] ss:$9 sm:$0xff] %v7043
    %7086 = vst [vmem:[%s7075] ss:$9 sm:$0xff] %v7044
    %7087 = vst [vmem:[%s7077] ss:$9 sm:$0xff] %v7028
    %v7088 = vld [vmem:[#allocation1] sm:$0xff]
    %7089 = vst [vmem:[#allocation1] ss:$9 sm:$0xff] %v7045
    %7090 = vst [vmem:[%s7065] ss:$9 sm:$0xff] %v7046
    %v7091 = vld [vmem:[#allocation1] sm:$0xff]
    %7095 = vmatpush.msra.mxu0 %v7063
    %7096 = vmatpush.msra.mxu0 %v7062
    %7097 = vmatpush.msra.mxu0 %v7061
    %7098 = vmatpush.msra.mxu0 %v7060
    %7099 = vmatpush.msra.mxu0 %v7059
    %7100 = vmatpush.msra.mxu0 %v7058
    %7101 = vmatpush.msra.mxu0 %v7057
    %7102 = vmatpush.msra.mxu0 %v7056
    %7103 = vmatpush.msra.mxu0 %v7055
    %7104 = vmatpush.msra.mxu0 %v7054
    %7105 = vmatpush.msra.mxu0 %v7053
    %7106 = vmatpush.msra.mxu0 %v7052
    %7107 = vmatpush.msra.mxu0 %v7051
    %7108 = vmatpush.msra.mxu0 %v7050
    %7109 = vmatpush.msra.mxu0 %v7049
    %7110 = vmatpush.msra.mxu0 %v7048
    %7111 = vmatmul.f32.gmra.mxu0 %v7079
    %v7112 = vpop.f32.mrf.mxu0
    %v7113 = vadd.f32 0.0, %v7112
    %7114 = vmatmul.f32.gmra.mxu0 %v7088
    %v7115 = vpop.f32.mrf.mxu0
    %v7116 = vadd.f32 0.0, %v7115
    %7117 = vmatmul.f32.gmra.mxu0 %v7091
    %v7118 = vpop.f32.mrf.mxu0
    %v7119 = vadd.f32 0.0, %v7118
    %7120 = vdwg.mxu0
    %v7121 = vadd.f32 %v7020, %v7113
    %v7122 = vadd.f32 %v7021, %v7116
    %v7123 = vadd.f32 %v7022, %v7119
    %s7124 = scalar_lea.vmem [#allocation5], 16
    %v7125 = vld [vmem:[%s7124] sm:$0x7]
    %v7126 = vld [vmem:[%s7124 + $0x8] sm:$0x7]
    %v7127 = vld [vmem:[%s7124 + $0x10] sm:$0x7]
    %v7128 = vld [vmem:[%s7124 + $0x28] sm:$0x7]
    %v7129 = vld [vmem:[%s7124 + $0x30] sm:$0x7]
    %v7130 = vld [vmem:[%s7124 + $0x38] sm:$0x7]
    %v7137 = vrot.slane %v7125, 1
    %v7138 = vrot.slane %v7125, 2
    %v7139 = vrot.slane %v7126, 1
    %v7140 = vrot.slane %v7126, 2
    %v7141 = vrot.slane %v7127, 1
    %v7142 = vrot.slane %v7127, 2
    %v7143 = vrot.slane %v7128, 1
    %v7144 = vrot.slane %v7128, 2
    %v7145 = vrot.slane %v7129, 1
    %v7146 = vrot.slane %v7129, 2
    %v7147 = vrot.slane %v7130, 1
    %v7148 = vrot.slane %v7130, 2
    %s7149 = scalar_lea.vmem %s3, 768
    %v7150 = vld [vmem:[%s7149] sm:$0xff]
    %v7151 = vld [vmem:[%s7149 + $0x8] sm:$0xff]
    %v7152 = vld [vmem:[%s7149 + $0x10] sm:$0xff]
    %v7153 = vld [vmem:[%s7149 + $0x18] sm:$0xff]
    %v7154 = vld [vmem:[%s7149 + $0x20] sm:$0xff]
    %v7155 = vld [vmem:[%s7149 + $0x28] sm:$0xff]
    %v7156 = vld [vmem:[%s7149 + $0x30] sm:$0xff]
    %v7157 = vld [vmem:[%s7149 + $0x38] sm:$0xff]
    %v7158 = vld [vmem:[%s7149 + $0x40] sm:$0xff]
    %v7159 = vld [vmem:[%s7149 + $0x48] sm:$0xff]
    %v7160 = vld [vmem:[%s7149 + $0x50] sm:$0xff]
    %v7161 = vld [vmem:[%s7149 + $0x58] sm:$0xff]
    %v7162 = vld [vmem:[%s7149 + $0x60] sm:$0xff]
    %v7163 = vld [vmem:[%s7149 + $0x68] sm:$0xff]
    %v7164 = vld [vmem:[%s7149 + $0x70] sm:$0xff]
    %v7165 = vld [vmem:[%s7149 + $0x78] sm:$0xff]
    %7166 = vst [vmem:[#allocation1] ss:$9 sm:$0xff] %v7125
    %s7167 = scalar_lea.vmem [#allocation1], 1
    %7168 = vst [vmem:[%s7167] ss:$9 sm:$0xff] %v7137
    %s7169 = scalar_lea.vmem [#allocation1], 2
    %7170 = vst [vmem:[%s7169] ss:$9 sm:$0xff] %v7138
    %s7171 = scalar_lea.vmem [#allocation1], 3
    %7172 = vst [vmem:[%s7171] ss:$9 sm:$0xff] %v7126
    %s7173 = scalar_lea.vmem [#allocation1], 4
    %7174 = vst [vmem:[%s7173] ss:$9 sm:$0xff] %v7139
    %s7175 = scalar_lea.vmem [#allocation1], 5
    %7176 = vst [vmem:[%s7175] ss:$9 sm:$0xff] %v7140
    %s7177 = scalar_lea.vmem [#allocation1], 6
    %7178 = vst [vmem:[%s7177] ss:$9 sm:$0xff] %v7127
    %s7179 = scalar_lea.vmem [#allocation1], 7
    %7180 = vst [vmem:[%s7179] ss:$9 sm:$0xff] %v7141
    %v7181 = vld [vmem:[#allocation1] sm:$0xff]
    %7182 = vst [vmem:[#allocation1] ss:$9 sm:$0xff] %v7142
    %7183 = vst [vmem:[%s7167] ss:$9 sm:$0xff] %v7128
    %7184 = vst [vmem:[%s7169] ss:$9 sm:$0xff] %v7143
    %7185 = vst [vmem:[%s7171] ss:$9 sm:$0xff] %v7144
    %7186 = vst [vmem:[%s7173] ss:$9 sm:$0xff] %v7129
    %7187 = vst [vmem:[%s7175] ss:$9 sm:$0xff] %v7145
    %7188 = vst [vmem:[%s7177] ss:$9 sm:$0xff] %v7146
    %7189 = vst [vmem:[%s7179] ss:$9 sm:$0xff] %v7130
    %v7190 = vld [vmem:[#allocation1] sm:$0xff]
    %7191 = vst [vmem:[#allocation1] ss:$9 sm:$0xff] %v7147
    %7192 = vst [vmem:[%s7167] ss:$9 sm:$0xff] %v7148
    %v7193 = vld [vmem:[#allocation1] sm:$0xff]
    %7197 = vmatpush.msra.mxu0 %v7165
    %7198 = vmatpush.msra.mxu0 %v7164
    %7199 = vmatpush.msra.mxu0 %v7163
    %7200 = vmatpush.msra.mxu0 %v7162
    %7201 = vmatpush.msra.mxu0 %v7161
    %7202 = vmatpush.msra.mxu0 %v7160
    %7203 = vmatpush.msra.mxu0 %v7159
    %7204 = vmatpush.msra.mxu0 %v7158
    %7205 = vmatpush.msra.mxu0 %v7157
    %7206 = vmatpush.msra.mxu0 %v7156
    %7207 = vmatpush.msra.mxu0 %v7155
    %7208 = vmatpush.msra.mxu0 %v7154
    %7209 = vmatpush.msra.mxu0 %v7153
    %7210 = vmatpush.msra.mxu0 %v7152
    %7211 = vmatpush.msra.mxu0 %v7151
    %7212 = vmatpush.msra.mxu0 %v7150
    %7213 = vmatmul.f32.gmra.mxu0 %v7181
    %v7214 = vpop.f32.mrf.mxu0
    %v7215 = vadd.f32 0.0, %v7214
    %7216 = vmatmul.f32.gmra.mxu0 %v7190
    %v7217 = vpop.f32.mrf.mxu0
    %v7218 = vadd.f32 0.0, %v7217
    %7219 = vmatmul.f32.gmra.mxu0 %v7193
    %v7220 = vpop.f32.mrf.mxu0
    %v7221 = vadd.f32 0.0, %v7220
    %7222 = vdwg.mxu0
    %v7223 = vadd.f32 %v7121, %v7215
    %v7224 = vadd.f32 %v7122, %v7218
    %v7225 = vadd.f32 %v7123, %v7221
    %v7226 = vld [vmem:[%s7124 + $0x1] sm:$0x7]
    %v7227 = vld [vmem:[%s7124 + $0x9] sm:$0x7]
    %v7228 = vld [vmem:[%s7124 + $0x11] sm:$0x7]
    %v7229 = vld [vmem:[%s7124 + $0x29] sm:$0x7]
    %v7230 = vld [vmem:[%s7124 + $0x31] sm:$0x7]
    %v7231 = vld [vmem:[%s7124 + $0x39] sm:$0x7]
    %v7238 = vrot.slane %v7226, 1
    %v7239 = vrot.slane %v7226, 2
    %v7240 = vrot.slane %v7227, 1
    %v7241 = vrot.slane %v7227, 2
    %v7242 = vrot.slane %v7228, 1
    %v7243 = vrot.slane %v7228, 2
    %v7244 = vrot.slane %v7229, 1
    %v7245 = vrot.slane %v7229, 2
    %v7246 = vrot.slane %v7230, 1
    %v7247 = vrot.slane %v7230, 2
    %v7248 = vrot.slane %v7231, 1
    %v7249 = vrot.slane %v7231, 2
    %s7250 = scalar_lea.vmem %s3, 896
    %v7251 = vld [vmem:[%s7250] sm:$0xff]
    %v7252 = vld [vmem:[%s7250 + $0x8] sm:$0xff]
    %v7253 = vld [vmem:[%s7250 + $0x10] sm:$0xff]
    %v7254 = vld [vmem:[%s7250 + $0x18] sm:$0xff]
    %v7255 = vld [vmem:[%s7250 + $0x20] sm:$0xff]
    %v7256 = vld [vmem:[%s7250 + $0x28] sm:$0xff]
    %v7257 = vld [vmem:[%s7250 + $0x30] sm:$0xff]
    %v7258 = vld [vmem:[%s7250 + $0x38] sm:$0xff]
    %v7259 = vld [vmem:[%s7250 + $0x40] sm:$0xff]
    %v7260 = vld [vmem:[%s7250 + $0x48] sm:$0xff]
    %v7261 = vld [vmem:[%s7250 + $0x50] sm:$0xff]
    %v7262 = vld [vmem:[%s7250 + $0x58] sm:$0xff]
    %v7263 = vld [vmem:[%s7250 + $0x60] sm:$0xff]
    %v7264 = vld [vmem:[%s7250 + $0x68] sm:$0xff]
    %v7265 = vld [vmem:[%s7250 + $0x70] sm:$0xff]
    %v7266 = vld [vmem:[%s7250 + $0x78] sm:$0xff]
    %7267 = vst [vmem:[#allocation1] ss:$9 sm:$0xff] %v7226
    %s7268 = scalar_lea.vmem [#allocation1], 1
    %7269 = vst [vmem:[%s7268] ss:$9 sm:$0xff] %v7238
    %s7270 = scalar_lea.vmem [#allocation1], 2
    %7271 = vst [vmem:[%s7270] ss:$9 sm:$0xff] %v7239
    %s7272 = scalar_lea.vmem [#allocation1], 3
    %7273 = vst [vmem:[%s7272] ss:$9 sm:$0xff] %v7227
    %s7274 = scalar_lea.vmem [#allocation1], 4
    %7275 = vst [vmem:[%s7274] ss:$9 sm:$0xff] %v7240
    %s7276 = scalar_lea.vmem [#allocation1], 5
    %7277 = vst [vmem:[%s7276] ss:$9 sm:$0xff] %v7241
    %s7278 = scalar_lea.vmem [#allocation1], 6
    %7279 = vst [vmem:[%s7278] ss:$9 sm:$0xff] %v7228
    %s7280 = scalar_lea.vmem [#allocation1], 7
    %7281 = vst [vmem:[%s7280] ss:$9 sm:$0xff] %v7242
    %v7282 = vld [vmem:[#allocation1] sm:$0xff]
    %7283 = vst [vmem:[#allocation1] ss:$9 sm:$0xff] %v7243
    %7284 = vst [vmem:[%s7268] ss:$9 sm:$0xff] %v7229
    %7285 = vst [vmem:[%s7270] ss:$9 sm:$0xff] %v7244
    %7286 = vst [vmem:[%s7272] ss:$9 sm:$0xff] %v7245
    %7287 = vst [vmem:[%s7274] ss:$9 sm:$0xff] %v7230
    %7288 = vst [vmem:[%s7276] ss:$9 sm:$0xff] %v7246
    %7289 = vst [vmem:[%s7278] ss:$9 sm:$0xff] %v7247
    %7290 = vst [vmem:[%s7280] ss:$9 sm:$0xff] %v7231
    %v7291 = vld [vmem:[#allocation1] sm:$0xff]
    %7292 = vst [vmem:[#allocation1] ss:$9 sm:$0xff] %v7248
    %7293 = vst [vmem:[%s7268] ss:$9 sm:$0xff] %v7249
    %v7294 = vld [vmem:[#allocation1] sm:$0xff]
    %7298 = vmatpush.msra.mxu0 %v7266
    %7299 = vmatpush.msra.mxu0 %v7265
    %7300 = vmatpush.msra.mxu0 %v7264
    %7301 = vmatpush.msra.mxu0 %v7263
    %7302 = vmatpush.msra.mxu0 %v7262
    %7303 = vmatpush.msra.mxu0 %v7261
    %7304 = vmatpush.msra.mxu0 %v7260
    %7305 = vmatpush.msra.mxu0 %v7259
    %7306 = vmatpush.msra.mxu0 %v7258
    %7307 = vmatpush.msra.mxu0 %v7257
    %7308 = vmatpush.msra.mxu0 %v7256
    %7309 = vmatpush.msra.mxu0 %v7255
    %7310 = vmatpush.msra.mxu0 %v7254
    %7311 = vmatpush.msra.mxu0 %v7253
    %7312 = vmatpush.msra.mxu0 %v7252
    %7313 = vmatpush.msra.mxu0 %v7251
    %7314 = vmatmul.f32.gmra.mxu0 %v7282
    %v7315 = vpop.f32.mrf.mxu0
    %v7316 = vadd.f32 0.0, %v7315
    %7317 = vmatmul.f32.gmra.mxu0 %v7291
    %v7318 = vpop.f32.mrf.mxu0
    %v7319 = vadd.f32 0.0, %v7318
    %7320 = vmatmul.f32.gmra.mxu0 %v7294
    %v7321 = vpop.f32.mrf.mxu0
    %v7322 = vadd.f32 0.0, %v7321
    %7323 = vdwg.mxu0
    %v7324 = vadd.f32 %v7223, %v7316
    %v7325 = vadd.f32 %v7224, %v7319
    %v7326 = vadd.f32 %v7225, %v7322
    %v7327 = vld [vmem:[%s7124 + $0x2] sm:$0x7]
    %v7328 = vld [vmem:[%s7124 + $0xa] sm:$0x7]
    %v7329 = vld [vmem:[%s7124 + $0x12] sm:$0x7]
    %v7330 = vld [vmem:[%s7124 + $0x2a] sm:$0x7]
    %v7331 = vld [vmem:[%s7124 + $0x32] sm:$0x7]
    %v7332 = vld [vmem:[%s7124 + $0x3a] sm:$0x7]
    %v7339 = vrot.slane %v7327, 1
    %v7340 = vrot.slane %v7327, 2
    %v7341 = vrot.slane %v7328, 1
    %v7342 = vrot.slane %v7328, 2
    %v7343 = vrot.slane %v7329, 1
    %v7344 = vrot.slane %v7329, 2
    %v7345 = vrot.slane %v7330, 1
    %v7346 = vrot.slane %v7330, 2
    %v7347 = vrot.slane %v7331, 1
    %v7348 = vrot.slane %v7331, 2
    %v7349 = vrot.slane %v7332, 1
    %v7350 = vrot.slane %v7332, 2
    %s7351 = scalar_lea.vmem %s3, 1024
    %v7352 = vld [vmem:[%s7351] sm:$0xff]
    %v7353 = vld [vmem:[%s7351 + $0x8] sm:$0xff]
    %v7354 = vld [vmem:[%s7351 + $0x10] sm:$0xff]
    %v7355 = vld [vmem:[%s7351 + $0x18] sm:$0xff]
    %v7356 = vld [vmem:[%s7351 + $0x20] sm:$0xff]
    %v7357 = vld [vmem:[%s7351 + $0x28] sm:$0xff]
    %v7358 = vld [vmem:[%s7351 + $0x30] sm:$0xff]
    %v7359 = vld [vmem:[%s7351 + $0x38] sm:$0xff]
    %v7360 = vld [vmem:[%s7351 + $0x40] sm:$0xff]
    %v7361 = vld [vmem:[%s7351 + $0x48] sm:$0xff]
    %v7362 = vld [vmem:[%s7351 + $0x50] sm:$0xff]
    %v7363 = vld [vmem:[%s7351 + $0x58] sm:$0xff]
    %v7364 = vld [vmem:[%s7351 + $0x60] sm:$0xff]
    %v7365 = vld [vmem:[%s7351 + $0x68] sm:$0xff]
    %v7366 = vld [vmem:[%s7351 + $0x70] sm:$0xff]
    %v7367 = vld [vmem:[%s7351 + $0x78] sm:$0xff]
    %7368 = vst [vmem:[#allocation1] ss:$9 sm:$0xff] %v7327
    %s7369 = scalar_lea.vmem [#allocation1], 1
    %7370 = vst [vmem:[%s7369] ss:$9 sm:$0xff] %v7339
    %s7371 = scalar_lea.vmem [#allocation1], 2
    %7372 = vst [vmem:[%s7371] ss:$9 sm:$0xff] %v7340
    %s7373 = scalar_lea.vmem [#allocation1], 3
    %7374 = vst [vmem:[%s7373] ss:$9 sm:$0xff] %v7328
    %s7375 = scalar_lea.vmem [#allocation1], 4
    %7376 = vst [vmem:[%s7375] ss:$9 sm:$0xff] %v7341
    %s7377 = scalar_lea.vmem [#allocation1], 5
    %7378 = vst [vmem:[%s7377] ss:$9 sm:$0xff] %v7342
    %s7379 = scalar_lea.vmem [#allocation1], 6
    %7380 = vst [vmem:[%s7379] ss:$9 sm:$0xff] %v7329
    %s7381 = scalar_lea.vmem [#allocation1], 7
    %7382 = vst [vmem:[%s7381] ss:$9 sm:$0xff] %v7343
    %v7383 = vld [vmem:[#allocation1] sm:$0xff]
    %7384 = vst [vmem:[#allocation1] ss:$9 sm:$0xff] %v7344
    %7385 = vst [vmem:[%s7369] ss:$9 sm:$0xff] %v7330
    %7386 = vst [vmem:[%s7371] ss:$9 sm:$0xff] %v7345
    %7387 = vst [vmem:[%s7373] ss:$9 sm:$0xff] %v7346
    %7388 = vst [vmem:[%s7375] ss:$9 sm:$0xff] %v7331
    %7389 = vst [vmem:[%s7377] ss:$9 sm:$0xff] %v7347
    %7390 = vst [vmem:[%s7379] ss:$9 sm:$0xff] %v7348
    %7391 = vst [vmem:[%s7381] ss:$9 sm:$0xff] %v7332
    %v7392 = vld [vmem:[#allocation1] sm:$0xff]
    %7393 = vst [vmem:[#allocation1] ss:$9 sm:$0xff] %v7349
    %7394 = vst [vmem:[%s7369] ss:$9 sm:$0xff] %v7350
    %v7395 = vld [vmem:[#allocation1] sm:$0xff]
    %7399 = vmatpush.msra.mxu0 %v7367
    %7400 = vmatpush.msra.mxu0 %v7366
    %7401 = vmatpush.msra.mxu0 %v7365
    %7402 = vmatpush.msra.mxu0 %v7364
    %7403 = vmatpush.msra.mxu0 %v7363
    %7404 = vmatpush.msra.mxu0 %v7362
    %7405 = vmatpush.msra.mxu0 %v7361
    %7406 = vmatpush.msra.mxu0 %v7360
    %7407 = vmatpush.msra.mxu0 %v7359
    %7408 = vmatpush.msra.mxu0 %v7358
    %7409 = vmatpush.msra.mxu0 %v7357
    %7410 = vmatpush.msra.mxu0 %v7356
    %7411 = vmatpush.msra.mxu0 %v7355
    %7412 = vmatpush.msra.mxu0 %v7354
    %7413 = vmatpush.msra.mxu0 %v7353
    %7414 = vmatpush.msra.mxu0 %v7352
    %7415 = vmatmul.f32.gmra.mxu0 %v7383
    %v7416 = vpop.f32.mrf.mxu0
    %v7417 = vadd.f32 0.0, %v7416
    %7418 = vmatmul.f32.gmra.mxu0 %v7392
    %v7419 = vpop.f32.mrf.mxu0
    %v7420 = vadd.f32 0.0, %v7419
    %7421 = vmatmul.f32.gmra.mxu0 %v7395
    %v7422 = vpop.f32.mrf.mxu0
    %v7423 = vadd.f32 0.0, %v7422
    %7424 = vdwg.mxu0
    %v7425 = vadd.f32 %v7324, %v7417
    %v7426 = vadd.f32 %v7325, %v7420
    %v7427 = vadd.f32 %v7326, %v7423
    %v7428 = vperm.slane %v6524, 0
    %v7429 = vadd.f32 %v7425, %v7428
    %v7430 = vadd.f32 %v7426, %v7428
    %v7431 = vadd.f32 %v7427, %v7428
    %v7432 = vmax.f32 %v7429, 0.0
    %v7433 = vmax.f32 %v7430, 0.0
    %v7434 = vmax.f32 %v7431, 0.0
    %7435 = vst [vmem:[#allocation6] sm:$0x1f] 0.0
    %7436 = vst [vmem:[#allocation6 + $0x8] sm:$0x1f] 0.0
    %7437 = vst [vmem:[#allocation6 + $0x10] sm:$0x1f] 0.0
    %7438 = vst [vmem:[#allocation6 + $0x18] sm:$0x1f] 0.0
    %7439 = vst [vmem:[#allocation6 + $0x20] sm:$0x1f] 0.0
    %7440 = vst [vmem:[#allocation6 + $0x28] sm:$0x1f] 0.0
    %7441 = vst [vmem:[#allocation6 + $0x30] sm:$0x1f] 0.0
    %7442 = vst [vmem:[#allocation6 + $0x38] sm:$0x1f] 0.0
    %7443 = vst [vmem:[#allocation6 + $0x40] sm:$0x1f] 0.0
    %7444 = vst [vmem:[#allocation6 + $0x48] sm:$0x1f] 0.0
    %v7448 = vrot.slane %v7432, 1
    %v7449 = vrot.slane %v7432, 2
    %v7450 = vrot.slane %v7432, 3
    %v7451 = vrot.slane %v7432, 4
    %v7452 = vrot.slane %v7432, 5
    %v7453 = vrot.slane %v7432, 6
    %v7454 = vrot.slane %v7432, 7
    %v7455 = vrot.slane %v7433, 1
    %v7456 = vrot.slane %v7433, 2
    %v7457 = vrot.slane %v7433, 3
    %v7458 = vrot.slane %v7433, 4
    %v7459 = vrot.slane %v7433, 5
    %v7460 = vrot.slane %v7433, 6
    %v7461 = vrot.slane %v7433, 7
    %v7462 = vrot.slane %v7434, 1
    %7463 = vst [vmem:[#allocation1] ss:$9 sm:$0xff] %v7432
    %s7464 = scalar_lea.vmem [#allocation1], 1
    %7465 = vst [vmem:[%s7464] ss:$9 sm:$0xff] %v7448
    %s7466 = scalar_lea.vmem [#allocation1], 2
    %7467 = vst [vmem:[%s7466] ss:$9 sm:$0xff] %v7449
    %v7468 = vld [vmem:[#allocation1] sm:$0xff]
    %7469 = vst [vmem:[#allocation1] ss:$9 sm:$0xff] %v7450
    %7470 = vst [vmem:[%s7464] ss:$9 sm:$0xff] %v7451
    %7471 = vst [vmem:[%s7466] ss:$9 sm:$0xff] %v7452
    %v7472 = vld [vmem:[#allocation1] sm:$0xff]
    %7473 = vst [vmem:[#allocation1] ss:$9 sm:$0xff] %v7453
    %7474 = vst [vmem:[%s7464] ss:$9 sm:$0xff] %v7454
    %7475 = vst [vmem:[%s7466] ss:$9 sm:$0xff] %v7433
    %v7476 = vld [vmem:[#allocation1] sm:$0xff]
    %7477 = vst [vmem:[#allocation1] ss:$9 sm:$0xff] %v7455
    %7478 = vst [vmem:[%s7464] ss:$9 sm:$0xff] %v7456
    %7479 = vst [vmem:[%s7466] ss:$9 sm:$0xff] %v7457
    %v7480 = vld [vmem:[#allocation1] sm:$0xff]
    %7481 = vst [vmem:[#allocation1] ss:$9 sm:$0xff] %v7458
    %7482 = vst [vmem:[%s7464] ss:$9 sm:$0xff] %v7459
    %7483 = vst [vmem:[%s7466] ss:$9 sm:$0xff] %v7460
    %v7484 = vld [vmem:[#allocation1] sm:$0xff]
    %7485 = vst [vmem:[#allocation1] ss:$9 sm:$0xff] %v7461
    %7486 = vst [vmem:[%s7464] ss:$9 sm:$0xff] %v7434
    %7487 = vst [vmem:[%s7466] ss:$9 sm:$0xff] %v7462
    %v7488 = vld [vmem:[#allocation1] sm:$0xff]
    %s7495 = scalar_lea.vmem [#allocation6], 8
    %7496 = vst [vmem:[%s7495 + $0x1] sm:$0x7] %v7468
    %7497 = vst [vmem:[%s7495 + $0x9] sm:$0x7] %v7472
    %7498 = vst [vmem:[%s7495 + $0x11] sm:$0x7] %v7476
    %7499 = vst [vmem:[%s7495 + $0x29] sm:$0x7] %v7480
    %7500 = vst [vmem:[%s7495 + $0x31] sm:$0x7] %v7484
    %7501 = vst [vmem:[%s7495 + $0x39] sm:$0x7] %v7488
    %v7502 = vld [vmem:[%s9 + $0x3] sm:$0x1]
    %v7503 = vld [vmem:[#allocation6] sm:$0x7]
    %v7504 = vld [vmem:[#allocation6 + $0x8] sm:$0x7]
    %v7505 = vld [vmem:[#allocation6 + $0x10] sm:$0x7]
    %v7506 = vld [vmem:[#allocation6 + $0x28] sm:$0x7]
    %v7507 = vld [vmem:[#allocation6 + $0x30] sm:$0x7]
    %v7508 = vld [vmem:[#allocation6 + $0x38] sm:$0x7]
    %v7515 = vrot.slane %v7503, 1
    %v7516 = vrot.slane %v7503, 2
    %v7517 = vrot.slane %v7504, 1
    %v7518 = vrot.slane %v7504, 2
    %v7519 = vrot.slane %v7505, 1
    %v7520 = vrot.slane %v7505, 2
    %v7521 = vrot.slane %v7506, 1
    %v7522 = vrot.slane %v7506, 2
    %v7523 = vrot.slane %v7507, 1
    %v7524 = vrot.slane %v7507, 2
    %v7525 = vrot.slane %v7508, 1
    %v7526 = vrot.slane %v7508, 2
    %v7527 = vld [vmem:[%s4] sm:$0xff]
    %v7528 = vld [vmem:[%s4 + $0x8] sm:$0xff]
    %v7529 = vld [vmem:[%s4 + $0x10] sm:$0xff]
    %v7530 = vld [vmem:[%s4 + $0x18] sm:$0xff]
    %v7531 = vld [vmem:[%s4 + $0x20] sm:$0xff]
    %v7532 = vld [vmem:[%s4 + $0x28] sm:$0xff]
    %v7533 = vld [vmem:[%s4 + $0x30] sm:$0xff]
    %v7534 = vld [vmem:[%s4 + $0x38] sm:$0xff]
    %v7535 = vld [vmem:[%s4 + $0x40] sm:$0xff]
    %v7536 = vld [vmem:[%s4 + $0x48] sm:$0xff]
    %v7537 = vld [vmem:[%s4 + $0x50] sm:$0xff]
    %v7538 = vld [vmem:[%s4 + $0x58] sm:$0xff]
    %v7539 = vld [vmem:[%s4 + $0x60] sm:$0xff]
    %v7540 = vld [vmem:[%s4 + $0x68] sm:$0xff]
    %v7541 = vld [vmem:[%s4 + $0x70] sm:$0xff]
    %v7542 = vld [vmem:[%s4 + $0x78] sm:$0xff]
    %v7543 = vld [vmem:[#allocation6 + $0x1] sm:$0x7]
    %v7544 = vld [vmem:[#allocation6 + $0x9] sm:$0x7]
    %v7545 = vld [vmem:[#allocation6 + $0x11] sm:$0x7]
    %v7546 = vld [vmem:[#allocation6 + $0x29] sm:$0x7]
    %v7547 = vld [vmem:[#allocation6 + $0x31] sm:$0x7]
    %v7548 = vld [vmem:[#allocation6 + $0x39] sm:$0x7]
    %v7555 = vrot.slane %v7543, 1
    %v7556 = vrot.slane %v7543, 2
    %v7557 = vrot.slane %v7544, 1
    %v7558 = vrot.slane %v7544, 2
    %v7559 = vrot.slane %v7545, 1
    %v7560 = vrot.slane %v7545, 2
    %v7561 = vrot.slane %v7546, 1
    %v7562 = vrot.slane %v7546, 2
    %v7563 = vrot.slane %v7547, 1
    %v7564 = vrot.slane %v7547, 2
    %v7565 = vrot.slane %v7548, 1
    %v7566 = vrot.slane %v7548, 2
    %s7567 = scalar_lea.vmem %s4, 128
    %v7568 = vld [vmem:[%s7567] sm:$0xff]
    %v7569 = vld [vmem:[%s7567 + $0x8] sm:$0xff]
    %v7570 = vld [vmem:[%s7567 + $0x10] sm:$0xff]
    %v7571 = vld [vmem:[%s7567 + $0x18] sm:$0xff]
    %v7572 = vld [vmem:[%s7567 + $0x20] sm:$0xff]
    %v7573 = vld [vmem:[%s7567 + $0x28] sm:$0xff]
    %v7574 = vld [vmem:[%s7567 + $0x30] sm:$0xff]
    %v7575 = vld [vmem:[%s7567 + $0x38] sm:$0xff]
    %v7576 = vld [vmem:[%s7567 + $0x40] sm:$0xff]
    %v7577 = vld [vmem:[%s7567 + $0x48] sm:$0xff]
    %v7578 = vld [vmem:[%s7567 + $0x50] sm:$0xff]
    %v7579 = vld [vmem:[%s7567 + $0x58] sm:$0xff]
    %v7580 = vld [vmem:[%s7567 + $0x60] sm:$0xff]
    %v7581 = vld [vmem:[%s7567 + $0x68] sm:$0xff]
    %v7582 = vld [vmem:[%s7567 + $0x70] sm:$0xff]
    %v7583 = vld [vmem:[%s7567 + $0x78] sm:$0xff]
    %7584 = vst [vmem:[#allocation1] ss:$9 sm:$0xff] %v7543
    %s7585 = scalar_lea.vmem [#allocation1], 1
    %7586 = vst [vmem:[%s7585] ss:$9 sm:$0xff] %v7555
    %s7587 = scalar_lea.vmem [#allocation1], 2
    %7588 = vst [vmem:[%s7587] ss:$9 sm:$0xff] %v7556
    %s7589 = scalar_lea.vmem [#allocation1], 3
    %7590 = vst [vmem:[%s7589] ss:$9 sm:$0xff] %v7544
    %s7591 = scalar_lea.vmem [#allocation1], 4
    %7592 = vst [vmem:[%s7591] ss:$9 sm:$0xff] %v7557
    %s7593 = scalar_lea.vmem [#allocation1], 5
    %7594 = vst [vmem:[%s7593] ss:$9 sm:$0xff] %v7558
    %s7595 = scalar_lea.vmem [#allocation1], 6
    %7596 = vst [vmem:[%s7595] ss:$9 sm:$0xff] %v7545
    %s7597 = scalar_lea.vmem [#allocation1], 7
    %7598 = vst [vmem:[%s7597] ss:$9 sm:$0xff] %v7559
    %v7599 = vld [vmem:[#allocation1] sm:$0xff]
    %7600 = vst [vmem:[#allocation1] ss:$9 sm:$0xff] %v7560
    %7601 = vst [vmem:[%s7585] ss:$9 sm:$0xff] %v7546
    %7602 = vst [vmem:[%s7587] ss:$9 sm:$0xff] %v7561
    %7603 = vst [vmem:[%s7589] ss:$9 sm:$0xff] %v7562
    %7604 = vst [vmem:[%s7591] ss:$9 sm:$0xff] %v7547
    %7605 = vst [vmem:[%s7593] ss:$9 sm:$0xff] %v7563
    %7606 = vst [vmem:[%s7595] ss:$9 sm:$0xff] %v7564
    %7607 = vst [vmem:[%s7597] ss:$9 sm:$0xff] %v7548
    %v7608 = vld [vmem:[#allocation1] sm:$0xff]
    %7609 = vst [vmem:[#allocation1] ss:$9 sm:$0xff] %v7565
    %7610 = vst [vmem:[%s7585] ss:$9 sm:$0xff] %v7566
    %v7611 = vld [vmem:[#allocation1] sm:$0xff]
    %7615 = vmatpush.msra.mxu0 %v7583
    %7616 = vmatpush.msra.mxu0 %v7582
    %7617 = vmatpush.msra.mxu0 %v7581
    %7618 = vmatpush.msra.mxu0 %v7580
    %7619 = vmatpush.msra.mxu0 %v7579
    %7620 = vmatpush.msra.mxu0 %v7578
    %7621 = vmatpush.msra.mxu0 %v7577
    %7622 = vmatpush.msra.mxu0 %v7576
    %7623 = vmatpush.msra.mxu0 %v7575
    %7624 = vmatpush.msra.mxu0 %v7574
    %7625 = vmatpush.msra.mxu0 %v7573
    %7626 = vmatpush.msra.mxu0 %v7572
    %7627 = vmatpush.msra.mxu0 %v7571
    %7628 = vmatpush.msra.mxu0 %v7570
    %7629 = vmatpush.msra.mxu0 %v7569
    %7630 = vmatpush.msra.mxu0 %v7568
    %7631 = vmatmul.f32.gmra.mxu0 %v7599
    %v7632 = vpop.f32.mrf.mxu0
    %v7633 = vadd.f32 0.0, %v7632
    %7634 = vmatmul.f32.gmra.mxu0 %v7608
    %v7635 = vpop.f32.mrf.mxu0
    %v7636 = vadd.f32 0.0, %v7635
    %7637 = vmatmul.f32.gmra.mxu0 %v7611
    %v7638 = vpop.f32.mrf.mxu0
    %v7639 = vadd.f32 0.0, %v7638
    %7640 = vdwg.mxu0
    %7641 = vst [vmem:[#allocation1] ss:$9 sm:$0xff] %v7503
    %s7642 = scalar_lea.vmem [#allocation1], 1
    %7643 = vst [vmem:[%s7642] ss:$9 sm:$0xff] %v7515
    %s7644 = scalar_lea.vmem [#allocation1], 2
    %7645 = vst [vmem:[%s7644] ss:$9 sm:$0xff] %v7516
    %s7646 = scalar_lea.vmem [#allocation1], 3
    %7647 = vst [vmem:[%s7646] ss:$9 sm:$0xff] %v7504
    %s7648 = scalar_lea.vmem [#allocation1], 4
    %7649 = vst [vmem:[%s7648] ss:$9 sm:$0xff] %v7517
    %s7650 = scalar_lea.vmem [#allocation1], 5
    %7651 = vst [vmem:[%s7650] ss:$9 sm:$0xff] %v7518
    %s7652 = scalar_lea.vmem [#allocation1], 6
    %7653 = vst [vmem:[%s7652] ss:$9 sm:$0xff] %v7505
    %s7654 = scalar_lea.vmem [#allocation1], 7
    %7655 = vst [vmem:[%s7654] ss:$9 sm:$0xff] %v7519
    %v7656 = vld [vmem:[#allocation1] sm:$0xff]
    %7657 = vst [vmem:[#allocation1] ss:$9 sm:$0xff] %v7520
    %7658 = vst [vmem:[%s7642] ss:$9 sm:$0xff] %v7506
    %7659 = vst [vmem:[%s7644] ss:$9 sm:$0xff] %v7521
    %7660 = vst [vmem:[%s7646] ss:$9 sm:$0xff] %v7522
    %7661 = vst [vmem:[%s7648] ss:$9 sm:$0xff] %v7507
    %7662 = vst [vmem:[%s7650] ss:$9 sm:$0xff] %v7523
    %7663 = vst [vmem:[%s7652] ss:$9 sm:$0xff] %v7524
    %7664 = vst [vmem:[%s7654] ss:$9 sm:$0xff] %v7508
    %v7665 = vld [vmem:[#allocation1] sm:$0xff]
    %7666 = vst [vmem:[#allocation1] ss:$9 sm:$0xff] %v7525
    %7667 = vst [vmem:[%s7642] ss:$9 sm:$0xff] %v7526
    %v7668 = vld [vmem:[#allocation1] sm:$0xff]
    %7672 = vmatpush.msra.mxu0 %v7542
    %7673 = vmatpush.msra.mxu0 %v7541
    %7674 = vmatpush.msra.mxu0 %v7540
    %7675 = vmatpush.msra.mxu0 %v7539
    %7676 = vmatpush.msra.mxu0 %v7538
    %7677 = vmatpush.msra.mxu0 %v7537
    %7678 = vmatpush.msra.mxu0 %v7536
    %7679 = vmatpush.msra.mxu0 %v7535
    %7680 = vmatpush.msra.mxu0 %v7534
    %7681 = vmatpush.msra.mxu0 %v7533
    %7682 = vmatpush.msra.mxu0 %v7532
    %7683 = vmatpush.msra.mxu0 %v7531
    %7684 = vmatpush.msra.mxu0 %v7530
    %7685 = vmatpush.msra.mxu0 %v7529
    %7686 = vmatpush.msra.mxu0 %v7528
    %7687 = vmatpush.msra.mxu0 %v7527
    %7688 = vmatmul.f32.gmra.mxu0 %v7656
    %v7689 = vpop.f32.mrf.mxu0
    %v7690 = vadd.f32 %v7633, %v7689
    %7691 = vmatmul.f32.gmra.mxu0 %v7665
    %v7692 = vpop.f32.mrf.mxu0
    %v7693 = vadd.f32 %v7636, %v7692
    %7694 = vmatmul.f32.gmra.mxu0 %v7668
    %v7695 = vpop.f32.mrf.mxu0
    %v7696 = vadd.f32 %v7639, %v7695
    %7697 = vdwg.mxu0
    %v7698 = vld [vmem:[#allocation6 + $0x2] sm:$0x7]
    %v7699 = vld [vmem:[#allocation6 + $0xa] sm:$0x7]
    %v7700 = vld [vmem:[#allocation6 + $0x12] sm:$0x7]
    %v7701 = vld [vmem:[#allocation6 + $0x2a] sm:$0x7]
    %v7702 = vld [vmem:[#allocation6 + $0x32] sm:$0x7]
    %v7703 = vld [vmem:[#allocation6 + $0x3a] sm:$0x7]
    %v7710 = vrot.slane %v7698, 1
    %v7711 = vrot.slane %v7698, 2
    %v7712 = vrot.slane %v7699, 1
    %v7713 = vrot.slane %v7699, 2
    %v7714 = vrot.slane %v7700, 1
    %v7715 = vrot.slane %v7700, 2
    %v7716 = vrot.slane %v7701, 1
    %v7717 = vrot.slane %v7701, 2
    %v7718 = vrot.slane %v7702, 1
    %v7719 = vrot.slane %v7702, 2
    %v7720 = vrot.slane %v7703, 1
    %v7721 = vrot.slane %v7703, 2
    %s7722 = scalar_lea.vmem %s4, 256
    %v7723 = vld [vmem:[%s7722] sm:$0xff]
    %v7724 = vld [vmem:[%s7722 + $0x8] sm:$0xff]
    %v7725 = vld [vmem:[%s7722 + $0x10] sm:$0xff]
    %v7726 = vld [vmem:[%s7722 + $0x18] sm:$0xff]
    %v7727 = vld [vmem:[%s7722 + $0x20] sm:$0xff]
    %v7728 = vld [vmem:[%s7722 + $0x28] sm:$0xff]
    %v7729 = vld [vmem:[%s7722 + $0x30] sm:$0xff]
    %v7730 = vld [vmem:[%s7722 + $0x38] sm:$0xff]
    %v7731 = vld [vmem:[%s7722 + $0x40] sm:$0xff]
    %v7732 = vld [vmem:[%s7722 + $0x48] sm:$0xff]
    %v7733 = vld [vmem:[%s7722 + $0x50] sm:$0xff]
    %v7734 = vld [vmem:[%s7722 + $0x58] sm:$0xff]
    %v7735 = vld [vmem:[%s7722 + $0x60] sm:$0xff]
    %v7736 = vld [vmem:[%s7722 + $0x68] sm:$0xff]
    %v7737 = vld [vmem:[%s7722 + $0x70] sm:$0xff]
    %v7738 = vld [vmem:[%s7722 + $0x78] sm:$0xff]
    %7739 = vst [vmem:[#allocation1] ss:$9 sm:$0xff] %v7698
    %s7740 = scalar_lea.vmem [#allocation1], 1
    %7741 = vst [vmem:[%s7740] ss:$9 sm:$0xff] %v7710
    %s7742 = scalar_lea.vmem [#allocation1], 2
    %7743 = vst [vmem:[%s7742] ss:$9 sm:$0xff] %v7711
    %s7744 = scalar_lea.vmem [#allocation1], 3
    %7745 = vst [vmem:[%s7744] ss:$9 sm:$0xff] %v7699
    %s7746 = scalar_lea.vmem [#allocation1], 4
    %7747 = vst [vmem:[%s7746] ss:$9 sm:$0xff] %v7712
    %s7748 = scalar_lea.vmem [#allocation1], 5
    %7749 = vst [vmem:[%s7748] ss:$9 sm:$0xff] %v7713
    %s7750 = scalar_lea.vmem [#allocation1], 6
    %7751 = vst [vmem:[%s7750] ss:$9 sm:$0xff] %v7700
    %s7752 = scalar_lea.vmem [#allocation1], 7
    %7753 = vst [vmem:[%s7752] ss:$9 sm:$0xff] %v7714
    %v7754 = vld [vmem:[#allocation1] sm:$0xff]
    %7755 = vst [vmem:[#allocation1] ss:$9 sm:$0xff] %v7715
    %7756 = vst [vmem:[%s7740] ss:$9 sm:$0xff] %v7701
    %7757 = vst [vmem:[%s7742] ss:$9 sm:$0xff] %v7716
    %7758 = vst [vmem:[%s7744] ss:$9 sm:$0xff] %v7717
    %7759 = vst [vmem:[%s7746] ss:$9 sm:$0xff] %v7702
    %7760 = vst [vmem:[%s7748] ss:$9 sm:$0xff] %v7718
    %7761 = vst [vmem:[%s7750] ss:$9 sm:$0xff] %v7719
    %7762 = vst [vmem:[%s7752] ss:$9 sm:$0xff] %v7703
    %v7763 = vld [vmem:[#allocation1] sm:$0xff]
    %7764 = vst [vmem:[#allocation1] ss:$9 sm:$0xff] %v7720
    %7765 = vst [vmem:[%s7740] ss:$9 sm:$0xff] %v7721
    %v7766 = vld [vmem:[#allocation1] sm:$0xff]
    %7770 = vmatpush.msra.mxu0 %v7738
    %7771 = vmatpush.msra.mxu0 %v7737
    %7772 = vmatpush.msra.mxu0 %v7736
    %7773 = vmatpush.msra.mxu0 %v7735
    %7774 = vmatpush.msra.mxu0 %v7734
    %7775 = vmatpush.msra.mxu0 %v7733
    %7776 = vmatpush.msra.mxu0 %v7732
    %7777 = vmatpush.msra.mxu0 %v7731
    %7778 = vmatpush.msra.mxu0 %v7730
    %7779 = vmatpush.msra.mxu0 %v7729
    %7780 = vmatpush.msra.mxu0 %v7728
    %7781 = vmatpush.msra.mxu0 %v7727
    %7782 = vmatpush.msra.mxu0 %v7726
    %7783 = vmatpush.msra.mxu0 %v7725
    %7784 = vmatpush.msra.mxu0 %v7724
    %7785 = vmatpush.msra.mxu0 %v7723
    %7786 = vmatmul.f32.gmra.mxu0 %v7754
    %v7787 = vpop.f32.mrf.mxu0
    %v7788 = vadd.f32 0.0, %v7787
    %7789 = vmatmul.f32.gmra.mxu0 %v7763
    %v7790 = vpop.f32.mrf.mxu0
    %v7791 = vadd.f32 0.0, %v7790
    %7792 = vmatmul.f32.gmra.mxu0 %v7766
    %v7793 = vpop.f32.mrf.mxu0
    %v7794 = vadd.f32 0.0, %v7793
    %7795 = vdwg.mxu0
    %v7796 = vadd.f32 %v7690, %v7788
    %v7797 = vadd.f32 %v7693, %v7791
    %v7798 = vadd.f32 %v7696, %v7794
    %v7799 = vld [vmem:[%s7495] sm:$0x7]
    %v7800 = vld [vmem:[%s7495 + $0x8] sm:$0x7]
    %v7801 = vld [vmem:[%s7495 + $0x10] sm:$0x7]
    %v7802 = vld [vmem:[%s7495 + $0x28] sm:$0x7]
    %v7803 = vld [vmem:[%s7495 + $0x30] sm:$0x7]
    %v7804 = vld [vmem:[%s7495 + $0x38] sm:$0x7]
    %v7811 = vrot.slane %v7799, 1
    %v7812 = vrot.slane %v7799, 2
    %v7813 = vrot.slane %v7800, 1
    %v7814 = vrot.slane %v7800, 2
    %v7815 = vrot.slane %v7801, 1
    %v7816 = vrot.slane %v7801, 2
    %v7817 = vrot.slane %v7802, 1
    %v7818 = vrot.slane %v7802, 2
    %v7819 = vrot.slane %v7803, 1
    %v7820 = vrot.slane %v7803, 2
    %v7821 = vrot.slane %v7804, 1
    %v7822 = vrot.slane %v7804, 2
    %s7823 = scalar_lea.vmem %s4, 384
    %v7824 = vld [vmem:[%s7823] sm:$0xff]
    %v7825 = vld [vmem:[%s7823 + $0x8] sm:$0xff]
    %v7826 = vld [vmem:[%s7823 + $0x10] sm:$0xff]
    %v7827 = vld [vmem:[%s7823 + $0x18] sm:$0xff]
    %v7828 = vld [vmem:[%s7823 + $0x20] sm:$0xff]
    %v7829 = vld [vmem:[%s7823 + $0x28] sm:$0xff]
    %v7830 = vld [vmem:[%s7823 + $0x30] sm:$0xff]
    %v7831 = vld [vmem:[%s7823 + $0x38] sm:$0xff]
    %v7832 = vld [vmem:[%s7823 + $0x40] sm:$0xff]
    %v7833 = vld [vmem:[%s7823 + $0x48] sm:$0xff]
    %v7834 = vld [vmem:[%s7823 + $0x50] sm:$0xff]
    %v7835 = vld [vmem:[%s7823 + $0x58] sm:$0xff]
    %v7836 = vld [vmem:[%s7823 + $0x60] sm:$0xff]
    %v7837 = vld [vmem:[%s7823 + $0x68] sm:$0xff]
    %v7838 = vld [vmem:[%s7823 + $0x70] sm:$0xff]
    %v7839 = vld [vmem:[%s7823 + $0x78] sm:$0xff]
    %7840 = vst [vmem:[#allocation1] ss:$9 sm:$0xff] %v7799
    %s7841 = scalar_lea.vmem [#allocation1], 1
    %7842 = vst [vmem:[%s7841] ss:$9 sm:$0xff] %v7811
    %s7843 = scalar_lea.vmem [#allocation1], 2
    %7844 = vst [vmem:[%s7843] ss:$9 sm:$0xff] %v7812
    %s7845 = scalar_lea.vmem [#allocation1], 3
    %7846 = vst [vmem:[%s7845] ss:$9 sm:$0xff] %v7800
    %s7847 = scalar_lea.vmem [#allocation1], 4
    %7848 = vst [vmem:[%s7847] ss:$9 sm:$0xff] %v7813
    %s7849 = scalar_lea.vmem [#allocation1], 5
    %7850 = vst [vmem:[%s7849] ss:$9 sm:$0xff] %v7814
    %s7851 = scalar_lea.vmem [#allocation1], 6
    %7852 = vst [vmem:[%s7851] ss:$9 sm:$0xff] %v7801
    %s7853 = scalar_lea.vmem [#allocation1], 7
    %7854 = vst [vmem:[%s7853] ss:$9 sm:$0xff] %v7815
    %v7855 = vld [vmem:[#allocation1] sm:$0xff]
    %7856 = vst [vmem:[#allocation1] ss:$9 sm:$0xff] %v7816
    %7857 = vst [vmem:[%s7841] ss:$9 sm:$0xff] %v7802
    %7858 = vst [vmem:[%s7843] ss:$9 sm:$0xff] %v7817
    %7859 = vst [vmem:[%s7845] ss:$9 sm:$0xff] %v7818
    %7860 = vst [vmem:[%s7847] ss:$9 sm:$0xff] %v7803
    %7861 = vst [vmem:[%s7849] ss:$9 sm:$0xff] %v7819
    %7862 = vst [vmem:[%s7851] ss:$9 sm:$0xff] %v7820
    %7863 = vst [vmem:[%s7853] ss:$9 sm:$0xff] %v7804
    %v7864 = vld [vmem:[#allocation1] sm:$0xff]
    %7865 = vst [vmem:[#allocation1] ss:$9 sm:$0xff] %v7821
    %7866 = vst [vmem:[%s7841] ss:$9 sm:$0xff] %v7822
    %v7867 = vld [vmem:[#allocation1] sm:$0xff]
    %7871 = vmatpush.msra.mxu0 %v7839
    %7872 = vmatpush.msra.mxu0 %v7838
    %7873 = vmatpush.msra.mxu0 %v7837
    %7874 = vmatpush.msra.mxu0 %v7836
    %7875 = vmatpush.msra.mxu0 %v7835
    %7876 = vmatpush.msra.mxu0 %v7834
    %7877 = vmatpush.msra.mxu0 %v7833
    %7878 = vmatpush.msra.mxu0 %v7832
    %7879 = vmatpush.msra.mxu0 %v7831
    %7880 = vmatpush.msra.mxu0 %v7830
    %7881 = vmatpush.msra.mxu0 %v7829
    %7882 = vmatpush.msra.mxu0 %v7828
    %7883 = vmatpush.msra.mxu0 %v7827
    %7884 = vmatpush.msra.mxu0 %v7826
    %7885 = vmatpush.msra.mxu0 %v7825
    %7886 = vmatpush.msra.mxu0 %v7824
    %7887 = vmatmul.f32.gmra.mxu0 %v7855
    %v7888 = vpop.f32.mrf.mxu0
    %v7889 = vadd.f32 0.0, %v7888
    %7890 = vmatmul.f32.gmra.mxu0 %v7864
    %v7891 = vpop.f32.mrf.mxu0
    %v7892 = vadd.f32 0.0, %v7891
    %7893 = vmatmul.f32.gmra.mxu0 %v7867
    %v7894 = vpop.f32.mrf.mxu0
    %v7895 = vadd.f32 0.0, %v7894
    %7896 = vdwg.mxu0
    %v7897 = vadd.f32 %v7796, %v7889
    %v7898 = vadd.f32 %v7797, %v7892
    %v7899 = vadd.f32 %v7798, %v7895
    %v7900 = vld [vmem:[%s7495 + $0x1] sm:$0x7]
    %v7901 = vld [vmem:[%s7495 + $0x9] sm:$0x7]
    %v7902 = vld [vmem:[%s7495 + $0x11] sm:$0x7]
    %v7903 = vld [vmem:[%s7495 + $0x29] sm:$0x7]
    %v7904 = vld [vmem:[%s7495 + $0x31] sm:$0x7]
    %v7905 = vld [vmem:[%s7495 + $0x39] sm:$0x7]
    %v7912 = vrot.slane %v7900, 1
    %v7913 = vrot.slane %v7900, 2
    %v7914 = vrot.slane %v7901, 1
    %v7915 = vrot.slane %v7901, 2
    %v7916 = vrot.slane %v7902, 1
    %v7917 = vrot.slane %v7902, 2
    %v7918 = vrot.slane %v7903, 1
    %v7919 = vrot.slane %v7903, 2
    %v7920 = vrot.slane %v7904, 1
    %v7921 = vrot.slane %v7904, 2
    %v7922 = vrot.slane %v7905, 1
    %v7923 = vrot.slane %v7905, 2
    %s7924 = scalar_lea.vmem %s4, 512
    %v7925 = vld [vmem:[%s7924] sm:$0xff]
    %v7926 = vld [vmem:[%s7924 + $0x8] sm:$0xff]
    %v7927 = vld [vmem:[%s7924 + $0x10] sm:$0xff]
    %v7928 = vld [vmem:[%s7924 + $0x18] sm:$0xff]
    %v7929 = vld [vmem:[%s7924 + $0x20] sm:$0xff]
    %v7930 = vld [vmem:[%s7924 + $0x28] sm:$0xff]
    %v7931 = vld [vmem:[%s7924 + $0x30] sm:$0xff]
    %v7932 = vld [vmem:[%s7924 + $0x38] sm:$0xff]
    %v7933 = vld [vmem:[%s7924 + $0x40] sm:$0xff]
    %v7934 = vld [vmem:[%s7924 + $0x48] sm:$0xff]
    %v7935 = vld [vmem:[%s7924 + $0x50] sm:$0xff]
    %v7936 = vld [vmem:[%s7924 + $0x58] sm:$0xff]
    %v7937 = vld [vmem:[%s7924 + $0x60] sm:$0xff]
    %v7938 = vld [vmem:[%s7924 + $0x68] sm:$0xff]
    %v7939 = vld [vmem:[%s7924 + $0x70] sm:$0xff]
    %v7940 = vld [vmem:[%s7924 + $0x78] sm:$0xff]
    %7941 = vst [vmem:[#allocation1] ss:$9 sm:$0xff] %v7900
    %s7942 = scalar_lea.vmem [#allocation1], 1
    %7943 = vst [vmem:[%s7942] ss:$9 sm:$0xff] %v7912
    %s7944 = scalar_lea.vmem [#allocation1], 2
    %7945 = vst [vmem:[%s7944] ss:$9 sm:$0xff] %v7913
    %s7946 = scalar_lea.vmem [#allocation1], 3
    %7947 = vst [vmem:[%s7946] ss:$9 sm:$0xff] %v7901
    %s7948 = scalar_lea.vmem [#allocation1], 4
    %7949 = vst [vmem:[%s7948] ss:$9 sm:$0xff] %v7914
    %s7950 = scalar_lea.vmem [#allocation1], 5
    %7951 = vst [vmem:[%s7950] ss:$9 sm:$0xff] %v7915
    %s7952 = scalar_lea.vmem [#allocation1], 6
    %7953 = vst [vmem:[%s7952] ss:$9 sm:$0xff] %v7902
    %s7954 = scalar_lea.vmem [#allocation1], 7
    %7955 = vst [vmem:[%s7954] ss:$9 sm:$0xff] %v7916
    %v7956 = vld [vmem:[#allocation1] sm:$0xff]
    %7957 = vst [vmem:[#allocation1] ss:$9 sm:$0xff] %v7917
    %7958 = vst [vmem:[%s7942] ss:$9 sm:$0xff] %v7903
    %7959 = vst [vmem:[%s7944] ss:$9 sm:$0xff] %v7918
    %7960 = vst [vmem:[%s7946] ss:$9 sm:$0xff] %v7919
    %7961 = vst [vmem:[%s7948] ss:$9 sm:$0xff] %v7904
    %7962 = vst [vmem:[%s7950] ss:$9 sm:$0xff] %v7920
    %7963 = vst [vmem:[%s7952] ss:$9 sm:$0xff] %v7921
    %7964 = vst [vmem:[%s7954] ss:$9 sm:$0xff] %v7905
    %v7965 = vld [vmem:[#allocation1] sm:$0xff]
    %7966 = vst [vmem:[#allocation1] ss:$9 sm:$0xff] %v7922
    %7967 = vst [vmem:[%s7942] ss:$9 sm:$0xff] %v7923
    %v7968 = vld [vmem:[#allocation1] sm:$0xff]
    %7972 = vmatpush.msra.mxu0 %v7940
    %7973 = vmatpush.msra.mxu0 %v7939
    %7974 = vmatpush.msra.mxu0 %v7938
    %7975 = vmatpush.msra.mxu0 %v7937
    %7976 = vmatpush.msra.mxu0 %v7936
    %7977 = vmatpush.msra.mxu0 %v7935
    %7978 = vmatpush.msra.mxu0 %v7934
    %7979 = vmatpush.msra.mxu0 %v7933
    %7980 = vmatpush.msra.mxu0 %v7932
    %7981 = vmatpush.msra.mxu0 %v7931
    %7982 = vmatpush.msra.mxu0 %v7930
    %7983 = vmatpush.msra.mxu0 %v7929
    %7984 = vmatpush.msra.mxu0 %v7928
    %7985 = vmatpush.msra.mxu0 %v7927
    %7986 = vmatpush.msra.mxu0 %v7926
    %7987 = vmatpush.msra.mxu0 %v7925
    %7988 = vmatmul.f32.gmra.mxu0 %v7956
    %v7989 = vpop.f32.mrf.mxu0
    %v7990 = vadd.f32 0.0, %v7989
    %7991 = vmatmul.f32.gmra.mxu0 %v7965
    %v7992 = vpop.f32.mrf.mxu0
    %v7993 = vadd.f32 0.0, %v7992
    %7994 = vmatmul.f32.gmra.mxu0 %v7968
    %v7995 = vpop.f32.mrf.mxu0
    %v7996 = vadd.f32 0.0, %v7995
    %7997 = vdwg.mxu0
    %v7998 = vadd.f32 %v7897, %v7990
    %v7999 = vadd.f32 %v7898, %v7993
    %v8000 = vadd.f32 %v7899, %v7996
    %v8001 = vld [vmem:[%s7495 + $0x2] sm:$0x7]
    %v8002 = vld [vmem:[%s7495 + $0xa] sm:$0x7]
    %v8003 = vld [vmem:[%s7495 + $0x12] sm:$0x7]
    %v8004 = vld [vmem:[%s7495 + $0x2a] sm:$0x7]
    %v8005 = vld [vmem:[%s7495 + $0x32] sm:$0x7]
    %v8006 = vld [vmem:[%s7495 + $0x3a] sm:$0x7]
    %v8013 = vrot.slane %v8001, 1
    %v8014 = vrot.slane %v8001, 2
    %v8015 = vrot.slane %v8002, 1
    %v8016 = vrot.slane %v8002, 2
    %v8017 = vrot.slane %v8003, 1
    %v8018 = vrot.slane %v8003, 2
    %v8019 = vrot.slane %v8004, 1
    %v8020 = vrot.slane %v8004, 2
    %v8021 = vrot.slane %v8005, 1
    %v8022 = vrot.slane %v8005, 2
    %v8023 = vrot.slane %v8006, 1
    %v8024 = vrot.slane %v8006, 2
    %s8025 = scalar_lea.vmem %s4, 640
    %v8026 = vld [vmem:[%s8025] sm:$0xff]
    %v8027 = vld [vmem:[%s8025 + $0x8] sm:$0xff]
    %v8028 = vld [vmem:[%s8025 + $0x10] sm:$0xff]
    %v8029 = vld [vmem:[%s8025 + $0x18] sm:$0xff]
    %v8030 = vld [vmem:[%s8025 + $0x20] sm:$0xff]
    %v8031 = vld [vmem:[%s8025 + $0x28] sm:$0xff]
    %v8032 = vld [vmem:[%s8025 + $0x30] sm:$0xff]
    %v8033 = vld [vmem:[%s8025 + $0x38] sm:$0xff]
    %v8034 = vld [vmem:[%s8025 + $0x40] sm:$0xff]
    %v8035 = vld [vmem:[%s8025 + $0x48] sm:$0xff]
    %v8036 = vld [vmem:[%s8025 + $0x50] sm:$0xff]
    %v8037 = vld [vmem:[%s8025 + $0x58] sm:$0xff]
    %v8038 = vld [vmem:[%s8025 + $0x60] sm:$0xff]
    %v8039 = vld [vmem:[%s8025 + $0x68] sm:$0xff]
    %v8040 = vld [vmem:[%s8025 + $0x70] sm:$0xff]
    %v8041 = vld [vmem:[%s8025 + $0x78] sm:$0xff]
    %8042 = vst [vmem:[#allocation1] ss:$9 sm:$0xff] %v8001
    %s8043 = scalar_lea.vmem [#allocation1], 1
    %8044 = vst [vmem:[%s8043] ss:$9 sm:$0xff] %v8013
    %s8045 = scalar_lea.vmem [#allocation1], 2
    %8046 = vst [vmem:[%s8045] ss:$9 sm:$0xff] %v8014
    %s8047 = scalar_lea.vmem [#allocation1], 3
    %8048 = vst [vmem:[%s8047] ss:$9 sm:$0xff] %v8002
    %s8049 = scalar_lea.vmem [#allocation1], 4
    %8050 = vst [vmem:[%s8049] ss:$9 sm:$0xff] %v8015
    %s8051 = scalar_lea.vmem [#allocation1], 5
    %8052 = vst [vmem:[%s8051] ss:$9 sm:$0xff] %v8016
    %s8053 = scalar_lea.vmem [#allocation1], 6
    %8054 = vst [vmem:[%s8053] ss:$9 sm:$0xff] %v8003
    %s8055 = scalar_lea.vmem [#allocation1], 7
    %8056 = vst [vmem:[%s8055] ss:$9 sm:$0xff] %v8017
    %v8057 = vld [vmem:[#allocation1] sm:$0xff]
    %8058 = vst [vmem:[#allocation1] ss:$9 sm:$0xff] %v8018
    %8059 = vst [vmem:[%s8043] ss:$9 sm:$0xff] %v8004
    %8060 = vst [vmem:[%s8045] ss:$9 sm:$0xff] %v8019
    %8061 = vst [vmem:[%s8047] ss:$9 sm:$0xff] %v8020
    %8062 = vst [vmem:[%s8049] ss:$9 sm:$0xff] %v8005
    %8063 = vst [vmem:[%s8051] ss:$9 sm:$0xff] %v8021
    %8064 = vst [vmem:[%s8053] ss:$9 sm:$0xff] %v8022
    %8065 = vst [vmem:[%s8055] ss:$9 sm:$0xff] %v8006
    %v8066 = vld [vmem:[#allocation1] sm:$0xff]
    %8067 = vst [vmem:[#allocation1] ss:$9 sm:$0xff] %v8023
    %8068 = vst [vmem:[%s8043] ss:$9 sm:$0xff] %v8024
    %v8069 = vld [vmem:[#allocation1] sm:$0xff]
    %8073 = vmatpush.msra.mxu0 %v8041
    %8074 = vmatpush.msra.mxu0 %v8040
    %8075 = vmatpush.msra.mxu0 %v8039
    %8076 = vmatpush.msra.mxu0 %v8038
    %8077 = vmatpush.msra.mxu0 %v8037
    %8078 = vmatpush.msra.mxu0 %v8036
    %8079 = vmatpush.msra.mxu0 %v8035
    %8080 = vmatpush.msra.mxu0 %v8034
    %8081 = vmatpush.msra.mxu0 %v8033
    %8082 = vmatpush.msra.mxu0 %v8032
    %8083 = vmatpush.msra.mxu0 %v8031
    %8084 = vmatpush.msra.mxu0 %v8030
    %8085 = vmatpush.msra.mxu0 %v8029
    %8086 = vmatpush.msra.mxu0 %v8028
    %8087 = vmatpush.msra.mxu0 %v8027
    %8088 = vmatpush.msra.mxu0 %v8026
    %8089 = vmatmul.f32.gmra.mxu0 %v8057
    %v8090 = vpop.f32.mrf.mxu0
    %v8091 = vadd.f32 0.0, %v8090
    %8092 = vmatmul.f32.gmra.mxu0 %v8066
    %v8093 = vpop.f32.mrf.mxu0
    %v8094 = vadd.f32 0.0, %v8093
    %8095 = vmatmul.f32.gmra.mxu0 %v8069
    %v8096 = vpop.f32.mrf.mxu0
    %v8097 = vadd.f32 0.0, %v8096
    %8098 = vdwg.mxu0
    %v8099 = vadd.f32 %v7998, %v8091
    %v8100 = vadd.f32 %v7999, %v8094
    %v8101 = vadd.f32 %v8000, %v8097
    %s8102 = scalar_lea.vmem [#allocation6], 16
    %v8103 = vld [vmem:[%s8102] sm:$0x7]
    %v8104 = vld [vmem:[%s8102 + $0x8] sm:$0x7]
    %v8105 = vld [vmem:[%s8102 + $0x10] sm:$0x7]
    %v8106 = vld [vmem:[%s8102 + $0x28] sm:$0x7]
    %v8107 = vld [vmem:[%s8102 + $0x30] sm:$0x7]
    %v8108 = vld [vmem:[%s8102 + $0x38] sm:$0x7]
    %v8115 = vrot.slane %v8103, 1
    %v8116 = vrot.slane %v8103, 2
    %v8117 = vrot.slane %v8104, 1
    %v8118 = vrot.slane %v8104, 2
    %v8119 = vrot.slane %v8105, 1
    %v8120 = vrot.slane %v8105, 2
    %v8121 = vrot.slane %v8106, 1
    %v8122 = vrot.slane %v8106, 2
    %v8123 = vrot.slane %v8107, 1
    %v8124 = vrot.slane %v8107, 2
    %v8125 = vrot.slane %v8108, 1
    %v8126 = vrot.slane %v8108, 2
    %s8127 = scalar_lea.vmem %s4, 768
    %v8128 = vld [vmem:[%s8127] sm:$0xff]
    %v8129 = vld [vmem:[%s8127 + $0x8] sm:$0xff]
    %v8130 = vld [vmem:[%s8127 + $0x10] sm:$0xff]
    %v8131 = vld [vmem:[%s8127 + $0x18] sm:$0xff]
    %v8132 = vld [vmem:[%s8127 + $0x20] sm:$0xff]
    %v8133 = vld [vmem:[%s8127 + $0x28] sm:$0xff]
    %v8134 = vld [vmem:[%s8127 + $0x30] sm:$0xff]
    %v8135 = vld [vmem:[%s8127 + $0x38] sm:$0xff]
    %v8136 = vld [vmem:[%s8127 + $0x40] sm:$0xff]
    %v8137 = vld [vmem:[%s8127 + $0x48] sm:$0xff]
    %v8138 = vld [vmem:[%s8127 + $0x50] sm:$0xff]
    %v8139 = vld [vmem:[%s8127 + $0x58] sm:$0xff]
    %v8140 = vld [vmem:[%s8127 + $0x60] sm:$0xff]
    %v8141 = vld [vmem:[%s8127 + $0x68] sm:$0xff]
    %v8142 = vld [vmem:[%s8127 + $0x70] sm:$0xff]
    %v8143 = vld [vmem:[%s8127 + $0x78] sm:$0xff]
    %8144 = vst [vmem:[#allocation1] ss:$9 sm:$0xff] %v8103
    %s8145 = scalar_lea.vmem [#allocation1], 1
    %8146 = vst [vmem:[%s8145] ss:$9 sm:$0xff] %v8115
    %s8147 = scalar_lea.vmem [#allocation1], 2
    %8148 = vst [vmem:[%s8147] ss:$9 sm:$0xff] %v8116
    %s8149 = scalar_lea.vmem [#allocation1], 3
    %8150 = vst [vmem:[%s8149] ss:$9 sm:$0xff] %v8104
    %s8151 = scalar_lea.vmem [#allocation1], 4
    %8152 = vst [vmem:[%s8151] ss:$9 sm:$0xff] %v8117
    %s8153 = scalar_lea.vmem [#allocation1], 5
    %8154 = vst [vmem:[%s8153] ss:$9 sm:$0xff] %v8118
    %s8155 = scalar_lea.vmem [#allocation1], 6
    %8156 = vst [vmem:[%s8155] ss:$9 sm:$0xff] %v8105
    %s8157 = scalar_lea.vmem [#allocation1], 7
    %8158 = vst [vmem:[%s8157] ss:$9 sm:$0xff] %v8119
    %v8159 = vld [vmem:[#allocation1] sm:$0xff]
    %8160 = vst [vmem:[#allocation1] ss:$9 sm:$0xff] %v8120
    %8161 = vst [vmem:[%s8145] ss:$9 sm:$0xff] %v8106
    %8162 = vst [vmem:[%s8147] ss:$9 sm:$0xff] %v8121
    %8163 = vst [vmem:[%s8149] ss:$9 sm:$0xff] %v8122
    %8164 = vst [vmem:[%s8151] ss:$9 sm:$0xff] %v8107
    %8165 = vst [vmem:[%s8153] ss:$9 sm:$0xff] %v8123
    %8166 = vst [vmem:[%s8155] ss:$9 sm:$0xff] %v8124
    %8167 = vst [vmem:[%s8157] ss:$9 sm:$0xff] %v8108
    %v8168 = vld [vmem:[#allocation1] sm:$0xff]
    %8169 = vst [vmem:[#allocation1] ss:$9 sm:$0xff] %v8125
    %8170 = vst [vmem:[%s8145] ss:$9 sm:$0xff] %v8126
    %v8171 = vld [vmem:[#allocation1] sm:$0xff]
    %8175 = vmatpush.msra.mxu0 %v8143
    %8176 = vmatpush.msra.mxu0 %v8142
    %8177 = vmatpush.msra.mxu0 %v8141
    %8178 = vmatpush.msra.mxu0 %v8140
    %8179 = vmatpush.msra.mxu0 %v8139
    %8180 = vmatpush.msra.mxu0 %v8138
    %8181 = vmatpush.msra.mxu0 %v8137
    %8182 = vmatpush.msra.mxu0 %v8136
    %8183 = vmatpush.msra.mxu0 %v8135
    %8184 = vmatpush.msra.mxu0 %v8134
    %8185 = vmatpush.msra.mxu0 %v8133
    %8186 = vmatpush.msra.mxu0 %v8132
    %8187 = vmatpush.msra.mxu0 %v8131
    %8188 = vmatpush.msra.mxu0 %v8130
    %8189 = vmatpush.msra.mxu0 %v8129
    %8190 = vmatpush.msra.mxu0 %v8128
    %8191 = vmatmul.f32.gmra.mxu0 %v8159
    %v8192 = vpop.f32.mrf.mxu0
    %v8193 = vadd.f32 0.0, %v8192
    %8194 = vmatmul.f32.gmra.mxu0 %v8168
    %v8195 = vpop.f32.mrf.mxu0
    %v8196 = vadd.f32 0.0, %v8195
    %8197 = vmatmul.f32.gmra.mxu0 %v8171
    %v8198 = vpop.f32.mrf.mxu0
    %v8199 = vadd.f32 0.0, %v8198
    %8200 = vdwg.mxu0
    %v8201 = vadd.f32 %v8099, %v8193
    %v8202 = vadd.f32 %v8100, %v8196
    %v8203 = vadd.f32 %v8101, %v8199
    %v8204 = vld [vmem:[%s8102 + $0x1] sm:$0x7]
    %v8205 = vld [vmem:[%s8102 + $0x9] sm:$0x7]
    %v8206 = vld [vmem:[%s8102 + $0x11] sm:$0x7]
    %v8207 = vld [vmem:[%s8102 + $0x29] sm:$0x7]
    %v8208 = vld [vmem:[%s8102 + $0x31] sm:$0x7]
    %v8209 = vld [vmem:[%s8102 + $0x39] sm:$0x7]
    %v8216 = vrot.slane %v8204, 1
    %v8217 = vrot.slane %v8204, 2
    %v8218 = vrot.slane %v8205, 1
    %v8219 = vrot.slane %v8205, 2
    %v8220 = vrot.slane %v8206, 1
    %v8221 = vrot.slane %v8206, 2
    %v8222 = vrot.slane %v8207, 1
    %v8223 = vrot.slane %v8207, 2
    %v8224 = vrot.slane %v8208, 1
    %v8225 = vrot.slane %v8208, 2
    %v8226 = vrot.slane %v8209, 1
    %v8227 = vrot.slane %v8209, 2
    %s8228 = scalar_lea.vmem %s4, 896
    %v8229 = vld [vmem:[%s8228] sm:$0xff]
    %v8230 = vld [vmem:[%s8228 + $0x8] sm:$0xff]
    %v8231 = vld [vmem:[%s8228 + $0x10] sm:$0xff]
    %v8232 = vld [vmem:[%s8228 + $0x18] sm:$0xff]
    %v8233 = vld [vmem:[%s8228 + $0x20] sm:$0xff]
    %v8234 = vld [vmem:[%s8228 + $0x28] sm:$0xff]
    %v8235 = vld [vmem:[%s8228 + $0x30] sm:$0xff]
    %v8236 = vld [vmem:[%s8228 + $0x38] sm:$0xff]
    %v8237 = vld [vmem:[%s8228 + $0x40] sm:$0xff]
    %v8238 = vld [vmem:[%s8228 + $0x48] sm:$0xff]
    %v8239 = vld [vmem:[%s8228 + $0x50] sm:$0xff]
    %v8240 = vld [vmem:[%s8228 + $0x58] sm:$0xff]
    %v8241 = vld [vmem:[%s8228 + $0x60] sm:$0xff]
    %v8242 = vld [vmem:[%s8228 + $0x68] sm:$0xff]
    %v8243 = vld [vmem:[%s8228 + $0x70] sm:$0xff]
    %v8244 = vld [vmem:[%s8228 + $0x78] sm:$0xff]
    %8245 = vst [vmem:[#allocation1] ss:$9 sm:$0xff] %v8204
    %s8246 = scalar_lea.vmem [#allocation1], 1
    %8247 = vst [vmem:[%s8246] ss:$9 sm:$0xff] %v8216
    %s8248 = scalar_lea.vmem [#allocation1], 2
    %8249 = vst [vmem:[%s8248] ss:$9 sm:$0xff] %v8217
    %s8250 = scalar_lea.vmem [#allocation1], 3
    %8251 = vst [vmem:[%s8250] ss:$9 sm:$0xff] %v8205
    %s8252 = scalar_lea.vmem [#allocation1], 4
    %8253 = vst [vmem:[%s8252] ss:$9 sm:$0xff] %v8218
    %s8254 = scalar_lea.vmem [#allocation1], 5
    %8255 = vst [vmem:[%s8254] ss:$9 sm:$0xff] %v8219
    %s8256 = scalar_lea.vmem [#allocation1], 6
    %8257 = vst [vmem:[%s8256] ss:$9 sm:$0xff] %v8206
    %s8258 = scalar_lea.vmem [#allocation1], 7
    %8259 = vst [vmem:[%s8258] ss:$9 sm:$0xff] %v8220
    %v8260 = vld [vmem:[#allocation1] sm:$0xff]
    %8261 = vst [vmem:[#allocation1] ss:$9 sm:$0xff] %v8221
    %8262 = vst [vmem:[%s8246] ss:$9 sm:$0xff] %v8207
    %8263 = vst [vmem:[%s8248] ss:$9 sm:$0xff] %v8222
    %8264 = vst [vmem:[%s8250] ss:$9 sm:$0xff] %v8223
    %8265 = vst [vmem:[%s8252] ss:$9 sm:$0xff] %v8208
    %8266 = vst [vmem:[%s8254] ss:$9 sm:$0xff] %v8224
    %8267 = vst [vmem:[%s8256] ss:$9 sm:$0xff] %v8225
    %8268 = vst [vmem:[%s8258] ss:$9 sm:$0xff] %v8209
    %v8269 = vld [vmem:[#allocation1] sm:$0xff]
    %8270 = vst [vmem:[#allocation1] ss:$9 sm:$0xff] %v8226
    %8271 = vst [vmem:[%s8246] ss:$9 sm:$0xff] %v8227
    %v8272 = vld [vmem:[#allocation1] sm:$0xff]
    %8276 = vmatpush.msra.mxu0 %v8244
    %8277 = vmatpush.msra.mxu0 %v8243
    %8278 = vmatpush.msra.mxu0 %v8242
    %8279 = vmatpush.msra.mxu0 %v8241
    %8280 = vmatpush.msra.mxu0 %v8240
    %8281 = vmatpush.msra.mxu0 %v8239
    %8282 = vmatpush.msra.mxu0 %v8238
    %8283 = vmatpush.msra.mxu0 %v8237
    %8284 = vmatpush.msra.mxu0 %v8236
    %8285 = vmatpush.msra.mxu0 %v8235
    %8286 = vmatpush.msra.mxu0 %v8234
    %8287 = vmatpush.msra.mxu0 %v8233
    %8288 = vmatpush.msra.mxu0 %v8232
    %8289 = vmatpush.msra.mxu0 %v8231
    %8290 = vmatpush.msra.mxu0 %v8230
    %8291 = vmatpush.msra.mxu0 %v8229
    %8292 = vmatmul.f32.gmra.mxu0 %v8260
    %v8293 = vpop.f32.mrf.mxu0
    %v8294 = vadd.f32 0.0, %v8293
    %8295 = vmatmul.f32.gmra.mxu0 %v8269
    %v8296 = vpop.f32.mrf.mxu0
    %v8297 = vadd.f32 0.0, %v8296
    %8298 = vmatmul.f32.gmra.mxu0 %v8272
    %v8299 = vpop.f32.mrf.mxu0
    %v8300 = vadd.f32 0.0, %v8299
    %8301 = vdwg.mxu0
    %v8302 = vadd.f32 %v8201, %v8294
    %v8303 = vadd.f32 %v8202, %v8297
    %v8304 = vadd.f32 %v8203, %v8300
    %v8305 = vld [vmem:[%s8102 + $0x2] sm:$0x7]
    %v8306 = vld [vmem:[%s8102 + $0xa] sm:$0x7]
    %v8307 = vld [vmem:[%s8102 + $0x12] sm:$0x7]
    %v8308 = vld [vmem:[%s8102 + $0x2a] sm:$0x7]
    %v8309 = vld [vmem:[%s8102 + $0x32] sm:$0x7]
    %v8310 = vld [vmem:[%s8102 + $0x3a] sm:$0x7]
    %v8317 = vrot.slane %v8305, 1
    %v8318 = vrot.slane %v8305, 2
    %v8319 = vrot.slane %v8306, 1
    %v8320 = vrot.slane %v8306, 2
    %v8321 = vrot.slane %v8307, 1
    %v8322 = vrot.slane %v8307, 2
    %v8323 = vrot.slane %v8308, 1
    %v8324 = vrot.slane %v8308, 2
    %v8325 = vrot.slane %v8309, 1
    %v8326 = vrot.slane %v8309, 2
    %v8327 = vrot.slane %v8310, 1
    %v8328 = vrot.slane %v8310, 2
    %s8329 = scalar_lea.vmem %s4, 1024
    %v8330 = vld [vmem:[%s8329] sm:$0xff]
    %v8331 = vld [vmem:[%s8329 + $0x8] sm:$0xff]
    %v8332 = vld [vmem:[%s8329 + $0x10] sm:$0xff]
    %v8333 = vld [vmem:[%s8329 + $0x18] sm:$0xff]
    %v8334 = vld [vmem:[%s8329 + $0x20] sm:$0xff]
    %v8335 = vld [vmem:[%s8329 + $0x28] sm:$0xff]
    %v8336 = vld [vmem:[%s8329 + $0x30] sm:$0xff]
    %v8337 = vld [vmem:[%s8329 + $0x38] sm:$0xff]
    %v8338 = vld [vmem:[%s8329 + $0x40] sm:$0xff]
    %v8339 = vld [vmem:[%s8329 + $0x48] sm:$0xff]
    %v8340 = vld [vmem:[%s8329 + $0x50] sm:$0xff]
    %v8341 = vld [vmem:[%s8329 + $0x58] sm:$0xff]
    %v8342 = vld [vmem:[%s8329 + $0x60] sm:$0xff]
    %v8343 = vld [vmem:[%s8329 + $0x68] sm:$0xff]
    %v8344 = vld [vmem:[%s8329 + $0x70] sm:$0xff]
    %v8345 = vld [vmem:[%s8329 + $0x78] sm:$0xff]
    %8346 = vst [vmem:[#allocation1] ss:$9 sm:$0xff] %v8305
    %s8347 = scalar_lea.vmem [#allocation1], 1
    %8348 = vst [vmem:[%s8347] ss:$9 sm:$0xff] %v8317
    %s8349 = scalar_lea.vmem [#allocation1], 2
    %8350 = vst [vmem:[%s8349] ss:$9 sm:$0xff] %v8318
    %s8351 = scalar_lea.vmem [#allocation1], 3
    %8352 = vst [vmem:[%s8351] ss:$9 sm:$0xff] %v8306
    %s8353 = scalar_lea.vmem [#allocation1], 4
    %8354 = vst [vmem:[%s8353] ss:$9 sm:$0xff] %v8319
    %s8355 = scalar_lea.vmem [#allocation1], 5
    %8356 = vst [vmem:[%s8355] ss:$9 sm:$0xff] %v8320
    %s8357 = scalar_lea.vmem [#allocation1], 6
    %8358 = vst [vmem:[%s8357] ss:$9 sm:$0xff] %v8307
    %s8359 = scalar_lea.vmem [#allocation1], 7
    %8360 = vst [vmem:[%s8359] ss:$9 sm:$0xff] %v8321
    %v8361 = vld [vmem:[#allocation1] sm:$0xff]
    %8362 = vst [vmem:[#allocation1] ss:$9 sm:$0xff] %v8322
    %8363 = vst [vmem:[%s8347] ss:$9 sm:$0xff] %v8308
    %8364 = vst [vmem:[%s8349] ss:$9 sm:$0xff] %v8323
    %8365 = vst [vmem:[%s8351] ss:$9 sm:$0xff] %v8324
    %8366 = vst [vmem:[%s8353] ss:$9 sm:$0xff] %v8309
    %8367 = vst [vmem:[%s8355] ss:$9 sm:$0xff] %v8325
    %8368 = vst [vmem:[%s8357] ss:$9 sm:$0xff] %v8326
    %8369 = vst [vmem:[%s8359] ss:$9 sm:$0xff] %v8310
    %v8370 = vld [vmem:[#allocation1] sm:$0xff]
    %8371 = vst [vmem:[#allocation1] ss:$9 sm:$0xff] %v8327
    %8372 = vst [vmem:[%s8347] ss:$9 sm:$0xff] %v8328
    %v8373 = vld [vmem:[#allocation1] sm:$0xff]
    %8377 = vmatpush.msra.mxu0 %v8345
    %8378 = vmatpush.msra.mxu0 %v8344
    %8379 = vmatpush.msra.mxu0 %v8343
    %8380 = vmatpush.msra.mxu0 %v8342
    %8381 = vmatpush.msra.mxu0 %v8341
    %8382 = vmatpush.msra.mxu0 %v8340
    %8383 = vmatpush.msra.mxu0 %v8339
    %8384 = vmatpush.msra.mxu0 %v8338
    %8385 = vmatpush.msra.mxu0 %v8337
    %8386 = vmatpush.msra.mxu0 %v8336
    %8387 = vmatpush.msra.mxu0 %v8335
    %8388 = vmatpush.msra.mxu0 %v8334
    %8389 = vmatpush.msra.mxu0 %v8333
    %8390 = vmatpush.msra.mxu0 %v8332
    %8391 = vmatpush.msra.mxu0 %v8331
    %8392 = vmatpush.msra.mxu0 %v8330
    %8393 = vmatmul.f32.gmra.mxu0 %v8361
    %v8394 = vpop.f32.mrf.mxu0
    %v8395 = vadd.f32 0.0, %v8394
    %8396 = vmatmul.f32.gmra.mxu0 %v8370
    %v8397 = vpop.f32.mrf.mxu0
    %v8398 = vadd.f32 0.0, %v8397
    %8399 = vmatmul.f32.gmra.mxu0 %v8373
    %v8400 = vpop.f32.mrf.mxu0
    %v8401 = vadd.f32 0.0, %v8400
    %8402 = vdwg.mxu0
    %v8403 = vadd.f32 %v8302, %v8395
    %v8404 = vadd.f32 %v8303, %v8398
    %v8405 = vadd.f32 %v8304, %v8401
    %v8406 = vperm.slane %v7502, 0
    %v8407 = vadd.f32 %v8403, %v8406
    %v8408 = vadd.f32 %v8404, %v8406
    %v8409 = vadd.f32 %v8405, %v8406
    %v8410 = vmax.f32 %v8407, 0.0
    %v8411 = vmax.f32 %v8408, 0.0
    %v8412 = vmax.f32 %v8409, 0.0
    %8413 = vst [vmem:[#allocation7] sm:$0x1f] 0.0
    %8414 = vst [vmem:[#allocation7 + $0x8] sm:$0x1f] 0.0
    %8415 = vst [vmem:[#allocation7 + $0x10] sm:$0x1f] 0.0
    %8416 = vst [vmem:[#allocation7 + $0x18] sm:$0x1f] 0.0
    %8417 = vst [vmem:[#allocation7 + $0x20] sm:$0x1f] 0.0
    %8418 = vst [vmem:[#allocation7 + $0x28] sm:$0x1f] 0.0
    %8419 = vst [vmem:[#allocation7 + $0x30] sm:$0x1f] 0.0
    %8420 = vst [vmem:[#allocation7 + $0x38] sm:$0x1f] 0.0
    %8421 = vst [vmem:[#allocation7 + $0x40] sm:$0x1f] 0.0
    %8422 = vst [vmem:[#allocation7 + $0x48] sm:$0x1f] 0.0
    %v8426 = vrot.slane %v8410, 1
    %v8427 = vrot.slane %v8410, 2
    %v8428 = vrot.slane %v8410, 3
    %v8429 = vrot.slane %v8410, 4
    %v8430 = vrot.slane %v8410, 5
    %v8431 = vrot.slane %v8410, 6
    %v8432 = vrot.slane %v8410, 7
    %v8433 = vrot.slane %v8411, 1
    %v8434 = vrot.slane %v8411, 2
    %v8435 = vrot.slane %v8411, 3
    %v8436 = vrot.slane %v8411, 4
    %v8437 = vrot.slane %v8411, 5
    %v8438 = vrot.slane %v8411, 6
    %v8439 = vrot.slane %v8411, 7
    %v8440 = vrot.slane %v8412, 1
    %8441 = vst [vmem:[#allocation1] ss:$9 sm:$0xff] %v8410
    %s8442 = scalar_lea.vmem [#allocation1], 1
    %8443 = vst [vmem:[%s8442] ss:$9 sm:$0xff] %v8426
    %s8444 = scalar_lea.vmem [#allocation1], 2
    %8445 = vst [vmem:[%s8444] ss:$9 sm:$0xff] %v8427
    %v8446 = vld [vmem:[#allocation1] sm:$0xff]
    %8447 = vst [vmem:[#allocation1] ss:$9 sm:$0xff] %v8428
    %8448 = vst [vmem:[%s8442] ss:$9 sm:$0xff] %v8429
    %8449 = vst [vmem:[%s8444] ss:$9 sm:$0xff] %v8430
    %v8450 = vld [vmem:[#allocation1] sm:$0xff]
    %8451 = vst [vmem:[#allocation1] ss:$9 sm:$0xff] %v8431
    %8452 = vst [vmem:[%s8442] ss:$9 sm:$0xff] %v8432
    %8453 = vst [vmem:[%s8444] ss:$9 sm:$0xff] %v8411
    %v8454 = vld [vmem:[#allocation1] sm:$0xff]
    %8455 = vst [vmem:[#allocation1] ss:$9 sm:$0xff] %v8433
    %8456 = vst [vmem:[%s8442] ss:$9 sm:$0xff] %v8434
    %8457 = vst [vmem:[%s8444] ss:$9 sm:$0xff] %v8435
    %v8458 = vld [vmem:[#allocation1] sm:$0xff]
    %8459 = vst [vmem:[#allocation1] ss:$9 sm:$0xff] %v8436
    %8460 = vst [vmem:[%s8442] ss:$9 sm:$0xff] %v8437
    %8461 = vst [vmem:[%s8444] ss:$9 sm:$0xff] %v8438
    %v8462 = vld [vmem:[#allocation1] sm:$0xff]
    %8463 = vst [vmem:[#allocation1] ss:$9 sm:$0xff] %v8439
    %8464 = vst [vmem:[%s8442] ss:$9 sm:$0xff] %v8412
    %8465 = vst [vmem:[%s8444] ss:$9 sm:$0xff] %v8440
    %v8466 = vld [vmem:[#allocation1] sm:$0xff]
    %s8473 = scalar_lea.vmem [#allocation7], 8
    %8474 = vst [vmem:[%s8473 + $0x1] sm:$0x7] %v8446
    %8475 = vst [vmem:[%s8473 + $0x9] sm:$0x7] %v8450
    %8476 = vst [vmem:[%s8473 + $0x11] sm:$0x7] %v8454
    %8477 = vst [vmem:[%s8473 + $0x29] sm:$0x7] %v8458
    %8478 = vst [vmem:[%s8473 + $0x31] sm:$0x7] %v8462
    %8479 = vst [vmem:[%s8473 + $0x39] sm:$0x7] %v8466
    %v8480 = vld [vmem:[%s9 + $0x4] sm:$0x1]
    %v8481 = vld [vmem:[#allocation7] sm:$0x7]
    %v8482 = vld [vmem:[#allocation7 + $0x8] sm:$0x7]
    %v8483 = vld [vmem:[#allocation7 + $0x10] sm:$0x7]
    %v8484 = vld [vmem:[#allocation7 + $0x28] sm:$0x7]
    %v8485 = vld [vmem:[#allocation7 + $0x30] sm:$0x7]
    %v8486 = vld [vmem:[#allocation7 + $0x38] sm:$0x7]
    %v8493 = vrot.slane %v8481, 1
    %v8494 = vrot.slane %v8481, 2
    %v8495 = vrot.slane %v8482, 1
    %v8496 = vrot.slane %v8482, 2
    %v8497 = vrot.slane %v8483, 1
    %v8498 = vrot.slane %v8483, 2
    %v8499 = vrot.slane %v8484, 1
    %v8500 = vrot.slane %v8484, 2
    %v8501 = vrot.slane %v8485, 1
    %v8502 = vrot.slane %v8485, 2
    %v8503 = vrot.slane %v8486, 1
    %v8504 = vrot.slane %v8486, 2
    %v8505 = vld [vmem:[%s5] sm:$0xff]
    %v8506 = vld [vmem:[%s5 + $0x8] sm:$0xff]
    %v8507 = vld [vmem:[%s5 + $0x10] sm:$0xff]
    %v8508 = vld [vmem:[%s5 + $0x18] sm:$0xff]
    %v8509 = vld [vmem:[%s5 + $0x20] sm:$0xff]
    %v8510 = vld [vmem:[%s5 + $0x28] sm:$0xff]
    %v8511 = vld [vmem:[%s5 + $0x30] sm:$0xff]
    %v8512 = vld [vmem:[%s5 + $0x38] sm:$0xff]
    %v8513 = vld [vmem:[%s5 + $0x40] sm:$0xff]
    %v8514 = vld [vmem:[%s5 + $0x48] sm:$0xff]
    %v8515 = vld [vmem:[%s5 + $0x50] sm:$0xff]
    %v8516 = vld [vmem:[%s5 + $0x58] sm:$0xff]
    %v8517 = vld [vmem:[%s5 + $0x60] sm:$0xff]
    %v8518 = vld [vmem:[%s5 + $0x68] sm:$0xff]
    %v8519 = vld [vmem:[%s5 + $0x70] sm:$0xff]
    %v8520 = vld [vmem:[%s5 + $0x78] sm:$0xff]
    %v8521 = vld [vmem:[#allocation7 + $0x1] sm:$0x7]
    %v8522 = vld [vmem:[#allocation7 + $0x9] sm:$0x7]
    %v8523 = vld [vmem:[#allocation7 + $0x11] sm:$0x7]
    %v8524 = vld [vmem:[#allocation7 + $0x29] sm:$0x7]
    %v8525 = vld [vmem:[#allocation7 + $0x31] sm:$0x7]
    %v8526 = vld [vmem:[#allocation7 + $0x39] sm:$0x7]
    %v8533 = vrot.slane %v8521, 1
    %v8534 = vrot.slane %v8521, 2
    %v8535 = vrot.slane %v8522, 1
    %v8536 = vrot.slane %v8522, 2
    %v8537 = vrot.slane %v8523, 1
    %v8538 = vrot.slane %v8523, 2
    %v8539 = vrot.slane %v8524, 1
    %v8540 = vrot.slane %v8524, 2
    %v8541 = vrot.slane %v8525, 1
    %v8542 = vrot.slane %v8525, 2
    %v8543 = vrot.slane %v8526, 1
    %v8544 = vrot.slane %v8526, 2
    %s8545 = scalar_lea.vmem %s5, 128
    %v8546 = vld [vmem:[%s8545] sm:$0xff]
    %v8547 = vld [vmem:[%s8545 + $0x8] sm:$0xff]
    %v8548 = vld [vmem:[%s8545 + $0x10] sm:$0xff]
    %v8549 = vld [vmem:[%s8545 + $0x18] sm:$0xff]
    %v8550 = vld [vmem:[%s8545 + $0x20] sm:$0xff]
    %v8551 = vld [vmem:[%s8545 + $0x28] sm:$0xff]
    %v8552 = vld [vmem:[%s8545 + $0x30] sm:$0xff]
    %v8553 = vld [vmem:[%s8545 + $0x38] sm:$0xff]
    %v8554 = vld [vmem:[%s8545 + $0x40] sm:$0xff]
    %v8555 = vld [vmem:[%s8545 + $0x48] sm:$0xff]
    %v8556 = vld [vmem:[%s8545 + $0x50] sm:$0xff]
    %v8557 = vld [vmem:[%s8545 + $0x58] sm:$0xff]
    %v8558 = vld [vmem:[%s8545 + $0x60] sm:$0xff]
    %v8559 = vld [vmem:[%s8545 + $0x68] sm:$0xff]
    %v8560 = vld [vmem:[%s8545 + $0x70] sm:$0xff]
    %v8561 = vld [vmem:[%s8545 + $0x78] sm:$0xff]
    %8562 = vst [vmem:[#allocation1] ss:$9 sm:$0xff] %v8521
    %s8563 = scalar_lea.vmem [#allocation1], 1
    %8564 = vst [vmem:[%s8563] ss:$9 sm:$0xff] %v8533
    %s8565 = scalar_lea.vmem [#allocation1], 2
    %8566 = vst [vmem:[%s8565] ss:$9 sm:$0xff] %v8534
    %s8567 = scalar_lea.vmem [#allocation1], 3
    %8568 = vst [vmem:[%s8567] ss:$9 sm:$0xff] %v8522
    %s8569 = scalar_lea.vmem [#allocation1], 4
    %8570 = vst [vmem:[%s8569] ss:$9 sm:$0xff] %v8535
    %s8571 = scalar_lea.vmem [#allocation1], 5
    %8572 = vst [vmem:[%s8571] ss:$9 sm:$0xff] %v8536
    %s8573 = scalar_lea.vmem [#allocation1], 6
    %8574 = vst [vmem:[%s8573] ss:$9 sm:$0xff] %v8523
    %s8575 = scalar_lea.vmem [#allocation1], 7
    %8576 = vst [vmem:[%s8575] ss:$9 sm:$0xff] %v8537
    %v8577 = vld [vmem:[#allocation1] sm:$0xff]
    %8578 = vst [vmem:[#allocation1] ss:$9 sm:$0xff] %v8538
    %8579 = vst [vmem:[%s8563] ss:$9 sm:$0xff] %v8524
    %8580 = vst [vmem:[%s8565] ss:$9 sm:$0xff] %v8539
    %8581 = vst [vmem:[%s8567] ss:$9 sm:$0xff] %v8540
    %8582 = vst [vmem:[%s8569] ss:$9 sm:$0xff] %v8525
    %8583 = vst [vmem:[%s8571] ss:$9 sm:$0xff] %v8541
    %8584 = vst [vmem:[%s8573] ss:$9 sm:$0xff] %v8542
    %8585 = vst [vmem:[%s8575] ss:$9 sm:$0xff] %v8526
    %v8586 = vld [vmem:[#allocation1] sm:$0xff]
    %8587 = vst [vmem:[#allocation1] ss:$9 sm:$0xff] %v8543
    %8588 = vst [vmem:[%s8563] ss:$9 sm:$0xff] %v8544
    %v8589 = vld [vmem:[#allocation1] sm:$0xff]
    %8593 = vmatpush.msra.mxu0 %v8561
    %8594 = vmatpush.msra.mxu0 %v8560
    %8595 = vmatpush.msra.mxu0 %v8559
    %8596 = vmatpush.msra.mxu0 %v8558
    %8597 = vmatpush.msra.mxu0 %v8557
    %8598 = vmatpush.msra.mxu0 %v8556
    %8599 = vmatpush.msra.mxu0 %v8555
    %8600 = vmatpush.msra.mxu0 %v8554
    %8601 = vmatpush.msra.mxu0 %v8553
    %8602 = vmatpush.msra.mxu0 %v8552
    %8603 = vmatpush.msra.mxu0 %v8551
    %8604 = vmatpush.msra.mxu0 %v8550
    %8605 = vmatpush.msra.mxu0 %v8549
    %8606 = vmatpush.msra.mxu0 %v8548
    %8607 = vmatpush.msra.mxu0 %v8547
    %8608 = vmatpush.msra.mxu0 %v8546
    %8609 = vmatmul.f32.gmra.mxu0 %v8577
    %v8610 = vpop.f32.mrf.mxu0
    %v8611 = vadd.f32 0.0, %v8610
    %8612 = vmatmul.f32.gmra.mxu0 %v8586
    %v8613 = vpop.f32.mrf.mxu0
    %v8614 = vadd.f32 0.0, %v8613
    %8615 = vmatmul.f32.gmra.mxu0 %v8589
    %v8616 = vpop.f32.mrf.mxu0
    %v8617 = vadd.f32 0.0, %v8616
    %8618 = vdwg.mxu0
    %8619 = vst [vmem:[#allocation1] ss:$9 sm:$0xff] %v8481
    %s8620 = scalar_lea.vmem [#allocation1], 1
    %8621 = vst [vmem:[%s8620] ss:$9 sm:$0xff] %v8493
    %s8622 = scalar_lea.vmem [#allocation1], 2
    %8623 = vst [vmem:[%s8622] ss:$9 sm:$0xff] %v8494
    %s8624 = scalar_lea.vmem [#allocation1], 3
    %8625 = vst [vmem:[%s8624] ss:$9 sm:$0xff] %v8482
    %s8626 = scalar_lea.vmem [#allocation1], 4
    %8627 = vst [vmem:[%s8626] ss:$9 sm:$0xff] %v8495
    %s8628 = scalar_lea.vmem [#allocation1], 5
    %8629 = vst [vmem:[%s8628] ss:$9 sm:$0xff] %v8496
    %s8630 = scalar_lea.vmem [#allocation1], 6
    %8631 = vst [vmem:[%s8630] ss:$9 sm:$0xff] %v8483
    %s8632 = scalar_lea.vmem [#allocation1], 7
    %8633 = vst [vmem:[%s8632] ss:$9 sm:$0xff] %v8497
    %v8634 = vld [vmem:[#allocation1] sm:$0xff]
    %8635 = vst [vmem:[#allocation1] ss:$9 sm:$0xff] %v8498
    %8636 = vst [vmem:[%s8620] ss:$9 sm:$0xff] %v8484
    %8637 = vst [vmem:[%s8622] ss:$9 sm:$0xff] %v8499
    %8638 = vst [vmem:[%s8624] ss:$9 sm:$0xff] %v8500
    %8639 = vst [vmem:[%s8626] ss:$9 sm:$0xff] %v8485
    %8640 = vst [vmem:[%s8628] ss:$9 sm:$0xff] %v8501
    %8641 = vst [vmem:[%s8630] ss:$9 sm:$0xff] %v8502
    %8642 = vst [vmem:[%s8632] ss:$9 sm:$0xff] %v8486
    %v8643 = vld [vmem:[#allocation1] sm:$0xff]
    %8644 = vst [vmem:[#allocation1] ss:$9 sm:$0xff] %v8503
    %8645 = vst [vmem:[%s8620] ss:$9 sm:$0xff] %v8504
    %v8646 = vld [vmem:[#allocation1] sm:$0xff]
    %8650 = vmatpush.msra.mxu0 %v8520
    %8651 = vmatpush.msra.mxu0 %v8519
    %8652 = vmatpush.msra.mxu0 %v8518
    %8653 = vmatpush.msra.mxu0 %v8517
    %8654 = vmatpush.msra.mxu0 %v8516
    %8655 = vmatpush.msra.mxu0 %v8515
    %8656 = vmatpush.msra.mxu0 %v8514
    %8657 = vmatpush.msra.mxu0 %v8513
    %8658 = vmatpush.msra.mxu0 %v8512
    %8659 = vmatpush.msra.mxu0 %v8511
    %8660 = vmatpush.msra.mxu0 %v8510
    %8661 = vmatpush.msra.mxu0 %v8509
    %8662 = vmatpush.msra.mxu0 %v8508
    %8663 = vmatpush.msra.mxu0 %v8507
    %8664 = vmatpush.msra.mxu0 %v8506
    %8665 = vmatpush.msra.mxu0 %v8505
    %8666 = vmatmul.f32.gmra.mxu0 %v8634
    %v8667 = vpop.f32.mrf.mxu0
    %v8668 = vadd.f32 %v8611, %v8667
    %8669 = vmatmul.f32.gmra.mxu0 %v8643
    %v8670 = vpop.f32.mrf.mxu0
    %v8671 = vadd.f32 %v8614, %v8670
    %8672 = vmatmul.f32.gmra.mxu0 %v8646
    %v8673 = vpop.f32.mrf.mxu0
    %v8674 = vadd.f32 %v8617, %v8673
    %8675 = vdwg.mxu0
    %v8676 = vld [vmem:[#allocation7 + $0x2] sm:$0x7]
    %v8677 = vld [vmem:[#allocation7 + $0xa] sm:$0x7]
    %v8678 = vld [vmem:[#allocation7 + $0x12] sm:$0x7]
    %v8679 = vld [vmem:[#allocation7 + $0x2a] sm:$0x7]
    %v8680 = vld [vmem:[#allocation7 + $0x32] sm:$0x7]
    %v8681 = vld [vmem:[#allocation7 + $0x3a] sm:$0x7]
    %v8688 = vrot.slane %v8676, 1
    %v8689 = vrot.slane %v8676, 2
    %v8690 = vrot.slane %v8677, 1
    %v8691 = vrot.slane %v8677, 2
    %v8692 = vrot.slane %v8678, 1
    %v8693 = vrot.slane %v8678, 2
    %v8694 = vrot.slane %v8679, 1
    %v8695 = vrot.slane %v8679, 2
    %v8696 = vrot.slane %v8680, 1
    %v8697 = vrot.slane %v8680, 2
    %v8698 = vrot.slane %v8681, 1
    %v8699 = vrot.slane %v8681, 2
    %s8700 = scalar_lea.vmem %s5, 256
    %v8701 = vld [vmem:[%s8700] sm:$0xff]
    %v8702 = vld [vmem:[%s8700 + $0x8] sm:$0xff]
    %v8703 = vld [vmem:[%s8700 + $0x10] sm:$0xff]
    %v8704 = vld [vmem:[%s8700 + $0x18] sm:$0xff]
    %v8705 = vld [vmem:[%s8700 + $0x20] sm:$0xff]
    %v8706 = vld [vmem:[%s8700 + $0x28] sm:$0xff]
    %v8707 = vld [vmem:[%s8700 + $0x30] sm:$0xff]
    %v8708 = vld [vmem:[%s8700 + $0x38] sm:$0xff]
    %v8709 = vld [vmem:[%s8700 + $0x40] sm:$0xff]
    %v8710 = vld [vmem:[%s8700 + $0x48] sm:$0xff]
    %v8711 = vld [vmem:[%s8700 + $0x50] sm:$0xff]
    %v8712 = vld [vmem:[%s8700 + $0x58] sm:$0xff]
    %v8713 = vld [vmem:[%s8700 + $0x60] sm:$0xff]
    %v8714 = vld [vmem:[%s8700 + $0x68] sm:$0xff]
    %v8715 = vld [vmem:[%s8700 + $0x70] sm:$0xff]
    %v8716 = vld [vmem:[%s8700 + $0x78] sm:$0xff]
    %8717 = vst [vmem:[#allocation1] ss:$9 sm:$0xff] %v8676
    %s8718 = scalar_lea.vmem [#allocation1], 1
    %8719 = vst [vmem:[%s8718] ss:$9 sm:$0xff] %v8688
    %s8720 = scalar_lea.vmem [#allocation1], 2
    %8721 = vst [vmem:[%s8720] ss:$9 sm:$0xff] %v8689
    %s8722 = scalar_lea.vmem [#allocation1], 3
    %8723 = vst [vmem:[%s8722] ss:$9 sm:$0xff] %v8677
    %s8724 = scalar_lea.vmem [#allocation1], 4
    %8725 = vst [vmem:[%s8724] ss:$9 sm:$0xff] %v8690
    %s8726 = scalar_lea.vmem [#allocation1], 5
    %8727 = vst [vmem:[%s8726] ss:$9 sm:$0xff] %v8691
    %s8728 = scalar_lea.vmem [#allocation1], 6
    %8729 = vst [vmem:[%s8728] ss:$9 sm:$0xff] %v8678
    %s8730 = scalar_lea.vmem [#allocation1], 7
    %8731 = vst [vmem:[%s8730] ss:$9 sm:$0xff] %v8692
    %v8732 = vld [vmem:[#allocation1] sm:$0xff]
    %8733 = vst [vmem:[#allocation1] ss:$9 sm:$0xff] %v8693
    %8734 = vst [vmem:[%s8718] ss:$9 sm:$0xff] %v8679
    %8735 = vst [vmem:[%s8720] ss:$9 sm:$0xff] %v8694
    %8736 = vst [vmem:[%s8722] ss:$9 sm:$0xff] %v8695
    %8737 = vst [vmem:[%s8724] ss:$9 sm:$0xff] %v8680
    %8738 = vst [vmem:[%s8726] ss:$9 sm:$0xff] %v8696
    %8739 = vst [vmem:[%s8728] ss:$9 sm:$0xff] %v8697
    %8740 = vst [vmem:[%s8730] ss:$9 sm:$0xff] %v8681
    %v8741 = vld [vmem:[#allocation1] sm:$0xff]
    %8742 = vst [vmem:[#allocation1] ss:$9 sm:$0xff] %v8698
    %8743 = vst [vmem:[%s8718] ss:$9 sm:$0xff] %v8699
    %v8744 = vld [vmem:[#allocation1] sm:$0xff]
    %8748 = vmatpush.msra.mxu0 %v8716
    %8749 = vmatpush.msra.mxu0 %v8715
    %8750 = vmatpush.msra.mxu0 %v8714
    %8751 = vmatpush.msra.mxu0 %v8713
    %8752 = vmatpush.msra.mxu0 %v8712
    %8753 = vmatpush.msra.mxu0 %v8711
    %8754 = vmatpush.msra.mxu0 %v8710
    %8755 = vmatpush.msra.mxu0 %v8709
    %8756 = vmatpush.msra.mxu0 %v8708
    %8757 = vmatpush.msra.mxu0 %v8707
    %8758 = vmatpush.msra.mxu0 %v8706
    %8759 = vmatpush.msra.mxu0 %v8705
    %8760 = vmatpush.msra.mxu0 %v8704
    %8761 = vmatpush.msra.mxu0 %v8703
    %8762 = vmatpush.msra.mxu0 %v8702
    %8763 = vmatpush.msra.mxu0 %v8701
    %8764 = vmatmul.f32.gmra.mxu0 %v8732
    %v8765 = vpop.f32.mrf.mxu0
    %v8766 = vadd.f32 0.0, %v8765
    %8767 = vmatmul.f32.gmra.mxu0 %v8741
    %v8768 = vpop.f32.mrf.mxu0
    %v8769 = vadd.f32 0.0, %v8768
    %8770 = vmatmul.f32.gmra.mxu0 %v8744
    %v8771 = vpop.f32.mrf.mxu0
    %v8772 = vadd.f32 0.0, %v8771
    %8773 = vdwg.mxu0
    %v8774 = vadd.f32 %v8668, %v8766
    %v8775 = vadd.f32 %v8671, %v8769
    %v8776 = vadd.f32 %v8674, %v8772
    %v8777 = vld [vmem:[%s8473] sm:$0x7]
    %v8778 = vld [vmem:[%s8473 + $0x8] sm:$0x7]
    %v8779 = vld [vmem:[%s8473 + $0x10] sm:$0x7]
    %v8780 = vld [vmem:[%s8473 + $0x28] sm:$0x7]
    %v8781 = vld [vmem:[%s8473 + $0x30] sm:$0x7]
    %v8782 = vld [vmem:[%s8473 + $0x38] sm:$0x7]
    %v8789 = vrot.slane %v8777, 1
    %v8790 = vrot.slane %v8777, 2
    %v8791 = vrot.slane %v8778, 1
    %v8792 = vrot.slane %v8778, 2
    %v8793 = vrot.slane %v8779, 1
    %v8794 = vrot.slane %v8779, 2
    %v8795 = vrot.slane %v8780, 1
    %v8796 = vrot.slane %v8780, 2
    %v8797 = vrot.slane %v8781, 1
    %v8798 = vrot.slane %v8781, 2
    %v8799 = vrot.slane %v8782, 1
    %v8800 = vrot.slane %v8782, 2
    %s8801 = scalar_lea.vmem %s5, 384
    %v8802 = vld [vmem:[%s8801] sm:$0xff]
    %v8803 = vld [vmem:[%s8801 + $0x8] sm:$0xff]
    %v8804 = vld [vmem:[%s8801 + $0x10] sm:$0xff]
    %v8805 = vld [vmem:[%s8801 + $0x18] sm:$0xff]
    %v8806 = vld [vmem:[%s8801 + $0x20] sm:$0xff]
    %v8807 = vld [vmem:[%s8801 + $0x28] sm:$0xff]
    %v8808 = vld [vmem:[%s8801 + $0x30] sm:$0xff]
    %v8809 = vld [vmem:[%s8801 + $0x38] sm:$0xff]
    %v8810 = vld [vmem:[%s8801 + $0x40] sm:$0xff]
    %v8811 = vld [vmem:[%s8801 + $0x48] sm:$0xff]
    %v8812 = vld [vmem:[%s8801 + $0x50] sm:$0xff]
    %v8813 = vld [vmem:[%s8801 + $0x58] sm:$0xff]
    %v8814 = vld [vmem:[%s8801 + $0x60] sm:$0xff]
    %v8815 = vld [vmem:[%s8801 + $0x68] sm:$0xff]
    %v8816 = vld [vmem:[%s8801 + $0x70] sm:$0xff]
    %v8817 = vld [vmem:[%s8801 + $0x78] sm:$0xff]
    %8818 = vst [vmem:[#allocation1] ss:$9 sm:$0xff] %v8777
    %s8819 = scalar_lea.vmem [#allocation1], 1
    %8820 = vst [vmem:[%s8819] ss:$9 sm:$0xff] %v8789
    %s8821 = scalar_lea.vmem [#allocation1], 2
    %8822 = vst [vmem:[%s8821] ss:$9 sm:$0xff] %v8790
    %s8823 = scalar_lea.vmem [#allocation1], 3
    %8824 = vst [vmem:[%s8823] ss:$9 sm:$0xff] %v8778
    %s8825 = scalar_lea.vmem [#allocation1], 4
    %8826 = vst [vmem:[%s8825] ss:$9 sm:$0xff] %v8791
    %s8827 = scalar_lea.vmem [#allocation1], 5
    %8828 = vst [vmem:[%s8827] ss:$9 sm:$0xff] %v8792
    %s8829 = scalar_lea.vmem [#allocation1], 6
    %8830 = vst [vmem:[%s8829] ss:$9 sm:$0xff] %v8779
    %s8831 = scalar_lea.vmem [#allocation1], 7
    %8832 = vst [vmem:[%s8831] ss:$9 sm:$0xff] %v8793
    %v8833 = vld [vmem:[#allocation1] sm:$0xff]
    %8834 = vst [vmem:[#allocation1] ss:$9 sm:$0xff] %v8794
    %8835 = vst [vmem:[%s8819] ss:$9 sm:$0xff] %v8780
    %8836 = vst [vmem:[%s8821] ss:$9 sm:$0xff] %v8795
    %8837 = vst [vmem:[%s8823] ss:$9 sm:$0xff] %v8796
    %8838 = vst [vmem:[%s8825] ss:$9 sm:$0xff] %v8781
    %8839 = vst [vmem:[%s8827] ss:$9 sm:$0xff] %v8797
    %8840 = vst [vmem:[%s8829] ss:$9 sm:$0xff] %v8798
    %8841 = vst [vmem:[%s8831] ss:$9 sm:$0xff] %v8782
    %v8842 = vld [vmem:[#allocation1] sm:$0xff]
    %8843 = vst [vmem:[#allocation1] ss:$9 sm:$0xff] %v8799
    %8844 = vst [vmem:[%s8819] ss:$9 sm:$0xff] %v8800
    %v8845 = vld [vmem:[#allocation1] sm:$0xff]
    %8849 = vmatpush.msra.mxu0 %v8817
    %8850 = vmatpush.msra.mxu0 %v8816
    %8851 = vmatpush.msra.mxu0 %v8815
    %8852 = vmatpush.msra.mxu0 %v8814
    %8853 = vmatpush.msra.mxu0 %v8813
    %8854 = vmatpush.msra.mxu0 %v8812
    %8855 = vmatpush.msra.mxu0 %v8811
    %8856 = vmatpush.msra.mxu0 %v8810
    %8857 = vmatpush.msra.mxu0 %v8809
    %8858 = vmatpush.msra.mxu0 %v8808
    %8859 = vmatpush.msra.mxu0 %v8807
    %8860 = vmatpush.msra.mxu0 %v8806
    %8861 = vmatpush.msra.mxu0 %v8805
    %8862 = vmatpush.msra.mxu0 %v8804
    %8863 = vmatpush.msra.mxu0 %v8803
    %8864 = vmatpush.msra.mxu0 %v8802
    %8865 = vmatmul.f32.gmra.mxu0 %v8833
    %v8866 = vpop.f32.mrf.mxu0
    %v8867 = vadd.f32 0.0, %v8866
    %8868 = vmatmul.f32.gmra.mxu0 %v8842
    %v8869 = vpop.f32.mrf.mxu0
    %v8870 = vadd.f32 0.0, %v8869
    %8871 = vmatmul.f32.gmra.mxu0 %v8845
    %v8872 = vpop.f32.mrf.mxu0
    %v8873 = vadd.f32 0.0, %v8872
    %8874 = vdwg.mxu0
    %v8875 = vadd.f32 %v8774, %v8867
    %v8876 = vadd.f32 %v8775, %v8870
    %v8877 = vadd.f32 %v8776, %v8873
    %v8878 = vld [vmem:[%s8473 + $0x1] sm:$0x7]
    %v8879 = vld [vmem:[%s8473 + $0x9] sm:$0x7]
    %v8880 = vld [vmem:[%s8473 + $0x11] sm:$0x7]
    %v8881 = vld [vmem:[%s8473 + $0x29] sm:$0x7]
    %v8882 = vld [vmem:[%s8473 + $0x31] sm:$0x7]
    %v8883 = vld [vmem:[%s8473 + $0x39] sm:$0x7]
    %v8890 = vrot.slane %v8878, 1
    %v8891 = vrot.slane %v8878, 2
    %v8892 = vrot.slane %v8879, 1
    %v8893 = vrot.slane %v8879, 2
    %v8894 = vrot.slane %v8880, 1
    %v8895 = vrot.slane %v8880, 2
    %v8896 = vrot.slane %v8881, 1
    %v8897 = vrot.slane %v8881, 2
    %v8898 = vrot.slane %v8882, 1
    %v8899 = vrot.slane %v8882, 2
    %v8900 = vrot.slane %v8883, 1
    %v8901 = vrot.slane %v8883, 2
    %s8902 = scalar_lea.vmem %s5, 512
    %v8903 = vld [vmem:[%s8902] sm:$0xff]
    %v8904 = vld [vmem:[%s8902 + $0x8] sm:$0xff]
    %v8905 = vld [vmem:[%s8902 + $0x10] sm:$0xff]
    %v8906 = vld [vmem:[%s8902 + $0x18] sm:$0xff]
    %v8907 = vld [vmem:[%s8902 + $0x20] sm:$0xff]
    %v8908 = vld [vmem:[%s8902 + $0x28] sm:$0xff]
    %v8909 = vld [vmem:[%s8902 + $0x30] sm:$0xff]
    %v8910 = vld [vmem:[%s8902 + $0x38] sm:$0xff]
    %v8911 = vld [vmem:[%s8902 + $0x40] sm:$0xff]
    %v8912 = vld [vmem:[%s8902 + $0x48] sm:$0xff]
    %v8913 = vld [vmem:[%s8902 + $0x50] sm:$0xff]
    %v8914 = vld [vmem:[%s8902 + $0x58] sm:$0xff]
    %v8915 = vld [vmem:[%s8902 + $0x60] sm:$0xff]
    %v8916 = vld [vmem:[%s8902 + $0x68] sm:$0xff]
    %v8917 = vld [vmem:[%s8902 + $0x70] sm:$0xff]
    %v8918 = vld [vmem:[%s8902 + $0x78] sm:$0xff]
    %8919 = vst [vmem:[#allocation1] ss:$9 sm:$0xff] %v8878
    %s8920 = scalar_lea.vmem [#allocation1], 1
    %8921 = vst [vmem:[%s8920] ss:$9 sm:$0xff] %v8890
    %s8922 = scalar_lea.vmem [#allocation1], 2
    %8923 = vst [vmem:[%s8922] ss:$9 sm:$0xff] %v8891
    %s8924 = scalar_lea.vmem [#allocation1], 3
    %8925 = vst [vmem:[%s8924] ss:$9 sm:$0xff] %v8879
    %s8926 = scalar_lea.vmem [#allocation1], 4
    %8927 = vst [vmem:[%s8926] ss:$9 sm:$0xff] %v8892
    %s8928 = scalar_lea.vmem [#allocation1], 5
    %8929 = vst [vmem:[%s8928] ss:$9 sm:$0xff] %v8893
    %s8930 = scalar_lea.vmem [#allocation1], 6
    %8931 = vst [vmem:[%s8930] ss:$9 sm:$0xff] %v8880
    %s8932 = scalar_lea.vmem [#allocation1], 7
    %8933 = vst [vmem:[%s8932] ss:$9 sm:$0xff] %v8894
    %v8934 = vld [vmem:[#allocation1] sm:$0xff]
    %8935 = vst [vmem:[#allocation1] ss:$9 sm:$0xff] %v8895
    %8936 = vst [vmem:[%s8920] ss:$9 sm:$0xff] %v8881
    %8937 = vst [vmem:[%s8922] ss:$9 sm:$0xff] %v8896
    %8938 = vst [vmem:[%s8924] ss:$9 sm:$0xff] %v8897
    %8939 = vst [vmem:[%s8926] ss:$9 sm:$0xff] %v8882
    %8940 = vst [vmem:[%s8928] ss:$9 sm:$0xff] %v8898
    %8941 = vst [vmem:[%s8930] ss:$9 sm:$0xff] %v8899
    %8942 = vst [vmem:[%s8932] ss:$9 sm:$0xff] %v8883
    %v8943 = vld [vmem:[#allocation1] sm:$0xff]
    %8944 = vst [vmem:[#allocation1] ss:$9 sm:$0xff] %v8900
    %8945 = vst [vmem:[%s8920] ss:$9 sm:$0xff] %v8901
    %v8946 = vld [vmem:[#allocation1] sm:$0xff]
    %8950 = vmatpush.msra.mxu0 %v8918
    %8951 = vmatpush.msra.mxu0 %v8917
    %8952 = vmatpush.msra.mxu0 %v8916
    %8953 = vmatpush.msra.mxu0 %v8915
    %8954 = vmatpush.msra.mxu0 %v8914
    %8955 = vmatpush.msra.mxu0 %v8913
    %8956 = vmatpush.msra.mxu0 %v8912
    %8957 = vmatpush.msra.mxu0 %v8911
    %8958 = vmatpush.msra.mxu0 %v8910
    %8959 = vmatpush.msra.mxu0 %v8909
    %8960 = vmatpush.msra.mxu0 %v8908
    %8961 = vmatpush.msra.mxu0 %v8907
    %8962 = vmatpush.msra.mxu0 %v8906
    %8963 = vmatpush.msra.mxu0 %v8905
    %8964 = vmatpush.msra.mxu0 %v8904
    %8965 = vmatpush.msra.mxu0 %v8903
    %8966 = vmatmul.f32.gmra.mxu0 %v8934
    %v8967 = vpop.f32.mrf.mxu0
    %v8968 = vadd.f32 0.0, %v8967
    %8969 = vmatmul.f32.gmra.mxu0 %v8943
    %v8970 = vpop.f32.mrf.mxu0
    %v8971 = vadd.f32 0.0, %v8970
    %8972 = vmatmul.f32.gmra.mxu0 %v8946
    %v8973 = vpop.f32.mrf.mxu0
    %v8974 = vadd.f32 0.0, %v8973
    %8975 = vdwg.mxu0
    %v8976 = vadd.f32 %v8875, %v8968
    %v8977 = vadd.f32 %v8876, %v8971
    %v8978 = vadd.f32 %v8877, %v8974
    %v8979 = vld [vmem:[%s8473 + $0x2] sm:$0x7]
    %v8980 = vld [vmem:[%s8473 + $0xa] sm:$0x7]
    %v8981 = vld [vmem:[%s8473 + $0x12] sm:$0x7]
    %v8982 = vld [vmem:[%s8473 + $0x2a] sm:$0x7]
    %v8983 = vld [vmem:[%s8473 + $0x32] sm:$0x7]
    %v8984 = vld [vmem:[%s8473 + $0x3a] sm:$0x7]
    %v8991 = vrot.slane %v8979, 1
    %v8992 = vrot.slane %v8979, 2
    %v8993 = vrot.slane %v8980, 1
    %v8994 = vrot.slane %v8980, 2
    %v8995 = vrot.slane %v8981, 1
    %v8996 = vrot.slane %v8981, 2
    %v8997 = vrot.slane %v8982, 1
    %v8998 = vrot.slane %v8982, 2
    %v8999 = vrot.slane %v8983, 1
    %v9000 = vrot.slane %v8983, 2
    %v9001 = vrot.slane %v8984, 1
    %v9002 = vrot.slane %v8984, 2
    %s9003 = scalar_lea.vmem %s5, 640
    %v9004 = vld [vmem:[%s9003] sm:$0xff]
    %v9005 = vld [vmem:[%s9003 + $0x8] sm:$0xff]
    %v9006 = vld [vmem:[%s9003 + $0x10] sm:$0xff]
    %v9007 = vld [vmem:[%s9003 + $0x18] sm:$0xff]
    %v9008 = vld [vmem:[%s9003 + $0x20] sm:$0xff]
    %v9009 = vld [vmem:[%s9003 + $0x28] sm:$0xff]
    %v9010 = vld [vmem:[%s9003 + $0x30] sm:$0xff]
    %v9011 = vld [vmem:[%s9003 + $0x38] sm:$0xff]
    %v9012 = vld [vmem:[%s9003 + $0x40] sm:$0xff]
    %v9013 = vld [vmem:[%s9003 + $0x48] sm:$0xff]
    %v9014 = vld [vmem:[%s9003 + $0x50] sm:$0xff]
    %v9015 = vld [vmem:[%s9003 + $0x58] sm:$0xff]
    %v9016 = vld [vmem:[%s9003 + $0x60] sm:$0xff]
    %v9017 = vld [vmem:[%s9003 + $0x68] sm:$0xff]
    %v9018 = vld [vmem:[%s9003 + $0x70] sm:$0xff]
    %v9019 = vld [vmem:[%s9003 + $0x78] sm:$0xff]
    %9020 = vst [vmem:[#allocation1] ss:$9 sm:$0xff] %v8979
    %s9021 = scalar_lea.vmem [#allocation1], 1
    %9022 = vst [vmem:[%s9021] ss:$9 sm:$0xff] %v8991
    %s9023 = scalar_lea.vmem [#allocation1], 2
    %9024 = vst [vmem:[%s9023] ss:$9 sm:$0xff] %v8992
    %s9025 = scalar_lea.vmem [#allocation1], 3
    %9026 = vst [vmem:[%s9025] ss:$9 sm:$0xff] %v8980
    %s9027 = scalar_lea.vmem [#allocation1], 4
    %9028 = vst [vmem:[%s9027] ss:$9 sm:$0xff] %v8993
    %s9029 = scalar_lea.vmem [#allocation1], 5
    %9030 = vst [vmem:[%s9029] ss:$9 sm:$0xff] %v8994
    %s9031 = scalar_lea.vmem [#allocation1], 6
    %9032 = vst [vmem:[%s9031] ss:$9 sm:$0xff] %v8981
    %s9033 = scalar_lea.vmem [#allocation1], 7
    %9034 = vst [vmem:[%s9033] ss:$9 sm:$0xff] %v8995
    %v9035 = vld [vmem:[#allocation1] sm:$0xff]
    %9036 = vst [vmem:[#allocation1] ss:$9 sm:$0xff] %v8996
    %9037 = vst [vmem:[%s9021] ss:$9 sm:$0xff] %v8982
    %9038 = vst [vmem:[%s9023] ss:$9 sm:$0xff] %v8997
    %9039 = vst [vmem:[%s9025] ss:$9 sm:$0xff] %v8998
    %9040 = vst [vmem:[%s9027] ss:$9 sm:$0xff] %v8983
    %9041 = vst [vmem:[%s9029] ss:$9 sm:$0xff] %v8999
    %9042 = vst [vmem:[%s9031] ss:$9 sm:$0xff] %v9000
    %9043 = vst [vmem:[%s9033] ss:$9 sm:$0xff] %v8984
    %v9044 = vld [vmem:[#allocation1] sm:$0xff]
    %9045 = vst [vmem:[#allocation1] ss:$9 sm:$0xff] %v9001
    %9046 = vst [vmem:[%s9021] ss:$9 sm:$0xff] %v9002
    %v9047 = vld [vmem:[#allocation1] sm:$0xff]
    %9051 = vmatpush.msra.mxu0 %v9019
    %9052 = vmatpush.msra.mxu0 %v9018
    %9053 = vmatpush.msra.mxu0 %v9017
    %9054 = vmatpush.msra.mxu0 %v9016
    %9055 = vmatpush.msra.mxu0 %v9015
    %9056 = vmatpush.msra.mxu0 %v9014
    %9057 = vmatpush.msra.mxu0 %v9013
    %9058 = vmatpush.msra.mxu0 %v9012
    %9059 = vmatpush.msra.mxu0 %v9011
    %9060 = vmatpush.msra.mxu0 %v9010
    %9061 = vmatpush.msra.mxu0 %v9009
    %9062 = vmatpush.msra.mxu0 %v9008
    %9063 = vmatpush.msra.mxu0 %v9007
    %9064 = vmatpush.msra.mxu0 %v9006
    %9065 = vmatpush.msra.mxu0 %v9005
    %9066 = vmatpush.msra.mxu0 %v9004
    %9067 = vmatmul.f32.gmra.mxu0 %v9035
    %v9068 = vpop.f32.mrf.mxu0
    %v9069 = vadd.f32 0.0, %v9068
    %9070 = vmatmul.f32.gmra.mxu0 %v9044
    %v9071 = vpop.f32.mrf.mxu0
    %v9072 = vadd.f32 0.0, %v9071
    %9073 = vmatmul.f32.gmra.mxu0 %v9047
    %v9074 = vpop.f32.mrf.mxu0
    %v9075 = vadd.f32 0.0, %v9074
    %9076 = vdwg.mxu0
    %v9077 = vadd.f32 %v8976, %v9069
    %v9078 = vadd.f32 %v8977, %v9072
    %v9079 = vadd.f32 %v8978, %v9075
    %s9080 = scalar_lea.vmem [#allocation7], 16
    %v9081 = vld [vmem:[%s9080] sm:$0x7]
    %v9082 = vld [vmem:[%s9080 + $0x8] sm:$0x7]
    %v9083 = vld [vmem:[%s9080 + $0x10] sm:$0x7]
    %v9084 = vld [vmem:[%s9080 + $0x28] sm:$0x7]
    %v9085 = vld [vmem:[%s9080 + $0x30] sm:$0x7]
    %v9086 = vld [vmem:[%s9080 + $0x38] sm:$0x7]
    %v9093 = vrot.slane %v9081, 1
    %v9094 = vrot.slane %v9081, 2
    %v9095 = vrot.slane %v9082, 1
    %v9096 = vrot.slane %v9082, 2
    %v9097 = vrot.slane %v9083, 1
    %v9098 = vrot.slane %v9083, 2
    %v9099 = vrot.slane %v9084, 1
    %v9100 = vrot.slane %v9084, 2
    %v9101 = vrot.slane %v9085, 1
    %v9102 = vrot.slane %v9085, 2
    %v9103 = vrot.slane %v9086, 1
    %v9104 = vrot.slane %v9086, 2
    %s9105 = scalar_lea.vmem %s5, 768
    %v9106 = vld [vmem:[%s9105] sm:$0xff]
    %v9107 = vld [vmem:[%s9105 + $0x8] sm:$0xff]
    %v9108 = vld [vmem:[%s9105 + $0x10] sm:$0xff]
    %v9109 = vld [vmem:[%s9105 + $0x18] sm:$0xff]
    %v9110 = vld [vmem:[%s9105 + $0x20] sm:$0xff]
    %v9111 = vld [vmem:[%s9105 + $0x28] sm:$0xff]
    %v9112 = vld [vmem:[%s9105 + $0x30] sm:$0xff]
    %v9113 = vld [vmem:[%s9105 + $0x38] sm:$0xff]
    %v9114 = vld [vmem:[%s9105 + $0x40] sm:$0xff]
    %v9115 = vld [vmem:[%s9105 + $0x48] sm:$0xff]
    %v9116 = vld [vmem:[%s9105 + $0x50] sm:$0xff]
    %v9117 = vld [vmem:[%s9105 + $0x58] sm:$0xff]
    %v9118 = vld [vmem:[%s9105 + $0x60] sm:$0xff]
    %v9119 = vld [vmem:[%s9105 + $0x68] sm:$0xff]
    %v9120 = vld [vmem:[%s9105 + $0x70] sm:$0xff]
    %v9121 = vld [vmem:[%s9105 + $0x78] sm:$0xff]
    %9122 = vst [vmem:[#allocation1] ss:$9 sm:$0xff] %v9081
    %s9123 = scalar_lea.vmem [#allocation1], 1
    %9124 = vst [vmem:[%s9123] ss:$9 sm:$0xff] %v9093
    %s9125 = scalar_lea.vmem [#allocation1], 2
    %9126 = vst [vmem:[%s9125] ss:$9 sm:$0xff] %v9094
    %s9127 = scalar_lea.vmem [#allocation1], 3
    %9128 = vst [vmem:[%s9127] ss:$9 sm:$0xff] %v9082
    %s9129 = scalar_lea.vmem [#allocation1], 4
    %9130 = vst [vmem:[%s9129] ss:$9 sm:$0xff] %v9095
    %s9131 = scalar_lea.vmem [#allocation1], 5
    %9132 = vst [vmem:[%s9131] ss:$9 sm:$0xff] %v9096
    %s9133 = scalar_lea.vmem [#allocation1], 6
    %9134 = vst [vmem:[%s9133] ss:$9 sm:$0xff] %v9083
    %s9135 = scalar_lea.vmem [#allocation1], 7
    %9136 = vst [vmem:[%s9135] ss:$9 sm:$0xff] %v9097
    %v9137 = vld [vmem:[#allocation1] sm:$0xff]
    %9138 = vst [vmem:[#allocation1] ss:$9 sm:$0xff] %v9098
    %9139 = vst [vmem:[%s9123] ss:$9 sm:$0xff] %v9084
    %9140 = vst [vmem:[%s9125] ss:$9 sm:$0xff] %v9099
    %9141 = vst [vmem:[%s9127] ss:$9 sm:$0xff] %v9100
    %9142 = vst [vmem:[%s9129] ss:$9 sm:$0xff] %v9085
    %9143 = vst [vmem:[%s9131] ss:$9 sm:$0xff] %v9101
    %9144 = vst [vmem:[%s9133] ss:$9 sm:$0xff] %v9102
    %9145 = vst [vmem:[%s9135] ss:$9 sm:$0xff] %v9086
    %v9146 = vld [vmem:[#allocation1] sm:$0xff]
    %9147 = vst [vmem:[#allocation1] ss:$9 sm:$0xff] %v9103
    %9148 = vst [vmem:[%s9123] ss:$9 sm:$0xff] %v9104
    %v9149 = vld [vmem:[#allocation1] sm:$0xff]
    %9153 = vmatpush.msra.mxu0 %v9121
    %9154 = vmatpush.msra.mxu0 %v9120
    %9155 = vmatpush.msra.mxu0 %v9119
    %9156 = vmatpush.msra.mxu0 %v9118
    %9157 = vmatpush.msra.mxu0 %v9117
    %9158 = vmatpush.msra.mxu0 %v9116
    %9159 = vmatpush.msra.mxu0 %v9115
    %9160 = vmatpush.msra.mxu0 %v9114
    %9161 = vmatpush.msra.mxu0 %v9113
    %9162 = vmatpush.msra.mxu0 %v9112
    %9163 = vmatpush.msra.mxu0 %v9111
    %9164 = vmatpush.msra.mxu0 %v9110
    %9165 = vmatpush.msra.mxu0 %v9109
    %9166 = vmatpush.msra.mxu0 %v9108
    %9167 = vmatpush.msra.mxu0 %v9107
    %9168 = vmatpush.msra.mxu0 %v9106
    %9169 = vmatmul.f32.gmra.mxu0 %v9137
    %v9170 = vpop.f32.mrf.mxu0
    %v9171 = vadd.f32 0.0, %v9170
    %9172 = vmatmul.f32.gmra.mxu0 %v9146
    %v9173 = vpop.f32.mrf.mxu0
    %v9174 = vadd.f32 0.0, %v9173
    %9175 = vmatmul.f32.gmra.mxu0 %v9149
    %v9176 = vpop.f32.mrf.mxu0
    %v9177 = vadd.f32 0.0, %v9176
    %9178 = vdwg.mxu0
    %v9179 = vadd.f32 %v9077, %v9171
    %v9180 = vadd.f32 %v9078, %v9174
    %v9181 = vadd.f32 %v9079, %v9177
    %v9182 = vld [vmem:[%s9080 + $0x1] sm:$0x7]
    %v9183 = vld [vmem:[%s9080 + $0x9] sm:$0x7]
    %v9184 = vld [vmem:[%s9080 + $0x11] sm:$0x7]
    %v9185 = vld [vmem:[%s9080 + $0x29] sm:$0x7]
    %v9186 = vld [vmem:[%s9080 + $0x31] sm:$0x7]
    %v9187 = vld [vmem:[%s9080 + $0x39] sm:$0x7]
    %v9194 = vrot.slane %v9182, 1
    %v9195 = vrot.slane %v9182, 2
    %v9196 = vrot.slane %v9183, 1
    %v9197 = vrot.slane %v9183, 2
    %v9198 = vrot.slane %v9184, 1
    %v9199 = vrot.slane %v9184, 2
    %v9200 = vrot.slane %v9185, 1
    %v9201 = vrot.slane %v9185, 2
    %v9202 = vrot.slane %v9186, 1
    %v9203 = vrot.slane %v9186, 2
    %v9204 = vrot.slane %v9187, 1
    %v9205 = vrot.slane %v9187, 2
    %s9206 = scalar_lea.vmem %s5, 896
    %v9207 = vld [vmem:[%s9206] sm:$0xff]
    %v9208 = vld [vmem:[%s9206 + $0x8] sm:$0xff]
    %v9209 = vld [vmem:[%s9206 + $0x10] sm:$0xff]
    %v9210 = vld [vmem:[%s9206 + $0x18] sm:$0xff]
    %v9211 = vld [vmem:[%s9206 + $0x20] sm:$0xff]
    %v9212 = vld [vmem:[%s9206 + $0x28] sm:$0xff]
    %v9213 = vld [vmem:[%s9206 + $0x30] sm:$0xff]
    %v9214 = vld [vmem:[%s9206 + $0x38] sm:$0xff]
    %v9215 = vld [vmem:[%s9206 + $0x40] sm:$0xff]
    %v9216 = vld [vmem:[%s9206 + $0x48] sm:$0xff]
    %v9217 = vld [vmem:[%s9206 + $0x50] sm:$0xff]
    %v9218 = vld [vmem:[%s9206 + $0x58] sm:$0xff]
    %v9219 = vld [vmem:[%s9206 + $0x60] sm:$0xff]
    %v9220 = vld [vmem:[%s9206 + $0x68] sm:$0xff]
    %v9221 = vld [vmem:[%s9206 + $0x70] sm:$0xff]
    %v9222 = vld [vmem:[%s9206 + $0x78] sm:$0xff]
    %9223 = vst [vmem:[#allocation1] ss:$9 sm:$0xff] %v9182
    %s9224 = scalar_lea.vmem [#allocation1], 1
    %9225 = vst [vmem:[%s9224] ss:$9 sm:$0xff] %v9194
    %s9226 = scalar_lea.vmem [#allocation1], 2
    %9227 = vst [vmem:[%s9226] ss:$9 sm:$0xff] %v9195
    %s9228 = scalar_lea.vmem [#allocation1], 3
    %9229 = vst [vmem:[%s9228] ss:$9 sm:$0xff] %v9183
    %s9230 = scalar_lea.vmem [#allocation1], 4
    %9231 = vst [vmem:[%s9230] ss:$9 sm:$0xff] %v9196
    %s9232 = scalar_lea.vmem [#allocation1], 5
    %9233 = vst [vmem:[%s9232] ss:$9 sm:$0xff] %v9197
    %s9234 = scalar_lea.vmem [#allocation1], 6
    %9235 = vst [vmem:[%s9234] ss:$9 sm:$0xff] %v9184
    %s9236 = scalar_lea.vmem [#allocation1], 7
    %9237 = vst [vmem:[%s9236] ss:$9 sm:$0xff] %v9198
    %v9238 = vld [vmem:[#allocation1] sm:$0xff]
    %9239 = vst [vmem:[#allocation1] ss:$9 sm:$0xff] %v9199
    %9240 = vst [vmem:[%s9224] ss:$9 sm:$0xff] %v9185
    %9241 = vst [vmem:[%s9226] ss:$9 sm:$0xff] %v9200
    %9242 = vst [vmem:[%s9228] ss:$9 sm:$0xff] %v9201
    %9243 = vst [vmem:[%s9230] ss:$9 sm:$0xff] %v9186
    %9244 = vst [vmem:[%s9232] ss:$9 sm:$0xff] %v9202
    %9245 = vst [vmem:[%s9234] ss:$9 sm:$0xff] %v9203
    %9246 = vst [vmem:[%s9236] ss:$9 sm:$0xff] %v9187
    %v9247 = vld [vmem:[#allocation1] sm:$0xff]
    %9248 = vst [vmem:[#allocation1] ss:$9 sm:$0xff] %v9204
    %9249 = vst [vmem:[%s9224] ss:$9 sm:$0xff] %v9205
    %v9250 = vld [vmem:[#allocation1] sm:$0xff]
    %9254 = vmatpush.msra.mxu0 %v9222
    %9255 = vmatpush.msra.mxu0 %v9221
    %9256 = vmatpush.msra.mxu0 %v9220
    %9257 = vmatpush.msra.mxu0 %v9219
    %9258 = vmatpush.msra.mxu0 %v9218
    %9259 = vmatpush.msra.mxu0 %v9217
    %9260 = vmatpush.msra.mxu0 %v9216
    %9261 = vmatpush.msra.mxu0 %v9215
    %9262 = vmatpush.msra.mxu0 %v9214
    %9263 = vmatpush.msra.mxu0 %v9213
    %9264 = vmatpush.msra.mxu0 %v9212
    %9265 = vmatpush.msra.mxu0 %v9211
    %9266 = vmatpush.msra.mxu0 %v9210
    %9267 = vmatpush.msra.mxu0 %v9209
    %9268 = vmatpush.msra.mxu0 %v9208
    %9269 = vmatpush.msra.mxu0 %v9207
    %9270 = vmatmul.f32.gmra.mxu0 %v9238
    %v9271 = vpop.f32.mrf.mxu0
    %v9272 = vadd.f32 0.0, %v9271
    %9273 = vmatmul.f32.gmra.mxu0 %v9247
    %v9274 = vpop.f32.mrf.mxu0
    %v9275 = vadd.f32 0.0, %v9274
    %9276 = vmatmul.f32.gmra.mxu0 %v9250
    %v9277 = vpop.f32.mrf.mxu0
    %v9278 = vadd.f32 0.0, %v9277
    %9279 = vdwg.mxu0
    %v9280 = vadd.f32 %v9179, %v9272
    %v9281 = vadd.f32 %v9180, %v9275
    %v9282 = vadd.f32 %v9181, %v9278
    %v9283 = vld [vmem:[%s9080 + $0x2] sm:$0x7]
    %v9284 = vld [vmem:[%s9080 + $0xa] sm:$0x7]
    %v9285 = vld [vmem:[%s9080 + $0x12] sm:$0x7]
    %v9286 = vld [vmem:[%s9080 + $0x2a] sm:$0x7]
    %v9287 = vld [vmem:[%s9080 + $0x32] sm:$0x7]
    %v9288 = vld [vmem:[%s9080 + $0x3a] sm:$0x7]
    %v9295 = vrot.slane %v9283, 1
    %v9296 = vrot.slane %v9283, 2
    %v9297 = vrot.slane %v9284, 1
    %v9298 = vrot.slane %v9284, 2
    %v9299 = vrot.slane %v9285, 1
    %v9300 = vrot.slane %v9285, 2
    %v9301 = vrot.slane %v9286, 1
    %v9302 = vrot.slane %v9286, 2
    %v9303 = vrot.slane %v9287, 1
    %v9304 = vrot.slane %v9287, 2
    %v9305 = vrot.slane %v9288, 1
    %v9306 = vrot.slane %v9288, 2
    %s9307 = scalar_lea.vmem %s5, 1024
    %v9308 = vld [vmem:[%s9307] sm:$0xff]
    %v9309 = vld [vmem:[%s9307 + $0x8] sm:$0xff]
    %v9310 = vld [vmem:[%s9307 + $0x10] sm:$0xff]
    %v9311 = vld [vmem:[%s9307 + $0x18] sm:$0xff]
    %v9312 = vld [vmem:[%s9307 + $0x20] sm:$0xff]
    %v9313 = vld [vmem:[%s9307 + $0x28] sm:$0xff]
    %v9314 = vld [vmem:[%s9307 + $0x30] sm:$0xff]
    %v9315 = vld [vmem:[%s9307 + $0x38] sm:$0xff]
    %v9316 = vld [vmem:[%s9307 + $0x40] sm:$0xff]
    %v9317 = vld [vmem:[%s9307 + $0x48] sm:$0xff]
    %v9318 = vld [vmem:[%s9307 + $0x50] sm:$0xff]
    %v9319 = vld [vmem:[%s9307 + $0x58] sm:$0xff]
    %v9320 = vld [vmem:[%s9307 + $0x60] sm:$0xff]
    %v9321 = vld [vmem:[%s9307 + $0x68] sm:$0xff]
    %v9322 = vld [vmem:[%s9307 + $0x70] sm:$0xff]
    %v9323 = vld [vmem:[%s9307 + $0x78] sm:$0xff]
    %9324 = vst [vmem:[#allocation1] ss:$9 sm:$0xff] %v9283
    %s9325 = scalar_lea.vmem [#allocation1], 1
    %9326 = vst [vmem:[%s9325] ss:$9 sm:$0xff] %v9295
    %s9327 = scalar_lea.vmem [#allocation1], 2
    %9328 = vst [vmem:[%s9327] ss:$9 sm:$0xff] %v9296
    %s9329 = scalar_lea.vmem [#allocation1], 3
    %9330 = vst [vmem:[%s9329] ss:$9 sm:$0xff] %v9284
    %s9331 = scalar_lea.vmem [#allocation1], 4
    %9332 = vst [vmem:[%s9331] ss:$9 sm:$0xff] %v9297
    %s9333 = scalar_lea.vmem [#allocation1], 5
    %9334 = vst [vmem:[%s9333] ss:$9 sm:$0xff] %v9298
    %s9335 = scalar_lea.vmem [#allocation1], 6
    %9336 = vst [vmem:[%s9335] ss:$9 sm:$0xff] %v9285
    %s9337 = scalar_lea.vmem [#allocation1], 7
    %9338 = vst [vmem:[%s9337] ss:$9 sm:$0xff] %v9299
    %v9339 = vld [vmem:[#allocation1] sm:$0xff]
    %9340 = vst [vmem:[#allocation1] ss:$9 sm:$0xff] %v9300
    %9341 = vst [vmem:[%s9325] ss:$9 sm:$0xff] %v9286
    %9342 = vst [vmem:[%s9327] ss:$9 sm:$0xff] %v9301
    %9343 = vst [vmem:[%s9329] ss:$9 sm:$0xff] %v9302
    %9344 = vst [vmem:[%s9331] ss:$9 sm:$0xff] %v9287
    %9345 = vst [vmem:[%s9333] ss:$9 sm:$0xff] %v9303
    %9346 = vst [vmem:[%s9335] ss:$9 sm:$0xff] %v9304
    %9347 = vst [vmem:[%s9337] ss:$9 sm:$0xff] %v9288
    %v9348 = vld [vmem:[#allocation1] sm:$0xff]
    %9349 = vst [vmem:[#allocation1] ss:$9 sm:$0xff] %v9305
    %9350 = vst [vmem:[%s9325] ss:$9 sm:$0xff] %v9306
    %v9351 = vld [vmem:[#allocation1] sm:$0xff]
    %9355 = vmatpush.msra.mxu0 %v9323
    %9356 = vmatpush.msra.mxu0 %v9322
    %9357 = vmatpush.msra.mxu0 %v9321
    %9358 = vmatpush.msra.mxu0 %v9320
    %9359 = vmatpush.msra.mxu0 %v9319
    %9360 = vmatpush.msra.mxu0 %v9318
    %9361 = vmatpush.msra.mxu0 %v9317
    %9362 = vmatpush.msra.mxu0 %v9316
    %9363 = vmatpush.msra.mxu0 %v9315
    %9364 = vmatpush.msra.mxu0 %v9314
    %9365 = vmatpush.msra.mxu0 %v9313
    %9366 = vmatpush.msra.mxu0 %v9312
    %9367 = vmatpush.msra.mxu0 %v9311
    %9368 = vmatpush.msra.mxu0 %v9310
    %9369 = vmatpush.msra.mxu0 %v9309
    %9370 = vmatpush.msra.mxu0 %v9308
    %9371 = vmatmul.f32.gmra.mxu0 %v9339
    %v9372 = vpop.f32.mrf.mxu0
    %v9373 = vadd.f32 0.0, %v9372
    %9374 = vmatmul.f32.gmra.mxu0 %v9348
    %v9375 = vpop.f32.mrf.mxu0
    %v9376 = vadd.f32 0.0, %v9375
    %9377 = vmatmul.f32.gmra.mxu0 %v9351
    %v9378 = vpop.f32.mrf.mxu0
    %v9379 = vadd.f32 0.0, %v9378
    %9380 = vdwg.mxu0
    %v9381 = vadd.f32 %v9280, %v9373
    %v9382 = vadd.f32 %v9281, %v9376
    %v9383 = vadd.f32 %v9282, %v9379
    %v9384 = vperm.slane %v8480, 0
    %v9385 = vadd.f32 %v9381, %v9384
    %v9386 = vadd.f32 %v9382, %v9384
    %v9387 = vadd.f32 %v9383, %v9384
    %v9388 = vmax.f32 %v9385, 0.0
    %v9389 = vmax.f32 %v9386, 0.0
    %v9390 = vmax.f32 %v9387, 0.0
    %v9394 = vrot.slane %v9388, 1
    %v9395 = vrot.slane %v9388, 2
    %v9396 = vrot.slane %v9388, 3
    %v9397 = vrot.slane %v9388, 4
    %v9398 = vrot.slane %v9388, 5
    %v9399 = vrot.slane %v9388, 6
    %v9400 = vrot.slane %v9388, 7
    %v9401 = vrot.slane %v9389, 1
    %v9402 = vrot.slane %v9389, 2
    %v9403 = vrot.slane %v9389, 3
    %v9404 = vrot.slane %v9389, 4
    %v9405 = vrot.slane %v9389, 5
    %v9406 = vrot.slane %v9389, 6
    %v9407 = vrot.slane %v9389, 7
    %v9408 = vrot.slane %v9390, 1
    %9409 = vst [vmem:[#allocation1] ss:$9 sm:$0xff] %v9388
    %s9410 = scalar_lea.vmem [#allocation1], 1
    %9411 = vst [vmem:[%s9410] ss:$9 sm:$0xff] %v9394
    %s9412 = scalar_lea.vmem [#allocation1], 2
    %9413 = vst [vmem:[%s9412] ss:$9 sm:$0xff] %v9395
    %s9414 = scalar_lea.vmem [#allocation1], 3
    %9415 = vst [vmem:[%s9414] ss:$9 sm:$0xff] %v9396
    %s9416 = scalar_lea.vmem [#allocation1], 4
    %9417 = vst [vmem:[%s9416] ss:$9 sm:$0xff] %v9397
    %s9418 = scalar_lea.vmem [#allocation1], 5
    %9419 = vst [vmem:[%s9418] ss:$9 sm:$0xff] %v9398
    %s9420 = scalar_lea.vmem [#allocation1], 6
    %9421 = vst [vmem:[%s9420] ss:$9 sm:$0xff] %v9399
    %s9422 = scalar_lea.vmem [#allocation1], 7
    %9423 = vst [vmem:[%s9422] ss:$9 sm:$0xff] %v9400
    %v9424 = vld [vmem:[#allocation1] sm:$0xff]
    %9425 = vst [vmem:[#allocation1] ss:$9 sm:$0xff] %v9389
    %v9426 = vld [vmem:[#allocation1] sm:$0xff]
    %9427 = vst [vmem:[#allocation1] ss:$9 sm:$0xff] %v9401
    %9428 = vst [vmem:[%s9410] ss:$9 sm:$0xff] %v9402
    %9429 = vst [vmem:[%s9412] ss:$9 sm:$0xff] %v9403
    %9430 = vst [vmem:[%s9414] ss:$9 sm:$0xff] %v9404
    %9431 = vst [vmem:[%s9416] ss:$9 sm:$0xff] %v9405
    %9432 = vst [vmem:[%s9418] ss:$9 sm:$0xff] %v9406
    %9433 = vst [vmem:[%s9420] ss:$9 sm:$0xff] %v9407
    %9434 = vst [vmem:[%s9422] ss:$9 sm:$0xff] %v9390
    %v9435 = vld [vmem:[#allocation1] sm:$0xff]
    %9436 = vst [vmem:[#allocation1] ss:$9 sm:$0xff] %v9408
    %v9437 = vld [vmem:[#allocation1] sm:$0xff]
    %vm9442 = vcmask 1040384
    %v9443 = vsel %vm9442, %v9426, -inf
    %v9444 = vmax.f32 %v9424, %v9443
    %v9445 = vrot.slane %v9444, 4
    %v9446 = vmax.f32 %v9444, %v9445
    %v9447 = vrot.slane %v9446, 2
    %v9448 = vmax.f32 %v9446, %v9447
    %v9449 = vrot.slane %v9448, 1
    %v9450 = vmax.f32 %v9448, %v9449
    %v9451 = vsel %vm9442, %v9437, -inf
    %v9452 = vmax.f32 %v9435, %v9451
    %v9453 = vrot.slane %v9452, 4
    %v9454 = vmax.f32 %v9452, %v9453
    %v9455 = vrot.slane %v9454, 2
    %v9456 = vmax.f32 %v9454, %v9455
    %v9457 = vrot.slane %v9456, 1
    %v9458 = vmax.f32 %v9456, %v9457
    %v9459 = vld [vmem:[%s6] sm:$0xff]
    %v9460 = vld [vmem:[%s6 + $0x8] sm:$0xff]
    %v9461 = vld [vmem:[%s6 + $0x10] sm:$0xff]
    %v9462 = vld [vmem:[%s6 + $0x18] sm:$0xff]
    %v9463 = vld [vmem:[%s6 + $0x20] sm:$0xff]
    %v9464 = vld [vmem:[%s6 + $0x28] sm:$0xff]
    %v9465 = vld [vmem:[%s6 + $0x30] sm:$0xff]
    %v9466 = vld [vmem:[%s6 + $0x38] sm:$0xff]
    %v9467 = vld [vmem:[%s6 + $0x40] sm:$0xff]
    %v9468 = vld [vmem:[%s6 + $0x48] sm:$0xff]
    %v9469 = vld [vmem:[%s6 + $0x50] sm:$0xff]
    %v9470 = vld [vmem:[%s6 + $0x58] sm:$0xff]
    %v9471 = vld [vmem:[%s6 + $0x60] sm:$0xff]
    %v9472 = vld [vmem:[%s6 + $0x68] sm:$0xff]
    %v9473 = vld [vmem:[%s6 + $0x70] sm:$0xff]
    %v9474 = vld [vmem:[%s6 + $0x78] sm:$0xff]
    %v9475 = vld [vmem:[%s9 + $0x5] sm:$0x1]
    %v9476 = vperm.slane %v9475, 0
    %vm9479 = vcmask 1041409
    %v9480 = vsel %vm9479, %v9458, %v9450
    %9482 = vmatpush.msra.mxu0 %v9474
    %9483 = vmatpush.msra.mxu0 %v9473
    %9484 = vmatpush.msra.mxu0 %v9472
    %9485 = vmatpush.msra.mxu0 %v9471
    %9486 = vmatpush.msra.mxu0 %v9470
    %9487 = vmatpush.msra.mxu0 %v9469
    %9488 = vmatpush.msra.mxu0 %v9468
    %9489 = vmatpush.msra.mxu0 %v9467
    %9490 = vmatpush.msra.mxu0 %v9466
    %9491 = vmatpush.msra.mxu0 %v9465
    %9492 = vmatpush.msra.mxu0 %v9464
    %9493 = vmatpush.msra.mxu0 %v9463
    %9494 = vmatpush.msra.mxu0 %v9462
    %9495 = vmatpush.msra.mxu0 %v9461
    %9496 = vmatpush.msra.mxu0 %v9460
    %9497 = vmatpush.msra.mxu0 %v9459
    %9498 = vmatmul.f32.gmra.mxu0 %v9480
    %v9499 = vpop.f32.mrf.mxu0
    %v9500 = vadd.f32 %v9476, %v9499
    %9501 = vdwg.mxu0
    %v9502 = vmax.f32 %v9500, 0.0
    %v9503 = vld [vmem:[%s7] sm:$0xff]
    %v9504 = vld [vmem:[%s7 + $0x8] sm:$0xff]
    %v9505 = vld [vmem:[%s7 + $0x10] sm:$0xff]
    %v9506 = vld [vmem:[%s7 + $0x18] sm:$0xff]
    %v9507 = vld [vmem:[%s7 + $0x20] sm:$0xff]
    %v9508 = vld [vmem:[%s7 + $0x28] sm:$0xff]
    %v9509 = vld [vmem:[%s7 + $0x30] sm:$0xff]
    %v9510 = vld [vmem:[%s7 + $0x38] sm:$0xff]
    %v9511 = vld [vmem:[%s7 + $0x40] sm:$0xff]
    %v9512 = vld [vmem:[%s7 + $0x48] sm:$0xff]
    %v9513 = vld [vmem:[%s7 + $0x50] sm:$0xff]
    %v9514 = vld [vmem:[%s7 + $0x58] sm:$0xff]
    %v9515 = vld [vmem:[%s7 + $0x60] sm:$0xff]
    %v9516 = vld [vmem:[%s7 + $0x68] sm:$0xff]
    %v9517 = vld [vmem:[%s7 + $0x70] sm:$0xff]
    %v9518 = vld [vmem:[%s7 + $0x78] sm:$0xff]
    %v9519 = vld [vmem:[%s9 + $0x6] sm:$0x1]
    %v9520 = vperm.slane %v9519, 0
    %9521 = vmatpush.msra.mxu0 %v9518
    %9522 = vmatpush.msra.mxu0 %v9517
    %9523 = vmatpush.msra.mxu0 %v9516
    %9524 = vmatpush.msra.mxu0 %v9515
    %9525 = vmatpush.msra.mxu0 %v9514
    %9526 = vmatpush.msra.mxu0 %v9513
    %9527 = vmatpush.msra.mxu0 %v9512
    %9528 = vmatpush.msra.mxu0 %v9511
    %9529 = vmatpush.msra.mxu0 %v9510
    %9530 = vmatpush.msra.mxu0 %v9509
    %9531 = vmatpush.msra.mxu0 %v9508
    %9532 = vmatpush.msra.mxu0 %v9507
    %9533 = vmatpush.msra.mxu0 %v9506
    %9534 = vmatpush.msra.mxu0 %v9505
    %9535 = vmatpush.msra.mxu0 %v9504
    %9536 = vmatpush.msra.mxu0 %v9503
    %9537 = vmatmul.f32.gmra.mxu0 %v9502
    %v9538 = vpop.f32.mrf.mxu0
    %v9539 = vadd.f32 %v9520, %v9538
    %9540 = vdwg.mxu0
    %v9541 = vmax.f32 %v9539, 0.0
    %v9542 = vld [vmem:[%s8] sm:$0xff]
    %v9543 = vld [vmem:[%s8 + $0x8] sm:$0xff]
    %v9544 = vld [vmem:[%s8 + $0x10] sm:$0xff]
    %v9545 = vld [vmem:[%s8 + $0x18] sm:$0xff]
    %v9546 = vld [vmem:[%s8 + $0x20] sm:$0xff]
    %v9547 = vld [vmem:[%s8 + $0x28] sm:$0xff]
    %v9548 = vld [vmem:[%s8 + $0x30] sm:$0xff]
    %v9549 = vld [vmem:[%s8 + $0x38] sm:$0xff]
    %v9550 = vld [vmem:[%s8 + $0x40] sm:$0xff]
    %v9551 = vld [vmem:[%s8 + $0x48] sm:$0xff]
    %v9552 = vld [vmem:[%s8 + $0x50] sm:$0xff]
    %v9553 = vld [vmem:[%s8 + $0x58] sm:$0xff]
    %v9554 = vld [vmem:[%s8 + $0x60] sm:$0xff]
    %v9555 = vld [vmem:[%s8 + $0x68] sm:$0xff]
    %v9556 = vld [vmem:[%s8 + $0x70] sm:$0xff]
    %v9557 = vld [vmem:[%s8 + $0x78] sm:$0xff]
    %v9558 = vld [vmem:[%s9 + $0x7] sm:$0x1]
    %v9559 = vperm.slane %v9558, 0
    %9560 = vmatpush.msra.mxu0 %v9557
    %9561 = vmatpush.msra.mxu0 %v9556
    %9562 = vmatpush.msra.mxu0 %v9555
    %9563 = vmatpush.msra.mxu0 %v9554
    %9564 = vmatpush.msra.mxu0 %v9553
    %9565 = vmatpush.msra.mxu0 %v9552
    %9566 = vmatpush.msra.mxu0 %v9551
    %9567 = vmatpush.msra.mxu0 %v9550
    %9568 = vmatpush.msra.mxu0 %v9549
    %9569 = vmatpush.msra.mxu0 %v9548
    %9570 = vmatpush.msra.mxu0 %v9547
    %9571 = vmatpush.msra.mxu0 %v9546
    %9572 = vmatpush.msra.mxu0 %v9545
    %9573 = vmatpush.msra.mxu0 %v9544
    %9574 = vmatpush.msra.mxu0 %v9543
    %9575 = vmatpush.msra.mxu0 %v9542
    %9576 = vmatmul.f32.gmra.mxu0 %v9541
    %v9577 = vpop.f32.mrf.mxu0
    %v9578 = vadd.f32 %v9559, %v9577
    %9579 = vdwg.mxu0
    %9580 = vst [vmem:[#allocation8] sm:$0x3] %v9578
    // Predicated region
    $region42: #{alexnet_forward.1} parent=1 // pred_check
      _
    $region43: #{alexnet_forward.1} parent=1 // pred_check_branch
      %9582 = sbr.rel (0) target = $region45
    $region44: #{alexnet_forward.1} parent=1 // pred_region
      %9584 = vsyncadd [#allocation9], 0
      %s9586 = sshll.u32 [#allocation8], 4
      %s9587 = int_to_ptr.vmem [resolvable:$true] %s9586
      %s9588 = sshll.u32 %s10, 4
      %s9589 = int_to_ptr.hbm [resolvable:$true] %s9588
      %9591 = dma.vmem_to_hbm [thread:$0]  %s9587, 32, %s9589, [#allocation9]
    $region45: #{alexnet_forward.1} parent=1 // pred_fallthru
      _
    // Predicated region
    $region46: #{alexnet_forward.1} parent=1 // pred_check
      _
    $region47: #{alexnet_forward.1} parent=1 // pred_check_branch
      %9593 = sbr.rel (0) target = $region49
    $region48: #{alexnet_forward.1} parent=1 // pred_region
      %9595 = dma.done [#allocation9], 32
    $region49: #{alexnet_forward.1} parent=1 // pred_fallthru
      _
    %9596 = vsyncpa [#allocation9], 1

</llo_original>
